<compile_context>
chip_gen: v5e
topology: v5e:2x2
jax: 0.10.0
libtpu: 0.0.40
codegen_flags: <defaults>
</compile_context>

<pallas_src>
import math
import jax
import jax.numpy as jnp
import numpy as np
from jax import lax
from jax.experimental import pallas as pl
from jax.experimental.pallas import tpu as pltpu

# ----- ModelArgs -----
DIM = 320
N_EXPERTS = 32          # 1 shared + 31 routed
N_SHARED = 1
N_ACTIVATED = 4
EXPERT_SCALE = 0.25
FFN_INTER = 2

N_ROUTED = N_EXPERTS - N_SHARED                       # 31
TOPK = N_ACTIVATED - N_SHARED                         # 3
INTER_DIM = int(int(DIM * FFN_INTER) * EXPERT_SCALE)  # 160

# ----- kernel tiling -----
EB = 16                    # experts per grid step
NB = N_EXPERTS // EB       # 2 expert blocks total
EI = EB * INTER_DIM        # 2560 (lane-dense: 20*128)
NEG = -1e9                 # router logit of the dummy (shared) lane -> affinity ~0


def _detect_ncore():
    """2 TensorCores only on v7x; plain sequential loop elsewhere."""
    try:
        kind = jax.devices()[0].device_kind.lower()
    except Exception:
        return 1
    return 2 if "v7" in kind else 1


NCORE = _detect_ncore()
assert NB % NCORE == 0
NBC = NB // NCORE          # expert blocks per core slice


# -------------------- in-kernel helpers --------------------
def _gelu_tanh(x):
    # tanh-approximate GELU (EUP tanh); |diff vs erf GELU| < ~3e-3, well inside tolerance.
    c = 0.7978845608028654  # sqrt(2/pi)
    return 0.5 * x * (1.0 + jnp.tanh(c * (x + 0.044715 * x * x * x)))


# -------------------- fused MoE kernel --------------------
def moe_kernel(x_ref, xb_ref, wr_ref, br_ref, shift_ref, rep_ref,
               w1_ref, b1_ref, w2_ref, b2_ref, o_ref, gates_ref):
    c = pl.program_id(0)          # core slice ("parallel")
    b = pl.program_id(1)          # expert block within the slice ("arbitrary", accumulated)

    @pl.when(b == 0)
    def _():
        # Router softmax + iterative top-k gating, computed once per core slice.
        # Lane N_EXPERTS-1 is the shared expert: logit NEG (affinity ~0), gate forced to 1.
        x = x_ref[...]                                                  # (T, D) f32
        logits = jnp.dot(x, wr_ref[...],
                         preferred_element_type=jnp.float32) + br_ref[...]
        m = jnp.max(logits, axis=-1, keepdims=True)
        ex = jnp.exp(logits - m)
        affin = ex / jnp.sum(ex, axis=-1, keepdims=True)                # (T, 32)
        eidx = lax.broadcasted_iota(jnp.int32, affin.shape, 1)
        a = affin
        g = jnp.zeros_like(affin)
        for _ in range(TOPK):                                           # iterative top-k scatter
            mv = jnp.max(a, axis=-1, keepdims=True)
            is_max = a >= mv
            first = jnp.min(jnp.where(is_max, eidx, N_EXPERTS), axis=-1, keepdims=True)
            pick = eidx == first
            g = jnp.where(pick, affin, g)
            a = jnp.where(pick, -jnp.inf, a)
        gates_ref[...] = jnp.where(eidx == N_EXPERTS - 1, 1.0, g)       # (T, 32) lane-dense
        # Accumulator init; residual `x` contributed by core slice 0 only.
        o_ref[0] = x * (c == 0).astype(jnp.float32)

    gates = gates_ref[...]                                              # (T, 32) f32

    # Per-block gate handling on the MXU (no per-expert masking loop):
    #   g_blk[:, j] = gates[:, block*EB + j]        via (T,32)@(32,EB)
    #   bias2       = sum_j g_j * b2_j              via (T,EB)@(EB,D)
    #   scale[:, j*I:(j+1)*I] = g_blk[:, j]         via (T,EB)@(EB,EB*I)  (REP is 0/1)
    g_blk = jnp.dot(gates, shift_ref[0], preferred_element_type=jnp.float32)   # (T, EB)
    bias2 = jnp.dot(g_blk, b2_ref[0], preferred_element_type=jnp.float32)      # (T, D)
    scale = jnp.dot(g_blk, rep_ref[...], preferred_element_type=jnp.float32)   # (T, EB*I)

    # First layers of all EB experts fused into one (T,D)@(D,EB*I) bf16 matmul (f32 accum).
    h = jnp.dot(xb_ref[...], w1_ref[0],
                preferred_element_type=jnp.float32) + b1_ref[0]         # (T, EB*I)
    h = _gelu_tanh(h)                                                   # dropout: identity (eval)

    # Gate-pre-scale, then fuse the EB second layers into one (T,EB*I)@(EB*I,D) matmul:
    #   y = sum_j gate_j * (gelu(h_j) @ W2_j)
    hs = (h * scale).astype(jnp.bfloat16)
    y = jnp.dot(hs, w2_ref[0], preferred_element_type=jnp.float32)      # (T, D)
    o_ref[0] = o_ref[0] + y + bias2


# -------------------- one-time parameter packing (outside the jitted forward) --------------------
def pack_params(params):
    """Repack / bf16-cast weights once at parameter-load time.

    Expert order everywhere: [routed 0..30, shared]  (shared last -> gate lane 31 == 1.0).
    """
    D = DIM
    w1_all = (params['w1'].transpose(0, 2, 1)                 # (E, D, I)
              .reshape(NB, EB, D, INTER_DIM)
              .transpose(0, 2, 1, 3)
              .reshape(NB, D, EI)
              .astype(jnp.bfloat16))                          # (NB, D, EB*I)   bf16
    b1_all = params['b1'].reshape(NB, 1, EI)                  # (NB, 1, EB*I)   f32
    w2_all = (params['w2'].transpose(0, 2, 1)                 # (E, I, D)
              .reshape(NB, EI, D)
              .astype(jnp.bfloat16))                          # (NB, EB*I, D)   bf16
    b2_all = params['b2'].reshape(NB, EB, D)                  # (NB, EB, D)     f32

    # Router padded with a dummy lane for the shared expert (logit NEG -> affinity ~0).
    wr_pad = jnp.concatenate([params['wr'].T, jnp.zeros((D, 1), jnp.float32)], axis=1)
    br_pad = jnp.concatenate([params['br'],
                              jnp.full((1,), NEG, jnp.float32)]).reshape(1, N_EXPERTS)

    # SHIFT_b: (N_EXPERTS, EB) 0/1 selector of this block's gate columns.
    shift = np.zeros((NB, N_EXPERTS, EB), np.float32)
    for bb in range(NB):
        for j in range(EB):
            shift[bb, bb * EB + j, j] = 1.0
    # REP: (EB, EB*I) 0/1 replication of each gate over its expert's INTER lanes.
    rep = np.kron(np.eye(EB, dtype=np.float32), np.ones((1, INTER_DIM), np.float32))

    return dict(w1=w1_all, b1=b1_all, w2=w2_all, b2=b2_all,
                wr=wr_pad, br=br_pad,
                shift=jnp.asarray(shift), rep=jnp.asarray(rep))


# -------------------- wrapper --------------------
def moe_forward(x, packed):
    """x: (B, S, DIM) float32 -> shared + routed + x (MoE.forward, eval mode)."""
    B, S, D = x.shape
    T = B * S
    x2d = x.reshape(T, D)
    xb = x2d.astype(jnp.bfloat16)        # cast once; reused by every grid step

    partial = pl.pallas_call(
        moe_kernel,
        out_shape=jax.ShapeDtypeStruct((NCORE, T, D), jnp.float32),
        grid=(NCORE, NBC),
        in_specs=[
            pl.BlockSpec((T, D), lambda c, b: (0, 0)),                              # x f32
            pl.BlockSpec((T, D), lambda c, b: (0, 0)),                              # x bf16
            pl.BlockSpec((D, N_EXPERTS), lambda c, b: (0, 0)),                      # router W
            pl.BlockSpec((1, N_EXPERTS), lambda c, b: (0, 0)),                      # router b
            pl.BlockSpec((1, N_EXPERTS, EB), lambda c, b: (c * NBC + b, 0, 0)),     # SHIFT block
            pl.BlockSpec((EB, EI), lambda c, b: (0, 0)),                            # REP (resident)
            pl.BlockSpec((1, D, EI), lambda c, b: (c * NBC + b, 0, 0)),             # W1 block
            pl.BlockSpec((1, 1, EI), lambda c, b: (c * NBC + b, 0, 0)),             # b1 block
            pl.BlockSpec((1, EI, D), lambda c, b: (c * NBC + b, 0, 0)),             # W2 block
            pl.BlockSpec((1, EB, D), lambda c, b: (c * NBC + b, 0, 0)),             # b2 block
        ],
        out_specs=pl.BlockSpec((1, T, D), lambda c, b: (c, 0, 0)),
        scratch_shapes=[pltpu.VMEM((T, N_EXPERTS), jnp.float32)],   # lane-dense gates
        compiler_params=pltpu.CompilerParams(
            dimension_semantics=("parallel", "arbitrary")),
    )(x2d, xb, packed['wr'], packed['br'], packed['shift'], packed['rep'],
      packed['w1'], packed['b1'], packed['w2'], packed['b2'])

    out2d = partial[0] if NCORE == 1 else partial[0] + partial[1]
    return out2d.reshape(B, S, D)


# -------------------- deterministic parameter init (nn.Linear-style) --------------------
def init_linear(key, fan_in, fan_out):
    kw, kb = jax.random.split(key)
    bound = 1.0 / math.sqrt(fan_in)
    w = jax.random.uniform(kw, (fan_out, fan_in), jnp.float32, -bound, bound)
    b = jax.random.uniform(kb, (fan_out,), jnp.float32, -bound, bound)
    return w, b


def init_params(key):
    k_router, k_shared, k_routed = jax.random.split(key, 3)
    wr, br = init_linear(k_router, DIM, N_ROUTED)
    expert_keys = list(jax.random.split(k_routed, N_ROUTED)) + [k_shared]  # routed..., shared
    w1s, b1s, w2s, b2s = [], [], [], []
    for ek in expert_keys:
        k1, k2 = jax.random.split(ek)
        w1, b1 = init_linear(k1, DIM, INTER_DIM)        # layer1: (I, D)
        w2, b2 = init_linear(k2, INTER_DIM, DIM)        # layer2: (D, I)
        w1s.append(w1); b1s.append(b1); w2s.append(w2); b2s.append(b2)
    return dict(wr=wr, br=br,
                w1=jnp.stack(w1s), b1=jnp.stack(b1s),
                w2=jnp.stack(w2s), b2=jnp.stack(b2s))


# -------------------- pure-JAX reference (for sanity check) --------------------
def reference_moe(x, params):
    def lin(v, w, bias):
        return v @ w.T + bias

    def ffn(v, w1, b1, w2, b2):
        return lin(jax.nn.gelu(lin(v, w1, b1), approximate=False), w2, b2)

    shared = ffn(x, params['w1'][N_ROUTED], params['b1'][N_ROUTED],
                 params['w2'][N_ROUTED], params['b2'][N_ROUTED])
    logits = lin(x, params['wr'], params['br'])
    affin = jax.nn.softmax(logits, axis=-1)
    tv, ti = lax.top_k(affin, TOPK)
    gates = jnp.zeros_like(affin)
    for j in range(TOPK):
        gates = gates + jax.nn.one_hot(ti[..., j], N_ROUTED) * tv[..., j:j + 1]
    routed = jnp.zeros_like(x)
    for i in range(N_ROUTED):
        routed = routed + gates[..., i:i + 1] * ffn(
            x, params['w1'][i], params['b1'][i], params['w2'][i], params['b2'][i])
    return shared + routed + x


# -------------------- main --------------------
if __name__ == "__main__":
    key = jax.random.PRNGKey(0)
    kx, kp = jax.random.split(key)
    B, S = 2, 8
    x = jax.random.normal(kx, (B, S, DIM), jnp.float32)
    params = init_params(kp)

    packed = pack_params(params)            # one-time repack, outside the jitted forward

    out = jax.jit(moe_forward)(x, packed)
    out = jax.block_until_ready(out)

    ref = reference_moe(x, params)
    assert out.shape == (B, S, DIM)
    np.testing.assert_allclose(np.asarray(out), np.asarray(ref), rtol=2e-2, atol=2e-2)
    print("KERNEL_OK")
</pallas_src>

<mosaic_0001>
module attributes {stable_mosaic.version = 11 : i64} {
  func.func @moe_kernel(%arg0: i32, %arg1: i32, %arg2: memref<16x320xf32, #tpu.memory_space<vmem>>, %arg3: memref<16x320xbf16, #tpu.memory_space<vmem>>, %arg4: memref<320x32xf32, #tpu.memory_space<vmem>>, %arg5: memref<1x32xf32, #tpu.memory_space<vmem>>, %arg6: memref<1x32x16xf32, #tpu.memory_space<vmem>>, %arg7: memref<16x2560xf32, #tpu.memory_space<vmem>>, %arg8: memref<1x320x2560xbf16, #tpu.memory_space<vmem>>, %arg9: memref<1x1x2560xf32, #tpu.memory_space<vmem>>, %arg10: memref<1x2560x320xbf16, #tpu.memory_space<vmem>>, %arg11: memref<1x16x320xf32, #tpu.memory_space<vmem>>, %arg12: memref<1x16x320xf32, #tpu.memory_space<vmem>>, %arg13: memref<16x32xf32, #tpu.memory_space<vmem>>) attributes {dimension_semantics = [#tpu.dimension_semantics<parallel>, #tpu.dimension_semantics<arbitrary>], iteration_bounds = array<i64: 1, 2>, scalar_prefetch = 0 : i64, scratch_operands = 1 : i64, tpu.core_type = #tpu.core_type<tc>, window_params = [{pipeline_mode = #tpu.pipeline_mode<synchronous>, transform_indices = @transform_0, window_bounds = array<i64: 16, 320>}, {pipeline_mode = #tpu.pipeline_mode<synchronous>, transform_indices = @transform_1, window_bounds = array<i64: 16, 320>}, {pipeline_mode = #tpu.pipeline_mode<synchronous>, transform_indices = @transform_2, window_bounds = array<i64: 320, 32>}, {pipeline_mode = #tpu.pipeline_mode<synchronous>, transform_indices = @transform_3, window_bounds = array<i64: 1, 32>}, {transform_indices = @transform_4, window_bounds = array<i64: 1, 32, 16>}, {pipeline_mode = #tpu.pipeline_mode<synchronous>, transform_indices = @transform_5, window_bounds = array<i64: 16, 2560>}, {transform_indices = @transform_6, window_bounds = array<i64: 1, 320, 2560>}, {transform_indices = @transform_7, window_bounds = array<i64: 1, 1, 2560>}, {transform_indices = @transform_8, window_bounds = array<i64: 1, 2560, 320>}, {transform_indices = @transform_9, window_bounds = array<i64: 1, 16, 320>}, {transform_indices = @transform_10, window_bounds = array<i64: 1, 16, 320>}]} {
    %c0_i32 = arith.constant 0 : i32
    %0 = arith.cmpi eq, %arg1, %c0_i32 : i32
    %1 = arith.extui %0 : i1 to i32
    %c0_i32_0 = arith.constant 0 : i32
    %2 = arith.cmpi ne, %1, %c0_i32_0 : i32
    scf.if %2 {
      %c0_35 = arith.constant 0 : index
      %c0_36 = arith.constant 0 : index
      %45 = vector.load %arg2[%c0_35, %c0_36] : memref<16x320xf32, #tpu.memory_space<vmem>>, vector<16x320xf32>
      %c0_37 = arith.constant 0 : index
      %c0_38 = arith.constant 0 : index
      %46 = vector.load %arg4[%c0_37, %c0_38] : memref<320x32xf32, #tpu.memory_space<vmem>>, vector<320x32xf32>
      %cst_39 = arith.constant dense<0.000000e+00> : vector<16x32xf32>
      %47 = tpu.matmul %45, %46, %cst_39 {dimension_numbers = #tpu.dot_dimension_numbers<[1], [0], [0], [1], [0, 0, 1, 1], [], []>} : vector<16x320xf32>, vector<320x32xf32>, vector<16x32xf32> -> vector<16x32xf32>
      %c0_40 = arith.constant 0 : index
      %c0_41 = arith.constant 0 : index
      %48 = vector.load %arg5[%c0_40, %c0_41] : memref<1x32xf32, #tpu.memory_space<vmem>>, vector<1x32xf32>
      %49 = vector.broadcast %48 : vector<1x32xf32> to vector<16x32xf32>
      %50 = arith.addf %47, %49 : vector<16x32xf32>
      %cst_42 = arith.constant dense<0xFF800000> : vector<16xf32>
      %51 = vector.multi_reduction <maximumf>, %50, %cst_42 [1] : vector<16x32xf32> to vector<16xf32>
      %52 = vector.shape_cast %51 : vector<16xf32> to vector<16x1xf32>
      %53 = vector.broadcast %52 : vector<16x1xf32> to vector<16x32xf32>
      %54 = arith.subf %50, %53 : vector<16x32xf32>
      %55 = math.exp %54 : vector<16x32xf32>
      %cst_43 = arith.constant dense<0.000000e+00> : vector<16xf32>
      %56 = vector.multi_reduction <add>, %55, %cst_43 [1] : vector<16x32xf32> to vector<16xf32>
      %57 = vector.shape_cast %56 : vector<16xf32> to vector<16x1xf32>
      %58 = vector.broadcast %57 : vector<16x1xf32> to vector<16x32xf32>
      %59 = arith.divf %55, %58 : vector<16x32xf32>
      %60 = tpu.iota {dimensions = array<i32: 1>} : vector<16x32xi32>
      %cst_44 = arith.constant 0.000000e+00 : f32
      %61 = vector.broadcast %cst_44 : f32 to vector<16x32xf32>
      %cst_45 = arith.constant dense<0xFF800000> : vector<16xf32>
      %62 = vector.multi_reduction <maximumf>, %59, %cst_45 [1] : vector<16x32xf32> to vector<16xf32>
      %63 = vector.shape_cast %62 : vector<16xf32> to vector<16x1xf32>
      %64 = vector.broadcast %63 : vector<16x1xf32> to vector<16x32xf32>
      %65 = arith.cmpf oge, %59, %64 : vector<16x32xf32>
      %c32_i32 = arith.constant 32 : i32
      %66 = vector.broadcast %c32_i32 : i32 to vector<16x32xi32>
      %67 = arith.select %65, %60, %66 : vector<16x32xi1>, vector<16x32xi32>
      %cst_46 = arith.constant dense<2147483647> : vector<16xi32>
      %68 = vector.multi_reduction <minsi>, %67, %cst_46 [1] : vector<16x32xi32> to vector<16xi32>
      %69 = vector.shape_cast %68 : vector<16xi32> to vector<16x1xi32>
      %70 = vector.broadcast %69 : vector<16x1xi32> to vector<16x32xi32>
      %71 = arith.cmpi eq, %60, %70 : vector<16x32xi32>
      %72 = arith.select %71, %59, %61 : vector<16x32xi1>, vector<16x32xf32>
      %cst_47 = arith.constant 0xFF800000 : f32
      %73 = vector.broadcast %cst_47 : f32 to vector<16x32xf32>
      %74 = arith.select %71, %73, %59 : vector<16x32xi1>, vector<16x32xf32>
      %cst_48 = arith.constant dense<0xFF800000> : vector<16xf32>
      %75 = vector.multi_reduction <maximumf>, %74, %cst_48 [1] : vector<16x32xf32> to vector<16xf32>
      %76 = vector.shape_cast %75 : vector<16xf32> to vector<16x1xf32>
      %77 = vector.broadcast %76 : vector<16x1xf32> to vector<16x32xf32>
      %78 = arith.cmpf oge, %74, %77 : vector<16x32xf32>
      %c32_i32_49 = arith.constant 32 : i32
      %79 = vector.broadcast %c32_i32_49 : i32 to vector<16x32xi32>
      %80 = arith.select %78, %60, %79 : vector<16x32xi1>, vector<16x32xi32>
      %cst_50 = arith.constant dense<2147483647> : vector<16xi32>
      %81 = vector.multi_reduction <minsi>, %80, %cst_50 [1] : vector<16x32xi32> to vector<16xi32>
      %82 = vector.shape_cast %81 : vector<16xi32> to vector<16x1xi32>
      %83 = vector.broadcast %82 : vector<16x1xi32> to vector<16x32xi32>
      %84 = arith.cmpi eq, %60, %83 : vector<16x32xi32>
      %85 = arith.select %84, %59, %72 : vector<16x32xi1>, vector<16x32xf32>
      %cst_51 = arith.constant 0xFF800000 : f32
      %86 = vector.broadcast %cst_51 : f32 to vector<16x32xf32>
      %87 = arith.select %84, %86, %74 : vector<16x32xi1>, vector<16x32xf32>
      %cst_52 = arith.constant dense<0xFF800000> : vector<16xf32>
      %88 = vector.multi_reduction <maximumf>, %87, %cst_52 [1] : vector<16x32xf32> to vector<16xf32>
      %89 = vector.shape_cast %88 : vector<16xf32> to vector<16x1xf32>
      %90 = vector.broadcast %89 : vector<16x1xf32> to vector<16x32xf32>
      %91 = arith.cmpf oge, %87, %90 : vector<16x32xf32>
      %c32_i32_53 = arith.constant 32 : i32
      %92 = vector.broadcast %c32_i32_53 : i32 to vector<16x32xi32>
      %93 = arith.select %91, %60, %92 : vector<16x32xi1>, vector<16x32xi32>
      %cst_54 = arith.constant dense<2147483647> : vector<16xi32>
      %94 = vector.multi_reduction <minsi>, %93, %cst_54 [1] : vector<16x32xi32> to vector<16xi32>
      %95 = vector.shape_cast %94 : vector<16xi32> to vector<16x1xi32>
      %96 = vector.broadcast %95 : vector<16x1xi32> to vector<16x32xi32>
      %97 = arith.cmpi eq, %60, %96 : vector<16x32xi32>
      %98 = arith.select %97, %59, %85 : vector<16x32xi1>, vector<16x32xf32>
      %c31_i32 = arith.constant 31 : i32
      %99 = vector.broadcast %c31_i32 : i32 to vector<16x32xi32>
      %100 = arith.cmpi eq, %60, %99 : vector<16x32xi32>
      %cst_55 = arith.constant 1.000000e+00 : f32
      %101 = vector.broadcast %cst_55 : f32 to vector<16x32xf32>
      %102 = arith.select %100, %101, %98 : vector<16x32xi1>, vector<16x32xf32>
      %c0_56 = arith.constant 0 : index
      %c0_57 = arith.constant 0 : index
      %103 = vector.load %arg13[%c0_56, %c0_57] : memref<16x32xf32, #tpu.memory_space<vmem>>, vector<16x32xf32>
      tpu.vector_store %arg13[%c0_56, %c0_57], %102 {strides = array<i32>} : memref<16x32xf32, #tpu.memory_space<vmem>>, vector<16x32xf32>,
      %c0_i32_58 = arith.constant 0 : i32
      %104 = arith.cmpi eq, %arg0, %c0_i32_58 : i32
      %105 = arith.extui %104 : i1 to i32
      %106 = arith.sitofp %105 : i32 to f32
      %107 = vector.broadcast %106 : f32 to vector<16x320xf32>
      %108 = arith.mulf %45, %107 : vector<16x320xf32>
      %c0_59 = arith.constant 0 : index
      %c0_60 = arith.constant 0 : index
      %c0_61 = arith.constant 0 : index
      %109 = vector.load %arg12[%c0_59, %c0_60, %c0_61] : memref<1x16x320xf32, #tpu.memory_space<vmem>>, vector<1x16x320xf32>
      %110 = vector.shape_cast %109 : vector<1x16x320xf32> to vector<16x320xf32>
      %111 = vector.shape_cast %108 : vector<16x320xf32> to vector<1x16x320xf32>
      tpu.vector_store %arg12[%c0_59, %c0_60, %c0_61], %111 {strides = array<i32>} : memref<1x16x320xf32, #tpu.memory_space<vmem>>, vector<1x16x320xf32>,
    } else {
    }
    %c0 = arith.constant 0 : index
    %c0_1 = arith.constant 0 : index
    %3 = vector.load %arg13[%c0, %c0_1] : memref<16x32xf32, #tpu.memory_space<vmem>>, vector<16x32xf32>
    %c0_2 = arith.constant 0 : index
    %c0_3 = arith.constant 0 : index
    %c0_4 = arith.constant 0 : index
    %4 = vector.load %arg6[%c0_2, %c0_3, %c0_4] : memref<1x32x16xf32, #tpu.memory_space<vmem>>, vector<1x32x16xf32>
    %5 = vector.shape_cast %4 : vector<1x32x16xf32> to vector<32x16xf32>
    %cst = arith.constant dense<0.000000e+00> : vector<16x16xf32>
    %6 = tpu.matmul %3, %5, %cst {dimension_numbers = #tpu.dot_dimension_numbers<[1], [0], [0], [1], [0, 0, 1, 1], [], []>} : vector<16x32xf32>, vector<32x16xf32>, vector<16x16xf32> -> vector<16x16xf32>
    %c0_5 = arith.constant 0 : index
    %c0_6 = arith.constant 0 : index
    %c0_7 = arith.constant 0 : index
    %7 = vector.load %arg11[%c0_5, %c0_6, %c0_7] : memref<1x16x320xf32, #tpu.memory_space<vmem>>, vector<1x16x320xf32>
    %8 = vector.shape_cast %7 : vector<1x16x320xf32> to vector<16x320xf32>
    %cst_8 = arith.constant dense<0.000000e+00> : vector<16x320xf32>
    %9 = tpu.matmul %6, %8, %cst_8 {dimension_numbers = #tpu.dot_dimension_numbers<[1], [0], [0], [1], [0, 0, 1, 1], [], []>} : vector<16x16xf32>, vector<16x320xf32>, vector<16x320xf32> -> vector<16x320xf32>
    %c0_9 = arith.constant 0 : index
    %c0_10 = arith.constant 0 : index
    %10 = vector.load %arg7[%c0_9, %c0_10] : memref<16x2560xf32, #tpu.memory_space<vmem>>, vector<16x2560xf32>
    %cst_11 = arith.constant dense<0.000000e+00> : vector<16x2560xf32>
    %11 = tpu.matmul %6, %10, %cst_11 {dimension_numbers = #tpu.dot_dimension_numbers<[1], [0], [0], [1], [0, 0, 1, 1], [], []>} : vector<16x16xf32>, vector<16x2560xf32>, vector<16x2560xf32> -> vector<16x2560xf32>
    %c0_12 = arith.constant 0 : index
    %c0_13 = arith.constant 0 : index
    %12 = vector.load %arg3[%c0_12, %c0_13] : memref<16x320xbf16, #tpu.memory_space<vmem>>, vector<16x320xbf16>
    %c0_14 = arith.constant 0 : index
    %c0_15 = arith.constant 0 : index
    %c0_16 = arith.constant 0 : index
    %13 = vector.load %arg8[%c0_14, %c0_15, %c0_16] : memref<1x320x2560xbf16, #tpu.memory_space<vmem>>, vector<1x320x2560xbf16>
    %14 = vector.shape_cast %13 : vector<1x320x2560xbf16> to vector<320x2560xbf16>
    %cst_17 = arith.constant dense<0.000000e+00> : vector<16x2560xf32>
    %15 = tpu.matmul %12, %14, %cst_17 {dimension_numbers = #tpu.dot_dimension_numbers<[1], [0], [0], [1], [0, 0, 1, 1], [], []>} : vector<16x320xbf16>, vector<320x2560xbf16>, vector<16x2560xf32> -> vector<16x2560xf32>
    %c0_18 = arith.constant 0 : index
    %c0_19 = arith.constant 0 : index
    %c0_20 = arith.constant 0 : index
    %16 = vector.load %arg9[%c0_18, %c0_19, %c0_20] : memref<1x1x2560xf32, #tpu.memory_space<vmem>>, vector<1x1x2560xf32>
    %17 = vector.shape_cast %16 : vector<1x1x2560xf32> to vector<1x2560xf32>
    %18 = vector.broadcast %17 : vector<1x2560xf32> to vector<16x2560xf32>
    %19 = arith.addf %15, %18 : vector<16x2560xf32>
    %cst_21 = arith.constant 5.000000e-01 : f32
    %20 = vector.broadcast %cst_21 : f32 to vector<16x2560xf32>
    %21 = arith.mulf %20, %19 : vector<16x2560xf32>
    %cst_22 = arith.constant 4.471500e-02 : f32
    %22 = vector.broadcast %cst_22 : f32 to vector<16x2560xf32>
    %23 = arith.mulf %22, %19 : vector<16x2560xf32>
    %24 = arith.mulf %23, %19 : vector<16x2560xf32>
    %25 = arith.mulf %24, %19 : vector<16x2560xf32>
    %26 = arith.addf %19, %25 : vector<16x2560xf32>
    %cst_23 = arith.constant 0.797884583 : f32
    %27 = vector.broadcast %cst_23 : f32 to vector<16x2560xf32>
    %28 = arith.mulf %27, %26 : vector<16x2560xf32>
    %29 = math.tanh %28 : vector<16x2560xf32>
    %cst_24 = arith.constant 1.000000e+00 : f32
    %30 = vector.broadcast %cst_24 : f32 to vector<16x2560xf32>
    %31 = arith.addf %30, %29 : vector<16x2560xf32>
    %32 = arith.mulf %21, %31 : vector<16x2560xf32>
    %33 = arith.mulf %32, %11 : vector<16x2560xf32>
    %34 = arith.truncf %33 : vector<16x2560xf32> to vector<16x2560xbf16>
    %c0_25 = arith.constant 0 : index
    %c0_26 = arith.constant 0 : index
    %c0_27 = arith.constant 0 : index
    %35 = vector.load %arg10[%c0_25, %c0_26, %c0_27] : memref<1x2560x320xbf16, #tpu.memory_space<vmem>>, vector<1x2560x320xbf16>
    %36 = vector.shape_cast %35 : vector<1x2560x320xbf16> to vector<2560x320xbf16>
    %cst_28 = arith.constant dense<0.000000e+00> : vector<16x320xf32>
    %37 = tpu.matmul %34, %36, %cst_28 {dimension_numbers = #tpu.dot_dimension_numbers<[1], [0], [0], [1], [0, 0, 1, 1], [], []>} : vector<16x2560xbf16>, vector<2560x320xbf16>, vector<16x320xf32> -> vector<16x320xf32>
    %c0_29 = arith.constant 0 : index
    %c0_30 = arith.constant 0 : index
    %c0_31 = arith.constant 0 : index
    %38 = vector.load %arg12[%c0_29, %c0_30, %c0_31] : memref<1x16x320xf32, #tpu.memory_space<vmem>>, vector<1x16x320xf32>
    %39 = vector.shape_cast %38 : vector<1x16x320xf32> to vector<16x320xf32>
    %40 = arith.addf %39, %37 : vector<16x320xf32>
    %41 = arith.addf %40, %9 : vector<16x320xf32>
    %c0_32 = arith.constant 0 : index
    %c0_33 = arith.constant 0 : index
    %c0_34 = arith.constant 0 : index
    %42 = vector.load %arg12[%c0_32, %c0_33, %c0_34] : memref<1x16x320xf32, #tpu.memory_space<vmem>>, vector<1x16x320xf32>
    %43 = vector.shape_cast %42 : vector<1x16x320xf32> to vector<16x320xf32>
    %44 = vector.shape_cast %41 : vector<16x320xf32> to vector<1x16x320xf32>
    tpu.vector_store %arg12[%c0_32, %c0_33, %c0_34], %44 {strides = array<i32>} : memref<1x16x320xf32, #tpu.memory_space<vmem>>, vector<1x16x320xf32>,
    return
  }
  func.func @transform_0(%arg0: i32, %arg1: i32) -> (i32, i32) {
    %c0_i32 = arith.constant 0 : i32
    %c0_i32_0 = arith.constant 0 : i32
    %c0_i32_1 = arith.constant 0 : i32
    return %c0_i32, %c0_i32_0 : i32, i32
  }
  func.func @transform_1(%arg0: i32, %arg1: i32) -> (i32, i32) {
    %c0_i32 = arith.constant 0 : i32
    %c0_i32_0 = arith.constant 0 : i32
    %c0_i32_1 = arith.constant 0 : i32
    return %c0_i32, %c0_i32_0 : i32, i32
  }
  func.func @transform_2(%arg0: i32, %arg1: i32) -> (i32, i32) {
    %c0_i32 = arith.constant 0 : i32
    %c0_i32_0 = arith.constant 0 : i32
    %c0_i32_1 = arith.constant 0 : i32
    return %c0_i32, %c0_i32_0 : i32, i32
  }
  func.func @transform_3(%arg0: i32, %arg1: i32) -> (i32, i32) {
    %c0_i32 = arith.constant 0 : i32
    %c0_i32_0 = arith.constant 0 : i32
    %c0_i32_1 = arith.constant 0 : i32
    return %c0_i32, %c0_i32_0 : i32, i32
  }
  func.func @transform_4(%arg0: i32, %arg1: i32) -> (i32, i32, i32) {
    %c2_i32 = arith.constant 2 : i32
    %0 = arith.muli %arg0, %c2_i32 : i32
    %1 = arith.addi %0, %arg1 : i32
    %c0_i32 = arith.constant 0 : i32
    %c0_i32_0 = arith.constant 0 : i32
    %c0_i32_1 = arith.constant 0 : i32
    return %1, %c0_i32, %c0_i32_0 : i32, i32, i32
  }
  func.func @transform_5(%arg0: i32, %arg1: i32) -> (i32, i32) {
    %c0_i32 = arith.constant 0 : i32
    %c0_i32_0 = arith.constant 0 : i32
    %c0_i32_1 = arith.constant 0 : i32
    return %c0_i32, %c0_i32_0 : i32, i32
  }
  func.func @transform_6(%arg0: i32, %arg1: i32) -> (i32, i32, i32) {
    %c2_i32 = arith.constant 2 : i32
    %0 = arith.muli %arg0, %c2_i32 : i32
    %1 = arith.addi %0, %arg1 : i32
    %c0_i32 = arith.constant 0 : i32
    %c0_i32_0 = arith.constant 0 : i32
    %c0_i32_1 = arith.constant 0 : i32
    return %1, %c0_i32, %c0_i32_0 : i32, i32, i32
  }
  func.func @transform_7(%arg0: i32, %arg1: i32) -> (i32, i32, i32) {
    %c2_i32 = arith.constant 2 : i32
    %0 = arith.muli %arg0, %c2_i32 : i32
    %1 = arith.addi %0, %arg1 : i32
    %c0_i32 = arith.constant 0 : i32
    %c0_i32_0 = arith.constant 0 : i32
    %c0_i32_1 = arith.constant 0 : i32
    return %1, %c0_i32, %c0_i32_0 : i32, i32, i32
  }
  func.func @transform_8(%arg0: i32, %arg1: i32) -> (i32, i32, i32) {
    %c2_i32 = arith.constant 2 : i32
    %0 = arith.muli %arg0, %c2_i32 : i32
    %1 = arith.addi %0, %arg1 : i32
    %c0_i32 = arith.constant 0 : i32
    %c0_i32_0 = arith.constant 0 : i32
    %c0_i32_1 = arith.constant 0 : i32
    return %1, %c0_i32, %c0_i32_0 : i32, i32, i32
  }
  func.func @transform_9(%arg0: i32, %arg1: i32) -> (i32, i32, i32) {
    %c2_i32 = arith.constant 2 : i32
    %0 = arith.muli %arg0, %c2_i32 : i32
    %1 = arith.addi %0, %arg1 : i32
    %c0_i32 = arith.constant 0 : i32
    %c0_i32_0 = arith.constant 0 : i32
    %c0_i32_1 = arith.constant 0 : i32
    return %1, %c0_i32, %c0_i32_0 : i32, i32, i32
  }
  func.func @transform_10(%arg0: i32, %arg1: i32) -> (i32, i32, i32) {
    %c0_i32 = arith.constant 0 : i32
    %c0_i32_0 = arith.constant 0 : i32
    %c0_i32_1 = arith.constant 0 : i32
    return %arg0, %c0_i32, %c0_i32_0 : i32, i32, i32
  }
}

</mosaic_0001>

<llo_original>
// kernel: moe_forward.1
$region0: #{moe_forward.1}
  #allocation0 [shape = 'u32[]', space=smem, size = 0x4, offset = 0x4, fixed_abs, tag = 'smem constant byte address 0x4 - core index']
  #allocation1 [shape = 'u32[72,128]{1,0:T(1,128)}', space=vmem, size = 0x9000, scoped, tag = 'internal scratch']
  #allocation2 [shape = 'f32[16,32]{1,0:T(8,128)}', space=vmem, size = 0x2000, scoped, tag = 'scratch operand']
  %s0 = inlined_call_operand.vmem [shape: f32[16,320], index: 0, kind: input, shape index: {}]
  %s1 = inlined_call_operand.vmem [shape: bf16[16,320], index: 1, kind: input, shape index: {}]
  %s2 = inlined_call_operand.vmem [shape: f32[320,32], index: 2, kind: input, shape index: {}]
  %s3 = inlined_call_operand.vmem [shape: f32[1,32], index: 3, kind: input, shape index: {}]
  %s4 = inlined_call_operand.vmem [shape: f32[2,32,16], index: 4, kind: input, shape index: {}]
  %s5 = inlined_call_operand.vmem [shape: f32[16,2560], index: 5, kind: input, shape index: {}]
  %s6 = inlined_call_operand.vmem [shape: bf16[2,320,2560], index: 6, kind: input, shape index: {}]
  %s7 = inlined_call_operand.vmem [shape: f32[2,1,2560], index: 7, kind: input, shape index: {}]
  %s8 = inlined_call_operand.vmem [shape: bf16[2,2560,320], index: 8, kind: input, shape index: {}]
  %s9 = inlined_call_operand.vmem [shape: f32[2,16,320], index: 9, kind: input, shape index: {}]
  %s10 = inlined_call_operand.hbm [shape: f32[1,16,320], index: 10, kind: output, shape index: {}]
  %s11 = sld [smem:[#allocation0]]
  $region77: #{moe_forward.1} parent=0
    _
  %s13 = ssub.s32 1, %s11
  %s14 = scalar_select 0, %s13, %s11
  $region1: #{moe_forward.1} parent=0
    #allocation3 [shape = 'u8[24576]{0}', space=vmem, size = 0x6000, scoped, tag = 'output window, operand 0, single buffered']
    #allocation4 [shape = 's32[2]{0}', space=sflag, size = 0x8, scoped, tag = 'scoped memory for moe_forward.1']
    %15 = vsyncpa [#allocation4], 0
    loop: start=0, step=1, limit=4
    $region2: #{moe_forward.1} parent=1 // loop_pre_header
      _
    $region3: #{moe_forward.1} parent=1 // loop_header
      %s17 = sphi 0, %s21
      %p18 = scmp.ge.s32.totalorder %s17, 4
      %s24 = sphi 0, %s36
      %s25 = sphi 0, %s32
      %s26 = sphi 0, %s24
      %s27 = sphi 0, %s25
      %s28 = sphi 0, %s26
      %s29 = sphi 0, %s27
      %s37 = sphi 0, %s37
      %s39 = sphi 0, %s37
      %s40 = sphi 0, %s39
      %s54 = sphi 0, %s40
      %s58 = sphi 0, %s58
      %s60 = sphi 0, %s58
      %s61 = sphi 0, %s60
      %s75 = sphi 0, %s61
      %s79 = sphi 0, %s79
      %s81 = sphi 0, %s79
      %s82 = sphi 0, %s81
      %s96 = sphi 0, %s82
      %s100 = sphi 0, %s100
      %s102 = sphi 0, %s100
      %s103 = sphi 0, %s102
      %s117 = sphi 0, %s103
      %s127 = sphi 0, %s129
      %s130 = sphi 0, %s127
      %s131 = sphi 0, %s130
      %s147 = sphi 0, %s131
      %s151 = sphi 0, %s151
      %s153 = sphi 0, %s151
      %s154 = sphi 0, %s153
      %s168 = sphi 0, %s154
      %s178 = sphi 0, %s180
      %s181 = sphi 0, %s178
      %s182 = sphi 0, %s181
      %s198 = sphi 0, %s182
      %s208 = sphi 0, %s210
      %s211 = sphi 0, %s208
      %s212 = sphi 0, %s211
      %s228 = sphi 0, %s212
      %s238 = sphi 0, %s240
      %s241 = sphi 0, %s238
      %s242 = sphi 0, %s241
      %s258 = sphi 0, %s242
      %s268 = sphi 0, %s270
      %s271 = sphi 0, %s268
      %s272 = sphi 0, %s271
      %s288 = sphi 0, %s272
      %s294 = sphi 0, %s296
      %s297 = sphi 0, %s294
      %s298 = sphi 0, %s297
      %s314 = sphi 0, %s298
    $region4: #{moe_forward.1} parent=1 // loop_header_branch
      %20 = sbr.rel (%p18) target = $region8
    $region5: #{moe_forward.1} parent=1 // loop_body
      %s22 = ssub.s32 %s17, 1
      %s23 = ssub.s32 %s17, 2
      %s30 = sadd.s32 1, %s25
      %p31 = scmp.ge.s32.totalorder %s30, 2
      %s32 = scalar_select %p31, 0, %s30
      %s33 = sadd.s32 1, %s24
      %s34 = scalar_select %p31, %s33, %s24
      %p35 = scmp.ge.s32.totalorder %s34, 1
      %s36 = scalar_select %p35, 0, %s34
      %s38 = sadd.s32 %s37, 1
      %p41 = scmp.eq.s32.totalorder %s17, 1
      %p42 = scmp.ne.s32.totalorder %s37, %s39
      %p43 = scmp.eq.s32.totalorder %s17, 0
      %p44 = por %p42, %p43
      %p45 = scmp.ne.s32.totalorder %s37, %s39
      %p46 = scmp.eq.s32.totalorder %s22, 1
      %p47 = por %p45, %p46
      %p48 = scmp.ne.s32.totalorder %s39, %s40
      %p49 = scmp.eq.s32.totalorder %s22, 0
      %p50 = por %p48, %p49
      %p51 = scmp.ne.s32.totalorder %s39, %s40
      %p52 = scmp.eq.s32.totalorder %s23, 1
      %p53 = por %p51, %p52
      %p55 = scmp.ne.s32.totalorder %s40, %s54
      %p56 = scmp.eq.s32.totalorder %s23, 0
      %p57 = por %p55, %p56
      %s59 = sadd.s32 %s58, 1
      %p62 = scmp.eq.s32.totalorder %s17, 1
      %p63 = scmp.ne.s32.totalorder %s58, %s60
      %p64 = scmp.eq.s32.totalorder %s17, 0
      %p65 = por %p63, %p64
      %p66 = scmp.ne.s32.totalorder %s58, %s60
      %p67 = scmp.eq.s32.totalorder %s22, 1
      %p68 = por %p66, %p67
      %p69 = scmp.ne.s32.totalorder %s60, %s61
      %p70 = scmp.eq.s32.totalorder %s22, 0
      %p71 = por %p69, %p70
      %p72 = scmp.ne.s32.totalorder %s60, %s61
      %p73 = scmp.eq.s32.totalorder %s23, 1
      %p74 = por %p72, %p73
      %p76 = scmp.ne.s32.totalorder %s61, %s75
      %p77 = scmp.eq.s32.totalorder %s23, 0
      %p78 = por %p76, %p77
      %s80 = sadd.s32 %s79, 1
      %p83 = scmp.eq.s32.totalorder %s17, 1
      %p84 = scmp.ne.s32.totalorder %s79, %s81
      %p85 = scmp.eq.s32.totalorder %s17, 0
      %p86 = por %p84, %p85
      %p87 = scmp.ne.s32.totalorder %s79, %s81
      %p88 = scmp.eq.s32.totalorder %s22, 1
      %p89 = por %p87, %p88
      %p90 = scmp.ne.s32.totalorder %s81, %s82
      %p91 = scmp.eq.s32.totalorder %s22, 0
      %p92 = por %p90, %p91
      %p93 = scmp.ne.s32.totalorder %s81, %s82
      %p94 = scmp.eq.s32.totalorder %s23, 1
      %p95 = por %p93, %p94
      %p97 = scmp.ne.s32.totalorder %s82, %s96
      %p98 = scmp.eq.s32.totalorder %s23, 0
      %p99 = por %p97, %p98
      %s101 = sadd.s32 %s100, 1
      %p104 = scmp.eq.s32.totalorder %s17, 1
      %p105 = scmp.ne.s32.totalorder %s100, %s102
      %p106 = scmp.eq.s32.totalorder %s17, 0
      %p107 = por %p105, %p106
      %p108 = scmp.ne.s32.totalorder %s100, %s102
      %p109 = scmp.eq.s32.totalorder %s22, 1
      %p110 = por %p108, %p109
      %p111 = scmp.ne.s32.totalorder %s102, %s103
      %p112 = scmp.eq.s32.totalorder %s22, 0
      %p113 = por %p111, %p112
      %p114 = scmp.ne.s32.totalorder %s102, %s103
      %p115 = scmp.eq.s32.totalorder %s23, 1
      %p116 = por %p114, %p115
      %p118 = scmp.ne.s32.totalorder %s103, %s117
      %p119 = scmp.eq.s32.totalorder %s23, 0
      %p120 = por %p118, %p119
      %s121 = smul.u32 %s24, 2
      %s122 = sadd.s32 %s121, %s25
      %s123 = smul.u32 %s36, 2
      %s124 = sadd.s32 %s123, %s32
      %s125 = ssub.s32 %s122, %s124
      %p126 = scmp.eq.s32.totalorder %s125, 0
      %s128 = sadd.s32 %s127, 1
      %s129 = scalar_select %p126, %s127, %s128
      %p132 = pneg %p126
      %p133 = scmp.eq.s32.totalorder %s17, 1
      %p134 = por %p132, %p133
      %p135 = scmp.ne.s32.totalorder %s127, %s130
      %p136 = scmp.eq.s32.totalorder %s17, 0
      %p137 = por %p135, %p136
      %p138 = scmp.ne.s32.totalorder %s127, %s130
      %p139 = scmp.eq.s32.totalorder %s22, 1
      %p140 = por %p138, %p139
      %p141 = scmp.ne.s32.totalorder %s130, %s131
      %p142 = scmp.eq.s32.totalorder %s22, 0
      %p143 = por %p141, %p142
      %p144 = scmp.ne.s32.totalorder %s130, %s131
      %p145 = scmp.eq.s32.totalorder %s23, 1
      %p146 = por %p144, %p145
      %p148 = scmp.ne.s32.totalorder %s131, %s147
      %p149 = scmp.eq.s32.totalorder %s23, 0
      %p150 = por %p148, %p149
      %s152 = sadd.s32 %s151, 1
      %p155 = scmp.eq.s32.totalorder %s17, 1
      %p156 = scmp.ne.s32.totalorder %s151, %s153
      %p157 = scmp.eq.s32.totalorder %s17, 0
      %p158 = por %p156, %p157
      %p159 = scmp.ne.s32.totalorder %s151, %s153
      %p160 = scmp.eq.s32.totalorder %s22, 1
      %p161 = por %p159, %p160
      %p162 = scmp.ne.s32.totalorder %s153, %s154
      %p163 = scmp.eq.s32.totalorder %s22, 0
      %p164 = por %p162, %p163
      %p165 = scmp.ne.s32.totalorder %s153, %s154
      %p166 = scmp.eq.s32.totalorder %s23, 1
      %p167 = por %p165, %p166
      %p169 = scmp.ne.s32.totalorder %s154, %s168
      %p170 = scmp.eq.s32.totalorder %s23, 0
      %p171 = por %p169, %p170
      %s172 = smul.u32 %s24, 2
      %s173 = sadd.s32 %s172, %s25
      %s174 = smul.u32 %s36, 2
      %s175 = sadd.s32 %s174, %s32
      %s176 = ssub.s32 %s173, %s175
      %p177 = scmp.eq.s32.totalorder %s176, 0
      %s179 = sadd.s32 %s178, 1
      %s180 = scalar_select %p177, %s178, %s179
      %p183 = pneg %p177
      %p184 = scmp.eq.s32.totalorder %s17, 1
      %p185 = por %p183, %p184
      %p186 = scmp.ne.s32.totalorder %s178, %s181
      %p187 = scmp.eq.s32.totalorder %s17, 0
      %p188 = por %p186, %p187
      %p189 = scmp.ne.s32.totalorder %s178, %s181
      %p190 = scmp.eq.s32.totalorder %s22, 1
      %p191 = por %p189, %p190
      %p192 = scmp.ne.s32.totalorder %s181, %s182
      %p193 = scmp.eq.s32.totalorder %s22, 0
      %p194 = por %p192, %p193
      %p195 = scmp.ne.s32.totalorder %s181, %s182
      %p196 = scmp.eq.s32.totalorder %s23, 1
      %p197 = por %p195, %p196
      %p199 = scmp.ne.s32.totalorder %s182, %s198
      %p200 = scmp.eq.s32.totalorder %s23, 0
      %p201 = por %p199, %p200
      %s202 = smul.u32 %s24, 2
      %s203 = sadd.s32 %s202, %s25
      %s204 = smul.u32 %s36, 2
      %s205 = sadd.s32 %s204, %s32
      %s206 = ssub.s32 %s203, %s205
      %p207 = scmp.eq.s32.totalorder %s206, 0
      %s209 = sadd.s32 %s208, 1
      %s210 = scalar_select %p207, %s208, %s209
      %p213 = pneg %p207
      %p214 = scmp.eq.s32.totalorder %s17, 1
      %p215 = por %p213, %p214
      %p216 = scmp.ne.s32.totalorder %s208, %s211
      %p217 = scmp.eq.s32.totalorder %s17, 0
      %p218 = por %p216, %p217
      %p219 = scmp.ne.s32.totalorder %s208, %s211
      %p220 = scmp.eq.s32.totalorder %s22, 1
      %p221 = por %p219, %p220
      %p222 = scmp.ne.s32.totalorder %s211, %s212
      %p223 = scmp.eq.s32.totalorder %s22, 0
      %p224 = por %p222, %p223
      %p225 = scmp.ne.s32.totalorder %s211, %s212
      %p226 = scmp.eq.s32.totalorder %s23, 1
      %p227 = por %p225, %p226
      %p229 = scmp.ne.s32.totalorder %s212, %s228
      %p230 = scmp.eq.s32.totalorder %s23, 0
      %p231 = por %p229, %p230
      %s232 = smul.u32 %s24, 2
      %s233 = sadd.s32 %s232, %s25
      %s234 = smul.u32 %s36, 2
      %s235 = sadd.s32 %s234, %s32
      %s236 = ssub.s32 %s233, %s235
      %p237 = scmp.eq.s32.totalorder %s236, 0
      %s239 = sadd.s32 %s238, 1
      %s240 = scalar_select %p237, %s238, %s239
      %p243 = pneg %p237
      %p244 = scmp.eq.s32.totalorder %s17, 1
      %p245 = por %p243, %p244
      %p246 = scmp.ne.s32.totalorder %s238, %s241
      %p247 = scmp.eq.s32.totalorder %s17, 0
      %p248 = por %p246, %p247
      %p249 = scmp.ne.s32.totalorder %s238, %s241
      %p250 = scmp.eq.s32.totalorder %s22, 1
      %p251 = por %p249, %p250
      %p252 = scmp.ne.s32.totalorder %s241, %s242
      %p253 = scmp.eq.s32.totalorder %s22, 0
      %p254 = por %p252, %p253
      %p255 = scmp.ne.s32.totalorder %s241, %s242
      %p256 = scmp.eq.s32.totalorder %s23, 1
      %p257 = por %p255, %p256
      %p259 = scmp.ne.s32.totalorder %s242, %s258
      %p260 = scmp.eq.s32.totalorder %s23, 0
      %p261 = por %p259, %p260
      %s262 = smul.u32 %s24, 2
      %s263 = sadd.s32 %s262, %s25
      %s264 = smul.u32 %s36, 2
      %s265 = sadd.s32 %s264, %s32
      %s266 = ssub.s32 %s263, %s265
      %p267 = scmp.eq.s32.totalorder %s266, 0
      %s269 = sadd.s32 %s268, 1
      %s270 = scalar_select %p267, %s268, %s269
      %p273 = pneg %p267
      %p274 = scmp.eq.s32.totalorder %s17, 1
      %p275 = por %p273, %p274
      %p276 = scmp.ne.s32.totalorder %s268, %s271
      %p277 = scmp.eq.s32.totalorder %s17, 0
      %p278 = por %p276, %p277
      %p279 = scmp.ne.s32.totalorder %s268, %s271
      %p280 = scmp.eq.s32.totalorder %s22, 1
      %p281 = por %p279, %p280
      %p282 = scmp.ne.s32.totalorder %s271, %s272
      %p283 = scmp.eq.s32.totalorder %s22, 0
      %p284 = por %p282, %p283
      %p285 = scmp.ne.s32.totalorder %s271, %s272
      %p286 = scmp.eq.s32.totalorder %s23, 1
      %p287 = por %p285, %p286
      %p289 = scmp.ne.s32.totalorder %s272, %s288
      %p290 = scmp.eq.s32.totalorder %s23, 0
      %p291 = por %p289, %p290
      %s292 = ssub.s32 %s24, %s36
      %p293 = scmp.eq.s32.totalorder %s292, 0
      %s295 = sadd.s32 %s294, 1
      %s296 = scalar_select %p293, %s294, %s295
      %p299 = pneg %p293
      %p300 = scmp.eq.s32.totalorder %s17, 1
      %p301 = por %p299, %p300
      %p302 = scmp.ne.s32.totalorder %s294, %s297
      %p303 = scmp.eq.s32.totalorder %s17, 0
      %p304 = por %p302, %p303
      %p305 = scmp.ne.s32.totalorder %s294, %s297
      %p306 = scmp.eq.s32.totalorder %s22, 1
      %p307 = por %p305, %p306
      %p308 = scmp.ne.s32.totalorder %s297, %s298
      %p309 = scmp.eq.s32.totalorder %s22, 0
      %p310 = por %p308, %p309
      %p311 = scmp.ne.s32.totalorder %s297, %s298
      %p312 = scmp.eq.s32.totalorder %s23, 1
      %p313 = por %p311, %p312
      %p315 = scmp.ne.s32.totalorder %s298, %s314
      %p316 = scmp.eq.s32.totalorder %s23, 0
      %p317 = por %p315, %p316
      %p318 = scmp.le.s32.totalorder 1, %s17
      %p319 = scmp.lt.s32.totalorder %s17, 3
      %p320 = pnand %p318, %p319
      %p321 = pneg %p320
      // Predicated region
      $region9: #{moe_forward.1} parent=5 // pred_check
        _
      $region10: #{moe_forward.1} parent=5 // pred_check_branch
        %323 = sbr.rel (%p320) target = $region12
      $region11: #{moe_forward.1} parent=5 // pred_region
        %s324 = ssub.s32 %s17, 1
        // Predicated region
        $region13: #{moe_forward.1} parent=11 // pred_check
          %p325 = pneg %p50
        $region14: #{moe_forward.1} parent=11 // pred_check_branch
          %327 = sbr.rel (%p325) target = $region16
        $region15: #{moe_forward.1} parent=11 // pred_region
          _
        $region16: #{moe_forward.1} parent=11 // pred_fallthru
          _
        // Predicated region
        $region17: #{moe_forward.1} parent=11 // pred_check
          %p328 = pneg %p71
        $region18: #{moe_forward.1} parent=11 // pred_check_branch
          %330 = sbr.rel (%p328) target = $region20
        $region19: #{moe_forward.1} parent=11 // pred_region
          _
        $region20: #{moe_forward.1} parent=11 // pred_fallthru
          _
        // Predicated region
        $region21: #{moe_forward.1} parent=11 // pred_check
          %p331 = pneg %p92
        $region22: #{moe_forward.1} parent=11 // pred_check_branch
          %333 = sbr.rel (%p331) target = $region24
        $region23: #{moe_forward.1} parent=11 // pred_region
          _
        $region24: #{moe_forward.1} parent=11 // pred_fallthru
          _
        // Predicated region
        $region25: #{moe_forward.1} parent=11 // pred_check
          %p334 = pneg %p113
        $region26: #{moe_forward.1} parent=11 // pred_check_branch
          %336 = sbr.rel (%p334) target = $region28
        $region27: #{moe_forward.1} parent=11 // pred_region
          _
        $region28: #{moe_forward.1} parent=11 // pred_fallthru
          _
        // Predicated region
        $region29: #{moe_forward.1} parent=11 // pred_check
          %p337 = pneg %p164
        $region30: #{moe_forward.1} parent=11 // pred_check_branch
          %339 = sbr.rel (%p337) target = $region32
        $region31: #{moe_forward.1} parent=11 // pred_region
          _
        $region32: #{moe_forward.1} parent=11 // pred_fallthru
          _
      $region12: #{moe_forward.1} parent=5 // pred_fallthru
        _
      %p340 = scmp.lt.s32.totalorder %s17, 2
      // Predicated region
      $region33: #{moe_forward.1} parent=5 // pred_check
        %p341 = pneg %p340
      $region34: #{moe_forward.1} parent=5 // pred_check_branch
        %343 = sbr.rel (%p341) target = $region36
      $region35: #{moe_forward.1} parent=5 // pred_region
        // Predicated region
        $region37: #{moe_forward.1} parent=35 // pred_check
          %p344 = pneg %p137
        $region38: #{moe_forward.1} parent=35 // pred_check_branch
          %346 = sbr.rel (%p344) target = $region40
        $region39: #{moe_forward.1} parent=35 // pred_region
          %s347 = smul.u32 %s24, 2
          %s348 = sadd.s32 %s347, %s25
          %p349 = scmp.lt.s32.totalorder %s348, 1
          %s350 = scalar_select %p349, %s348, 1
          %s351 = smul.addr %s350, 4
          %s352 = smul.addr %s351, 8
          %s353 = scalar_lea.vmem %s4, %s352
          %s354 = smul.u32 %s24, 2
          %s355 = sadd.s32 %s354, %s25
        $region40: #{moe_forward.1} parent=35 // pred_fallthru
          _
        // Predicated region
        $region41: #{moe_forward.1} parent=35 // pred_check
          %p356 = pneg %p188
        $region42: #{moe_forward.1} parent=35 // pred_check_branch
          %358 = sbr.rel (%p356) target = $region44
        $region43: #{moe_forward.1} parent=35 // pred_region
          %s359 = smul.u32 %s24, 2
          %s360 = sadd.s32 %s359, %s25
          %p361 = scmp.lt.s32.totalorder %s360, 1
          %s362 = scalar_select %p361, %s360, 1
          %s363 = smul.addr %s362, 800
          %s364 = smul.addr %s363, 4
          %s365 = scalar_lea.vmem %s6, %s364
          %s366 = smul.u32 %s24, 2
          %s367 = sadd.s32 %s366, %s25
        $region44: #{moe_forward.1} parent=35 // pred_fallthru
          _
        // Predicated region
        $region45: #{moe_forward.1} parent=35 // pred_check
          %p368 = pneg %p218
        $region46: #{moe_forward.1} parent=35 // pred_check_branch
          %370 = sbr.rel (%p368) target = $region48
        $region47: #{moe_forward.1} parent=35 // pred_region
          %s371 = smul.u32 %s24, 2
          %s372 = sadd.s32 %s371, %s25
          %p373 = scmp.lt.s32.totalorder %s372, 1
          %s374 = scalar_select %p373, %s372, 1
          %s375 = smul.addr %s374, 20
          %s376 = scalar_lea.vmem %s7, %s375
          %s377 = smul.u32 %s24, 2
          %s378 = sadd.s32 %s377, %s25
        $region48: #{moe_forward.1} parent=35 // pred_fallthru
          _
        // Predicated region
        $region49: #{moe_forward.1} parent=35 // pred_check
          %p379 = pneg %p248
        $region50: #{moe_forward.1} parent=35 // pred_check_branch
          %381 = sbr.rel (%p379) target = $region52
        $region51: #{moe_forward.1} parent=35 // pred_region
          %s382 = smul.u32 %s24, 2
          %s383 = sadd.s32 %s382, %s25
          %p384 = scmp.lt.s32.totalorder %s383, 1
          %s385 = scalar_select %p384, %s383, 1
          %s386 = smul.addr %s385, 960
          %s387 = smul.addr %s386, 4
          %s388 = scalar_lea.vmem %s8, %s387
          %s389 = smul.u32 %s24, 2
          %s390 = sadd.s32 %s389, %s25
        $region52: #{moe_forward.1} parent=35 // pred_fallthru
          _
        // Predicated region
        $region53: #{moe_forward.1} parent=35 // pred_check
          %p391 = pneg %p278
        $region54: #{moe_forward.1} parent=35 // pred_check_branch
          %393 = sbr.rel (%p391) target = $region56
        $region55: #{moe_forward.1} parent=35 // pred_region
          %s394 = smul.u32 %s24, 2
          %s395 = sadd.s32 %s394, %s25
          %p396 = scmp.lt.s32.totalorder %s395, 1
          %s397 = scalar_select %p396, %s395, 1
          %s398 = smul.addr %s397, 6
          %s399 = smul.addr %s398, 8
          %s400 = scalar_lea.vmem %s9, %s399
          %s401 = smul.u32 %s24, 2
          %s402 = sadd.s32 %s401, %s25
        $region56: #{moe_forward.1} parent=35 // pred_fallthru
          _
      $region36: #{moe_forward.1} parent=5 // pred_fallthru
        _
      %p403 = scmp.le.s32.totalorder 1, %s17
      %p404 = scmp.lt.s32.totalorder %s17, 3
      %p405 = pnand %p403, %p404
      %p406 = pneg %p405
      // Predicated region
      $region57: #{moe_forward.1} parent=5 // pred_check
        _
      $region58: #{moe_forward.1} parent=5 // pred_check_branch
        %408 = sbr.rel (%p405) target = $region60
      $region59: #{moe_forward.1} parent=5 // pred_region
        %s409 = ssub.s32 %s17, 1
        %p410 = pneg %p50
        %p411 = pneg %p47
        %p412 = pneg %p71
        %p413 = pneg %p68
        %p414 = pneg %p92
        %p415 = pneg %p89
        %p416 = pneg %p113
        %p417 = pneg %p110
        %s418 = smul.u32 %s26, 2
        %s419 = sadd.s32 %s418, %s27
        %p420 = scmp.lt.s32.totalorder %s419, 1
        %s421 = scalar_select %p420, %s419, 1
        %s422 = smul.addr %s421, 4
        %s423 = smul.addr %s422, 8
        %s424 = scalar_lea.vmem %s4, %s423
        %p425 = pneg %p143
        %p426 = pneg %p140
        %p427 = pneg %p164
        %p428 = pneg %p161
        %s429 = smul.u32 %s26, 2
        %s430 = sadd.s32 %s429, %s27
        %p431 = scmp.lt.s32.totalorder %s430, 1
        %s432 = scalar_select %p431, %s430, 1
        %s433 = smul.addr %s432, 800
        %s434 = smul.addr %s433, 4
        %s435 = scalar_lea.vmem %s6, %s434
        %p436 = pneg %p194
        %p437 = pneg %p191
        %s438 = smul.u32 %s26, 2
        %s439 = sadd.s32 %s438, %s27
        %p440 = scmp.lt.s32.totalorder %s439, 1
        %s441 = scalar_select %p440, %s439, 1
        %s442 = smul.addr %s441, 20
        %s443 = scalar_lea.vmem %s7, %s442
        %p444 = pneg %p224
        %p445 = pneg %p221
        %s446 = smul.u32 %s26, 2
        %s447 = sadd.s32 %s446, %s27
        %p448 = scmp.lt.s32.totalorder %s447, 1
        %s449 = scalar_select %p448, %s447, 1
        %s450 = smul.addr %s449, 960
        %s451 = smul.addr %s450, 4
        %s452 = scalar_lea.vmem %s8, %s451
        %p453 = pneg %p254
        %p454 = pneg %p251
        %s455 = smul.u32 %s26, 2
        %s456 = sadd.s32 %s455, %s27
        %p457 = scmp.lt.s32.totalorder %s456, 1
        %s458 = scalar_select %p457, %s456, 1
        %s459 = smul.addr %s458, 6
        %s460 = smul.addr %s459, 8
        %s461 = scalar_lea.vmem %s9, %s460
        %p462 = pneg %p284
        %p463 = pneg %p281
        %p464 = pneg %p310
        %p465 = pneg %p307
        %s466 = smul.u32 %s26, 2
        %s467 = sadd.s32 %s466, %s27
        %p468 = scmp.lt.s32.totalorder %s467, 1
        %s469 = scalar_select %p468, %s467, 1
        %s470 = smul.addr %s469, 4
        %s471 = smul.addr %s470, 8
        %s472 = scalar_lea.vmem %s4, %s471
        %s473 = smul.u32 %s26, 2
        %s474 = sadd.s32 %s473, %s27
        %s475 = smul.u32 %s26, 2
        %s476 = sadd.s32 %s475, %s27
        %p477 = scmp.lt.s32.totalorder %s476, 1
        %s478 = scalar_select %p477, %s476, 1
        %s479 = smul.addr %s478, 800
        %s480 = smul.addr %s479, 4
        %s481 = scalar_lea.vmem %s6, %s480
        %s482 = smul.u32 %s26, 2
        %s483 = sadd.s32 %s482, %s27
        %s484 = smul.u32 %s26, 2
        %s485 = sadd.s32 %s484, %s27
        %p486 = scmp.lt.s32.totalorder %s485, 1
        %s487 = scalar_select %p486, %s485, 1
        %s488 = smul.addr %s487, 20
        %s489 = scalar_lea.vmem %s7, %s488
        %s490 = smul.u32 %s26, 2
        %s491 = sadd.s32 %s490, %s27
        %s492 = smul.u32 %s26, 2
        %s493 = sadd.s32 %s492, %s27
        %p494 = scmp.lt.s32.totalorder %s493, 1
        %s495 = scalar_select %p494, %s493, 1
        %s496 = smul.addr %s495, 960
        %s497 = smul.addr %s496, 4
        %s498 = scalar_lea.vmem %s8, %s497
        %s499 = smul.u32 %s26, 2
        %s500 = sadd.s32 %s499, %s27
        %s501 = smul.u32 %s26, 2
        %s502 = sadd.s32 %s501, %s27
        %p503 = scmp.lt.s32.totalorder %s502, 1
        %s504 = scalar_select %p503, %s502, 1
        %s505 = smul.addr %s504, 6
        %s506 = smul.addr %s505, 8
        %s507 = scalar_lea.vmem %s9, %s506
        %s508 = smul.u32 %s26, 2
        %s509 = sadd.s32 %s508, %s27
        %p511 = scmp.eq.s32.totalorder %s27, 0
        // Predicated region
        $region61: #{moe_forward.1} parent=59 // pred_check
          %p512 = pneg %p511
        $region62: #{moe_forward.1} parent=59 // pred_check_branch
          %514 = sbr.rel (%p512) target = $region64
        $region63: #{moe_forward.1} parent=59 // pred_region
          %v515 = vld [vmem:[%s0] sm:$0xff]
          %v516 = vld [vmem:[%s0 + $0x8] sm:$0xff]
          %v517 = vld [vmem:[%s0 + $0x10] sm:$0xff]
          %v518 = vld [vmem:[%s0 + $0x18] sm:$0xff]
          %v519 = vld [vmem:[%s0 + $0x20] sm:$0xff]
          %v520 = vld [vmem:[%s0 + $0x28] sm:$0xff]
          %v521 = vld [vmem:[%s2] sm:$0xff]
          %v522 = vld [vmem:[%s2 + $0x8] sm:$0xff]
          %v523 = vld [vmem:[%s2 + $0x10] sm:$0xff]
          %v524 = vld [vmem:[%s2 + $0x18] sm:$0xff]
          %v525 = vld [vmem:[%s2 + $0x20] sm:$0xff]
          %v526 = vld [vmem:[%s2 + $0x28] sm:$0xff]
          %v527 = vld [vmem:[%s2 + $0x30] sm:$0xff]
          %v528 = vld [vmem:[%s2 + $0x38] sm:$0xff]
          %v529 = vld [vmem:[%s2 + $0x40] sm:$0xff]
          %v530 = vld [vmem:[%s2 + $0x48] sm:$0xff]
          %v531 = vld [vmem:[%s2 + $0x50] sm:$0xff]
          %v532 = vld [vmem:[%s2 + $0x58] sm:$0xff]
          %v533 = vld [vmem:[%s2 + $0x60] sm:$0xff]
          %v534 = vld [vmem:[%s2 + $0x68] sm:$0xff]
          %v535 = vld [vmem:[%s2 + $0x70] sm:$0xff]
          %v536 = vld [vmem:[%s2 + $0x78] sm:$0xff]
          %v537 = vld [vmem:[%s2 + $0x80] sm:$0xff]
          %v538 = vld [vmem:[%s2 + $0x88] sm:$0xff]
          %v539 = vld [vmem:[%s2 + $0x90] sm:$0xff]
          %v540 = vld [vmem:[%s2 + $0x98] sm:$0xff]
          %v541 = vld [vmem:[%s2 + $0xa0] sm:$0xff]
          %v542 = vld [vmem:[%s2 + $0xa8] sm:$0xff]
          %v543 = vld [vmem:[%s2 + $0xb0] sm:$0xff]
          %v544 = vld [vmem:[%s2 + $0xb8] sm:$0xff]
          %v545 = vld [vmem:[%s2 + $0xc0] sm:$0xff]
          %v546 = vld [vmem:[%s2 + $0xc8] sm:$0xff]
          %v547 = vld [vmem:[%s2 + $0xd0] sm:$0xff]
          %v548 = vld [vmem:[%s2 + $0xd8] sm:$0xff]
          %v549 = vld [vmem:[%s2 + $0xe0] sm:$0xff]
          %v550 = vld [vmem:[%s2 + $0xe8] sm:$0xff]
          %v551 = vld [vmem:[%s2 + $0xf0] sm:$0xff]
          %v552 = vld [vmem:[%s2 + $0xf8] sm:$0xff]
          %v553 = vld [vmem:[%s2 + $0x100] sm:$0xff]
          %v554 = vld [vmem:[%s2 + $0x108] sm:$0xff]
          %v555 = vld [vmem:[%s2 + $0x110] sm:$0xff]
          %v556 = vld [vmem:[%s2 + $0x118] sm:$0xff]
          %v557 = vld [vmem:[%s2 + $0x120] sm:$0xff]
          %v558 = vld [vmem:[%s2 + $0x128] sm:$0xff]
          %v559 = vld [vmem:[%s2 + $0x130] sm:$0xff]
          %v560 = vld [vmem:[%s2 + $0x138] sm:$0xff]
          %v561 = vld [vmem:[%s3] sm:$0x1]
          %v563 = vperm.slane %v561, 0
          %vm565 = vcmask 523264
          %v567 = vsel %vm565, %v517, 0
          %v570 = vsel %vm565, %v520, 0
          %572 = vmatpush.msra.mxu0 %v536
          %573 = vmatpush.msra.mxu0 %v535
          %574 = vmatpush.msra.mxu0 %v534
          %575 = vmatpush.msra.mxu0 %v533
          %576 = vmatpush.msra.mxu0 %v532
          %577 = vmatpush.msra.mxu0 %v531
          %578 = vmatpush.msra.mxu0 %v530
          %579 = vmatpush.msra.mxu0 %v529
          %580 = vmatpush.msra.mxu0 %v528
          %581 = vmatpush.msra.mxu0 %v527
          %582 = vmatpush.msra.mxu0 %v526
          %583 = vmatpush.msra.mxu0 %v525
          %584 = vmatpush.msra.mxu0 %v524
          %585 = vmatpush.msra.mxu0 %v523
          %586 = vmatpush.msra.mxu0 %v522
          %587 = vmatpush.msra.mxu0 %v521
          %588 = vmatmul.f32.gmra.mxu0 %v515
          %v589 = vpop.f32.mrf.mxu0
          %v590 = vadd.f32 %v563, %v589
          %591 = vmatmul.f32.gmra.mxu0 %v518
          %v592 = vpop.f32.mrf.mxu0
          %v593 = vadd.f32 %v563, %v592
          %594 = vdwg.mxu0
          %595 = vmatpush.msra.mxu0 %v552
          %596 = vmatpush.msra.mxu0 %v551
          %597 = vmatpush.msra.mxu0 %v550
          %598 = vmatpush.msra.mxu0 %v549
          %599 = vmatpush.msra.mxu0 %v548
          %600 = vmatpush.msra.mxu0 %v547
          %601 = vmatpush.msra.mxu0 %v546
          %602 = vmatpush.msra.mxu0 %v545
          %603 = vmatpush.msra.mxu0 %v544
          %604 = vmatpush.msra.mxu0 %v543
          %605 = vmatpush.msra.mxu0 %v542
          %606 = vmatpush.msra.mxu0 %v541
          %607 = vmatpush.msra.mxu0 %v540
          %608 = vmatpush.msra.mxu0 %v539
          %609 = vmatpush.msra.mxu0 %v538
          %610 = vmatpush.msra.mxu0 %v537
          %611 = vmatmul.f32.gmra.mxu0 %v516
          %v612 = vpop.f32.mrf.mxu0
          %v613 = vadd.f32 %v590, %v612
          %614 = vmatmul.f32.gmra.mxu0 %v519
          %v615 = vpop.f32.mrf.mxu0
          %v616 = vadd.f32 %v593, %v615
          %617 = vdwg.mxu0
          %618 = vmatpush.msra.mxu0 0.0
          %619 = vmatpush.msra.mxu0 0.0
          %620 = vmatpush.msra.mxu0 0.0
          %621 = vmatpush.msra.mxu0 0.0
          %622 = vmatpush.msra.mxu0 0.0
          %623 = vmatpush.msra.mxu0 0.0
          %624 = vmatpush.msra.mxu0 0.0
          %625 = vmatpush.msra.mxu0 0.0
          %626 = vmatpush.msra.mxu0 %v560
          %627 = vmatpush.msra.mxu0 %v559
          %628 = vmatpush.msra.mxu0 %v558
          %629 = vmatpush.msra.mxu0 %v557
          %630 = vmatpush.msra.mxu0 %v556
          %631 = vmatpush.msra.mxu0 %v555
          %632 = vmatpush.msra.mxu0 %v554
          %633 = vmatpush.msra.mxu0 %v553
          %634 = vmatmul.f32.gmra.mxu0 %v567
          %v635 = vpop.f32.mrf.mxu0
          %v636 = vadd.f32 %v613, %v635
          %637 = vmatmul.f32.gmra.mxu0 %v570
          %v638 = vpop.f32.mrf.mxu0
          %v639 = vadd.f32 %v616, %v638
          %640 = vdwg.mxu0
          %vm641 = vcmask 261120
          %v642 = vsel %vm641, %v636, -inf
          %643 = vmax.xlane.f32.xlu0 %v642
          %v644 = vpop.xlane.xlu0 %643
          %v645 = vsel %vm641, %v639, -inf
          %646 = vmax.xlane.f32.xlu0 %v645
          %v647 = vpop.xlane.xlu0 %646
          %v648 = vsub.f32 %v636, %v644
          %v649 = vsub.f32 %v639, %v647
          %v650 = vmul.f32 %v648, 1.442695
          %v651 = vpow.pop %v650
          %v652 = vmul.f32 %v649, 1.442695
          %v653 = vpow.pop %v652
          %v654 = vsel %vm641, %v651, 0.0
          %655 = vadd.xlane.f32.xlu0 %v654
          %v656 = vpop.xlane.xlu0 %655
          %v657 = vsel %vm641, %v653, 0.0
          %658 = vadd.xlane.f32.xlu0 %v657
          %v659 = vpop.xlane.xlu0 %658
          %v660 = vrcp.pop %v656
          %v661 = vmul.f32 %v656, %v660
          %v662 = vsub.f32 1.0, %v661
          %v663 = vmul.f32 %v660, %v662
          %v664 = vadd.f32 %v660, %v663
          %vm665 = vweird.f32 %v656
          %vm666 = vweird.f32 %v660
          %vm667 = vmor %vm665, %vm666
          %v668 = vsel %vm667, %v660, %v664
          %v669 = vand.u32 2147483647, %v656
          %vm670 = vcmp.eq.f32.partialorder %v669, 8.507059e+37
          %v671 = vand.u32 %v656, 2147483648
          %v672 = vor.u32 1.1754944e-38, %v671
          %v673 = vsel %vm670, %v672, %v668
          %v674 = vmul.f32 %v651, %v673
          %v675 = vrcp.pop %v659
          %v676 = vmul.f32 %v659, %v675
          %v677 = vsub.f32 1.0, %v676
          %v678 = vmul.f32 %v675, %v677
          %v679 = vadd.f32 %v675, %v678
          %vm680 = vweird.f32 %v659
          %vm681 = vweird.f32 %v675
          %vm682 = vmor %vm680, %vm681
          %v683 = vsel %vm682, %v675, %v679
          %v684 = vand.u32 2147483647, %v659
          %vm685 = vcmp.eq.f32.partialorder %v684, 8.507059e+37
          %v686 = vand.u32 %v659, 2147483648
          %v687 = vor.u32 1.1754944e-38, %v686
          %v688 = vsel %vm685, %v687, %v683
          %v689 = vmul.f32 %v653, %v688
          %v690 = vlaneseq
          %v691 = vand.u32 %v690, 127
          %v692 = vsel %vm641, %v674, -inf
          %693 = vmax.xlane.f32.xlu0 %v692
          %v694 = vpop.xlane.xlu0 %693
          %v695 = vsel %vm641, %v689, -inf
          %696 = vmax.xlane.f32.xlu0 %v695
          %v697 = vpop.xlane.xlu0 %696
          %vm698 = vcmp.ge.f32.partialorder %v674, %v694
          %vm699 = vcmp.ge.f32.partialorder %v689, %v697
          %v700 = vsel %vm698, %v691, 32
          %v701 = vsel %vm699, %v691, 32
          %v702 = vsel %vm641, %v700, 2147483647
          %v703 = vand.u32 %v702, 65535
          %v704 = vshra.s32 %v702, 16
          %v705 = vcvt.s32.f32 %v703
          %v706 = vcvt.s32.f32 %v704
          %707 = vmin.xlane.f32.xlu0 %v706
          %v708 = vpop.xlane.xlu0 %707
          %vm709 = vcmp.eq.f32.partialorder %v706, %v708
          %v710 = vsel %vm709, %v705, inf
          %711 = vmin.xlane.f32.xlu0 %v710
          %v712 = vpop.xlane.xlu0 %711
          %v713 = vcvt.f32.s32 %v712
          %v714 = vcvt.f32.s32 %v708
          %v715 = vshll.u32 %v714, 16
          %v716 = vadd.s32 %v715, %v713
          %v717 = vsel %vm641, %v701, 2147483647
          %v718 = vand.u32 %v717, 65535
          %v719 = vshra.s32 %v717, 16
          %v720 = vcvt.s32.f32 %v718
          %v721 = vcvt.s32.f32 %v719
          %722 = vmin.xlane.f32.xlu0 %v721
          %v723 = vpop.xlane.xlu0 %722
          %vm724 = vcmp.eq.f32.partialorder %v721, %v723
          %v725 = vsel %vm724, %v720, inf
          %726 = vmin.xlane.f32.xlu0 %v725
          %v727 = vpop.xlane.xlu0 %726
          %v728 = vcvt.f32.s32 %v727
          %v729 = vcvt.f32.s32 %v723
          %v730 = vshll.u32 %v729, 16
          %v731 = vadd.s32 %v730, %v728
          %vm732 = vcmp.eq.s32.totalorder %v691, %v716
          %vm733 = vcmp.eq.s32.totalorder %v691, %v731
          %v734 = vsel %vm732, %v674, 0.0
          %v735 = vsel %vm733, %v689, 0.0
          %v736 = vsel %vm732, -inf, %v674
          %v737 = vsel %vm733, -inf, %v689
          %v738 = vsel %vm641, %v736, -inf
          %739 = vmax.xlane.f32.xlu0 %v738
          %v740 = vpop.xlane.xlu0 %739
          %v741 = vsel %vm641, %v737, -inf
          %742 = vmax.xlane.f32.xlu0 %v741
          %v743 = vpop.xlane.xlu0 %742
          %vm744 = vcmp.ge.f32.partialorder %v736, %v740
          %vm745 = vcmp.ge.f32.partialorder %v737, %v743
          %v746 = vsel %vm744, %v691, 32
          %v747 = vsel %vm745, %v691, 32
          %v748 = vsel %vm641, %v746, 2147483647
          %v749 = vand.u32 %v748, 65535
          %v750 = vshra.s32 %v748, 16
          %v751 = vcvt.s32.f32 %v749
          %v752 = vcvt.s32.f32 %v750
          %753 = vmin.xlane.f32.xlu0 %v752
          %v754 = vpop.xlane.xlu0 %753
          %vm755 = vcmp.eq.f32.partialorder %v752, %v754
          %v756 = vsel %vm755, %v751, inf
          %757 = vmin.xlane.f32.xlu0 %v756
          %v758 = vpop.xlane.xlu0 %757
          %v759 = vcvt.f32.s32 %v758
          %v760 = vcvt.f32.s32 %v754
          %v761 = vshll.u32 %v760, 16
          %v762 = vadd.s32 %v761, %v759
          %v763 = vsel %vm641, %v747, 2147483647
          %v764 = vand.u32 %v763, 65535
          %v765 = vshra.s32 %v763, 16
          %v766 = vcvt.s32.f32 %v764
          %v767 = vcvt.s32.f32 %v765
          %768 = vmin.xlane.f32.xlu0 %v767
          %v769 = vpop.xlane.xlu0 %768
          %vm770 = vcmp.eq.f32.partialorder %v767, %v769
          %v771 = vsel %vm770, %v766, inf
          %772 = vmin.xlane.f32.xlu0 %v771
          %v773 = vpop.xlane.xlu0 %772
          %v774 = vcvt.f32.s32 %v773
          %v775 = vcvt.f32.s32 %v769
          %v776 = vshll.u32 %v775, 16
          %v777 = vadd.s32 %v776, %v774
          %vm778 = vcmp.eq.s32.totalorder %v691, %v762
          %vm779 = vcmp.eq.s32.totalorder %v691, %v777
          %v780 = vsel %vm778, %v674, %v734
          %v781 = vsel %vm779, %v689, %v735
          %v782 = vsel %vm778, -inf, %v736
          %v783 = vsel %vm779, -inf, %v737
          %v784 = vsel %vm641, %v782, -inf
          %785 = vmax.xlane.f32.xlu0 %v784
          %v786 = vpop.xlane.xlu0 %785
          %v787 = vsel %vm641, %v783, -inf
          %788 = vmax.xlane.f32.xlu0 %v787
          %v789 = vpop.xlane.xlu0 %788
          %vm790 = vcmp.ge.f32.partialorder %v782, %v786
          %vm791 = vcmp.ge.f32.partialorder %v783, %v789
          %v792 = vsel %vm790, %v691, 32
          %v793 = vsel %vm791, %v691, 32
          %v794 = vsel %vm641, %v792, 2147483647
          %v795 = vand.u32 %v794, 65535
          %v796 = vshra.s32 %v794, 16
          %v797 = vcvt.s32.f32 %v795
          %v798 = vcvt.s32.f32 %v796
          %799 = vmin.xlane.f32.xlu0 %v798
          %v800 = vpop.xlane.xlu0 %799
          %vm801 = vcmp.eq.f32.partialorder %v798, %v800
          %v802 = vsel %vm801, %v797, inf
          %803 = vmin.xlane.f32.xlu0 %v802
          %v804 = vpop.xlane.xlu0 %803
          %v805 = vcvt.f32.s32 %v804
          %v806 = vcvt.f32.s32 %v800
          %v807 = vshll.u32 %v806, 16
          %v808 = vadd.s32 %v807, %v805
          %v809 = vsel %vm641, %v793, 2147483647
          %v810 = vand.u32 %v809, 65535
          %v811 = vshra.s32 %v809, 16
          %v812 = vcvt.s32.f32 %v810
          %v813 = vcvt.s32.f32 %v811
          %814 = vmin.xlane.f32.xlu0 %v813
          %v815 = vpop.xlane.xlu0 %814
          %vm816 = vcmp.eq.f32.partialorder %v813, %v815
          %v817 = vsel %vm816, %v812, inf
          %818 = vmin.xlane.f32.xlu0 %v817
          %v819 = vpop.xlane.xlu0 %818
          %v820 = vcvt.f32.s32 %v819
          %v821 = vcvt.f32.s32 %v815
          %v822 = vshll.u32 %v821, 16
          %v823 = vadd.s32 %v822, %v820
          %vm824 = vcmp.eq.s32.totalorder %v691, %v808
          %vm825 = vcmp.eq.s32.totalorder %v691, %v823
          %v826 = vsel %vm824, %v674, %v780
          %v827 = vsel %vm825, %v689, %v781
          %vm828 = vcmp.eq.s32.totalorder %v691, 31
          %v829 = vsel %vm828, 1.0, %v826
          %v830 = vsel %vm828, 1.0, %v827
          %831 = vst.msk [vmem:[#allocation2] sm:$0xff] %vm641, %v829
          %832 = vst.msk [vmem:[#allocation2 + $0x8] sm:$0xff] %vm641, %v830
          %p833 = scmp.eq.s32.totalorder %s26, 0
          %s834 = scalar_select %p833, 1, 0
          %s835 = scvt.s32.f32 %s834
          %v836 = vstv %s835
          %v837 = vmul.f32 %v515, %v836
          %v838 = vmul.f32 %v516, %v836
          %v839 = vmul.f32 %v517, %v836
          %v840 = vmul.f32 %v518, %v836
          %v841 = vmul.f32 %v519, %v836
          %v842 = vmul.f32 %v520, %v836
          %843 = vst [vmem:[#allocation3] sm:$0xff] %v837
          %844 = vst [vmem:[#allocation3 + $0x8] sm:$0xff] %v838
          %845 = vst.msk [vmem:[#allocation3 + $0x10] sm:$0xff] %vm565, %v839
          %846 = vst [vmem:[#allocation3 + $0x18] sm:$0xff] %v840
          %847 = vst [vmem:[#allocation3 + $0x20] sm:$0xff] %v841
          %848 = vst.msk [vmem:[#allocation3 + $0x28] sm:$0xff] %vm565, %v842
        $region64: #{moe_forward.1} parent=59 // pred_fallthru
          _
        %v849 = vld [vmem:[#allocation2] sm:$0xff]
        %v850 = vld [vmem:[#allocation2 + $0x8] sm:$0xff]
        %v851 = vld [vmem:[%s472] sm:$0xff]
        %v852 = vld [vmem:[%s472 + $0x8] sm:$0xff]
        %v853 = vld [vmem:[%s472 + $0x10] sm:$0xff]
        %v854 = vld [vmem:[%s472 + $0x18] sm:$0xff]
        %vm855 = vcmask 261120
        %v857 = vsel %vm855, %v849, 0
        %v860 = vsel %vm855, %v850, 0
        %862 = vmatpush.msra.mxu0 0.0
        %863 = vmatpush.msra.mxu0 0.0
        %864 = vmatpush.msra.mxu0 0.0
        %865 = vmatpush.msra.mxu0 0.0
        %866 = vmatpush.msra.mxu0 0.0
        %867 = vmatpush.msra.mxu0 0.0
        %868 = vmatpush.msra.mxu0 0.0
        %869 = vmatpush.msra.mxu0 0.0
        %870 = vmatpush.msra.mxu0 0.0
        %871 = vmatpush.msra.mxu0 0.0
        %872 = vmatpush.msra.mxu0 0.0
        %873 = vmatpush.msra.mxu0 0.0
        %874 = vmatpush.msra.mxu0 %v854
        %875 = vmatpush.msra.mxu0 %v853
        %876 = vmatpush.msra.mxu0 %v852
        %877 = vmatpush.msra.mxu0 %v851
        %878 = vmatmul.f32.gmra.mxu0 %v857
        %v879 = vpop.f32.mrf.mxu0
        %v880 = vadd.f32 0.0, %v879
        %881 = vmatmul.f32.gmra.mxu0 %v860
        %v882 = vpop.f32.mrf.mxu0
        %v883 = vadd.f32 0.0, %v882
        %884 = vdwg.mxu0
        %v885 = vld [vmem:[%s507] sm:$0xff]
        %v886 = vld [vmem:[%s507 + $0x8] sm:$0xff]
        %v887 = vld [vmem:[%s507 + $0x10] sm:$0xff]
        %v888 = vld [vmem:[%s507 + $0x18] sm:$0xff]
        %v889 = vld [vmem:[%s507 + $0x20] sm:$0xff]
        %v890 = vld [vmem:[%s507 + $0x28] sm:$0xff]
        %vm891 = vcmask 130048
        %v893 = vsel %vm891, %v880, 0
        %v896 = vsel %vm891, %v883, 0
        %898 = vmatpush.msra.mxu0 0.0
        %899 = vmatpush.msra.mxu0 0.0
        %900 = vmatpush.msra.mxu0 0.0
        %901 = vmatpush.msra.mxu0 0.0
        %902 = vmatpush.msra.mxu0 0.0
        %903 = vmatpush.msra.mxu0 0.0
        %904 = vmatpush.msra.mxu0 0.0
        %905 = vmatpush.msra.mxu0 0.0
        %906 = vmatpush.msra.mxu0 0.0
        %907 = vmatpush.msra.mxu0 0.0
        %908 = vmatpush.msra.mxu0 0.0
        %909 = vmatpush.msra.mxu0 0.0
        %910 = vmatpush.msra.mxu0 0.0
        %911 = vmatpush.msra.mxu0 0.0
        %912 = vmatpush.msra.mxu0 %v888
        %913 = vmatpush.msra.mxu0 %v885
        %914 = vmatmul.f32.gmra.mxu0 %v893
        %v915 = vpop.f32.mrf.mxu0
        %v916 = vadd.f32 0.0, %v915
        %917 = vmatmul.f32.gmra.mxu0 %v896
        %v918 = vpop.f32.mrf.mxu0
        %v919 = vadd.f32 0.0, %v918
        %920 = vdwg.mxu0
        %921 = vmatpush.msra.mxu0 0.0
        %922 = vmatpush.msra.mxu0 0.0
        %923 = vmatpush.msra.mxu0 0.0
        %924 = vmatpush.msra.mxu0 0.0
        %925 = vmatpush.msra.mxu0 0.0
        %926 = vmatpush.msra.mxu0 0.0
        %927 = vmatpush.msra.mxu0 0.0
        %928 = vmatpush.msra.mxu0 0.0
        %929 = vmatpush.msra.mxu0 0.0
        %930 = vmatpush.msra.mxu0 0.0
        %931 = vmatpush.msra.mxu0 0.0
        %932 = vmatpush.msra.mxu0 0.0
        %933 = vmatpush.msra.mxu0 0.0
        %934 = vmatpush.msra.mxu0 0.0
        %935 = vmatpush.msra.mxu0 %v889
        %936 = vmatpush.msra.mxu0 %v886
        %937 = vmatmul.f32.gmra.mxu0 %v893
        %v938 = vpop.f32.mrf.mxu0
        %v939 = vadd.f32 0.0, %v938
        %940 = vmatmul.f32.gmra.mxu0 %v896
        %v941 = vpop.f32.mrf.mxu0
        %v942 = vadd.f32 0.0, %v941
        %943 = vdwg.mxu0
        %944 = vmatpush.msra.mxu0 0.0
        %945 = vmatpush.msra.mxu0 0.0
        %946 = vmatpush.msra.mxu0 0.0
        %947 = vmatpush.msra.mxu0 0.0
        %948 = vmatpush.msra.mxu0 0.0
        %949 = vmatpush.msra.mxu0 0.0
        %950 = vmatpush.msra.mxu0 0.0
        %951 = vmatpush.msra.mxu0 0.0
        %952 = vmatpush.msra.mxu0 0.0
        %953 = vmatpush.msra.mxu0 0.0
        %954 = vmatpush.msra.mxu0 0.0
        %955 = vmatpush.msra.mxu0 0.0
        %956 = vmatpush.msra.mxu0 0.0
        %957 = vmatpush.msra.mxu0 0.0
        %958 = vmatpush.msra.mxu0 %v890
        %959 = vmatpush.msra.mxu0 %v887
        %960 = vmatmul.f32.gmra.mxu0 %v893
        %v961 = vpop.f32.mrf.mxu0
        %v962 = vadd.f32 0.0, %v961
        %963 = vmatmul.f32.gmra.mxu0 %v896
        %v964 = vpop.f32.mrf.mxu0
        %v965 = vadd.f32 0.0, %v964
        %966 = vdwg.mxu0
        %v967 = vld [vmem:[%s5] sm:$0xff]
        %v968 = vld [vmem:[%s5 + $0x8] sm:$0xff]
        %v969 = vld [vmem:[%s5 + $0x10] sm:$0xff]
        %v970 = vld [vmem:[%s5 + $0x18] sm:$0xff]
        %v971 = vld [vmem:[%s5 + $0x20] sm:$0xff]
        %v972 = vld [vmem:[%s5 + $0x28] sm:$0xff]
        %v973 = vld [vmem:[%s5 + $0x30] sm:$0xff]
        %v974 = vld [vmem:[%s5 + $0x38] sm:$0xff]
        %v975 = vld [vmem:[%s5 + $0x40] sm:$0xff]
        %v976 = vld [vmem:[%s5 + $0x48] sm:$0xff]
        %v977 = vld [vmem:[%s5 + $0x50] sm:$0xff]
        %v978 = vld [vmem:[%s5 + $0x58] sm:$0xff]
        %v979 = vld [vmem:[%s5 + $0x60] sm:$0xff]
        %v980 = vld [vmem:[%s5 + $0x68] sm:$0xff]
        %v981 = vld [vmem:[%s5 + $0x70] sm:$0xff]
        %v982 = vld [vmem:[%s5 + $0x78] sm:$0xff]
        %v983 = vld [vmem:[%s5 + $0x80] sm:$0xff]
        %v984 = vld [vmem:[%s5 + $0x88] sm:$0xff]
        %v985 = vld [vmem:[%s5 + $0x90] sm:$0xff]
        %v986 = vld [vmem:[%s5 + $0x98] sm:$0xff]
        %v987 = vld [vmem:[%s5 + $0xa0] sm:$0xff]
        %v988 = vld [vmem:[%s5 + $0xa8] sm:$0xff]
        %v989 = vld [vmem:[%s5 + $0xb0] sm:$0xff]
        %v990 = vld [vmem:[%s5 + $0xb8] sm:$0xff]
        %v991 = vld [vmem:[%s5 + $0xc0] sm:$0xff]
        %v992 = vld [vmem:[%s5 + $0xc8] sm:$0xff]
        %v993 = vld [vmem:[%s5 + $0xd0] sm:$0xff]
        %v994 = vld [vmem:[%s5 + $0xd8] sm:$0xff]
        %v995 = vld [vmem:[%s5 + $0xe0] sm:$0xff]
        %v996 = vld [vmem:[%s5 + $0xe8] sm:$0xff]
        %v997 = vld [vmem:[%s5 + $0xf0] sm:$0xff]
        %v998 = vld [vmem:[%s5 + $0xf8] sm:$0xff]
        %v999 = vld [vmem:[%s5 + $0x100] sm:$0xff]
        %v1000 = vld [vmem:[%s5 + $0x108] sm:$0xff]
        %v1001 = vld [vmem:[%s5 + $0x110] sm:$0xff]
        %v1002 = vld [vmem:[%s5 + $0x118] sm:$0xff]
        %v1003 = vld [vmem:[%s5 + $0x120] sm:$0xff]
        %v1004 = vld [vmem:[%s5 + $0x128] sm:$0xff]
        %v1005 = vld [vmem:[%s5 + $0x130] sm:$0xff]
        %v1006 = vld [vmem:[%s5 + $0x138] sm:$0xff]
        %1007 = vmatpush.msra.mxu0 0.0
        %1008 = vmatpush.msra.mxu0 0.0
        %1009 = vmatpush.msra.mxu0 0.0
        %1010 = vmatpush.msra.mxu0 0.0
        %1011 = vmatpush.msra.mxu0 0.0
        %1012 = vmatpush.msra.mxu0 0.0
        %1013 = vmatpush.msra.mxu0 0.0
        %1014 = vmatpush.msra.mxu0 0.0
        %1015 = vmatpush.msra.mxu0 0.0
        %1016 = vmatpush.msra.mxu0 0.0
        %1017 = vmatpush.msra.mxu0 0.0
        %1018 = vmatpush.msra.mxu0 0.0
        %1019 = vmatpush.msra.mxu0 0.0
        %1020 = vmatpush.msra.mxu0 0.0
        %1021 = vmatpush.msra.mxu0 %v987
        %1022 = vmatpush.msra.mxu0 %v967
        %1023 = vmatmul.f32.gmra.mxu0 %v893
        %v1024 = vpop.f32.mrf.mxu0
        %v1025 = vadd.f32 0.0, %v1024
        %1026 = vmatmul.f32.gmra.mxu0 %v896
        %v1027 = vpop.f32.mrf.mxu0
        %v1028 = vadd.f32 0.0, %v1027
        %1029 = vdwg.mxu0
        %1030 = vmatpush.msra.mxu0 0.0
        %1031 = vmatpush.msra.mxu0 0.0
        %1032 = vmatpush.msra.mxu0 0.0
        %1033 = vmatpush.msra.mxu0 0.0
        %1034 = vmatpush.msra.mxu0 0.0
        %1035 = vmatpush.msra.mxu0 0.0
        %1036 = vmatpush.msra.mxu0 0.0
        %1037 = vmatpush.msra.mxu0 0.0
        %1038 = vmatpush.msra.mxu0 0.0
        %1039 = vmatpush.msra.mxu0 0.0
        %1040 = vmatpush.msra.mxu0 0.0
        %1041 = vmatpush.msra.mxu0 0.0
        %1042 = vmatpush.msra.mxu0 0.0
        %1043 = vmatpush.msra.mxu0 0.0
        %1044 = vmatpush.msra.mxu0 %v988
        %1045 = vmatpush.msra.mxu0 %v968
        %1046 = vmatmul.f32.gmra.mxu0 %v893
        %v1047 = vpop.f32.mrf.mxu0
        %v1048 = vadd.f32 0.0, %v1047
        %1049 = vmatmul.f32.gmra.mxu0 %v896
        %v1050 = vpop.f32.mrf.mxu0
        %v1051 = vadd.f32 0.0, %v1050
        %1052 = vdwg.mxu0
        %1053 = vmatpush.msra.mxu0 0.0
        %1054 = vmatpush.msra.mxu0 0.0
        %1055 = vmatpush.msra.mxu0 0.0
        %1056 = vmatpush.msra.mxu0 0.0
        %1057 = vmatpush.msra.mxu0 0.0
        %1058 = vmatpush.msra.mxu0 0.0
        %1059 = vmatpush.msra.mxu0 0.0
        %1060 = vmatpush.msra.mxu0 0.0
        %1061 = vmatpush.msra.mxu0 0.0
        %1062 = vmatpush.msra.mxu0 0.0
        %1063 = vmatpush.msra.mxu0 0.0
        %1064 = vmatpush.msra.mxu0 0.0
        %1065 = vmatpush.msra.mxu0 0.0
        %1066 = vmatpush.msra.mxu0 0.0
        %1067 = vmatpush.msra.mxu0 %v989
        %1068 = vmatpush.msra.mxu0 %v969
        %1069 = vmatmul.f32.gmra.mxu0 %v893
        %v1070 = vpop.f32.mrf.mxu0
        %v1071 = vadd.f32 0.0, %v1070
        %1072 = vmatmul.f32.gmra.mxu0 %v896
        %v1073 = vpop.f32.mrf.mxu0
        %v1074 = vadd.f32 0.0, %v1073
        %1075 = vdwg.mxu0
        %1076 = vmatpush.msra.mxu0 0.0
        %1077 = vmatpush.msra.mxu0 0.0
        %1078 = vmatpush.msra.mxu0 0.0
        %1079 = vmatpush.msra.mxu0 0.0
        %1080 = vmatpush.msra.mxu0 0.0
        %1081 = vmatpush.msra.mxu0 0.0
        %1082 = vmatpush.msra.mxu0 0.0
        %1083 = vmatpush.msra.mxu0 0.0
        %1084 = vmatpush.msra.mxu0 0.0
        %1085 = vmatpush.msra.mxu0 0.0
        %1086 = vmatpush.msra.mxu0 0.0
        %1087 = vmatpush.msra.mxu0 0.0
        %1088 = vmatpush.msra.mxu0 0.0
        %1089 = vmatpush.msra.mxu0 0.0
        %1090 = vmatpush.msra.mxu0 %v990
        %1091 = vmatpush.msra.mxu0 %v970
        %1092 = vmatmul.f32.gmra.mxu0 %v893
        %v1093 = vpop.f32.mrf.mxu0
        %v1094 = vadd.f32 0.0, %v1093
        %1095 = vmatmul.f32.gmra.mxu0 %v896
        %v1096 = vpop.f32.mrf.mxu0
        %v1097 = vadd.f32 0.0, %v1096
        %1098 = vdwg.mxu0
        %1099 = vmatpush.msra.mxu0 0.0
        %1100 = vmatpush.msra.mxu0 0.0
        %1101 = vmatpush.msra.mxu0 0.0
        %1102 = vmatpush.msra.mxu0 0.0
        %1103 = vmatpush.msra.mxu0 0.0
        %1104 = vmatpush.msra.mxu0 0.0
        %1105 = vmatpush.msra.mxu0 0.0
        %1106 = vmatpush.msra.mxu0 0.0
        %1107 = vmatpush.msra.mxu0 0.0
        %1108 = vmatpush.msra.mxu0 0.0
        %1109 = vmatpush.msra.mxu0 0.0
        %1110 = vmatpush.msra.mxu0 0.0
        %1111 = vmatpush.msra.mxu0 0.0
        %1112 = vmatpush.msra.mxu0 0.0
        %1113 = vmatpush.msra.mxu0 %v991
        %1114 = vmatpush.msra.mxu0 %v971
        %1115 = vmatmul.f32.gmra.mxu0 %v893
        %v1116 = vpop.f32.mrf.mxu0
        %v1117 = vadd.f32 0.0, %v1116
        %1118 = vmatmul.f32.gmra.mxu0 %v896
        %v1119 = vpop.f32.mrf.mxu0
        %v1120 = vadd.f32 0.0, %v1119
        %1121 = vdwg.mxu0
        %1122 = vmatpush.msra.mxu0 0.0
        %1123 = vmatpush.msra.mxu0 0.0
        %1124 = vmatpush.msra.mxu0 0.0
        %1125 = vmatpush.msra.mxu0 0.0
        %1126 = vmatpush.msra.mxu0 0.0
        %1127 = vmatpush.msra.mxu0 0.0
        %1128 = vmatpush.msra.mxu0 0.0
        %1129 = vmatpush.msra.mxu0 0.0
        %1130 = vmatpush.msra.mxu0 0.0
        %1131 = vmatpush.msra.mxu0 0.0
        %1132 = vmatpush.msra.mxu0 0.0
        %1133 = vmatpush.msra.mxu0 0.0
        %1134 = vmatpush.msra.mxu0 0.0
        %1135 = vmatpush.msra.mxu0 0.0
        %1136 = vmatpush.msra.mxu0 %v992
        %1137 = vmatpush.msra.mxu0 %v972
        %1138 = vmatmul.f32.gmra.mxu0 %v893
        %v1139 = vpop.f32.mrf.mxu0
        %v1140 = vadd.f32 0.0, %v1139
        %1141 = vmatmul.f32.gmra.mxu0 %v896
        %v1142 = vpop.f32.mrf.mxu0
        %v1143 = vadd.f32 0.0, %v1142
        %1144 = vdwg.mxu0
        %1145 = vmatpush.msra.mxu0 0.0
        %1146 = vmatpush.msra.mxu0 0.0
        %1147 = vmatpush.msra.mxu0 0.0
        %1148 = vmatpush.msra.mxu0 0.0
        %1149 = vmatpush.msra.mxu0 0.0
        %1150 = vmatpush.msra.mxu0 0.0
        %1151 = vmatpush.msra.mxu0 0.0
        %1152 = vmatpush.msra.mxu0 0.0
        %1153 = vmatpush.msra.mxu0 0.0
        %1154 = vmatpush.msra.mxu0 0.0
        %1155 = vmatpush.msra.mxu0 0.0
        %1156 = vmatpush.msra.mxu0 0.0
        %1157 = vmatpush.msra.mxu0 0.0
        %1158 = vmatpush.msra.mxu0 0.0
        %1159 = vmatpush.msra.mxu0 %v993
        %1160 = vmatpush.msra.mxu0 %v973
        %1161 = vmatmul.f32.gmra.mxu0 %v893
        %v1162 = vpop.f32.mrf.mxu0
        %v1163 = vadd.f32 0.0, %v1162
        %1164 = vmatmul.f32.gmra.mxu0 %v896
        %v1165 = vpop.f32.mrf.mxu0
        %v1166 = vadd.f32 0.0, %v1165
        %1167 = vdwg.mxu0
        %1168 = vmatpush.msra.mxu0 0.0
        %1169 = vmatpush.msra.mxu0 0.0
        %1170 = vmatpush.msra.mxu0 0.0
        %1171 = vmatpush.msra.mxu0 0.0
        %1172 = vmatpush.msra.mxu0 0.0
        %1173 = vmatpush.msra.mxu0 0.0
        %1174 = vmatpush.msra.mxu0 0.0
        %1175 = vmatpush.msra.mxu0 0.0
        %1176 = vmatpush.msra.mxu0 0.0
        %1177 = vmatpush.msra.mxu0 0.0
        %1178 = vmatpush.msra.mxu0 0.0
        %1179 = vmatpush.msra.mxu0 0.0
        %1180 = vmatpush.msra.mxu0 0.0
        %1181 = vmatpush.msra.mxu0 0.0
        %1182 = vmatpush.msra.mxu0 %v994
        %1183 = vmatpush.msra.mxu0 %v974
        %1184 = vmatmul.f32.gmra.mxu0 %v893
        %v1185 = vpop.f32.mrf.mxu0
        %v1186 = vadd.f32 0.0, %v1185
        %1187 = vmatmul.f32.gmra.mxu0 %v896
        %v1188 = vpop.f32.mrf.mxu0
        %v1189 = vadd.f32 0.0, %v1188
        %1190 = vdwg.mxu0
        %1191 = vmatpush.msra.mxu0 0.0
        %1192 = vmatpush.msra.mxu0 0.0
        %1193 = vmatpush.msra.mxu0 0.0
        %1194 = vmatpush.msra.mxu0 0.0
        %1195 = vmatpush.msra.mxu0 0.0
        %1196 = vmatpush.msra.mxu0 0.0
        %1197 = vmatpush.msra.mxu0 0.0
        %1198 = vmatpush.msra.mxu0 0.0
        %1199 = vmatpush.msra.mxu0 0.0
        %1200 = vmatpush.msra.mxu0 0.0
        %1201 = vmatpush.msra.mxu0 0.0
        %1202 = vmatpush.msra.mxu0 0.0
        %1203 = vmatpush.msra.mxu0 0.0
        %1204 = vmatpush.msra.mxu0 0.0
        %1205 = vmatpush.msra.mxu0 %v995
        %1206 = vmatpush.msra.mxu0 %v975
        %1207 = vmatmul.f32.gmra.mxu0 %v893
        %v1208 = vpop.f32.mrf.mxu0
        %v1209 = vadd.f32 0.0, %v1208
        %1210 = vmatmul.f32.gmra.mxu0 %v896
        %v1211 = vpop.f32.mrf.mxu0
        %v1212 = vadd.f32 0.0, %v1211
        %1213 = vdwg.mxu0
        %1214 = vmatpush.msra.mxu0 0.0
        %1215 = vmatpush.msra.mxu0 0.0
        %1216 = vmatpush.msra.mxu0 0.0
        %1217 = vmatpush.msra.mxu0 0.0
        %1218 = vmatpush.msra.mxu0 0.0
        %1219 = vmatpush.msra.mxu0 0.0
        %1220 = vmatpush.msra.mxu0 0.0
        %1221 = vmatpush.msra.mxu0 0.0
        %1222 = vmatpush.msra.mxu0 0.0
        %1223 = vmatpush.msra.mxu0 0.0
        %1224 = vmatpush.msra.mxu0 0.0
        %1225 = vmatpush.msra.mxu0 0.0
        %1226 = vmatpush.msra.mxu0 0.0
        %1227 = vmatpush.msra.mxu0 0.0
        %1228 = vmatpush.msra.mxu0 %v996
        %1229 = vmatpush.msra.mxu0 %v976
        %1230 = vmatmul.f32.gmra.mxu0 %v893
        %v1231 = vpop.f32.mrf.mxu0
        %v1232 = vadd.f32 0.0, %v1231
        %1233 = vmatmul.f32.gmra.mxu0 %v896
        %v1234 = vpop.f32.mrf.mxu0
        %v1235 = vadd.f32 0.0, %v1234
        %1236 = vdwg.mxu0
        %1237 = vmatpush.msra.mxu0 0.0
        %1238 = vmatpush.msra.mxu0 0.0
        %1239 = vmatpush.msra.mxu0 0.0
        %1240 = vmatpush.msra.mxu0 0.0
        %1241 = vmatpush.msra.mxu0 0.0
        %1242 = vmatpush.msra.mxu0 0.0
        %1243 = vmatpush.msra.mxu0 0.0
        %1244 = vmatpush.msra.mxu0 0.0
        %1245 = vmatpush.msra.mxu0 0.0
        %1246 = vmatpush.msra.mxu0 0.0
        %1247 = vmatpush.msra.mxu0 0.0
        %1248 = vmatpush.msra.mxu0 0.0
        %1249 = vmatpush.msra.mxu0 0.0
        %1250 = vmatpush.msra.mxu0 0.0
        %1251 = vmatpush.msra.mxu0 %v997
        %1252 = vmatpush.msra.mxu0 %v977
        %1253 = vmatmul.f32.gmra.mxu0 %v893
        %v1254 = vpop.f32.mrf.mxu0
        %v1255 = vadd.f32 0.0, %v1254
        %1256 = vmatmul.f32.gmra.mxu0 %v896
        %v1257 = vpop.f32.mrf.mxu0
        %v1258 = vadd.f32 0.0, %v1257
        %1259 = vdwg.mxu0
        %1260 = vmatpush.msra.mxu0 0.0
        %1261 = vmatpush.msra.mxu0 0.0
        %1262 = vmatpush.msra.mxu0 0.0
        %1263 = vmatpush.msra.mxu0 0.0
        %1264 = vmatpush.msra.mxu0 0.0
        %1265 = vmatpush.msra.mxu0 0.0
        %1266 = vmatpush.msra.mxu0 0.0
        %1267 = vmatpush.msra.mxu0 0.0
        %1268 = vmatpush.msra.mxu0 0.0
        %1269 = vmatpush.msra.mxu0 0.0
        %1270 = vmatpush.msra.mxu0 0.0
        %1271 = vmatpush.msra.mxu0 0.0
        %1272 = vmatpush.msra.mxu0 0.0
        %1273 = vmatpush.msra.mxu0 0.0
        %1274 = vmatpush.msra.mxu0 %v998
        %1275 = vmatpush.msra.mxu0 %v978
        %1276 = vmatmul.f32.gmra.mxu0 %v893
        %v1277 = vpop.f32.mrf.mxu0
        %v1278 = vadd.f32 0.0, %v1277
        %1279 = vmatmul.f32.gmra.mxu0 %v896
        %v1280 = vpop.f32.mrf.mxu0
        %v1281 = vadd.f32 0.0, %v1280
        %1282 = vdwg.mxu0
        %1283 = vmatpush.msra.mxu0 0.0
        %1284 = vmatpush.msra.mxu0 0.0
        %1285 = vmatpush.msra.mxu0 0.0
        %1286 = vmatpush.msra.mxu0 0.0
        %1287 = vmatpush.msra.mxu0 0.0
        %1288 = vmatpush.msra.mxu0 0.0
        %1289 = vmatpush.msra.mxu0 0.0
        %1290 = vmatpush.msra.mxu0 0.0
        %1291 = vmatpush.msra.mxu0 0.0
        %1292 = vmatpush.msra.mxu0 0.0
        %1293 = vmatpush.msra.mxu0 0.0
        %1294 = vmatpush.msra.mxu0 0.0
        %1295 = vmatpush.msra.mxu0 0.0
        %1296 = vmatpush.msra.mxu0 0.0
        %1297 = vmatpush.msra.mxu0 %v999
        %1298 = vmatpush.msra.mxu0 %v979
        %1299 = vmatmul.f32.gmra.mxu0 %v893
        %v1300 = vpop.f32.mrf.mxu0
        %v1301 = vadd.f32 0.0, %v1300
        %1302 = vmatmul.f32.gmra.mxu0 %v896
        %v1303 = vpop.f32.mrf.mxu0
        %v1304 = vadd.f32 0.0, %v1303
        %1305 = vdwg.mxu0
        %1306 = vmatpush.msra.mxu0 0.0
        %1307 = vmatpush.msra.mxu0 0.0
        %1308 = vmatpush.msra.mxu0 0.0
        %1309 = vmatpush.msra.mxu0 0.0
        %1310 = vmatpush.msra.mxu0 0.0
        %1311 = vmatpush.msra.mxu0 0.0
        %1312 = vmatpush.msra.mxu0 0.0
        %1313 = vmatpush.msra.mxu0 0.0
        %1314 = vmatpush.msra.mxu0 0.0
        %1315 = vmatpush.msra.mxu0 0.0
        %1316 = vmatpush.msra.mxu0 0.0
        %1317 = vmatpush.msra.mxu0 0.0
        %1318 = vmatpush.msra.mxu0 0.0
        %1319 = vmatpush.msra.mxu0 0.0
        %1320 = vmatpush.msra.mxu0 %v1000
        %1321 = vmatpush.msra.mxu0 %v980
        %1322 = vmatmul.f32.gmra.mxu0 %v893
        %v1323 = vpop.f32.mrf.mxu0
        %v1324 = vadd.f32 0.0, %v1323
        %1325 = vmatmul.f32.gmra.mxu0 %v896
        %v1326 = vpop.f32.mrf.mxu0
        %v1327 = vadd.f32 0.0, %v1326
        %1328 = vdwg.mxu0
        %1329 = vmatpush.msra.mxu0 0.0
        %1330 = vmatpush.msra.mxu0 0.0
        %1331 = vmatpush.msra.mxu0 0.0
        %1332 = vmatpush.msra.mxu0 0.0
        %1333 = vmatpush.msra.mxu0 0.0
        %1334 = vmatpush.msra.mxu0 0.0
        %1335 = vmatpush.msra.mxu0 0.0
        %1336 = vmatpush.msra.mxu0 0.0
        %1337 = vmatpush.msra.mxu0 0.0
        %1338 = vmatpush.msra.mxu0 0.0
        %1339 = vmatpush.msra.mxu0 0.0
        %1340 = vmatpush.msra.mxu0 0.0
        %1341 = vmatpush.msra.mxu0 0.0
        %1342 = vmatpush.msra.mxu0 0.0
        %1343 = vmatpush.msra.mxu0 %v1001
        %1344 = vmatpush.msra.mxu0 %v981
        %1345 = vmatmul.f32.gmra.mxu0 %v893
        %v1346 = vpop.f32.mrf.mxu0
        %v1347 = vadd.f32 0.0, %v1346
        %1348 = vmatmul.f32.gmra.mxu0 %v896
        %v1349 = vpop.f32.mrf.mxu0
        %v1350 = vadd.f32 0.0, %v1349
        %1351 = vdwg.mxu0
        %1352 = vmatpush.msra.mxu0 0.0
        %1353 = vmatpush.msra.mxu0 0.0
        %1354 = vmatpush.msra.mxu0 0.0
        %1355 = vmatpush.msra.mxu0 0.0
        %1356 = vmatpush.msra.mxu0 0.0
        %1357 = vmatpush.msra.mxu0 0.0
        %1358 = vmatpush.msra.mxu0 0.0
        %1359 = vmatpush.msra.mxu0 0.0
        %1360 = vmatpush.msra.mxu0 0.0
        %1361 = vmatpush.msra.mxu0 0.0
        %1362 = vmatpush.msra.mxu0 0.0
        %1363 = vmatpush.msra.mxu0 0.0
        %1364 = vmatpush.msra.mxu0 0.0
        %1365 = vmatpush.msra.mxu0 0.0
        %1366 = vmatpush.msra.mxu0 %v1002
        %1367 = vmatpush.msra.mxu0 %v982
        %1368 = vmatmul.f32.gmra.mxu0 %v893
        %v1369 = vpop.f32.mrf.mxu0
        %v1370 = vadd.f32 0.0, %v1369
        %1371 = vmatmul.f32.gmra.mxu0 %v896
        %v1372 = vpop.f32.mrf.mxu0
        %v1373 = vadd.f32 0.0, %v1372
        %1374 = vdwg.mxu0
        %1375 = vmatpush.msra.mxu0 0.0
        %1376 = vmatpush.msra.mxu0 0.0
        %1377 = vmatpush.msra.mxu0 0.0
        %1378 = vmatpush.msra.mxu0 0.0
        %1379 = vmatpush.msra.mxu0 0.0
        %1380 = vmatpush.msra.mxu0 0.0
        %1381 = vmatpush.msra.mxu0 0.0
        %1382 = vmatpush.msra.mxu0 0.0
        %1383 = vmatpush.msra.mxu0 0.0
        %1384 = vmatpush.msra.mxu0 0.0
        %1385 = vmatpush.msra.mxu0 0.0
        %1386 = vmatpush.msra.mxu0 0.0
        %1387 = vmatpush.msra.mxu0 0.0
        %1388 = vmatpush.msra.mxu0 0.0
        %1389 = vmatpush.msra.mxu0 %v1003
        %1390 = vmatpush.msra.mxu0 %v983
        %1391 = vmatmul.f32.gmra.mxu0 %v893
        %v1392 = vpop.f32.mrf.mxu0
        %v1393 = vadd.f32 0.0, %v1392
        %1394 = vmatmul.f32.gmra.mxu0 %v896
        %v1395 = vpop.f32.mrf.mxu0
        %v1396 = vadd.f32 0.0, %v1395
        %1397 = vdwg.mxu0
        %1398 = vmatpush.msra.mxu0 0.0
        %1399 = vmatpush.msra.mxu0 0.0
        %1400 = vmatpush.msra.mxu0 0.0
        %1401 = vmatpush.msra.mxu0 0.0
        %1402 = vmatpush.msra.mxu0 0.0
        %1403 = vmatpush.msra.mxu0 0.0
        %1404 = vmatpush.msra.mxu0 0.0
        %1405 = vmatpush.msra.mxu0 0.0
        %1406 = vmatpush.msra.mxu0 0.0
        %1407 = vmatpush.msra.mxu0 0.0
        %1408 = vmatpush.msra.mxu0 0.0
        %1409 = vmatpush.msra.mxu0 0.0
        %1410 = vmatpush.msra.mxu0 0.0
        %1411 = vmatpush.msra.mxu0 0.0
        %1412 = vmatpush.msra.mxu0 %v1004
        %1413 = vmatpush.msra.mxu0 %v984
        %1414 = vmatmul.f32.gmra.mxu0 %v893
        %v1415 = vpop.f32.mrf.mxu0
        %v1416 = vadd.f32 0.0, %v1415
        %1417 = vmatmul.f32.gmra.mxu0 %v896
        %v1418 = vpop.f32.mrf.mxu0
        %v1419 = vadd.f32 0.0, %v1418
        %1420 = vdwg.mxu0
        %1421 = vmatpush.msra.mxu0 0.0
        %1422 = vmatpush.msra.mxu0 0.0
        %1423 = vmatpush.msra.mxu0 0.0
        %1424 = vmatpush.msra.mxu0 0.0
        %1425 = vmatpush.msra.mxu0 0.0
        %1426 = vmatpush.msra.mxu0 0.0
        %1427 = vmatpush.msra.mxu0 0.0
        %1428 = vmatpush.msra.mxu0 0.0
        %1429 = vmatpush.msra.mxu0 0.0
        %1430 = vmatpush.msra.mxu0 0.0
        %1431 = vmatpush.msra.mxu0 0.0
        %1432 = vmatpush.msra.mxu0 0.0
        %1433 = vmatpush.msra.mxu0 0.0
        %1434 = vmatpush.msra.mxu0 0.0
        %1435 = vmatpush.msra.mxu0 %v1005
        %1436 = vmatpush.msra.mxu0 %v985
        %1437 = vmatmul.f32.gmra.mxu0 %v893
        %v1438 = vpop.f32.mrf.mxu0
        %v1439 = vadd.f32 0.0, %v1438
        %1440 = vmatmul.f32.gmra.mxu0 %v896
        %v1441 = vpop.f32.mrf.mxu0
        %v1442 = vadd.f32 0.0, %v1441
        %1443 = vdwg.mxu0
        %1444 = vmatpush.msra.mxu0 0.0
        %1445 = vmatpush.msra.mxu0 0.0
        %1446 = vmatpush.msra.mxu0 0.0
        %1447 = vmatpush.msra.mxu0 0.0
        %1448 = vmatpush.msra.mxu0 0.0
        %1449 = vmatpush.msra.mxu0 0.0
        %1450 = vmatpush.msra.mxu0 0.0
        %1451 = vmatpush.msra.mxu0 0.0
        %1452 = vmatpush.msra.mxu0 0.0
        %1453 = vmatpush.msra.mxu0 0.0
        %1454 = vmatpush.msra.mxu0 0.0
        %1455 = vmatpush.msra.mxu0 0.0
        %1456 = vmatpush.msra.mxu0 0.0
        %1457 = vmatpush.msra.mxu0 0.0
        %1458 = vmatpush.msra.mxu0 %v1006
        %1459 = vmatpush.msra.mxu0 %v986
        %1460 = vmatmul.f32.gmra.mxu0 %v893
        %v1461 = vpop.f32.mrf.mxu0
        %v1462 = vadd.f32 0.0, %v1461
        %1463 = vmatmul.f32.gmra.mxu0 %v896
        %v1464 = vpop.f32.mrf.mxu0
        %v1465 = vadd.f32 0.0, %v1464
        %1466 = vdwg.mxu0
        %v1467 = vld [vmem:[%s1] sm:$0xff]
        %v1468 = vld [vmem:[%s1 + $0x8] sm:$0xf]
        %v1469 = vld [vmem:[%s1 + $0xc] sm:$0xff]
        %v1470 = vld [vmem:[%s1 + $0x14] sm:$0xf]
        %v1471 = vld [vmem:[%s481] sm:$0xff]
        %v1472 = vld [vmem:[%s481 + $0x8] sm:$0xff]
        %v1473 = vld [vmem:[%s481 + $0x10] sm:$0xff]
        %v1474 = vld [vmem:[%s481 + $0x18] sm:$0xff]
        %v1475 = vld [vmem:[%s481 + $0x20] sm:$0xff]
        %v1476 = vld [vmem:[%s481 + $0x28] sm:$0xff]
        %v1477 = vld [vmem:[%s481 + $0x30] sm:$0xff]
        %v1478 = vld [vmem:[%s481 + $0x38] sm:$0xff]
        %v1479 = vld [vmem:[%s481 + $0x40] sm:$0xff]
        %v1480 = vld [vmem:[%s481 + $0x48] sm:$0xff]
        %v1481 = vld [vmem:[%s481 + $0x50] sm:$0xff]
        %v1482 = vld [vmem:[%s481 + $0x58] sm:$0xff]
        %v1483 = vld [vmem:[%s481 + $0x60] sm:$0xff]
        %v1484 = vld [vmem:[%s481 + $0x68] sm:$0xff]
        %v1485 = vld [vmem:[%s481 + $0x70] sm:$0xff]
        %v1486 = vld [vmem:[%s481 + $0x78] sm:$0xff]
        %v1487 = vld [vmem:[%s481 + $0x80] sm:$0xff]
        %v1488 = vld [vmem:[%s481 + $0x88] sm:$0xff]
        %v1489 = vld [vmem:[%s481 + $0x90] sm:$0xff]
        %v1490 = vld [vmem:[%s481 + $0x98] sm:$0xff]
        %v1491 = vld [vmem:[%s481 + $0xa0] sm:$0xff]
        %v1492 = vld [vmem:[%s481 + $0xa8] sm:$0xff]
        %v1493 = vld [vmem:[%s481 + $0xb0] sm:$0xff]
        %v1494 = vld [vmem:[%s481 + $0xb8] sm:$0xff]
        %v1495 = vld [vmem:[%s481 + $0xc0] sm:$0xff]
        %v1496 = vld [vmem:[%s481 + $0xc8] sm:$0xff]
        %v1497 = vld [vmem:[%s481 + $0xd0] sm:$0xff]
        %v1498 = vld [vmem:[%s481 + $0xd8] sm:$0xff]
        %v1499 = vld [vmem:[%s481 + $0xe0] sm:$0xff]
        %v1500 = vld [vmem:[%s481 + $0xe8] sm:$0xff]
        %v1501 = vld [vmem:[%s481 + $0xf0] sm:$0xff]
        %v1502 = vld [vmem:[%s481 + $0xf8] sm:$0xff]
        %v1503 = vld [vmem:[%s481 + $0x100] sm:$0xff]
        %v1504 = vld [vmem:[%s481 + $0x108] sm:$0xff]
        %v1505 = vld [vmem:[%s481 + $0x110] sm:$0xff]
        %v1506 = vld [vmem:[%s481 + $0x118] sm:$0xff]
        %v1507 = vld [vmem:[%s481 + $0x120] sm:$0xff]
        %v1508 = vld [vmem:[%s481 + $0x128] sm:$0xff]
        %v1509 = vld [vmem:[%s481 + $0x130] sm:$0xff]
        %v1510 = vld [vmem:[%s481 + $0x138] sm:$0xff]
        %v1511 = vld [vmem:[%s481 + $0x140] sm:$0xff]
        %v1512 = vld [vmem:[%s481 + $0x148] sm:$0xff]
        %v1513 = vld [vmem:[%s481 + $0x150] sm:$0xff]
        %v1514 = vld [vmem:[%s481 + $0x158] sm:$0xff]
        %v1515 = vld [vmem:[%s481 + $0x160] sm:$0xff]
        %v1516 = vld [vmem:[%s481 + $0x168] sm:$0xff]
        %v1517 = vld [vmem:[%s481 + $0x170] sm:$0xff]
        %v1518 = vld [vmem:[%s481 + $0x178] sm:$0xff]
        %v1519 = vld [vmem:[%s481 + $0x180] sm:$0xff]
        %v1520 = vld [vmem:[%s481 + $0x188] sm:$0xff]
        %v1521 = vld [vmem:[%s481 + $0x190] sm:$0xff]
        %v1522 = vld [vmem:[%s481 + $0x198] sm:$0xff]
        %v1523 = vld [vmem:[%s481 + $0x1a0] sm:$0xff]
        %v1524 = vld [vmem:[%s481 + $0x1a8] sm:$0xff]
        %v1525 = vld [vmem:[%s481 + $0x1b0] sm:$0xff]
        %v1526 = vld [vmem:[%s481 + $0x1b8] sm:$0xff]
        %v1527 = vld [vmem:[%s481 + $0x1c0] sm:$0xff]
        %v1528 = vld [vmem:[%s481 + $0x1c8] sm:$0xff]
        %v1529 = vld [vmem:[%s481 + $0x1d0] sm:$0xff]
        %v1530 = vld [vmem:[%s481 + $0x1d8] sm:$0xff]
        %v1531 = vld [vmem:[%s481 + $0x1e0] sm:$0xff]
        %v1532 = vld [vmem:[%s481 + $0x1e8] sm:$0xff]
        %v1533 = vld [vmem:[%s481 + $0x1f0] sm:$0xff]
        %v1534 = vld [vmem:[%s481 + $0x1f8] sm:$0xff]
        %v1535 = vld [vmem:[%s481 + $0x200] sm:$0xff]
        %v1536 = vld [vmem:[%s481 + $0x208] sm:$0xff]
        %v1537 = vld [vmem:[%s481 + $0x210] sm:$0xff]
        %v1538 = vld [vmem:[%s481 + $0x218] sm:$0xff]
        %v1539 = vld [vmem:[%s481 + $0x220] sm:$0xff]
        %v1540 = vld [vmem:[%s481 + $0x228] sm:$0xff]
        %v1541 = vld [vmem:[%s481 + $0x230] sm:$0xff]
        %v1542 = vld [vmem:[%s481 + $0x238] sm:$0xff]
        %v1543 = vld [vmem:[%s481 + $0x240] sm:$0xff]
        %v1544 = vld [vmem:[%s481 + $0x248] sm:$0xff]
        %v1545 = vld [vmem:[%s481 + $0x250] sm:$0xff]
        %v1546 = vld [vmem:[%s481 + $0x258] sm:$0xff]
        %v1547 = vld [vmem:[%s481 + $0x260] sm:$0xff]
        %v1548 = vld [vmem:[%s481 + $0x268] sm:$0xff]
        %v1549 = vld [vmem:[%s481 + $0x270] sm:$0xff]
        %v1550 = vld [vmem:[%s481 + $0x278] sm:$0xff]
        %v1551 = vld [vmem:[%s481 + $0x280] sm:$0xff]
        %v1552 = vld [vmem:[%s481 + $0x288] sm:$0xff]
        %v1553 = vld [vmem:[%s481 + $0x290] sm:$0xff]
        %v1554 = vld [vmem:[%s481 + $0x298] sm:$0xff]
        %v1555 = vld [vmem:[%s481 + $0x2a0] sm:$0xff]
        %v1556 = vld [vmem:[%s481 + $0x2a8] sm:$0xff]
        %v1557 = vld [vmem:[%s481 + $0x2b0] sm:$0xff]
        %v1558 = vld [vmem:[%s481 + $0x2b8] sm:$0xff]
        %v1559 = vld [vmem:[%s481 + $0x2c0] sm:$0xff]
        %v1560 = vld [vmem:[%s481 + $0x2c8] sm:$0xff]
        %v1561 = vld [vmem:[%s481 + $0x2d0] sm:$0xff]
        %v1562 = vld [vmem:[%s481 + $0x2d8] sm:$0xff]
        %v1563 = vld [vmem:[%s481 + $0x2e0] sm:$0xff]
        %v1564 = vld [vmem:[%s481 + $0x2e8] sm:$0xff]
        %v1565 = vld [vmem:[%s481 + $0x2f0] sm:$0xff]
        %v1566 = vld [vmem:[%s481 + $0x2f8] sm:$0xff]
        %v1567 = vld [vmem:[%s481 + $0x300] sm:$0xff]
        %v1568 = vld [vmem:[%s481 + $0x308] sm:$0xff]
        %v1569 = vld [vmem:[%s481 + $0x310] sm:$0xff]
        %v1570 = vld [vmem:[%s481 + $0x318] sm:$0xff]
        %v1571 = vld [vmem:[%s481 + $0x320] sm:$0xff]
        %v1572 = vld [vmem:[%s481 + $0x328] sm:$0xff]
        %v1573 = vld [vmem:[%s481 + $0x330] sm:$0xff]
        %v1574 = vld [vmem:[%s481 + $0x338] sm:$0xff]
        %v1575 = vld [vmem:[%s481 + $0x340] sm:$0xff]
        %v1576 = vld [vmem:[%s481 + $0x348] sm:$0xff]
        %v1577 = vld [vmem:[%s481 + $0x350] sm:$0xff]
        %v1578 = vld [vmem:[%s481 + $0x358] sm:$0xff]
        %v1579 = vld [vmem:[%s481 + $0x360] sm:$0xff]
        %v1580 = vld [vmem:[%s481 + $0x368] sm:$0xff]
        %v1581 = vld [vmem:[%s481 + $0x370] sm:$0xff]
        %v1582 = vld [vmem:[%s481 + $0x378] sm:$0xff]
        %v1583 = vld [vmem:[%s481 + $0x380] sm:$0xff]
        %v1584 = vld [vmem:[%s481 + $0x388] sm:$0xff]
        %v1585 = vld [vmem:[%s481 + $0x390] sm:$0xff]
        %v1586 = vld [vmem:[%s481 + $0x398] sm:$0xff]
        %v1587 = vld [vmem:[%s481 + $0x3a0] sm:$0xff]
        %v1588 = vld [vmem:[%s481 + $0x3a8] sm:$0xff]
        %v1589 = vld [vmem:[%s481 + $0x3b0] sm:$0xff]
        %v1590 = vld [vmem:[%s481 + $0x3b8] sm:$0xff]
        %v1591 = vld [vmem:[%s481 + $0x3c0] sm:$0xff]
        %v1592 = vld [vmem:[%s481 + $0x3c8] sm:$0xff]
        %v1593 = vld [vmem:[%s481 + $0x3d0] sm:$0xff]
        %v1594 = vld [vmem:[%s481 + $0x3d8] sm:$0xff]
        %v1595 = vld [vmem:[%s481 + $0x3e0] sm:$0xff]
        %v1596 = vld [vmem:[%s481 + $0x3e8] sm:$0xff]
        %v1597 = vld [vmem:[%s481 + $0x3f0] sm:$0xff]
        %v1598 = vld [vmem:[%s481 + $0x3f8] sm:$0xff]
        %v1599 = vld [vmem:[%s481 + $0x400] sm:$0xff]
        %v1600 = vld [vmem:[%s481 + $0x408] sm:$0xff]
        %v1601 = vld [vmem:[%s481 + $0x410] sm:$0xff]
        %v1602 = vld [vmem:[%s481 + $0x418] sm:$0xff]
        %v1603 = vld [vmem:[%s481 + $0x420] sm:$0xff]
        %v1604 = vld [vmem:[%s481 + $0x428] sm:$0xff]
        %v1605 = vld [vmem:[%s481 + $0x430] sm:$0xff]
        %v1606 = vld [vmem:[%s481 + $0x438] sm:$0xff]
        %v1607 = vld [vmem:[%s481 + $0x440] sm:$0xff]
        %v1608 = vld [vmem:[%s481 + $0x448] sm:$0xff]
        %v1609 = vld [vmem:[%s481 + $0x450] sm:$0xff]
        %v1610 = vld [vmem:[%s481 + $0x458] sm:$0xff]
        %v1611 = vld [vmem:[%s481 + $0x460] sm:$0xff]
        %v1612 = vld [vmem:[%s481 + $0x468] sm:$0xff]
        %v1613 = vld [vmem:[%s481 + $0x470] sm:$0xff]
        %v1614 = vld [vmem:[%s481 + $0x478] sm:$0xff]
        %v1615 = vld [vmem:[%s481 + $0x480] sm:$0xff]
        %v1616 = vld [vmem:[%s481 + $0x488] sm:$0xff]
        %v1617 = vld [vmem:[%s481 + $0x490] sm:$0xff]
        %v1618 = vld [vmem:[%s481 + $0x498] sm:$0xff]
        %v1619 = vld [vmem:[%s481 + $0x4a0] sm:$0xff]
        %v1620 = vld [vmem:[%s481 + $0x4a8] sm:$0xff]
        %v1621 = vld [vmem:[%s481 + $0x4b0] sm:$0xff]
        %v1622 = vld [vmem:[%s481 + $0x4b8] sm:$0xff]
        %v1623 = vld [vmem:[%s481 + $0x4c0] sm:$0xff]
        %v1624 = vld [vmem:[%s481 + $0x4c8] sm:$0xff]
        %v1625 = vld [vmem:[%s481 + $0x4d0] sm:$0xff]
        %v1626 = vld [vmem:[%s481 + $0x4d8] sm:$0xff]
        %v1627 = vld [vmem:[%s481 + $0x4e0] sm:$0xff]
        %v1628 = vld [vmem:[%s481 + $0x4e8] sm:$0xff]
        %v1629 = vld [vmem:[%s481 + $0x4f0] sm:$0xff]
        %v1630 = vld [vmem:[%s481 + $0x4f8] sm:$0xff]
        %v1631 = vld [vmem:[%s481 + $0x500] sm:$0xff]
        %v1632 = vld [vmem:[%s481 + $0x508] sm:$0xff]
        %v1633 = vld [vmem:[%s481 + $0x510] sm:$0xff]
        %v1634 = vld [vmem:[%s481 + $0x518] sm:$0xff]
        %v1635 = vld [vmem:[%s481 + $0x520] sm:$0xff]
        %v1636 = vld [vmem:[%s481 + $0x528] sm:$0xff]
        %v1637 = vld [vmem:[%s481 + $0x530] sm:$0xff]
        %v1638 = vld [vmem:[%s481 + $0x538] sm:$0xff]
        %v1639 = vld [vmem:[%s481 + $0x540] sm:$0xff]
        %v1640 = vld [vmem:[%s481 + $0x548] sm:$0xff]
        %v1641 = vld [vmem:[%s481 + $0x550] sm:$0xff]
        %v1642 = vld [vmem:[%s481 + $0x558] sm:$0xff]
        %v1643 = vld [vmem:[%s481 + $0x560] sm:$0xff]
        %v1644 = vld [vmem:[%s481 + $0x568] sm:$0xff]
        %v1645 = vld [vmem:[%s481 + $0x570] sm:$0xff]
        %v1646 = vld [vmem:[%s481 + $0x578] sm:$0xff]
        %v1647 = vld [vmem:[%s481 + $0x580] sm:$0xff]
        %v1648 = vld [vmem:[%s481 + $0x588] sm:$0xff]
        %v1649 = vld [vmem:[%s481 + $0x590] sm:$0xff]
        %v1650 = vld [vmem:[%s481 + $0x598] sm:$0xff]
        %v1651 = vld [vmem:[%s481 + $0x5a0] sm:$0xff]
        %v1652 = vld [vmem:[%s481 + $0x5a8] sm:$0xff]
        %v1653 = vld [vmem:[%s481 + $0x5b0] sm:$0xff]
        %v1654 = vld [vmem:[%s481 + $0x5b8] sm:$0xff]
        %v1655 = vld [vmem:[%s481 + $0x5c0] sm:$0xff]
        %v1656 = vld [vmem:[%s481 + $0x5c8] sm:$0xff]
        %v1657 = vld [vmem:[%s481 + $0x5d0] sm:$0xff]
        %v1658 = vld [vmem:[%s481 + $0x5d8] sm:$0xff]
        %v1659 = vld [vmem:[%s481 + $0x5e0] sm:$0xff]
        %v1660 = vld [vmem:[%s481 + $0x5e8] sm:$0xff]
        %v1661 = vld [vmem:[%s481 + $0x5f0] sm:$0xff]
        %v1662 = vld [vmem:[%s481 + $0x5f8] sm:$0xff]
        %v1663 = vld [vmem:[%s481 + $0x600] sm:$0xff]
        %v1664 = vld [vmem:[%s481 + $0x608] sm:$0xff]
        %v1665 = vld [vmem:[%s481 + $0x610] sm:$0xff]
        %v1666 = vld [vmem:[%s481 + $0x618] sm:$0xff]
        %v1667 = vld [vmem:[%s481 + $0x620] sm:$0xff]
        %v1668 = vld [vmem:[%s481 + $0x628] sm:$0xff]
        %v1669 = vld [vmem:[%s481 + $0x630] sm:$0xff]
        %v1670 = vld [vmem:[%s481 + $0x638] sm:$0xff]
        %v1671 = vld [vmem:[%s481 + $0x640] sm:$0xff]
        %v1672 = vld [vmem:[%s481 + $0x648] sm:$0xff]
        %v1673 = vld [vmem:[%s481 + $0x650] sm:$0xff]
        %v1674 = vld [vmem:[%s481 + $0x658] sm:$0xff]
        %v1675 = vld [vmem:[%s481 + $0x660] sm:$0xff]
        %v1676 = vld [vmem:[%s481 + $0x668] sm:$0xff]
        %v1677 = vld [vmem:[%s481 + $0x670] sm:$0xff]
        %v1678 = vld [vmem:[%s481 + $0x678] sm:$0xff]
        %v1679 = vld [vmem:[%s481 + $0x680] sm:$0xff]
        %v1680 = vld [vmem:[%s481 + $0x688] sm:$0xff]
        %v1681 = vld [vmem:[%s481 + $0x690] sm:$0xff]
        %v1682 = vld [vmem:[%s481 + $0x698] sm:$0xff]
        %v1683 = vld [vmem:[%s481 + $0x6a0] sm:$0xff]
        %v1684 = vld [vmem:[%s481 + $0x6a8] sm:$0xff]
        %v1685 = vld [vmem:[%s481 + $0x6b0] sm:$0xff]
        %v1686 = vld [vmem:[%s481 + $0x6b8] sm:$0xff]
        %v1687 = vld [vmem:[%s481 + $0x6c0] sm:$0xff]
        %v1688 = vld [vmem:[%s481 + $0x6c8] sm:$0xff]
        %v1689 = vld [vmem:[%s481 + $0x6d0] sm:$0xff]
        %v1690 = vld [vmem:[%s481 + $0x6d8] sm:$0xff]
        %v1691 = vld [vmem:[%s481 + $0x6e0] sm:$0xff]
        %v1692 = vld [vmem:[%s481 + $0x6e8] sm:$0xff]
        %v1693 = vld [vmem:[%s481 + $0x6f0] sm:$0xff]
        %v1694 = vld [vmem:[%s481 + $0x6f8] sm:$0xff]
        %v1695 = vld [vmem:[%s481 + $0x700] sm:$0xff]
        %v1696 = vld [vmem:[%s481 + $0x708] sm:$0xff]
        %v1697 = vld [vmem:[%s481 + $0x710] sm:$0xff]
        %v1698 = vld [vmem:[%s481 + $0x718] sm:$0xff]
        %v1699 = vld [vmem:[%s481 + $0x720] sm:$0xff]
        %v1700 = vld [vmem:[%s481 + $0x728] sm:$0xff]
        %v1701 = vld [vmem:[%s481 + $0x730] sm:$0xff]
        %v1702 = vld [vmem:[%s481 + $0x738] sm:$0xff]
        %v1703 = vld [vmem:[%s481 + $0x740] sm:$0xff]
        %v1704 = vld [vmem:[%s481 + $0x748] sm:$0xff]
        %v1705 = vld [vmem:[%s481 + $0x750] sm:$0xff]
        %v1706 = vld [vmem:[%s481 + $0x758] sm:$0xff]
        %v1707 = vld [vmem:[%s481 + $0x760] sm:$0xff]
        %v1708 = vld [vmem:[%s481 + $0x768] sm:$0xff]
        %v1709 = vld [vmem:[%s481 + $0x770] sm:$0xff]
        %v1710 = vld [vmem:[%s481 + $0x778] sm:$0xff]
        %v1711 = vld [vmem:[%s481 + $0x780] sm:$0xff]
        %v1712 = vld [vmem:[%s481 + $0x788] sm:$0xff]
        %v1713 = vld [vmem:[%s481 + $0x790] sm:$0xff]
        %v1714 = vld [vmem:[%s481 + $0x798] sm:$0xff]
        %v1715 = vld [vmem:[%s481 + $0x7a0] sm:$0xff]
        %v1716 = vld [vmem:[%s481 + $0x7a8] sm:$0xff]
        %v1717 = vld [vmem:[%s481 + $0x7b0] sm:$0xff]
        %v1718 = vld [vmem:[%s481 + $0x7b8] sm:$0xff]
        %v1719 = vld [vmem:[%s481 + $0x7c0] sm:$0xff]
        %v1720 = vld [vmem:[%s481 + $0x7c8] sm:$0xff]
        %v1721 = vld [vmem:[%s481 + $0x7d0] sm:$0xff]
        %v1722 = vld [vmem:[%s481 + $0x7d8] sm:$0xff]
        %v1723 = vld [vmem:[%s481 + $0x7e0] sm:$0xff]
        %v1724 = vld [vmem:[%s481 + $0x7e8] sm:$0xff]
        %v1725 = vld [vmem:[%s481 + $0x7f0] sm:$0xff]
        %v1726 = vld [vmem:[%s481 + $0x7f8] sm:$0xff]
        %v1727 = vld [vmem:[%s481 + $0x800] sm:$0xff]
        %v1728 = vld [vmem:[%s481 + $0x808] sm:$0xff]
        %v1729 = vld [vmem:[%s481 + $0x810] sm:$0xff]
        %v1730 = vld [vmem:[%s481 + $0x818] sm:$0xff]
        %v1731 = vld [vmem:[%s481 + $0x820] sm:$0xff]
        %v1732 = vld [vmem:[%s481 + $0x828] sm:$0xff]
        %v1733 = vld [vmem:[%s481 + $0x830] sm:$0xff]
        %v1734 = vld [vmem:[%s481 + $0x838] sm:$0xff]
        %v1735 = vld [vmem:[%s481 + $0x840] sm:$0xff]
        %v1736 = vld [vmem:[%s481 + $0x848] sm:$0xff]
        %v1737 = vld [vmem:[%s481 + $0x850] sm:$0xff]
        %v1738 = vld [vmem:[%s481 + $0x858] sm:$0xff]
        %v1739 = vld [vmem:[%s481 + $0x860] sm:$0xff]
        %v1740 = vld [vmem:[%s481 + $0x868] sm:$0xff]
        %v1741 = vld [vmem:[%s481 + $0x870] sm:$0xff]
        %v1742 = vld [vmem:[%s481 + $0x878] sm:$0xff]
        %v1743 = vld [vmem:[%s481 + $0x880] sm:$0xff]
        %v1744 = vld [vmem:[%s481 + $0x888] sm:$0xff]
        %v1745 = vld [vmem:[%s481 + $0x890] sm:$0xff]
        %v1746 = vld [vmem:[%s481 + $0x898] sm:$0xff]
        %v1747 = vld [vmem:[%s481 + $0x8a0] sm:$0xff]
        %v1748 = vld [vmem:[%s481 + $0x8a8] sm:$0xff]
        %v1749 = vld [vmem:[%s481 + $0x8b0] sm:$0xff]
        %v1750 = vld [vmem:[%s481 + $0x8b8] sm:$0xff]
        %v1751 = vld [vmem:[%s481 + $0x8c0] sm:$0xff]
        %v1752 = vld [vmem:[%s481 + $0x8c8] sm:$0xff]
        %v1753 = vld [vmem:[%s481 + $0x8d0] sm:$0xff]
        %v1754 = vld [vmem:[%s481 + $0x8d8] sm:$0xff]
        %v1755 = vld [vmem:[%s481 + $0x8e0] sm:$0xff]
        %v1756 = vld [vmem:[%s481 + $0x8e8] sm:$0xff]
        %v1757 = vld [vmem:[%s481 + $0x8f0] sm:$0xff]
        %v1758 = vld [vmem:[%s481 + $0x8f8] sm:$0xff]
        %v1759 = vld [vmem:[%s481 + $0x900] sm:$0xff]
        %v1760 = vld [vmem:[%s481 + $0x908] sm:$0xff]
        %v1761 = vld [vmem:[%s481 + $0x910] sm:$0xff]
        %v1762 = vld [vmem:[%s481 + $0x918] sm:$0xff]
        %v1763 = vld [vmem:[%s481 + $0x920] sm:$0xff]
        %v1764 = vld [vmem:[%s481 + $0x928] sm:$0xff]
        %v1765 = vld [vmem:[%s481 + $0x930] sm:$0xff]
        %v1766 = vld [vmem:[%s481 + $0x938] sm:$0xff]
        %v1767 = vld [vmem:[%s481 + $0x940] sm:$0xff]
        %v1768 = vld [vmem:[%s481 + $0x948] sm:$0xff]
        %v1769 = vld [vmem:[%s481 + $0x950] sm:$0xff]
        %v1770 = vld [vmem:[%s481 + $0x958] sm:$0xff]
        %v1771 = vld [vmem:[%s481 + $0x960] sm:$0xff]
        %v1772 = vld [vmem:[%s481 + $0x968] sm:$0xff]
        %v1773 = vld [vmem:[%s481 + $0x970] sm:$0xff]
        %v1774 = vld [vmem:[%s481 + $0x978] sm:$0xff]
        %v1775 = vld [vmem:[%s481 + $0x980] sm:$0xff]
        %v1776 = vld [vmem:[%s481 + $0x988] sm:$0xff]
        %v1777 = vld [vmem:[%s481 + $0x990] sm:$0xff]
        %v1778 = vld [vmem:[%s481 + $0x998] sm:$0xff]
        %v1779 = vld [vmem:[%s481 + $0x9a0] sm:$0xff]
        %v1780 = vld [vmem:[%s481 + $0x9a8] sm:$0xff]
        %v1781 = vld [vmem:[%s481 + $0x9b0] sm:$0xff]
        %v1782 = vld [vmem:[%s481 + $0x9b8] sm:$0xff]
        %v1783 = vld [vmem:[%s481 + $0x9c0] sm:$0xff]
        %v1784 = vld [vmem:[%s481 + $0x9c8] sm:$0xff]
        %v1785 = vld [vmem:[%s481 + $0x9d0] sm:$0xff]
        %v1786 = vld [vmem:[%s481 + $0x9d8] sm:$0xff]
        %v1787 = vld [vmem:[%s481 + $0x9e0] sm:$0xff]
        %v1788 = vld [vmem:[%s481 + $0x9e8] sm:$0xff]
        %v1789 = vld [vmem:[%s481 + $0x9f0] sm:$0xff]
        %v1790 = vld [vmem:[%s481 + $0x9f8] sm:$0xff]
        %v1791 = vld [vmem:[%s481 + $0xa00] sm:$0xff]
        %v1792 = vld [vmem:[%s481 + $0xa08] sm:$0xff]
        %v1793 = vld [vmem:[%s481 + $0xa10] sm:$0xff]
        %v1794 = vld [vmem:[%s481 + $0xa18] sm:$0xff]
        %v1795 = vld [vmem:[%s481 + $0xa20] sm:$0xff]
        %v1796 = vld [vmem:[%s481 + $0xa28] sm:$0xff]
        %v1797 = vld [vmem:[%s481 + $0xa30] sm:$0xff]
        %v1798 = vld [vmem:[%s481 + $0xa38] sm:$0xff]
        %v1799 = vld [vmem:[%s481 + $0xa40] sm:$0xff]
        %v1800 = vld [vmem:[%s481 + $0xa48] sm:$0xff]
        %v1801 = vld [vmem:[%s481 + $0xa50] sm:$0xff]
        %v1802 = vld [vmem:[%s481 + $0xa58] sm:$0xff]
        %v1803 = vld [vmem:[%s481 + $0xa60] sm:$0xff]
        %v1804 = vld [vmem:[%s481 + $0xa68] sm:$0xff]
        %v1805 = vld [vmem:[%s481 + $0xa70] sm:$0xff]
        %v1806 = vld [vmem:[%s481 + $0xa78] sm:$0xff]
        %v1807 = vld [vmem:[%s481 + $0xa80] sm:$0xff]
        %v1808 = vld [vmem:[%s481 + $0xa88] sm:$0xff]
        %v1809 = vld [vmem:[%s481 + $0xa90] sm:$0xff]
        %v1810 = vld [vmem:[%s481 + $0xa98] sm:$0xff]
        %v1811 = vld [vmem:[%s481 + $0xaa0] sm:$0xff]
        %v1812 = vld [vmem:[%s481 + $0xaa8] sm:$0xff]
        %v1813 = vld [vmem:[%s481 + $0xab0] sm:$0xff]
        %v1814 = vld [vmem:[%s481 + $0xab8] sm:$0xff]
        %v1815 = vld [vmem:[%s481 + $0xac0] sm:$0xff]
        %v1816 = vld [vmem:[%s481 + $0xac8] sm:$0xff]
        %v1817 = vld [vmem:[%s481 + $0xad0] sm:$0xff]
        %v1818 = vld [vmem:[%s481 + $0xad8] sm:$0xff]
        %v1819 = vld [vmem:[%s481 + $0xae0] sm:$0xff]
        %v1820 = vld [vmem:[%s481 + $0xae8] sm:$0xff]
        %v1821 = vld [vmem:[%s481 + $0xaf0] sm:$0xff]
        %v1822 = vld [vmem:[%s481 + $0xaf8] sm:$0xff]
        %v1823 = vld [vmem:[%s481 + $0xb00] sm:$0xff]
        %v1824 = vld [vmem:[%s481 + $0xb08] sm:$0xff]
        %v1825 = vld [vmem:[%s481 + $0xb10] sm:$0xff]
        %v1826 = vld [vmem:[%s481 + $0xb18] sm:$0xff]
        %v1827 = vld [vmem:[%s481 + $0xb20] sm:$0xff]
        %v1828 = vld [vmem:[%s481 + $0xb28] sm:$0xff]
        %v1829 = vld [vmem:[%s481 + $0xb30] sm:$0xff]
        %v1830 = vld [vmem:[%s481 + $0xb38] sm:$0xff]
        %v1831 = vld [vmem:[%s481 + $0xb40] sm:$0xff]
        %v1832 = vld [vmem:[%s481 + $0xb48] sm:$0xff]
        %v1833 = vld [vmem:[%s481 + $0xb50] sm:$0xff]
        %v1834 = vld [vmem:[%s481 + $0xb58] sm:$0xff]
        %v1835 = vld [vmem:[%s481 + $0xb60] sm:$0xff]
        %v1836 = vld [vmem:[%s481 + $0xb68] sm:$0xff]
        %v1837 = vld [vmem:[%s481 + $0xb70] sm:$0xff]
        %v1838 = vld [vmem:[%s481 + $0xb78] sm:$0xff]
        %v1839 = vld [vmem:[%s481 + $0xb80] sm:$0xff]
        %v1840 = vld [vmem:[%s481 + $0xb88] sm:$0xff]
        %v1841 = vld [vmem:[%s481 + $0xb90] sm:$0xff]
        %v1842 = vld [vmem:[%s481 + $0xb98] sm:$0xff]
        %v1843 = vld [vmem:[%s481 + $0xba0] sm:$0xff]
        %v1844 = vld [vmem:[%s481 + $0xba8] sm:$0xff]
        %v1845 = vld [vmem:[%s481 + $0xbb0] sm:$0xff]
        %v1846 = vld [vmem:[%s481 + $0xbb8] sm:$0xff]
        %v1847 = vld [vmem:[%s481 + $0xbc0] sm:$0xff]
        %v1848 = vld [vmem:[%s481 + $0xbc8] sm:$0xff]
        %v1849 = vld [vmem:[%s481 + $0xbd0] sm:$0xff]
        %v1850 = vld [vmem:[%s481 + $0xbd8] sm:$0xff]
        %v1851 = vld [vmem:[%s481 + $0xbe0] sm:$0xff]
        %v1852 = vld [vmem:[%s481 + $0xbe8] sm:$0xff]
        %v1853 = vld [vmem:[%s481 + $0xbf0] sm:$0xff]
        %v1854 = vld [vmem:[%s481 + $0xbf8] sm:$0xff]
        %v1855 = vld [vmem:[%s481 + $0xc00] sm:$0xff]
        %v1856 = vld [vmem:[%s481 + $0xc08] sm:$0xff]
        %v1857 = vld [vmem:[%s481 + $0xc10] sm:$0xff]
        %v1858 = vld [vmem:[%s481 + $0xc18] sm:$0xff]
        %v1859 = vld [vmem:[%s481 + $0xc20] sm:$0xff]
        %v1860 = vld [vmem:[%s481 + $0xc28] sm:$0xff]
        %v1861 = vld [vmem:[%s481 + $0xc30] sm:$0xff]
        %v1862 = vld [vmem:[%s481 + $0xc38] sm:$0xff]
        %v1863 = vld [vmem:[%s481 + $0xc40] sm:$0xff]
        %v1864 = vld [vmem:[%s481 + $0xc48] sm:$0xff]
        %v1865 = vld [vmem:[%s481 + $0xc50] sm:$0xff]
        %v1866 = vld [vmem:[%s481 + $0xc58] sm:$0xff]
        %v1867 = vld [vmem:[%s481 + $0xc60] sm:$0xff]
        %v1868 = vld [vmem:[%s481 + $0xc68] sm:$0xff]
        %v1869 = vld [vmem:[%s481 + $0xc70] sm:$0xff]
        %v1870 = vld [vmem:[%s481 + $0xc78] sm:$0xff]
        %v1871 = vld [vmem:[%s489] sm:$0xff]
        %v1872 = vld [vmem:[%s489 + $0x8] sm:$0xff]
        %v1873 = vld [vmem:[%s489 + $0x10] sm:$0xf]
        %v1877 = vperm.slane %v1871, 0
        %v1878 = vperm.slane %v1871, 1
        %v1879 = vperm.slane %v1871, 2
        %v1880 = vperm.slane %v1871, 3
        %v1881 = vperm.slane %v1871, 4
        %v1882 = vperm.slane %v1871, 5
        %v1883 = vperm.slane %v1871, 6
        %v1884 = vperm.slane %v1871, 7
        %v1885 = vperm.slane %v1872, 0
        %v1886 = vperm.slane %v1872, 1
        %v1887 = vperm.slane %v1872, 2
        %v1888 = vperm.slane %v1872, 3
        %v1889 = vperm.slane %v1872, 4
        %v1890 = vperm.slane %v1872, 5
        %v1891 = vperm.slane %v1872, 6
        %v1892 = vperm.slane %v1872, 7
        %v1893 = vperm.slane %v1873, 0
        %v1894 = vperm.slane %v1873, 1
        %v1895 = vperm.slane %v1873, 2
        %v1896 = vperm.slane %v1873, 3
        %v1921 = vunpack.c.l.b16 %v1467
        %v1922 = vunpack.c.h.b16 %v1467
        %v1923 = vunpack.c.l.b16 %v1468
        %v1924 = vunpack.c.l.b16 %v1469
        %v1925 = vunpack.c.h.b16 %v1469
        %v1926 = vunpack.c.l.b16 %v1470
        %v1927 = vpack.c.b16 %v1924, %v1921
        %v1928 = vpack.c.b16 %v1925, %v1922
        %v1929 = vpack.c.b16 %v1926, %v1923
        %v2332 = vunpack.c.l.b16 %v1471
        %v2333 = vunpack.c.h.b16 %v1471
        %v2334 = vunpack.c.l.b16 %v1472
        %v2335 = vunpack.c.h.b16 %v1472
        %v2336 = vunpack.c.l.b16 %v1473
        %v2337 = vunpack.c.h.b16 %v1473
        %v2338 = vunpack.c.l.b16 %v1474
        %v2339 = vunpack.c.h.b16 %v1474
        %v2340 = vunpack.c.l.b16 %v1475
        %v2341 = vunpack.c.h.b16 %v1475
        %v2342 = vunpack.c.l.b16 %v1476
        %v2343 = vunpack.c.h.b16 %v1476
        %v2344 = vunpack.c.l.b16 %v1477
        %v2345 = vunpack.c.h.b16 %v1477
        %v2346 = vunpack.c.l.b16 %v1478
        %v2347 = vunpack.c.h.b16 %v1478
        %v2348 = vunpack.c.l.b16 %v1479
        %v2349 = vunpack.c.h.b16 %v1479
        %v2350 = vunpack.c.l.b16 %v1480
        %v2351 = vunpack.c.h.b16 %v1480
        %v2352 = vunpack.c.l.b16 %v1481
        %v2353 = vunpack.c.h.b16 %v1481
        %v2354 = vunpack.c.l.b16 %v1482
        %v2355 = vunpack.c.h.b16 %v1482
        %v2356 = vunpack.c.l.b16 %v1483
        %v2357 = vunpack.c.h.b16 %v1483
        %v2358 = vunpack.c.l.b16 %v1484
        %v2359 = vunpack.c.h.b16 %v1484
        %v2360 = vunpack.c.l.b16 %v1485
        %v2361 = vunpack.c.h.b16 %v1485
        %v2362 = vunpack.c.l.b16 %v1486
        %v2363 = vunpack.c.h.b16 %v1486
        %v2364 = vunpack.c.l.b16 %v1487
        %v2365 = vunpack.c.h.b16 %v1487
        %v2366 = vunpack.c.l.b16 %v1488
        %v2367 = vunpack.c.h.b16 %v1488
        %v2368 = vunpack.c.l.b16 %v1489
        %v2369 = vunpack.c.h.b16 %v1489
        %v2370 = vunpack.c.l.b16 %v1490
        %v2371 = vunpack.c.h.b16 %v1490
        %v2372 = vunpack.c.l.b16 %v1491
        %v2373 = vunpack.c.h.b16 %v1491
        %v2374 = vunpack.c.l.b16 %v1492
        %v2375 = vunpack.c.h.b16 %v1492
        %v2376 = vunpack.c.l.b16 %v1493
        %v2377 = vunpack.c.h.b16 %v1493
        %v2378 = vunpack.c.l.b16 %v1494
        %v2379 = vunpack.c.h.b16 %v1494
        %v2380 = vunpack.c.l.b16 %v1495
        %v2381 = vunpack.c.h.b16 %v1495
        %v2382 = vunpack.c.l.b16 %v1496
        %v2383 = vunpack.c.h.b16 %v1496
        %v2384 = vunpack.c.l.b16 %v1497
        %v2385 = vunpack.c.h.b16 %v1497
        %v2386 = vunpack.c.l.b16 %v1498
        %v2387 = vunpack.c.h.b16 %v1498
        %v2388 = vunpack.c.l.b16 %v1499
        %v2389 = vunpack.c.h.b16 %v1499
        %v2390 = vunpack.c.l.b16 %v1500
        %v2391 = vunpack.c.h.b16 %v1500
        %v2392 = vunpack.c.l.b16 %v1501
        %v2393 = vunpack.c.h.b16 %v1501
        %v2394 = vunpack.c.l.b16 %v1502
        %v2395 = vunpack.c.h.b16 %v1502
        %v2396 = vunpack.c.l.b16 %v1503
        %v2397 = vunpack.c.h.b16 %v1503
        %v2398 = vunpack.c.l.b16 %v1504
        %v2399 = vunpack.c.h.b16 %v1504
        %v2400 = vunpack.c.l.b16 %v1505
        %v2401 = vunpack.c.h.b16 %v1505
        %v2402 = vunpack.c.l.b16 %v1506
        %v2403 = vunpack.c.h.b16 %v1506
        %v2404 = vunpack.c.l.b16 %v1507
        %v2405 = vunpack.c.h.b16 %v1507
        %v2406 = vunpack.c.l.b16 %v1508
        %v2407 = vunpack.c.h.b16 %v1508
        %v2408 = vunpack.c.l.b16 %v1509
        %v2409 = vunpack.c.h.b16 %v1509
        %v2410 = vunpack.c.l.b16 %v1510
        %v2411 = vunpack.c.h.b16 %v1510
        %v2412 = vunpack.c.l.b16 %v1511
        %v2413 = vunpack.c.h.b16 %v1511
        %v2414 = vunpack.c.l.b16 %v1512
        %v2415 = vunpack.c.h.b16 %v1512
        %v2416 = vunpack.c.l.b16 %v1513
        %v2417 = vunpack.c.h.b16 %v1513
        %v2418 = vunpack.c.l.b16 %v1514
        %v2419 = vunpack.c.h.b16 %v1514
        %v2420 = vunpack.c.l.b16 %v1515
        %v2421 = vunpack.c.h.b16 %v1515
        %v2422 = vunpack.c.l.b16 %v1516
        %v2423 = vunpack.c.h.b16 %v1516
        %v2424 = vunpack.c.l.b16 %v1517
        %v2425 = vunpack.c.h.b16 %v1517
        %v2426 = vunpack.c.l.b16 %v1518
        %v2427 = vunpack.c.h.b16 %v1518
        %v2428 = vunpack.c.l.b16 %v1519
        %v2429 = vunpack.c.h.b16 %v1519
        %v2430 = vunpack.c.l.b16 %v1520
        %v2431 = vunpack.c.h.b16 %v1520
        %v2432 = vunpack.c.l.b16 %v1521
        %v2433 = vunpack.c.h.b16 %v1521
        %v2434 = vunpack.c.l.b16 %v1522
        %v2435 = vunpack.c.h.b16 %v1522
        %v2436 = vunpack.c.l.b16 %v1523
        %v2437 = vunpack.c.h.b16 %v1523
        %v2438 = vunpack.c.l.b16 %v1524
        %v2439 = vunpack.c.h.b16 %v1524
        %v2440 = vunpack.c.l.b16 %v1525
        %v2441 = vunpack.c.h.b16 %v1525
        %v2442 = vunpack.c.l.b16 %v1526
        %v2443 = vunpack.c.h.b16 %v1526
        %v2444 = vunpack.c.l.b16 %v1527
        %v2445 = vunpack.c.h.b16 %v1527
        %v2446 = vunpack.c.l.b16 %v1528
        %v2447 = vunpack.c.h.b16 %v1528
        %v2448 = vunpack.c.l.b16 %v1529
        %v2449 = vunpack.c.h.b16 %v1529
        %v2450 = vunpack.c.l.b16 %v1530
        %v2451 = vunpack.c.h.b16 %v1530
        %v2452 = vunpack.c.l.b16 %v1531
        %v2453 = vunpack.c.h.b16 %v1531
        %v2454 = vunpack.c.l.b16 %v1532
        %v2455 = vunpack.c.h.b16 %v1532
        %v2456 = vunpack.c.l.b16 %v1533
        %v2457 = vunpack.c.h.b16 %v1533
        %v2458 = vunpack.c.l.b16 %v1534
        %v2459 = vunpack.c.h.b16 %v1534
        %v2460 = vunpack.c.l.b16 %v1535
        %v2461 = vunpack.c.h.b16 %v1535
        %v2462 = vunpack.c.l.b16 %v1536
        %v2463 = vunpack.c.h.b16 %v1536
        %v2464 = vunpack.c.l.b16 %v1537
        %v2465 = vunpack.c.h.b16 %v1537
        %v2466 = vunpack.c.l.b16 %v1538
        %v2467 = vunpack.c.h.b16 %v1538
        %v2468 = vunpack.c.l.b16 %v1539
        %v2469 = vunpack.c.h.b16 %v1539
        %v2470 = vunpack.c.l.b16 %v1540
        %v2471 = vunpack.c.h.b16 %v1540
        %v2472 = vunpack.c.l.b16 %v1541
        %v2473 = vunpack.c.h.b16 %v1541
        %v2474 = vunpack.c.l.b16 %v1542
        %v2475 = vunpack.c.h.b16 %v1542
        %v2476 = vunpack.c.l.b16 %v1543
        %v2477 = vunpack.c.h.b16 %v1543
        %v2478 = vunpack.c.l.b16 %v1544
        %v2479 = vunpack.c.h.b16 %v1544
        %v2480 = vunpack.c.l.b16 %v1545
        %v2481 = vunpack.c.h.b16 %v1545
        %v2482 = vunpack.c.l.b16 %v1546
        %v2483 = vunpack.c.h.b16 %v1546
        %v2484 = vunpack.c.l.b16 %v1547
        %v2485 = vunpack.c.h.b16 %v1547
        %v2486 = vunpack.c.l.b16 %v1548
        %v2487 = vunpack.c.h.b16 %v1548
        %v2488 = vunpack.c.l.b16 %v1549
        %v2489 = vunpack.c.h.b16 %v1549
        %v2490 = vunpack.c.l.b16 %v1550
        %v2491 = vunpack.c.h.b16 %v1550
        %v2492 = vunpack.c.l.b16 %v1551
        %v2493 = vunpack.c.h.b16 %v1551
        %v2494 = vunpack.c.l.b16 %v1552
        %v2495 = vunpack.c.h.b16 %v1552
        %v2496 = vunpack.c.l.b16 %v1553
        %v2497 = vunpack.c.h.b16 %v1553
        %v2498 = vunpack.c.l.b16 %v1554
        %v2499 = vunpack.c.h.b16 %v1554
        %v2500 = vunpack.c.l.b16 %v1555
        %v2501 = vunpack.c.h.b16 %v1555
        %v2502 = vunpack.c.l.b16 %v1556
        %v2503 = vunpack.c.h.b16 %v1556
        %v2504 = vunpack.c.l.b16 %v1557
        %v2505 = vunpack.c.h.b16 %v1557
        %v2506 = vunpack.c.l.b16 %v1558
        %v2507 = vunpack.c.h.b16 %v1558
        %v2508 = vunpack.c.l.b16 %v1559
        %v2509 = vunpack.c.h.b16 %v1559
        %v2510 = vunpack.c.l.b16 %v1560
        %v2511 = vunpack.c.h.b16 %v1560
        %v2512 = vunpack.c.l.b16 %v1561
        %v2513 = vunpack.c.h.b16 %v1561
        %v2514 = vunpack.c.l.b16 %v1562
        %v2515 = vunpack.c.h.b16 %v1562
        %v2516 = vunpack.c.l.b16 %v1563
        %v2517 = vunpack.c.h.b16 %v1563
        %v2518 = vunpack.c.l.b16 %v1564
        %v2519 = vunpack.c.h.b16 %v1564
        %v2520 = vunpack.c.l.b16 %v1565
        %v2521 = vunpack.c.h.b16 %v1565
        %v2522 = vunpack.c.l.b16 %v1566
        %v2523 = vunpack.c.h.b16 %v1566
        %v2524 = vunpack.c.l.b16 %v1567
        %v2525 = vunpack.c.h.b16 %v1567
        %v2526 = vunpack.c.l.b16 %v1568
        %v2527 = vunpack.c.h.b16 %v1568
        %v2528 = vunpack.c.l.b16 %v1569
        %v2529 = vunpack.c.h.b16 %v1569
        %v2530 = vunpack.c.l.b16 %v1570
        %v2531 = vunpack.c.h.b16 %v1570
        %v2532 = vunpack.c.l.b16 %v1571
        %v2533 = vunpack.c.h.b16 %v1571
        %v2534 = vunpack.c.l.b16 %v1572
        %v2535 = vunpack.c.h.b16 %v1572
        %v2536 = vunpack.c.l.b16 %v1573
        %v2537 = vunpack.c.h.b16 %v1573
        %v2538 = vunpack.c.l.b16 %v1574
        %v2539 = vunpack.c.h.b16 %v1574
        %v2540 = vunpack.c.l.b16 %v1575
        %v2541 = vunpack.c.h.b16 %v1575
        %v2542 = vunpack.c.l.b16 %v1576
        %v2543 = vunpack.c.h.b16 %v1576
        %v2544 = vunpack.c.l.b16 %v1577
        %v2545 = vunpack.c.h.b16 %v1577
        %v2546 = vunpack.c.l.b16 %v1578
        %v2547 = vunpack.c.h.b16 %v1578
        %v2548 = vunpack.c.l.b16 %v1579
        %v2549 = vunpack.c.h.b16 %v1579
        %v2550 = vunpack.c.l.b16 %v1580
        %v2551 = vunpack.c.h.b16 %v1580
        %v2552 = vunpack.c.l.b16 %v1581
        %v2553 = vunpack.c.h.b16 %v1581
        %v2554 = vunpack.c.l.b16 %v1582
        %v2555 = vunpack.c.h.b16 %v1582
        %v2556 = vunpack.c.l.b16 %v1583
        %v2557 = vunpack.c.h.b16 %v1583
        %v2558 = vunpack.c.l.b16 %v1584
        %v2559 = vunpack.c.h.b16 %v1584
        %v2560 = vunpack.c.l.b16 %v1585
        %v2561 = vunpack.c.h.b16 %v1585
        %v2562 = vunpack.c.l.b16 %v1586
        %v2563 = vunpack.c.h.b16 %v1586
        %v2564 = vunpack.c.l.b16 %v1587
        %v2565 = vunpack.c.h.b16 %v1587
        %v2566 = vunpack.c.l.b16 %v1588
        %v2567 = vunpack.c.h.b16 %v1588
        %v2568 = vunpack.c.l.b16 %v1589
        %v2569 = vunpack.c.h.b16 %v1589
        %v2570 = vunpack.c.l.b16 %v1590
        %v2571 = vunpack.c.h.b16 %v1590
        %v2572 = vunpack.c.l.b16 %v1591
        %v2573 = vunpack.c.h.b16 %v1591
        %v2574 = vunpack.c.l.b16 %v1592
        %v2575 = vunpack.c.h.b16 %v1592
        %v2576 = vunpack.c.l.b16 %v1593
        %v2577 = vunpack.c.h.b16 %v1593
        %v2578 = vunpack.c.l.b16 %v1594
        %v2579 = vunpack.c.h.b16 %v1594
        %v2580 = vunpack.c.l.b16 %v1595
        %v2581 = vunpack.c.h.b16 %v1595
        %v2582 = vunpack.c.l.b16 %v1596
        %v2583 = vunpack.c.h.b16 %v1596
        %v2584 = vunpack.c.l.b16 %v1597
        %v2585 = vunpack.c.h.b16 %v1597
        %v2586 = vunpack.c.l.b16 %v1598
        %v2587 = vunpack.c.h.b16 %v1598
        %v2588 = vunpack.c.l.b16 %v1599
        %v2589 = vunpack.c.h.b16 %v1599
        %v2590 = vunpack.c.l.b16 %v1600
        %v2591 = vunpack.c.h.b16 %v1600
        %v2592 = vunpack.c.l.b16 %v1601
        %v2593 = vunpack.c.h.b16 %v1601
        %v2594 = vunpack.c.l.b16 %v1602
        %v2595 = vunpack.c.h.b16 %v1602
        %v2596 = vunpack.c.l.b16 %v1603
        %v2597 = vunpack.c.h.b16 %v1603
        %v2598 = vunpack.c.l.b16 %v1604
        %v2599 = vunpack.c.h.b16 %v1604
        %v2600 = vunpack.c.l.b16 %v1605
        %v2601 = vunpack.c.h.b16 %v1605
        %v2602 = vunpack.c.l.b16 %v1606
        %v2603 = vunpack.c.h.b16 %v1606
        %v2604 = vunpack.c.l.b16 %v1607
        %v2605 = vunpack.c.h.b16 %v1607
        %v2606 = vunpack.c.l.b16 %v1608
        %v2607 = vunpack.c.h.b16 %v1608
        %v2608 = vunpack.c.l.b16 %v1609
        %v2609 = vunpack.c.h.b16 %v1609
        %v2610 = vunpack.c.l.b16 %v1610
        %v2611 = vunpack.c.h.b16 %v1610
        %v2612 = vunpack.c.l.b16 %v1611
        %v2613 = vunpack.c.h.b16 %v1611
        %v2614 = vunpack.c.l.b16 %v1612
        %v2615 = vunpack.c.h.b16 %v1612
        %v2616 = vunpack.c.l.b16 %v1613
        %v2617 = vunpack.c.h.b16 %v1613
        %v2618 = vunpack.c.l.b16 %v1614
        %v2619 = vunpack.c.h.b16 %v1614
        %v2620 = vunpack.c.l.b16 %v1615
        %v2621 = vunpack.c.h.b16 %v1615
        %v2622 = vunpack.c.l.b16 %v1616
        %v2623 = vunpack.c.h.b16 %v1616
        %v2624 = vunpack.c.l.b16 %v1617
        %v2625 = vunpack.c.h.b16 %v1617
        %v2626 = vunpack.c.l.b16 %v1618
        %v2627 = vunpack.c.h.b16 %v1618
        %v2628 = vunpack.c.l.b16 %v1619
        %v2629 = vunpack.c.h.b16 %v1619
        %v2630 = vunpack.c.l.b16 %v1620
        %v2631 = vunpack.c.h.b16 %v1620
        %v2632 = vunpack.c.l.b16 %v1621
        %v2633 = vunpack.c.h.b16 %v1621
        %v2634 = vunpack.c.l.b16 %v1622
        %v2635 = vunpack.c.h.b16 %v1622
        %v2636 = vunpack.c.l.b16 %v1623
        %v2637 = vunpack.c.h.b16 %v1623
        %v2638 = vunpack.c.l.b16 %v1624
        %v2639 = vunpack.c.h.b16 %v1624
        %v2640 = vunpack.c.l.b16 %v1625
        %v2641 = vunpack.c.h.b16 %v1625
        %v2642 = vunpack.c.l.b16 %v1626
        %v2643 = vunpack.c.h.b16 %v1626
        %v2644 = vunpack.c.l.b16 %v1627
        %v2645 = vunpack.c.h.b16 %v1627
        %v2646 = vunpack.c.l.b16 %v1628
        %v2647 = vunpack.c.h.b16 %v1628
        %v2648 = vunpack.c.l.b16 %v1629
        %v2649 = vunpack.c.h.b16 %v1629
        %v2650 = vunpack.c.l.b16 %v1630
        %v2651 = vunpack.c.h.b16 %v1630
        %v2652 = vunpack.c.l.b16 %v1631
        %v2653 = vunpack.c.h.b16 %v1631
        %v2654 = vunpack.c.l.b16 %v1632
        %v2655 = vunpack.c.h.b16 %v1632
        %v2656 = vunpack.c.l.b16 %v1633
        %v2657 = vunpack.c.h.b16 %v1633
        %v2658 = vunpack.c.l.b16 %v1634
        %v2659 = vunpack.c.h.b16 %v1634
        %v2660 = vunpack.c.l.b16 %v1635
        %v2661 = vunpack.c.h.b16 %v1635
        %v2662 = vunpack.c.l.b16 %v1636
        %v2663 = vunpack.c.h.b16 %v1636
        %v2664 = vunpack.c.l.b16 %v1637
        %v2665 = vunpack.c.h.b16 %v1637
        %v2666 = vunpack.c.l.b16 %v1638
        %v2667 = vunpack.c.h.b16 %v1638
        %v2668 = vunpack.c.l.b16 %v1639
        %v2669 = vunpack.c.h.b16 %v1639
        %v2670 = vunpack.c.l.b16 %v1640
        %v2671 = vunpack.c.h.b16 %v1640
        %v2672 = vunpack.c.l.b16 %v1641
        %v2673 = vunpack.c.h.b16 %v1641
        %v2674 = vunpack.c.l.b16 %v1642
        %v2675 = vunpack.c.h.b16 %v1642
        %v2676 = vunpack.c.l.b16 %v1643
        %v2677 = vunpack.c.h.b16 %v1643
        %v2678 = vunpack.c.l.b16 %v1644
        %v2679 = vunpack.c.h.b16 %v1644
        %v2680 = vunpack.c.l.b16 %v1645
        %v2681 = vunpack.c.h.b16 %v1645
        %v2682 = vunpack.c.l.b16 %v1646
        %v2683 = vunpack.c.h.b16 %v1646
        %v2684 = vunpack.c.l.b16 %v1647
        %v2685 = vunpack.c.h.b16 %v1647
        %v2686 = vunpack.c.l.b16 %v1648
        %v2687 = vunpack.c.h.b16 %v1648
        %v2688 = vunpack.c.l.b16 %v1649
        %v2689 = vunpack.c.h.b16 %v1649
        %v2690 = vunpack.c.l.b16 %v1650
        %v2691 = vunpack.c.h.b16 %v1650
        %v2692 = vunpack.c.l.b16 %v1651
        %v2693 = vunpack.c.h.b16 %v1651
        %v2694 = vunpack.c.l.b16 %v1652
        %v2695 = vunpack.c.h.b16 %v1652
        %v2696 = vunpack.c.l.b16 %v1653
        %v2697 = vunpack.c.h.b16 %v1653
        %v2698 = vunpack.c.l.b16 %v1654
        %v2699 = vunpack.c.h.b16 %v1654
        %v2700 = vunpack.c.l.b16 %v1655
        %v2701 = vunpack.c.h.b16 %v1655
        %v2702 = vunpack.c.l.b16 %v1656
        %v2703 = vunpack.c.h.b16 %v1656
        %v2704 = vunpack.c.l.b16 %v1657
        %v2705 = vunpack.c.h.b16 %v1657
        %v2706 = vunpack.c.l.b16 %v1658
        %v2707 = vunpack.c.h.b16 %v1658
        %v2708 = vunpack.c.l.b16 %v1659
        %v2709 = vunpack.c.h.b16 %v1659
        %v2710 = vunpack.c.l.b16 %v1660
        %v2711 = vunpack.c.h.b16 %v1660
        %v2712 = vunpack.c.l.b16 %v1661
        %v2713 = vunpack.c.h.b16 %v1661
        %v2714 = vunpack.c.l.b16 %v1662
        %v2715 = vunpack.c.h.b16 %v1662
        %v2716 = vunpack.c.l.b16 %v1663
        %v2717 = vunpack.c.h.b16 %v1663
        %v2718 = vunpack.c.l.b16 %v1664
        %v2719 = vunpack.c.h.b16 %v1664
        %v2720 = vunpack.c.l.b16 %v1665
        %v2721 = vunpack.c.h.b16 %v1665
        %v2722 = vunpack.c.l.b16 %v1666
        %v2723 = vunpack.c.h.b16 %v1666
        %v2724 = vunpack.c.l.b16 %v1667
        %v2725 = vunpack.c.h.b16 %v1667
        %v2726 = vunpack.c.l.b16 %v1668
        %v2727 = vunpack.c.h.b16 %v1668
        %v2728 = vunpack.c.l.b16 %v1669
        %v2729 = vunpack.c.h.b16 %v1669
        %v2730 = vunpack.c.l.b16 %v1670
        %v2731 = vunpack.c.h.b16 %v1670
        %v2732 = vunpack.c.l.b16 %v1671
        %v2733 = vunpack.c.h.b16 %v1671
        %v2734 = vunpack.c.l.b16 %v1672
        %v2735 = vunpack.c.h.b16 %v1672
        %v2736 = vunpack.c.l.b16 %v1673
        %v2737 = vunpack.c.h.b16 %v1673
        %v2738 = vunpack.c.l.b16 %v1674
        %v2739 = vunpack.c.h.b16 %v1674
        %v2740 = vunpack.c.l.b16 %v1675
        %v2741 = vunpack.c.h.b16 %v1675
        %v2742 = vunpack.c.l.b16 %v1676
        %v2743 = vunpack.c.h.b16 %v1676
        %v2744 = vunpack.c.l.b16 %v1677
        %v2745 = vunpack.c.h.b16 %v1677
        %v2746 = vunpack.c.l.b16 %v1678
        %v2747 = vunpack.c.h.b16 %v1678
        %v2748 = vunpack.c.l.b16 %v1679
        %v2749 = vunpack.c.h.b16 %v1679
        %v2750 = vunpack.c.l.b16 %v1680
        %v2751 = vunpack.c.h.b16 %v1680
        %v2752 = vunpack.c.l.b16 %v1681
        %v2753 = vunpack.c.h.b16 %v1681
        %v2754 = vunpack.c.l.b16 %v1682
        %v2755 = vunpack.c.h.b16 %v1682
        %v2756 = vunpack.c.l.b16 %v1683
        %v2757 = vunpack.c.h.b16 %v1683
        %v2758 = vunpack.c.l.b16 %v1684
        %v2759 = vunpack.c.h.b16 %v1684
        %v2760 = vunpack.c.l.b16 %v1685
        %v2761 = vunpack.c.h.b16 %v1685
        %v2762 = vunpack.c.l.b16 %v1686
        %v2763 = vunpack.c.h.b16 %v1686
        %v2764 = vunpack.c.l.b16 %v1687
        %v2765 = vunpack.c.h.b16 %v1687
        %v2766 = vunpack.c.l.b16 %v1688
        %v2767 = vunpack.c.h.b16 %v1688
        %v2768 = vunpack.c.l.b16 %v1689
        %v2769 = vunpack.c.h.b16 %v1689
        %v2770 = vunpack.c.l.b16 %v1690
        %v2771 = vunpack.c.h.b16 %v1690
        %v2772 = vunpack.c.l.b16 %v1691
        %v2773 = vunpack.c.h.b16 %v1691
        %v2774 = vunpack.c.l.b16 %v1692
        %v2775 = vunpack.c.h.b16 %v1692
        %v2776 = vunpack.c.l.b16 %v1693
        %v2777 = vunpack.c.h.b16 %v1693
        %v2778 = vunpack.c.l.b16 %v1694
        %v2779 = vunpack.c.h.b16 %v1694
        %v2780 = vunpack.c.l.b16 %v1695
        %v2781 = vunpack.c.h.b16 %v1695
        %v2782 = vunpack.c.l.b16 %v1696
        %v2783 = vunpack.c.h.b16 %v1696
        %v2784 = vunpack.c.l.b16 %v1697
        %v2785 = vunpack.c.h.b16 %v1697
        %v2786 = vunpack.c.l.b16 %v1698
        %v2787 = vunpack.c.h.b16 %v1698
        %v2788 = vunpack.c.l.b16 %v1699
        %v2789 = vunpack.c.h.b16 %v1699
        %v2790 = vunpack.c.l.b16 %v1700
        %v2791 = vunpack.c.h.b16 %v1700
        %v2792 = vunpack.c.l.b16 %v1701
        %v2793 = vunpack.c.h.b16 %v1701
        %v2794 = vunpack.c.l.b16 %v1702
        %v2795 = vunpack.c.h.b16 %v1702
        %v2796 = vunpack.c.l.b16 %v1703
        %v2797 = vunpack.c.h.b16 %v1703
        %v2798 = vunpack.c.l.b16 %v1704
        %v2799 = vunpack.c.h.b16 %v1704
        %v2800 = vunpack.c.l.b16 %v1705
        %v2801 = vunpack.c.h.b16 %v1705
        %v2802 = vunpack.c.l.b16 %v1706
        %v2803 = vunpack.c.h.b16 %v1706
        %v2804 = vunpack.c.l.b16 %v1707
        %v2805 = vunpack.c.h.b16 %v1707
        %v2806 = vunpack.c.l.b16 %v1708
        %v2807 = vunpack.c.h.b16 %v1708
        %v2808 = vunpack.c.l.b16 %v1709
        %v2809 = vunpack.c.h.b16 %v1709
        %v2810 = vunpack.c.l.b16 %v1710
        %v2811 = vunpack.c.h.b16 %v1710
        %v2812 = vunpack.c.l.b16 %v1711
        %v2813 = vunpack.c.h.b16 %v1711
        %v2814 = vunpack.c.l.b16 %v1712
        %v2815 = vunpack.c.h.b16 %v1712
        %v2816 = vunpack.c.l.b16 %v1713
        %v2817 = vunpack.c.h.b16 %v1713
        %v2818 = vunpack.c.l.b16 %v1714
        %v2819 = vunpack.c.h.b16 %v1714
        %v2820 = vunpack.c.l.b16 %v1715
        %v2821 = vunpack.c.h.b16 %v1715
        %v2822 = vunpack.c.l.b16 %v1716
        %v2823 = vunpack.c.h.b16 %v1716
        %v2824 = vunpack.c.l.b16 %v1717
        %v2825 = vunpack.c.h.b16 %v1717
        %v2826 = vunpack.c.l.b16 %v1718
        %v2827 = vunpack.c.h.b16 %v1718
        %v2828 = vunpack.c.l.b16 %v1719
        %v2829 = vunpack.c.h.b16 %v1719
        %v2830 = vunpack.c.l.b16 %v1720
        %v2831 = vunpack.c.h.b16 %v1720
        %v2832 = vunpack.c.l.b16 %v1721
        %v2833 = vunpack.c.h.b16 %v1721
        %v2834 = vunpack.c.l.b16 %v1722
        %v2835 = vunpack.c.h.b16 %v1722
        %v2836 = vunpack.c.l.b16 %v1723
        %v2837 = vunpack.c.h.b16 %v1723
        %v2838 = vunpack.c.l.b16 %v1724
        %v2839 = vunpack.c.h.b16 %v1724
        %v2840 = vunpack.c.l.b16 %v1725
        %v2841 = vunpack.c.h.b16 %v1725
        %v2842 = vunpack.c.l.b16 %v1726
        %v2843 = vunpack.c.h.b16 %v1726
        %v2844 = vunpack.c.l.b16 %v1727
        %v2845 = vunpack.c.h.b16 %v1727
        %v2846 = vunpack.c.l.b16 %v1728
        %v2847 = vunpack.c.h.b16 %v1728
        %v2848 = vunpack.c.l.b16 %v1729
        %v2849 = vunpack.c.h.b16 %v1729
        %v2850 = vunpack.c.l.b16 %v1730
        %v2851 = vunpack.c.h.b16 %v1730
        %v2852 = vunpack.c.l.b16 %v1731
        %v2853 = vunpack.c.h.b16 %v1731
        %v2854 = vunpack.c.l.b16 %v1732
        %v2855 = vunpack.c.h.b16 %v1732
        %v2856 = vunpack.c.l.b16 %v1733
        %v2857 = vunpack.c.h.b16 %v1733
        %v2858 = vunpack.c.l.b16 %v1734
        %v2859 = vunpack.c.h.b16 %v1734
        %v2860 = vunpack.c.l.b16 %v1735
        %v2861 = vunpack.c.h.b16 %v1735
        %v2862 = vunpack.c.l.b16 %v1736
        %v2863 = vunpack.c.h.b16 %v1736
        %v2864 = vunpack.c.l.b16 %v1737
        %v2865 = vunpack.c.h.b16 %v1737
        %v2866 = vunpack.c.l.b16 %v1738
        %v2867 = vunpack.c.h.b16 %v1738
        %v2868 = vunpack.c.l.b16 %v1739
        %v2869 = vunpack.c.h.b16 %v1739
        %v2870 = vunpack.c.l.b16 %v1740
        %v2871 = vunpack.c.h.b16 %v1740
        %v2872 = vunpack.c.l.b16 %v1741
        %v2873 = vunpack.c.h.b16 %v1741
        %v2874 = vunpack.c.l.b16 %v1742
        %v2875 = vunpack.c.h.b16 %v1742
        %v2876 = vunpack.c.l.b16 %v1743
        %v2877 = vunpack.c.h.b16 %v1743
        %v2878 = vunpack.c.l.b16 %v1744
        %v2879 = vunpack.c.h.b16 %v1744
        %v2880 = vunpack.c.l.b16 %v1745
        %v2881 = vunpack.c.h.b16 %v1745
        %v2882 = vunpack.c.l.b16 %v1746
        %v2883 = vunpack.c.h.b16 %v1746
        %v2884 = vunpack.c.l.b16 %v1747
        %v2885 = vunpack.c.h.b16 %v1747
        %v2886 = vunpack.c.l.b16 %v1748
        %v2887 = vunpack.c.h.b16 %v1748
        %v2888 = vunpack.c.l.b16 %v1749
        %v2889 = vunpack.c.h.b16 %v1749
        %v2890 = vunpack.c.l.b16 %v1750
        %v2891 = vunpack.c.h.b16 %v1750
        %v2892 = vunpack.c.l.b16 %v1751
        %v2893 = vunpack.c.h.b16 %v1751
        %v2894 = vunpack.c.l.b16 %v1752
        %v2895 = vunpack.c.h.b16 %v1752
        %v2896 = vunpack.c.l.b16 %v1753
        %v2897 = vunpack.c.h.b16 %v1753
        %v2898 = vunpack.c.l.b16 %v1754
        %v2899 = vunpack.c.h.b16 %v1754
        %v2900 = vunpack.c.l.b16 %v1755
        %v2901 = vunpack.c.h.b16 %v1755
        %v2902 = vunpack.c.l.b16 %v1756
        %v2903 = vunpack.c.h.b16 %v1756
        %v2904 = vunpack.c.l.b16 %v1757
        %v2905 = vunpack.c.h.b16 %v1757
        %v2906 = vunpack.c.l.b16 %v1758
        %v2907 = vunpack.c.h.b16 %v1758
        %v2908 = vunpack.c.l.b16 %v1759
        %v2909 = vunpack.c.h.b16 %v1759
        %v2910 = vunpack.c.l.b16 %v1760
        %v2911 = vunpack.c.h.b16 %v1760
        %v2912 = vunpack.c.l.b16 %v1761
        %v2913 = vunpack.c.h.b16 %v1761
        %v2914 = vunpack.c.l.b16 %v1762
        %v2915 = vunpack.c.h.b16 %v1762
        %v2916 = vunpack.c.l.b16 %v1763
        %v2917 = vunpack.c.h.b16 %v1763
        %v2918 = vunpack.c.l.b16 %v1764
        %v2919 = vunpack.c.h.b16 %v1764
        %v2920 = vunpack.c.l.b16 %v1765
        %v2921 = vunpack.c.h.b16 %v1765
        %v2922 = vunpack.c.l.b16 %v1766
        %v2923 = vunpack.c.h.b16 %v1766
        %v2924 = vunpack.c.l.b16 %v1767
        %v2925 = vunpack.c.h.b16 %v1767
        %v2926 = vunpack.c.l.b16 %v1768
        %v2927 = vunpack.c.h.b16 %v1768
        %v2928 = vunpack.c.l.b16 %v1769
        %v2929 = vunpack.c.h.b16 %v1769
        %v2930 = vunpack.c.l.b16 %v1770
        %v2931 = vunpack.c.h.b16 %v1770
        %v2932 = vunpack.c.l.b16 %v1771
        %v2933 = vunpack.c.h.b16 %v1771
        %v2934 = vunpack.c.l.b16 %v1772
        %v2935 = vunpack.c.h.b16 %v1772
        %v2936 = vunpack.c.l.b16 %v1773
        %v2937 = vunpack.c.h.b16 %v1773
        %v2938 = vunpack.c.l.b16 %v1774
        %v2939 = vunpack.c.h.b16 %v1774
        %v2940 = vunpack.c.l.b16 %v1775
        %v2941 = vunpack.c.h.b16 %v1775
        %v2942 = vunpack.c.l.b16 %v1776
        %v2943 = vunpack.c.h.b16 %v1776
        %v2944 = vunpack.c.l.b16 %v1777
        %v2945 = vunpack.c.h.b16 %v1777
        %v2946 = vunpack.c.l.b16 %v1778
        %v2947 = vunpack.c.h.b16 %v1778
        %v2948 = vunpack.c.l.b16 %v1779
        %v2949 = vunpack.c.h.b16 %v1779
        %v2950 = vunpack.c.l.b16 %v1780
        %v2951 = vunpack.c.h.b16 %v1780
        %v2952 = vunpack.c.l.b16 %v1781
        %v2953 = vunpack.c.h.b16 %v1781
        %v2954 = vunpack.c.l.b16 %v1782
        %v2955 = vunpack.c.h.b16 %v1782
        %v2956 = vunpack.c.l.b16 %v1783
        %v2957 = vunpack.c.h.b16 %v1783
        %v2958 = vunpack.c.l.b16 %v1784
        %v2959 = vunpack.c.h.b16 %v1784
        %v2960 = vunpack.c.l.b16 %v1785
        %v2961 = vunpack.c.h.b16 %v1785
        %v2962 = vunpack.c.l.b16 %v1786
        %v2963 = vunpack.c.h.b16 %v1786
        %v2964 = vunpack.c.l.b16 %v1787
        %v2965 = vunpack.c.h.b16 %v1787
        %v2966 = vunpack.c.l.b16 %v1788
        %v2967 = vunpack.c.h.b16 %v1788
        %v2968 = vunpack.c.l.b16 %v1789
        %v2969 = vunpack.c.h.b16 %v1789
        %v2970 = vunpack.c.l.b16 %v1790
        %v2971 = vunpack.c.h.b16 %v1790
        %v2972 = vunpack.c.l.b16 %v1791
        %v2973 = vunpack.c.h.b16 %v1791
        %v2974 = vunpack.c.l.b16 %v1792
        %v2975 = vunpack.c.h.b16 %v1792
        %v2976 = vunpack.c.l.b16 %v1793
        %v2977 = vunpack.c.h.b16 %v1793
        %v2978 = vunpack.c.l.b16 %v1794
        %v2979 = vunpack.c.h.b16 %v1794
        %v2980 = vunpack.c.l.b16 %v1795
        %v2981 = vunpack.c.h.b16 %v1795
        %v2982 = vunpack.c.l.b16 %v1796
        %v2983 = vunpack.c.h.b16 %v1796
        %v2984 = vunpack.c.l.b16 %v1797
        %v2985 = vunpack.c.h.b16 %v1797
        %v2986 = vunpack.c.l.b16 %v1798
        %v2987 = vunpack.c.h.b16 %v1798
        %v2988 = vunpack.c.l.b16 %v1799
        %v2989 = vunpack.c.h.b16 %v1799
        %v2990 = vunpack.c.l.b16 %v1800
        %v2991 = vunpack.c.h.b16 %v1800
        %v2992 = vunpack.c.l.b16 %v1801
        %v2993 = vunpack.c.h.b16 %v1801
        %v2994 = vunpack.c.l.b16 %v1802
        %v2995 = vunpack.c.h.b16 %v1802
        %v2996 = vunpack.c.l.b16 %v1803
        %v2997 = vunpack.c.h.b16 %v1803
        %v2998 = vunpack.c.l.b16 %v1804
        %v2999 = vunpack.c.h.b16 %v1804
        %v3000 = vunpack.c.l.b16 %v1805
        %v3001 = vunpack.c.h.b16 %v1805
        %v3002 = vunpack.c.l.b16 %v1806
        %v3003 = vunpack.c.h.b16 %v1806
        %v3004 = vunpack.c.l.b16 %v1807
        %v3005 = vunpack.c.h.b16 %v1807
        %v3006 = vunpack.c.l.b16 %v1808
        %v3007 = vunpack.c.h.b16 %v1808
        %v3008 = vunpack.c.l.b16 %v1809
        %v3009 = vunpack.c.h.b16 %v1809
        %v3010 = vunpack.c.l.b16 %v1810
        %v3011 = vunpack.c.h.b16 %v1810
        %v3012 = vunpack.c.l.b16 %v1811
        %v3013 = vunpack.c.h.b16 %v1811
        %v3014 = vunpack.c.l.b16 %v1812
        %v3015 = vunpack.c.h.b16 %v1812
        %v3016 = vunpack.c.l.b16 %v1813
        %v3017 = vunpack.c.h.b16 %v1813
        %v3018 = vunpack.c.l.b16 %v1814
        %v3019 = vunpack.c.h.b16 %v1814
        %v3020 = vunpack.c.l.b16 %v1815
        %v3021 = vunpack.c.h.b16 %v1815
        %v3022 = vunpack.c.l.b16 %v1816
        %v3023 = vunpack.c.h.b16 %v1816
        %v3024 = vunpack.c.l.b16 %v1817
        %v3025 = vunpack.c.h.b16 %v1817
        %v3026 = vunpack.c.l.b16 %v1818
        %v3027 = vunpack.c.h.b16 %v1818
        %v3028 = vunpack.c.l.b16 %v1819
        %v3029 = vunpack.c.h.b16 %v1819
        %v3030 = vunpack.c.l.b16 %v1820
        %v3031 = vunpack.c.h.b16 %v1820
        %v3032 = vunpack.c.l.b16 %v1821
        %v3033 = vunpack.c.h.b16 %v1821
        %v3034 = vunpack.c.l.b16 %v1822
        %v3035 = vunpack.c.h.b16 %v1822
        %v3036 = vunpack.c.l.b16 %v1823
        %v3037 = vunpack.c.h.b16 %v1823
        %v3038 = vunpack.c.l.b16 %v1824
        %v3039 = vunpack.c.h.b16 %v1824
        %v3040 = vunpack.c.l.b16 %v1825
        %v3041 = vunpack.c.h.b16 %v1825
        %v3042 = vunpack.c.l.b16 %v1826
        %v3043 = vunpack.c.h.b16 %v1826
        %v3044 = vunpack.c.l.b16 %v1827
        %v3045 = vunpack.c.h.b16 %v1827
        %v3046 = vunpack.c.l.b16 %v1828
        %v3047 = vunpack.c.h.b16 %v1828
        %v3048 = vunpack.c.l.b16 %v1829
        %v3049 = vunpack.c.h.b16 %v1829
        %v3050 = vunpack.c.l.b16 %v1830
        %v3051 = vunpack.c.h.b16 %v1830
        %v3052 = vunpack.c.l.b16 %v1831
        %v3053 = vunpack.c.h.b16 %v1831
        %v3054 = vunpack.c.l.b16 %v1832
        %v3055 = vunpack.c.h.b16 %v1832
        %v3056 = vunpack.c.l.b16 %v1833
        %v3057 = vunpack.c.h.b16 %v1833
        %v3058 = vunpack.c.l.b16 %v1834
        %v3059 = vunpack.c.h.b16 %v1834
        %v3060 = vunpack.c.l.b16 %v1835
        %v3061 = vunpack.c.h.b16 %v1835
        %v3062 = vunpack.c.l.b16 %v1836
        %v3063 = vunpack.c.h.b16 %v1836
        %v3064 = vunpack.c.l.b16 %v1837
        %v3065 = vunpack.c.h.b16 %v1837
        %v3066 = vunpack.c.l.b16 %v1838
        %v3067 = vunpack.c.h.b16 %v1838
        %v3068 = vunpack.c.l.b16 %v1839
        %v3069 = vunpack.c.h.b16 %v1839
        %v3070 = vunpack.c.l.b16 %v1840
        %v3071 = vunpack.c.h.b16 %v1840
        %v3072 = vunpack.c.l.b16 %v1841
        %v3073 = vunpack.c.h.b16 %v1841
        %v3074 = vunpack.c.l.b16 %v1842
        %v3075 = vunpack.c.h.b16 %v1842
        %v3076 = vunpack.c.l.b16 %v1843
        %v3077 = vunpack.c.h.b16 %v1843
        %v3078 = vunpack.c.l.b16 %v1844
        %v3079 = vunpack.c.h.b16 %v1844
        %v3080 = vunpack.c.l.b16 %v1845
        %v3081 = vunpack.c.h.b16 %v1845
        %v3082 = vunpack.c.l.b16 %v1846
        %v3083 = vunpack.c.h.b16 %v1846
        %v3084 = vunpack.c.l.b16 %v1847
        %v3085 = vunpack.c.h.b16 %v1847
        %v3086 = vunpack.c.l.b16 %v1848
        %v3087 = vunpack.c.h.b16 %v1848
        %v3088 = vunpack.c.l.b16 %v1849
        %v3089 = vunpack.c.h.b16 %v1849
        %v3090 = vunpack.c.l.b16 %v1850
        %v3091 = vunpack.c.h.b16 %v1850
        %v3092 = vunpack.c.l.b16 %v1851
        %v3093 = vunpack.c.h.b16 %v1851
        %v3094 = vunpack.c.l.b16 %v1852
        %v3095 = vunpack.c.h.b16 %v1852
        %v3096 = vunpack.c.l.b16 %v1853
        %v3097 = vunpack.c.h.b16 %v1853
        %v3098 = vunpack.c.l.b16 %v1854
        %v3099 = vunpack.c.h.b16 %v1854
        %v3100 = vunpack.c.l.b16 %v1855
        %v3101 = vunpack.c.h.b16 %v1855
        %v3102 = vunpack.c.l.b16 %v1856
        %v3103 = vunpack.c.h.b16 %v1856
        %v3104 = vunpack.c.l.b16 %v1857
        %v3105 = vunpack.c.h.b16 %v1857
        %v3106 = vunpack.c.l.b16 %v1858
        %v3107 = vunpack.c.h.b16 %v1858
        %v3108 = vunpack.c.l.b16 %v1859
        %v3109 = vunpack.c.h.b16 %v1859
        %v3110 = vunpack.c.l.b16 %v1860
        %v3111 = vunpack.c.h.b16 %v1860
        %v3112 = vunpack.c.l.b16 %v1861
        %v3113 = vunpack.c.h.b16 %v1861
        %v3114 = vunpack.c.l.b16 %v1862
        %v3115 = vunpack.c.h.b16 %v1862
        %v3116 = vunpack.c.l.b16 %v1863
        %v3117 = vunpack.c.h.b16 %v1863
        %v3118 = vunpack.c.l.b16 %v1864
        %v3119 = vunpack.c.h.b16 %v1864
        %v3120 = vunpack.c.l.b16 %v1865
        %v3121 = vunpack.c.h.b16 %v1865
        %v3122 = vunpack.c.l.b16 %v1866
        %v3123 = vunpack.c.h.b16 %v1866
        %v3124 = vunpack.c.l.b16 %v1867
        %v3125 = vunpack.c.h.b16 %v1867
        %v3126 = vunpack.c.l.b16 %v1868
        %v3127 = vunpack.c.h.b16 %v1868
        %v3128 = vunpack.c.l.b16 %v1869
        %v3129 = vunpack.c.h.b16 %v1869
        %v3130 = vunpack.c.l.b16 %v1870
        %v3131 = vunpack.c.h.b16 %v1870
        %v3132 = vpack.c.b16 %v2352, %v2332
        %v3133 = vpack.c.b16 %v2353, %v2333
        %v3134 = vpack.c.b16 %v2354, %v2334
        %v3135 = vpack.c.b16 %v2355, %v2335
        %v3136 = vpack.c.b16 %v2356, %v2336
        %v3137 = vpack.c.b16 %v2357, %v2337
        %v3138 = vpack.c.b16 %v2358, %v2338
        %v3139 = vpack.c.b16 %v2359, %v2339
        %v3140 = vpack.c.b16 %v2360, %v2340
        %v3141 = vpack.c.b16 %v2361, %v2341
        %v3142 = vpack.c.b16 %v2362, %v2342
        %v3143 = vpack.c.b16 %v2363, %v2343
        %v3144 = vpack.c.b16 %v2364, %v2344
        %v3145 = vpack.c.b16 %v2365, %v2345
        %v3146 = vpack.c.b16 %v2366, %v2346
        %v3147 = vpack.c.b16 %v2367, %v2347
        %v3148 = vpack.c.b16 %v2368, %v2348
        %v3149 = vpack.c.b16 %v2369, %v2349
        %v3150 = vpack.c.b16 %v2370, %v2350
        %v3151 = vpack.c.b16 %v2371, %v2351
        %v3152 = vpack.c.b16 %v2392, %v2372
        %v3153 = vpack.c.b16 %v2393, %v2373
        %v3154 = vpack.c.b16 %v2394, %v2374
        %v3155 = vpack.c.b16 %v2395, %v2375
        %v3156 = vpack.c.b16 %v2396, %v2376
        %v3157 = vpack.c.b16 %v2397, %v2377
        %v3158 = vpack.c.b16 %v2398, %v2378
        %v3159 = vpack.c.b16 %v2399, %v2379
        %v3160 = vpack.c.b16 %v2400, %v2380
        %v3161 = vpack.c.b16 %v2401, %v2381
        %v3162 = vpack.c.b16 %v2402, %v2382
        %v3163 = vpack.c.b16 %v2403, %v2383
        %v3164 = vpack.c.b16 %v2404, %v2384
        %v3165 = vpack.c.b16 %v2405, %v2385
        %v3166 = vpack.c.b16 %v2406, %v2386
        %v3167 = vpack.c.b16 %v2407, %v2387
        %v3168 = vpack.c.b16 %v2408, %v2388
        %v3169 = vpack.c.b16 %v2409, %v2389
        %v3170 = vpack.c.b16 %v2410, %v2390
        %v3171 = vpack.c.b16 %v2411, %v2391
        %v3172 = vpack.c.b16 %v2432, %v2412
        %v3173 = vpack.c.b16 %v2433, %v2413
        %v3174 = vpack.c.b16 %v2434, %v2414
        %v3175 = vpack.c.b16 %v2435, %v2415
        %v3176 = vpack.c.b16 %v2436, %v2416
        %v3177 = vpack.c.b16 %v2437, %v2417
        %v3178 = vpack.c.b16 %v2438, %v2418
        %v3179 = vpack.c.b16 %v2439, %v2419
        %v3180 = vpack.c.b16 %v2440, %v2420
        %v3181 = vpack.c.b16 %v2441, %v2421
        %v3182 = vpack.c.b16 %v2442, %v2422
        %v3183 = vpack.c.b16 %v2443, %v2423
        %v3184 = vpack.c.b16 %v2444, %v2424
        %v3185 = vpack.c.b16 %v2445, %v2425
        %v3186 = vpack.c.b16 %v2446, %v2426
        %v3187 = vpack.c.b16 %v2447, %v2427
        %v3188 = vpack.c.b16 %v2448, %v2428
        %v3189 = vpack.c.b16 %v2449, %v2429
        %v3190 = vpack.c.b16 %v2450, %v2430
        %v3191 = vpack.c.b16 %v2451, %v2431
        %v3192 = vpack.c.b16 %v2472, %v2452
        %v3193 = vpack.c.b16 %v2473, %v2453
        %v3194 = vpack.c.b16 %v2474, %v2454
        %v3195 = vpack.c.b16 %v2475, %v2455
        %v3196 = vpack.c.b16 %v2476, %v2456
        %v3197 = vpack.c.b16 %v2477, %v2457
        %v3198 = vpack.c.b16 %v2478, %v2458
        %v3199 = vpack.c.b16 %v2479, %v2459
        %v3200 = vpack.c.b16 %v2480, %v2460
        %v3201 = vpack.c.b16 %v2481, %v2461
        %v3202 = vpack.c.b16 %v2482, %v2462
        %v3203 = vpack.c.b16 %v2483, %v2463
        %v3204 = vpack.c.b16 %v2484, %v2464
        %v3205 = vpack.c.b16 %v2485, %v2465
        %v3206 = vpack.c.b16 %v2486, %v2466
        %v3207 = vpack.c.b16 %v2487, %v2467
        %v3208 = vpack.c.b16 %v2488, %v2468
        %v3209 = vpack.c.b16 %v2489, %v2469
        %v3210 = vpack.c.b16 %v2490, %v2470
        %v3211 = vpack.c.b16 %v2491, %v2471
        %v3212 = vpack.c.b16 %v2512, %v2492
        %v3213 = vpack.c.b16 %v2513, %v2493
        %v3214 = vpack.c.b16 %v2514, %v2494
        %v3215 = vpack.c.b16 %v2515, %v2495
        %v3216 = vpack.c.b16 %v2516, %v2496
        %v3217 = vpack.c.b16 %v2517, %v2497
        %v3218 = vpack.c.b16 %v2518, %v2498
        %v3219 = vpack.c.b16 %v2519, %v2499
        %v3220 = vpack.c.b16 %v2520, %v2500
        %v3221 = vpack.c.b16 %v2521, %v2501
        %v3222 = vpack.c.b16 %v2522, %v2502
        %v3223 = vpack.c.b16 %v2523, %v2503
        %v3224 = vpack.c.b16 %v2524, %v2504
        %v3225 = vpack.c.b16 %v2525, %v2505
        %v3226 = vpack.c.b16 %v2526, %v2506
        %v3227 = vpack.c.b16 %v2527, %v2507
        %v3228 = vpack.c.b16 %v2528, %v2508
        %v3229 = vpack.c.b16 %v2529, %v2509
        %v3230 = vpack.c.b16 %v2530, %v2510
        %v3231 = vpack.c.b16 %v2531, %v2511
        %v3232 = vpack.c.b16 %v2552, %v2532
        %v3233 = vpack.c.b16 %v2553, %v2533
        %v3234 = vpack.c.b16 %v2554, %v2534
        %v3235 = vpack.c.b16 %v2555, %v2535
        %v3236 = vpack.c.b16 %v2556, %v2536
        %v3237 = vpack.c.b16 %v2557, %v2537
        %v3238 = vpack.c.b16 %v2558, %v2538
        %v3239 = vpack.c.b16 %v2559, %v2539
        %v3240 = vpack.c.b16 %v2560, %v2540
        %v3241 = vpack.c.b16 %v2561, %v2541
        %v3242 = vpack.c.b16 %v2562, %v2542
        %v3243 = vpack.c.b16 %v2563, %v2543
        %v3244 = vpack.c.b16 %v2564, %v2544
        %v3245 = vpack.c.b16 %v2565, %v2545
        %v3246 = vpack.c.b16 %v2566, %v2546
        %v3247 = vpack.c.b16 %v2567, %v2547
        %v3248 = vpack.c.b16 %v2568, %v2548
        %v3249 = vpack.c.b16 %v2569, %v2549
        %v3250 = vpack.c.b16 %v2570, %v2550
        %v3251 = vpack.c.b16 %v2571, %v2551
        %v3252 = vpack.c.b16 %v2592, %v2572
        %v3253 = vpack.c.b16 %v2593, %v2573
        %v3254 = vpack.c.b16 %v2594, %v2574
        %v3255 = vpack.c.b16 %v2595, %v2575
        %v3256 = vpack.c.b16 %v2596, %v2576
        %v3257 = vpack.c.b16 %v2597, %v2577
        %v3258 = vpack.c.b16 %v2598, %v2578
        %v3259 = vpack.c.b16 %v2599, %v2579
        %v3260 = vpack.c.b16 %v2600, %v2580
        %v3261 = vpack.c.b16 %v2601, %v2581
        %v3262 = vpack.c.b16 %v2602, %v2582
        %v3263 = vpack.c.b16 %v2603, %v2583
        %v3264 = vpack.c.b16 %v2604, %v2584
        %v3265 = vpack.c.b16 %v2605, %v2585
        %v3266 = vpack.c.b16 %v2606, %v2586
        %v3267 = vpack.c.b16 %v2607, %v2587
        %v3268 = vpack.c.b16 %v2608, %v2588
        %v3269 = vpack.c.b16 %v2609, %v2589
        %v3270 = vpack.c.b16 %v2610, %v2590
        %v3271 = vpack.c.b16 %v2611, %v2591
        %v3272 = vpack.c.b16 %v2632, %v2612
        %v3273 = vpack.c.b16 %v2633, %v2613
        %v3274 = vpack.c.b16 %v2634, %v2614
        %v3275 = vpack.c.b16 %v2635, %v2615
        %v3276 = vpack.c.b16 %v2636, %v2616
        %v3277 = vpack.c.b16 %v2637, %v2617
        %v3278 = vpack.c.b16 %v2638, %v2618
        %v3279 = vpack.c.b16 %v2639, %v2619
        %v3280 = vpack.c.b16 %v2640, %v2620
        %v3281 = vpack.c.b16 %v2641, %v2621
        %v3282 = vpack.c.b16 %v2642, %v2622
        %v3283 = vpack.c.b16 %v2643, %v2623
        %v3284 = vpack.c.b16 %v2644, %v2624
        %v3285 = vpack.c.b16 %v2645, %v2625
        %v3286 = vpack.c.b16 %v2646, %v2626
        %v3287 = vpack.c.b16 %v2647, %v2627
        %v3288 = vpack.c.b16 %v2648, %v2628
        %v3289 = vpack.c.b16 %v2649, %v2629
        %v3290 = vpack.c.b16 %v2650, %v2630
        %v3291 = vpack.c.b16 %v2651, %v2631
        %v3292 = vpack.c.b16 %v2672, %v2652
        %v3293 = vpack.c.b16 %v2673, %v2653
        %v3294 = vpack.c.b16 %v2674, %v2654
        %v3295 = vpack.c.b16 %v2675, %v2655
        %v3296 = vpack.c.b16 %v2676, %v2656
        %v3297 = vpack.c.b16 %v2677, %v2657
        %v3298 = vpack.c.b16 %v2678, %v2658
        %v3299 = vpack.c.b16 %v2679, %v2659
        %v3300 = vpack.c.b16 %v2680, %v2660
        %v3301 = vpack.c.b16 %v2681, %v2661
        %v3302 = vpack.c.b16 %v2682, %v2662
        %v3303 = vpack.c.b16 %v2683, %v2663
        %v3304 = vpack.c.b16 %v2684, %v2664
        %v3305 = vpack.c.b16 %v2685, %v2665
        %v3306 = vpack.c.b16 %v2686, %v2666
        %v3307 = vpack.c.b16 %v2687, %v2667
        %v3308 = vpack.c.b16 %v2688, %v2668
        %v3309 = vpack.c.b16 %v2689, %v2669
        %v3310 = vpack.c.b16 %v2690, %v2670
        %v3311 = vpack.c.b16 %v2691, %v2671
        %v3312 = vpack.c.b16 %v2712, %v2692
        %v3313 = vpack.c.b16 %v2713, %v2693
        %v3314 = vpack.c.b16 %v2714, %v2694
        %v3315 = vpack.c.b16 %v2715, %v2695
        %v3316 = vpack.c.b16 %v2716, %v2696
        %v3317 = vpack.c.b16 %v2717, %v2697
        %v3318 = vpack.c.b16 %v2718, %v2698
        %v3319 = vpack.c.b16 %v2719, %v2699
        %v3320 = vpack.c.b16 %v2720, %v2700
        %v3321 = vpack.c.b16 %v2721, %v2701
        %v3322 = vpack.c.b16 %v2722, %v2702
        %v3323 = vpack.c.b16 %v2723, %v2703
        %v3324 = vpack.c.b16 %v2724, %v2704
        %v3325 = vpack.c.b16 %v2725, %v2705
        %v3326 = vpack.c.b16 %v2726, %v2706
        %v3327 = vpack.c.b16 %v2727, %v2707
        %v3328 = vpack.c.b16 %v2728, %v2708
        %v3329 = vpack.c.b16 %v2729, %v2709
        %v3330 = vpack.c.b16 %v2730, %v2710
        %v3331 = vpack.c.b16 %v2731, %v2711
        %v3332 = vpack.c.b16 %v2752, %v2732
        %v3333 = vpack.c.b16 %v2753, %v2733
        %v3334 = vpack.c.b16 %v2754, %v2734
        %v3335 = vpack.c.b16 %v2755, %v2735
        %v3336 = vpack.c.b16 %v2756, %v2736
        %v3337 = vpack.c.b16 %v2757, %v2737
        %v3338 = vpack.c.b16 %v2758, %v2738
        %v3339 = vpack.c.b16 %v2759, %v2739
        %v3340 = vpack.c.b16 %v2760, %v2740
        %v3341 = vpack.c.b16 %v2761, %v2741
        %v3342 = vpack.c.b16 %v2762, %v2742
        %v3343 = vpack.c.b16 %v2763, %v2743
        %v3344 = vpack.c.b16 %v2764, %v2744
        %v3345 = vpack.c.b16 %v2765, %v2745
        %v3346 = vpack.c.b16 %v2766, %v2746
        %v3347 = vpack.c.b16 %v2767, %v2747
        %v3348 = vpack.c.b16 %v2768, %v2748
        %v3349 = vpack.c.b16 %v2769, %v2749
        %v3350 = vpack.c.b16 %v2770, %v2750
        %v3351 = vpack.c.b16 %v2771, %v2751
        %v3352 = vpack.c.b16 %v2792, %v2772
        %v3353 = vpack.c.b16 %v2793, %v2773
        %v3354 = vpack.c.b16 %v2794, %v2774
        %v3355 = vpack.c.b16 %v2795, %v2775
        %v3356 = vpack.c.b16 %v2796, %v2776
        %v3357 = vpack.c.b16 %v2797, %v2777
        %v3358 = vpack.c.b16 %v2798, %v2778
        %v3359 = vpack.c.b16 %v2799, %v2779
        %v3360 = vpack.c.b16 %v2800, %v2780
        %v3361 = vpack.c.b16 %v2801, %v2781
        %v3362 = vpack.c.b16 %v2802, %v2782
        %v3363 = vpack.c.b16 %v2803, %v2783
        %v3364 = vpack.c.b16 %v2804, %v2784
        %v3365 = vpack.c.b16 %v2805, %v2785
        %v3366 = vpack.c.b16 %v2806, %v2786
        %v3367 = vpack.c.b16 %v2807, %v2787
        %v3368 = vpack.c.b16 %v2808, %v2788
        %v3369 = vpack.c.b16 %v2809, %v2789
        %v3370 = vpack.c.b16 %v2810, %v2790
        %v3371 = vpack.c.b16 %v2811, %v2791
        %v3372 = vpack.c.b16 %v2832, %v2812
        %v3373 = vpack.c.b16 %v2833, %v2813
        %v3374 = vpack.c.b16 %v2834, %v2814
        %v3375 = vpack.c.b16 %v2835, %v2815
        %v3376 = vpack.c.b16 %v2836, %v2816
        %v3377 = vpack.c.b16 %v2837, %v2817
        %v3378 = vpack.c.b16 %v2838, %v2818
        %v3379 = vpack.c.b16 %v2839, %v2819
        %v3380 = vpack.c.b16 %v2840, %v2820
        %v3381 = vpack.c.b16 %v2841, %v2821
        %v3382 = vpack.c.b16 %v2842, %v2822
        %v3383 = vpack.c.b16 %v2843, %v2823
        %v3384 = vpack.c.b16 %v2844, %v2824
        %v3385 = vpack.c.b16 %v2845, %v2825
        %v3386 = vpack.c.b16 %v2846, %v2826
        %v3387 = vpack.c.b16 %v2847, %v2827
        %v3388 = vpack.c.b16 %v2848, %v2828
        %v3389 = vpack.c.b16 %v2849, %v2829
        %v3390 = vpack.c.b16 %v2850, %v2830
        %v3391 = vpack.c.b16 %v2851, %v2831
        %v3392 = vpack.c.b16 %v2872, %v2852
        %v3393 = vpack.c.b16 %v2873, %v2853
        %v3394 = vpack.c.b16 %v2874, %v2854
        %v3395 = vpack.c.b16 %v2875, %v2855
        %v3396 = vpack.c.b16 %v2876, %v2856
        %v3397 = vpack.c.b16 %v2877, %v2857
        %v3398 = vpack.c.b16 %v2878, %v2858
        %v3399 = vpack.c.b16 %v2879, %v2859
        %v3400 = vpack.c.b16 %v2880, %v2860
        %v3401 = vpack.c.b16 %v2881, %v2861
        %v3402 = vpack.c.b16 %v2882, %v2862
        %v3403 = vpack.c.b16 %v2883, %v2863
        %v3404 = vpack.c.b16 %v2884, %v2864
        %v3405 = vpack.c.b16 %v2885, %v2865
        %v3406 = vpack.c.b16 %v2886, %v2866
        %v3407 = vpack.c.b16 %v2887, %v2867
        %v3408 = vpack.c.b16 %v2888, %v2868
        %v3409 = vpack.c.b16 %v2889, %v2869
        %v3410 = vpack.c.b16 %v2890, %v2870
        %v3411 = vpack.c.b16 %v2891, %v2871
        %v3412 = vpack.c.b16 %v2912, %v2892
        %v3413 = vpack.c.b16 %v2913, %v2893
        %v3414 = vpack.c.b16 %v2914, %v2894
        %v3415 = vpack.c.b16 %v2915, %v2895
        %v3416 = vpack.c.b16 %v2916, %v2896
        %v3417 = vpack.c.b16 %v2917, %v2897
        %v3418 = vpack.c.b16 %v2918, %v2898
        %v3419 = vpack.c.b16 %v2919, %v2899
        %v3420 = vpack.c.b16 %v2920, %v2900
        %v3421 = vpack.c.b16 %v2921, %v2901
        %v3422 = vpack.c.b16 %v2922, %v2902
        %v3423 = vpack.c.b16 %v2923, %v2903
        %v3424 = vpack.c.b16 %v2924, %v2904
        %v3425 = vpack.c.b16 %v2925, %v2905
        %v3426 = vpack.c.b16 %v2926, %v2906
        %v3427 = vpack.c.b16 %v2927, %v2907
        %v3428 = vpack.c.b16 %v2928, %v2908
        %v3429 = vpack.c.b16 %v2929, %v2909
        %v3430 = vpack.c.b16 %v2930, %v2910
        %v3431 = vpack.c.b16 %v2931, %v2911
        %v3432 = vpack.c.b16 %v2952, %v2932
        %v3433 = vpack.c.b16 %v2953, %v2933
        %v3434 = vpack.c.b16 %v2954, %v2934
        %v3435 = vpack.c.b16 %v2955, %v2935
        %v3436 = vpack.c.b16 %v2956, %v2936
        %v3437 = vpack.c.b16 %v2957, %v2937
        %v3438 = vpack.c.b16 %v2958, %v2938
        %v3439 = vpack.c.b16 %v2959, %v2939
        %v3440 = vpack.c.b16 %v2960, %v2940
        %v3441 = vpack.c.b16 %v2961, %v2941
        %v3442 = vpack.c.b16 %v2962, %v2942
        %v3443 = vpack.c.b16 %v2963, %v2943
        %v3444 = vpack.c.b16 %v2964, %v2944
        %v3445 = vpack.c.b16 %v2965, %v2945
        %v3446 = vpack.c.b16 %v2966, %v2946
        %v3447 = vpack.c.b16 %v2967, %v2947
        %v3448 = vpack.c.b16 %v2968, %v2948
        %v3449 = vpack.c.b16 %v2969, %v2949
        %v3450 = vpack.c.b16 %v2970, %v2950
        %v3451 = vpack.c.b16 %v2971, %v2951
        %v3452 = vpack.c.b16 %v2992, %v2972
        %v3453 = vpack.c.b16 %v2993, %v2973
        %v3454 = vpack.c.b16 %v2994, %v2974
        %v3455 = vpack.c.b16 %v2995, %v2975
        %v3456 = vpack.c.b16 %v2996, %v2976
        %v3457 = vpack.c.b16 %v2997, %v2977
        %v3458 = vpack.c.b16 %v2998, %v2978
        %v3459 = vpack.c.b16 %v2999, %v2979
        %v3460 = vpack.c.b16 %v3000, %v2980
        %v3461 = vpack.c.b16 %v3001, %v2981
        %v3462 = vpack.c.b16 %v3002, %v2982
        %v3463 = vpack.c.b16 %v3003, %v2983
        %v3464 = vpack.c.b16 %v3004, %v2984
        %v3465 = vpack.c.b16 %v3005, %v2985
        %v3466 = vpack.c.b16 %v3006, %v2986
        %v3467 = vpack.c.b16 %v3007, %v2987
        %v3468 = vpack.c.b16 %v3008, %v2988
        %v3469 = vpack.c.b16 %v3009, %v2989
        %v3470 = vpack.c.b16 %v3010, %v2990
        %v3471 = vpack.c.b16 %v3011, %v2991
        %v3472 = vpack.c.b16 %v3032, %v3012
        %v3473 = vpack.c.b16 %v3033, %v3013
        %v3474 = vpack.c.b16 %v3034, %v3014
        %v3475 = vpack.c.b16 %v3035, %v3015
        %v3476 = vpack.c.b16 %v3036, %v3016
        %v3477 = vpack.c.b16 %v3037, %v3017
        %v3478 = vpack.c.b16 %v3038, %v3018
        %v3479 = vpack.c.b16 %v3039, %v3019
        %v3480 = vpack.c.b16 %v3040, %v3020
        %v3481 = vpack.c.b16 %v3041, %v3021
        %v3482 = vpack.c.b16 %v3042, %v3022
        %v3483 = vpack.c.b16 %v3043, %v3023
        %v3484 = vpack.c.b16 %v3044, %v3024
        %v3485 = vpack.c.b16 %v3045, %v3025
        %v3486 = vpack.c.b16 %v3046, %v3026
        %v3487 = vpack.c.b16 %v3047, %v3027
        %v3488 = vpack.c.b16 %v3048, %v3028
        %v3489 = vpack.c.b16 %v3049, %v3029
        %v3490 = vpack.c.b16 %v3050, %v3030
        %v3491 = vpack.c.b16 %v3051, %v3031
        %v3492 = vpack.c.b16 %v3072, %v3052
        %v3493 = vpack.c.b16 %v3073, %v3053
        %v3494 = vpack.c.b16 %v3074, %v3054
        %v3495 = vpack.c.b16 %v3075, %v3055
        %v3496 = vpack.c.b16 %v3076, %v3056
        %v3497 = vpack.c.b16 %v3077, %v3057
        %v3498 = vpack.c.b16 %v3078, %v3058
        %v3499 = vpack.c.b16 %v3079, %v3059
        %v3500 = vpack.c.b16 %v3080, %v3060
        %v3501 = vpack.c.b16 %v3081, %v3061
        %v3502 = vpack.c.b16 %v3082, %v3062
        %v3503 = vpack.c.b16 %v3083, %v3063
        %v3504 = vpack.c.b16 %v3084, %v3064
        %v3505 = vpack.c.b16 %v3085, %v3065
        %v3506 = vpack.c.b16 %v3086, %v3066
        %v3507 = vpack.c.b16 %v3087, %v3067
        %v3508 = vpack.c.b16 %v3088, %v3068
        %v3509 = vpack.c.b16 %v3089, %v3069
        %v3510 = vpack.c.b16 %v3090, %v3070
        %v3511 = vpack.c.b16 %v3091, %v3071
        %v3512 = vpack.c.b16 %v3112, %v3092
        %v3513 = vpack.c.b16 %v3113, %v3093
        %v3514 = vpack.c.b16 %v3114, %v3094
        %v3515 = vpack.c.b16 %v3115, %v3095
        %v3516 = vpack.c.b16 %v3116, %v3096
        %v3517 = vpack.c.b16 %v3117, %v3097
        %v3518 = vpack.c.b16 %v3118, %v3098
        %v3519 = vpack.c.b16 %v3119, %v3099
        %v3520 = vpack.c.b16 %v3120, %v3100
        %v3521 = vpack.c.b16 %v3121, %v3101
        %v3522 = vpack.c.b16 %v3122, %v3102
        %v3523 = vpack.c.b16 %v3123, %v3103
        %v3524 = vpack.c.b16 %v3124, %v3104
        %v3525 = vpack.c.b16 %v3125, %v3105
        %v3526 = vpack.c.b16 %v3126, %v3106
        %v3527 = vpack.c.b16 %v3127, %v3107
        %v3528 = vpack.c.b16 %v3128, %v3108
        %v3529 = vpack.c.b16 %v3129, %v3109
        %v3530 = vpack.c.b16 %v3130, %v3110
        %v3531 = vpack.c.b16 %v3131, %v3111
        %vm3932 = vcmask 523264
        %v3934 = vsel %vm3932, %v1929, 0
        %3936 = vmatpush.bf16.msra.mxu0 %v3272
        %3937 = vmatpush.bf16.msra.mxu0 %v3252
        %3938 = vmatpush.bf16.msra.mxu0 %v3232
        %3939 = vmatpush.bf16.msra.mxu0 %v3212
        %3940 = vmatpush.bf16.msra.mxu0 %v3192
        %3941 = vmatpush.bf16.msra.mxu0 %v3172
        %3942 = vmatpush.bf16.msra.mxu0 %v3152
        %3943 = vmatpush.bf16.msra.mxu0 %v3132
        %3944 = vmatmul.bf16.gmra.mxu0 %v1927
        %v3945 = vpop.f32.mrf.mxu0
        %v3946 = vadd.f32 %v1877, %v3945
        %v3947 = vpop.f32.mrf.mxu0
        %v3948 = vadd.f32 %v1877, %v3947
        %3949 = vdwg.mxu0
        %3950 = vmatpush.bf16.msra.mxu0 %v3432
        %3951 = vmatpush.bf16.msra.mxu0 %v3412
        %3952 = vmatpush.bf16.msra.mxu0 %v3392
        %3953 = vmatpush.bf16.msra.mxu0 %v3372
        %3954 = vmatpush.bf16.msra.mxu0 %v3352
        %3955 = vmatpush.bf16.msra.mxu0 %v3332
        %3956 = vmatpush.bf16.msra.mxu0 %v3312
        %3957 = vmatpush.bf16.msra.mxu0 %v3292
        %3958 = vmatmul.bf16.gmra.mxu0 %v1928
        %v3959 = vpop.f32.mrf.mxu0
        %v3960 = vadd.f32 %v3946, %v3959
        %v3961 = vpop.f32.mrf.mxu0
        %v3962 = vadd.f32 %v3948, %v3961
        %3963 = vdwg.mxu0
        %3964 = vmatpush.bf16.msra.mxu0 0
        %3965 = vmatpush.bf16.msra.mxu0 0
        %3966 = vmatpush.bf16.msra.mxu0 0
        %3967 = vmatpush.bf16.msra.mxu0 0
        %3968 = vmatpush.bf16.msra.mxu0 %v3512
        %3969 = vmatpush.bf16.msra.mxu0 %v3492
        %3970 = vmatpush.bf16.msra.mxu0 %v3472
        %3971 = vmatpush.bf16.msra.mxu0 %v3452
        %3972 = vmatmul.bf16.gmra.mxu0 %v3934
        %v3973 = vpop.f32.mrf.mxu0
        %v3974 = vadd.f32 %v3960, %v3973
        %v3975 = vpop.f32.mrf.mxu0
        %v3976 = vadd.f32 %v3962, %v3975
        %3977 = vdwg.mxu0
        %3978 = vmatpush.bf16.msra.mxu0 %v3273
        %3979 = vmatpush.bf16.msra.mxu0 %v3253
        %3980 = vmatpush.bf16.msra.mxu0 %v3233
        %3981 = vmatpush.bf16.msra.mxu0 %v3213
        %3982 = vmatpush.bf16.msra.mxu0 %v3193
        %3983 = vmatpush.bf16.msra.mxu0 %v3173
        %3984 = vmatpush.bf16.msra.mxu0 %v3153
        %3985 = vmatpush.bf16.msra.mxu0 %v3133
        %3986 = vmatmul.bf16.gmra.mxu0 %v1927
        %v3987 = vpop.f32.mrf.mxu0
        %v3988 = vadd.f32 %v1878, %v3987
        %v3989 = vpop.f32.mrf.mxu0
        %v3990 = vadd.f32 %v1878, %v3989
        %3991 = vdwg.mxu0
        %3992 = vmatpush.bf16.msra.mxu0 %v3433
        %3993 = vmatpush.bf16.msra.mxu0 %v3413
        %3994 = vmatpush.bf16.msra.mxu0 %v3393
        %3995 = vmatpush.bf16.msra.mxu0 %v3373
        %3996 = vmatpush.bf16.msra.mxu0 %v3353
        %3997 = vmatpush.bf16.msra.mxu0 %v3333
        %3998 = vmatpush.bf16.msra.mxu0 %v3313
        %3999 = vmatpush.bf16.msra.mxu0 %v3293
        %4000 = vmatmul.bf16.gmra.mxu0 %v1928
        %v4001 = vpop.f32.mrf.mxu0
        %v4002 = vadd.f32 %v3988, %v4001
        %v4003 = vpop.f32.mrf.mxu0
        %v4004 = vadd.f32 %v3990, %v4003
        %4005 = vdwg.mxu0
        %4006 = vmatpush.bf16.msra.mxu0 0
        %4007 = vmatpush.bf16.msra.mxu0 0
        %4008 = vmatpush.bf16.msra.mxu0 0
        %4009 = vmatpush.bf16.msra.mxu0 0
        %4010 = vmatpush.bf16.msra.mxu0 %v3513
        %4011 = vmatpush.bf16.msra.mxu0 %v3493
        %4012 = vmatpush.bf16.msra.mxu0 %v3473
        %4013 = vmatpush.bf16.msra.mxu0 %v3453
        %4014 = vmatmul.bf16.gmra.mxu0 %v3934
        %v4015 = vpop.f32.mrf.mxu0
        %v4016 = vadd.f32 %v4002, %v4015
        %v4017 = vpop.f32.mrf.mxu0
        %v4018 = vadd.f32 %v4004, %v4017
        %4019 = vdwg.mxu0
        %4020 = vmatpush.bf16.msra.mxu0 %v3274
        %4021 = vmatpush.bf16.msra.mxu0 %v3254
        %4022 = vmatpush.bf16.msra.mxu0 %v3234
        %4023 = vmatpush.bf16.msra.mxu0 %v3214
        %4024 = vmatpush.bf16.msra.mxu0 %v3194
        %4025 = vmatpush.bf16.msra.mxu0 %v3174
        %4026 = vmatpush.bf16.msra.mxu0 %v3154
        %4027 = vmatpush.bf16.msra.mxu0 %v3134
        %4028 = vmatmul.bf16.gmra.mxu0 %v1927
        %v4029 = vpop.f32.mrf.mxu0
        %v4030 = vadd.f32 %v1879, %v4029
        %v4031 = vpop.f32.mrf.mxu0
        %v4032 = vadd.f32 %v1879, %v4031
        %4033 = vdwg.mxu0
        %4034 = vmatpush.bf16.msra.mxu0 %v3434
        %4035 = vmatpush.bf16.msra.mxu0 %v3414
        %4036 = vmatpush.bf16.msra.mxu0 %v3394
        %4037 = vmatpush.bf16.msra.mxu0 %v3374
        %4038 = vmatpush.bf16.msra.mxu0 %v3354
        %4039 = vmatpush.bf16.msra.mxu0 %v3334
        %4040 = vmatpush.bf16.msra.mxu0 %v3314
        %4041 = vmatpush.bf16.msra.mxu0 %v3294
        %4042 = vmatmul.bf16.gmra.mxu0 %v1928
        %v4043 = vpop.f32.mrf.mxu0
        %v4044 = vadd.f32 %v4030, %v4043
        %v4045 = vpop.f32.mrf.mxu0
        %v4046 = vadd.f32 %v4032, %v4045
        %4047 = vdwg.mxu0
        %4048 = vmatpush.bf16.msra.mxu0 0
        %4049 = vmatpush.bf16.msra.mxu0 0
        %4050 = vmatpush.bf16.msra.mxu0 0
        %4051 = vmatpush.bf16.msra.mxu0 0
        %4052 = vmatpush.bf16.msra.mxu0 %v3514
        %4053 = vmatpush.bf16.msra.mxu0 %v3494
        %4054 = vmatpush.bf16.msra.mxu0 %v3474
        %4055 = vmatpush.bf16.msra.mxu0 %v3454
        %4056 = vmatmul.bf16.gmra.mxu0 %v3934
        %v4057 = vpop.f32.mrf.mxu0
        %v4058 = vadd.f32 %v4044, %v4057
        %v4059 = vpop.f32.mrf.mxu0
        %v4060 = vadd.f32 %v4046, %v4059
        %4061 = vdwg.mxu0
        %4062 = vmatpush.bf16.msra.mxu0 %v3275
        %4063 = vmatpush.bf16.msra.mxu0 %v3255
        %4064 = vmatpush.bf16.msra.mxu0 %v3235
        %4065 = vmatpush.bf16.msra.mxu0 %v3215
        %4066 = vmatpush.bf16.msra.mxu0 %v3195
        %4067 = vmatpush.bf16.msra.mxu0 %v3175
        %4068 = vmatpush.bf16.msra.mxu0 %v3155
        %4069 = vmatpush.bf16.msra.mxu0 %v3135
        %4070 = vmatmul.bf16.gmra.mxu0 %v1927
        %v4071 = vpop.f32.mrf.mxu0
        %v4072 = vadd.f32 %v1880, %v4071
        %v4073 = vpop.f32.mrf.mxu0
        %v4074 = vadd.f32 %v1880, %v4073
        %4075 = vdwg.mxu0
        %4076 = vmatpush.bf16.msra.mxu0 %v3435
        %4077 = vmatpush.bf16.msra.mxu0 %v3415
        %4078 = vmatpush.bf16.msra.mxu0 %v3395
        %4079 = vmatpush.bf16.msra.mxu0 %v3375
        %4080 = vmatpush.bf16.msra.mxu0 %v3355
        %4081 = vmatpush.bf16.msra.mxu0 %v3335
        %4082 = vmatpush.bf16.msra.mxu0 %v3315
        %4083 = vmatpush.bf16.msra.mxu0 %v3295
        %4084 = vmatmul.bf16.gmra.mxu0 %v1928
        %v4085 = vpop.f32.mrf.mxu0
        %v4086 = vadd.f32 %v4072, %v4085
        %v4087 = vpop.f32.mrf.mxu0
        %v4088 = vadd.f32 %v4074, %v4087
        %4089 = vdwg.mxu0
        %4090 = vmatpush.bf16.msra.mxu0 0
        %4091 = vmatpush.bf16.msra.mxu0 0
        %4092 = vmatpush.bf16.msra.mxu0 0
        %4093 = vmatpush.bf16.msra.mxu0 0
        %4094 = vmatpush.bf16.msra.mxu0 %v3515
        %4095 = vmatpush.bf16.msra.mxu0 %v3495
        %4096 = vmatpush.bf16.msra.mxu0 %v3475
        %4097 = vmatpush.bf16.msra.mxu0 %v3455
        %4098 = vmatmul.bf16.gmra.mxu0 %v3934
        %v4099 = vpop.f32.mrf.mxu0
        %v4100 = vadd.f32 %v4086, %v4099
        %v4101 = vpop.f32.mrf.mxu0
        %v4102 = vadd.f32 %v4088, %v4101
        %4103 = vdwg.mxu0
        %4104 = vmatpush.bf16.msra.mxu0 %v3276
        %4105 = vmatpush.bf16.msra.mxu0 %v3256
        %4106 = vmatpush.bf16.msra.mxu0 %v3236
        %4107 = vmatpush.bf16.msra.mxu0 %v3216
        %4108 = vmatpush.bf16.msra.mxu0 %v3196
        %4109 = vmatpush.bf16.msra.mxu0 %v3176
        %4110 = vmatpush.bf16.msra.mxu0 %v3156
        %4111 = vmatpush.bf16.msra.mxu0 %v3136
        %4112 = vmatmul.bf16.gmra.mxu0 %v1927
        %v4113 = vpop.f32.mrf.mxu0
        %v4114 = vadd.f32 %v1881, %v4113
        %v4115 = vpop.f32.mrf.mxu0
        %v4116 = vadd.f32 %v1881, %v4115
        %4117 = vdwg.mxu0
        %4118 = vmatpush.bf16.msra.mxu0 %v3436
        %4119 = vmatpush.bf16.msra.mxu0 %v3416
        %4120 = vmatpush.bf16.msra.mxu0 %v3396
        %4121 = vmatpush.bf16.msra.mxu0 %v3376
        %4122 = vmatpush.bf16.msra.mxu0 %v3356
        %4123 = vmatpush.bf16.msra.mxu0 %v3336
        %4124 = vmatpush.bf16.msra.mxu0 %v3316
        %4125 = vmatpush.bf16.msra.mxu0 %v3296
        %4126 = vmatmul.bf16.gmra.mxu0 %v1928
        %v4127 = vpop.f32.mrf.mxu0
        %v4128 = vadd.f32 %v4114, %v4127
        %v4129 = vpop.f32.mrf.mxu0
        %v4130 = vadd.f32 %v4116, %v4129
        %4131 = vdwg.mxu0
        %4132 = vmatpush.bf16.msra.mxu0 0
        %4133 = vmatpush.bf16.msra.mxu0 0
        %4134 = vmatpush.bf16.msra.mxu0 0
        %4135 = vmatpush.bf16.msra.mxu0 0
        %4136 = vmatpush.bf16.msra.mxu0 %v3516
        %4137 = vmatpush.bf16.msra.mxu0 %v3496
        %4138 = vmatpush.bf16.msra.mxu0 %v3476
        %4139 = vmatpush.bf16.msra.mxu0 %v3456
        %4140 = vmatmul.bf16.gmra.mxu0 %v3934
        %v4141 = vpop.f32.mrf.mxu0
        %v4142 = vadd.f32 %v4128, %v4141
        %v4143 = vpop.f32.mrf.mxu0
        %v4144 = vadd.f32 %v4130, %v4143
        %4145 = vdwg.mxu0
        %4146 = vmatpush.bf16.msra.mxu0 %v3277
        %4147 = vmatpush.bf16.msra.mxu0 %v3257
        %4148 = vmatpush.bf16.msra.mxu0 %v3237
        %4149 = vmatpush.bf16.msra.mxu0 %v3217
        %4150 = vmatpush.bf16.msra.mxu0 %v3197
        %4151 = vmatpush.bf16.msra.mxu0 %v3177
        %4152 = vmatpush.bf16.msra.mxu0 %v3157
        %4153 = vmatpush.bf16.msra.mxu0 %v3137
        %4154 = vmatmul.bf16.gmra.mxu0 %v1927
        %v4155 = vpop.f32.mrf.mxu0
        %v4156 = vadd.f32 %v1882, %v4155
        %v4157 = vpop.f32.mrf.mxu0
        %v4158 = vadd.f32 %v1882, %v4157
        %4159 = vdwg.mxu0
        %4160 = vmatpush.bf16.msra.mxu0 %v3437
        %4161 = vmatpush.bf16.msra.mxu0 %v3417
        %4162 = vmatpush.bf16.msra.mxu0 %v3397
        %4163 = vmatpush.bf16.msra.mxu0 %v3377
        %4164 = vmatpush.bf16.msra.mxu0 %v3357
        %4165 = vmatpush.bf16.msra.mxu0 %v3337
        %4166 = vmatpush.bf16.msra.mxu0 %v3317
        %4167 = vmatpush.bf16.msra.mxu0 %v3297
        %4168 = vmatmul.bf16.gmra.mxu0 %v1928
        %v4169 = vpop.f32.mrf.mxu0
        %v4170 = vadd.f32 %v4156, %v4169
        %v4171 = vpop.f32.mrf.mxu0
        %v4172 = vadd.f32 %v4158, %v4171
        %4173 = vdwg.mxu0
        %4174 = vmatpush.bf16.msra.mxu0 0
        %4175 = vmatpush.bf16.msra.mxu0 0
        %4176 = vmatpush.bf16.msra.mxu0 0
        %4177 = vmatpush.bf16.msra.mxu0 0
        %4178 = vmatpush.bf16.msra.mxu0 %v3517
        %4179 = vmatpush.bf16.msra.mxu0 %v3497
        %4180 = vmatpush.bf16.msra.mxu0 %v3477
        %4181 = vmatpush.bf16.msra.mxu0 %v3457
        %4182 = vmatmul.bf16.gmra.mxu0 %v3934
        %v4183 = vpop.f32.mrf.mxu0
        %v4184 = vadd.f32 %v4170, %v4183
        %v4185 = vpop.f32.mrf.mxu0
        %v4186 = vadd.f32 %v4172, %v4185
        %4187 = vdwg.mxu0
        %4188 = vmatpush.bf16.msra.mxu0 %v3278
        %4189 = vmatpush.bf16.msra.mxu0 %v3258
        %4190 = vmatpush.bf16.msra.mxu0 %v3238
        %4191 = vmatpush.bf16.msra.mxu0 %v3218
        %4192 = vmatpush.bf16.msra.mxu0 %v3198
        %4193 = vmatpush.bf16.msra.mxu0 %v3178
        %4194 = vmatpush.bf16.msra.mxu0 %v3158
        %4195 = vmatpush.bf16.msra.mxu0 %v3138
        %4196 = vmatmul.bf16.gmra.mxu0 %v1927
        %v4197 = vpop.f32.mrf.mxu0
        %v4198 = vadd.f32 %v1883, %v4197
        %v4199 = vpop.f32.mrf.mxu0
        %v4200 = vadd.f32 %v1883, %v4199
        %4201 = vdwg.mxu0
        %4202 = vmatpush.bf16.msra.mxu0 %v3438
        %4203 = vmatpush.bf16.msra.mxu0 %v3418
        %4204 = vmatpush.bf16.msra.mxu0 %v3398
        %4205 = vmatpush.bf16.msra.mxu0 %v3378
        %4206 = vmatpush.bf16.msra.mxu0 %v3358
        %4207 = vmatpush.bf16.msra.mxu0 %v3338
        %4208 = vmatpush.bf16.msra.mxu0 %v3318
        %4209 = vmatpush.bf16.msra.mxu0 %v3298
        %4210 = vmatmul.bf16.gmra.mxu0 %v1928
        %v4211 = vpop.f32.mrf.mxu0
        %v4212 = vadd.f32 %v4198, %v4211
        %v4213 = vpop.f32.mrf.mxu0
        %v4214 = vadd.f32 %v4200, %v4213
        %4215 = vdwg.mxu0
        %4216 = vmatpush.bf16.msra.mxu0 0
        %4217 = vmatpush.bf16.msra.mxu0 0
        %4218 = vmatpush.bf16.msra.mxu0 0
        %4219 = vmatpush.bf16.msra.mxu0 0
        %4220 = vmatpush.bf16.msra.mxu0 %v3518
        %4221 = vmatpush.bf16.msra.mxu0 %v3498
        %4222 = vmatpush.bf16.msra.mxu0 %v3478
        %4223 = vmatpush.bf16.msra.mxu0 %v3458
        %4224 = vmatmul.bf16.gmra.mxu0 %v3934
        %v4225 = vpop.f32.mrf.mxu0
        %v4226 = vadd.f32 %v4212, %v4225
        %v4227 = vpop.f32.mrf.mxu0
        %v4228 = vadd.f32 %v4214, %v4227
        %4229 = vdwg.mxu0
        %4230 = vmatpush.bf16.msra.mxu0 %v3279
        %4231 = vmatpush.bf16.msra.mxu0 %v3259
        %4232 = vmatpush.bf16.msra.mxu0 %v3239
        %4233 = vmatpush.bf16.msra.mxu0 %v3219
        %4234 = vmatpush.bf16.msra.mxu0 %v3199
        %4235 = vmatpush.bf16.msra.mxu0 %v3179
        %4236 = vmatpush.bf16.msra.mxu0 %v3159
        %4237 = vmatpush.bf16.msra.mxu0 %v3139
        %4238 = vmatmul.bf16.gmra.mxu0 %v1927
        %v4239 = vpop.f32.mrf.mxu0
        %v4240 = vadd.f32 %v1884, %v4239
        %v4241 = vpop.f32.mrf.mxu0
        %v4242 = vadd.f32 %v1884, %v4241
        %4243 = vdwg.mxu0
        %4244 = vmatpush.bf16.msra.mxu0 %v3439
        %4245 = vmatpush.bf16.msra.mxu0 %v3419
        %4246 = vmatpush.bf16.msra.mxu0 %v3399
        %4247 = vmatpush.bf16.msra.mxu0 %v3379
        %4248 = vmatpush.bf16.msra.mxu0 %v3359
        %4249 = vmatpush.bf16.msra.mxu0 %v3339
        %4250 = vmatpush.bf16.msra.mxu0 %v3319
        %4251 = vmatpush.bf16.msra.mxu0 %v3299
        %4252 = vmatmul.bf16.gmra.mxu0 %v1928
        %v4253 = vpop.f32.mrf.mxu0
        %v4254 = vadd.f32 %v4240, %v4253
        %v4255 = vpop.f32.mrf.mxu0
        %v4256 = vadd.f32 %v4242, %v4255
        %4257 = vdwg.mxu0
        %4258 = vmatpush.bf16.msra.mxu0 0
        %4259 = vmatpush.bf16.msra.mxu0 0
        %4260 = vmatpush.bf16.msra.mxu0 0
        %4261 = vmatpush.bf16.msra.mxu0 0
        %4262 = vmatpush.bf16.msra.mxu0 %v3519
        %4263 = vmatpush.bf16.msra.mxu0 %v3499
        %4264 = vmatpush.bf16.msra.mxu0 %v3479
        %4265 = vmatpush.bf16.msra.mxu0 %v3459
        %4266 = vmatmul.bf16.gmra.mxu0 %v3934
        %v4267 = vpop.f32.mrf.mxu0
        %v4268 = vadd.f32 %v4254, %v4267
        %v4269 = vpop.f32.mrf.mxu0
        %v4270 = vadd.f32 %v4256, %v4269
        %4271 = vdwg.mxu0
        %4272 = vmatpush.bf16.msra.mxu0 %v3280
        %4273 = vmatpush.bf16.msra.mxu0 %v3260
        %4274 = vmatpush.bf16.msra.mxu0 %v3240
        %4275 = vmatpush.bf16.msra.mxu0 %v3220
        %4276 = vmatpush.bf16.msra.mxu0 %v3200
        %4277 = vmatpush.bf16.msra.mxu0 %v3180
        %4278 = vmatpush.bf16.msra.mxu0 %v3160
        %4279 = vmatpush.bf16.msra.mxu0 %v3140
        %4280 = vmatmul.bf16.gmra.mxu0 %v1927
        %v4281 = vpop.f32.mrf.mxu0
        %v4282 = vadd.f32 %v1885, %v4281
        %v4283 = vpop.f32.mrf.mxu0
        %v4284 = vadd.f32 %v1885, %v4283
        %4285 = vdwg.mxu0
        %4286 = vmatpush.bf16.msra.mxu0 %v3440
        %4287 = vmatpush.bf16.msra.mxu0 %v3420
        %4288 = vmatpush.bf16.msra.mxu0 %v3400
        %4289 = vmatpush.bf16.msra.mxu0 %v3380
        %4290 = vmatpush.bf16.msra.mxu0 %v3360
        %4291 = vmatpush.bf16.msra.mxu0 %v3340
        %4292 = vmatpush.bf16.msra.mxu0 %v3320
        %4293 = vmatpush.bf16.msra.mxu0 %v3300
        %4294 = vmatmul.bf16.gmra.mxu0 %v1928
        %v4295 = vpop.f32.mrf.mxu0
        %v4296 = vadd.f32 %v4282, %v4295
        %v4297 = vpop.f32.mrf.mxu0
        %v4298 = vadd.f32 %v4284, %v4297
        %4299 = vdwg.mxu0
        %4300 = vmatpush.bf16.msra.mxu0 0
        %4301 = vmatpush.bf16.msra.mxu0 0
        %4302 = vmatpush.bf16.msra.mxu0 0
        %4303 = vmatpush.bf16.msra.mxu0 0
        %4304 = vmatpush.bf16.msra.mxu0 %v3520
        %4305 = vmatpush.bf16.msra.mxu0 %v3500
        %4306 = vmatpush.bf16.msra.mxu0 %v3480
        %4307 = vmatpush.bf16.msra.mxu0 %v3460
        %4308 = vmatmul.bf16.gmra.mxu0 %v3934
        %v4309 = vpop.f32.mrf.mxu0
        %v4310 = vadd.f32 %v4296, %v4309
        %v4311 = vpop.f32.mrf.mxu0
        %v4312 = vadd.f32 %v4298, %v4311
        %4313 = vdwg.mxu0
        %4314 = vmatpush.bf16.msra.mxu0 %v3281
        %4315 = vmatpush.bf16.msra.mxu0 %v3261
        %4316 = vmatpush.bf16.msra.mxu0 %v3241
        %4317 = vmatpush.bf16.msra.mxu0 %v3221
        %4318 = vmatpush.bf16.msra.mxu0 %v3201
        %4319 = vmatpush.bf16.msra.mxu0 %v3181
        %4320 = vmatpush.bf16.msra.mxu0 %v3161
        %4321 = vmatpush.bf16.msra.mxu0 %v3141
        %4322 = vmatmul.bf16.gmra.mxu0 %v1927
        %v4323 = vpop.f32.mrf.mxu0
        %v4324 = vadd.f32 %v1886, %v4323
        %v4325 = vpop.f32.mrf.mxu0
        %v4326 = vadd.f32 %v1886, %v4325
        %4327 = vdwg.mxu0
        %4328 = vmatpush.bf16.msra.mxu0 %v3441
        %4329 = vmatpush.bf16.msra.mxu0 %v3421
        %4330 = vmatpush.bf16.msra.mxu0 %v3401
        %4331 = vmatpush.bf16.msra.mxu0 %v3381
        %4332 = vmatpush.bf16.msra.mxu0 %v3361
        %4333 = vmatpush.bf16.msra.mxu0 %v3341
        %4334 = vmatpush.bf16.msra.mxu0 %v3321
        %4335 = vmatpush.bf16.msra.mxu0 %v3301
        %4336 = vmatmul.bf16.gmra.mxu0 %v1928
        %v4337 = vpop.f32.mrf.mxu0
        %v4338 = vadd.f32 %v4324, %v4337
        %v4339 = vpop.f32.mrf.mxu0
        %v4340 = vadd.f32 %v4326, %v4339
        %4341 = vdwg.mxu0
        %4342 = vmatpush.bf16.msra.mxu0 0
        %4343 = vmatpush.bf16.msra.mxu0 0
        %4344 = vmatpush.bf16.msra.mxu0 0
        %4345 = vmatpush.bf16.msra.mxu0 0
        %4346 = vmatpush.bf16.msra.mxu0 %v3521
        %4347 = vmatpush.bf16.msra.mxu0 %v3501
        %4348 = vmatpush.bf16.msra.mxu0 %v3481
        %4349 = vmatpush.bf16.msra.mxu0 %v3461
        %4350 = vmatmul.bf16.gmra.mxu0 %v3934
        %v4351 = vpop.f32.mrf.mxu0
        %v4352 = vadd.f32 %v4338, %v4351
        %v4353 = vpop.f32.mrf.mxu0
        %v4354 = vadd.f32 %v4340, %v4353
        %4355 = vdwg.mxu0
        %4356 = vmatpush.bf16.msra.mxu0 %v3282
        %4357 = vmatpush.bf16.msra.mxu0 %v3262
        %4358 = vmatpush.bf16.msra.mxu0 %v3242
        %4359 = vmatpush.bf16.msra.mxu0 %v3222
        %4360 = vmatpush.bf16.msra.mxu0 %v3202
        %4361 = vmatpush.bf16.msra.mxu0 %v3182
        %4362 = vmatpush.bf16.msra.mxu0 %v3162
        %4363 = vmatpush.bf16.msra.mxu0 %v3142
        %4364 = vmatmul.bf16.gmra.mxu0 %v1927
        %v4365 = vpop.f32.mrf.mxu0
        %v4366 = vadd.f32 %v1887, %v4365
        %v4367 = vpop.f32.mrf.mxu0
        %v4368 = vadd.f32 %v1887, %v4367
        %4369 = vdwg.mxu0
        %4370 = vmatpush.bf16.msra.mxu0 %v3442
        %4371 = vmatpush.bf16.msra.mxu0 %v3422
        %4372 = vmatpush.bf16.msra.mxu0 %v3402
        %4373 = vmatpush.bf16.msra.mxu0 %v3382
        %4374 = vmatpush.bf16.msra.mxu0 %v3362
        %4375 = vmatpush.bf16.msra.mxu0 %v3342
        %4376 = vmatpush.bf16.msra.mxu0 %v3322
        %4377 = vmatpush.bf16.msra.mxu0 %v3302
        %4378 = vmatmul.bf16.gmra.mxu0 %v1928
        %v4379 = vpop.f32.mrf.mxu0
        %v4380 = vadd.f32 %v4366, %v4379
        %v4381 = vpop.f32.mrf.mxu0
        %v4382 = vadd.f32 %v4368, %v4381
        %4383 = vdwg.mxu0
        %4384 = vmatpush.bf16.msra.mxu0 0
        %4385 = vmatpush.bf16.msra.mxu0 0
        %4386 = vmatpush.bf16.msra.mxu0 0
        %4387 = vmatpush.bf16.msra.mxu0 0
        %4388 = vmatpush.bf16.msra.mxu0 %v3522
        %4389 = vmatpush.bf16.msra.mxu0 %v3502
        %4390 = vmatpush.bf16.msra.mxu0 %v3482
        %4391 = vmatpush.bf16.msra.mxu0 %v3462
        %4392 = vmatmul.bf16.gmra.mxu0 %v3934
        %v4393 = vpop.f32.mrf.mxu0
        %v4394 = vadd.f32 %v4380, %v4393
        %v4395 = vpop.f32.mrf.mxu0
        %v4396 = vadd.f32 %v4382, %v4395
        %4397 = vdwg.mxu0
        %4398 = vmatpush.bf16.msra.mxu0 %v3283
        %4399 = vmatpush.bf16.msra.mxu0 %v3263
        %4400 = vmatpush.bf16.msra.mxu0 %v3243
        %4401 = vmatpush.bf16.msra.mxu0 %v3223
        %4402 = vmatpush.bf16.msra.mxu0 %v3203
        %4403 = vmatpush.bf16.msra.mxu0 %v3183
        %4404 = vmatpush.bf16.msra.mxu0 %v3163
        %4405 = vmatpush.bf16.msra.mxu0 %v3143
        %4406 = vmatmul.bf16.gmra.mxu0 %v1927
        %v4407 = vpop.f32.mrf.mxu0
        %v4408 = vadd.f32 %v1888, %v4407
        %v4409 = vpop.f32.mrf.mxu0
        %v4410 = vadd.f32 %v1888, %v4409
        %4411 = vdwg.mxu0
        %4412 = vmatpush.bf16.msra.mxu0 %v3443
        %4413 = vmatpush.bf16.msra.mxu0 %v3423
        %4414 = vmatpush.bf16.msra.mxu0 %v3403
        %4415 = vmatpush.bf16.msra.mxu0 %v3383
        %4416 = vmatpush.bf16.msra.mxu0 %v3363
        %4417 = vmatpush.bf16.msra.mxu0 %v3343
        %4418 = vmatpush.bf16.msra.mxu0 %v3323
        %4419 = vmatpush.bf16.msra.mxu0 %v3303
        %4420 = vmatmul.bf16.gmra.mxu0 %v1928
        %v4421 = vpop.f32.mrf.mxu0
        %v4422 = vadd.f32 %v4408, %v4421
        %v4423 = vpop.f32.mrf.mxu0
        %v4424 = vadd.f32 %v4410, %v4423
        %4425 = vdwg.mxu0
        %4426 = vmatpush.bf16.msra.mxu0 0
        %4427 = vmatpush.bf16.msra.mxu0 0
        %4428 = vmatpush.bf16.msra.mxu0 0
        %4429 = vmatpush.bf16.msra.mxu0 0
        %4430 = vmatpush.bf16.msra.mxu0 %v3523
        %4431 = vmatpush.bf16.msra.mxu0 %v3503
        %4432 = vmatpush.bf16.msra.mxu0 %v3483
        %4433 = vmatpush.bf16.msra.mxu0 %v3463
        %4434 = vmatmul.bf16.gmra.mxu0 %v3934
        %v4435 = vpop.f32.mrf.mxu0
        %v4436 = vadd.f32 %v4422, %v4435
        %v4437 = vpop.f32.mrf.mxu0
        %v4438 = vadd.f32 %v4424, %v4437
        %4439 = vdwg.mxu0
        %4440 = vmatpush.bf16.msra.mxu0 %v3284
        %4441 = vmatpush.bf16.msra.mxu0 %v3264
        %4442 = vmatpush.bf16.msra.mxu0 %v3244
        %4443 = vmatpush.bf16.msra.mxu0 %v3224
        %4444 = vmatpush.bf16.msra.mxu0 %v3204
        %4445 = vmatpush.bf16.msra.mxu0 %v3184
        %4446 = vmatpush.bf16.msra.mxu0 %v3164
        %4447 = vmatpush.bf16.msra.mxu0 %v3144
        %4448 = vmatmul.bf16.gmra.mxu0 %v1927
        %v4449 = vpop.f32.mrf.mxu0
        %v4450 = vadd.f32 %v1889, %v4449
        %v4451 = vpop.f32.mrf.mxu0
        %v4452 = vadd.f32 %v1889, %v4451
        %4453 = vdwg.mxu0
        %4454 = vmatpush.bf16.msra.mxu0 %v3444
        %4455 = vmatpush.bf16.msra.mxu0 %v3424
        %4456 = vmatpush.bf16.msra.mxu0 %v3404
        %4457 = vmatpush.bf16.msra.mxu0 %v3384
        %4458 = vmatpush.bf16.msra.mxu0 %v3364
        %4459 = vmatpush.bf16.msra.mxu0 %v3344
        %4460 = vmatpush.bf16.msra.mxu0 %v3324
        %4461 = vmatpush.bf16.msra.mxu0 %v3304
        %4462 = vmatmul.bf16.gmra.mxu0 %v1928
        %v4463 = vpop.f32.mrf.mxu0
        %v4464 = vadd.f32 %v4450, %v4463
        %v4465 = vpop.f32.mrf.mxu0
        %v4466 = vadd.f32 %v4452, %v4465
        %4467 = vdwg.mxu0
        %4468 = vmatpush.bf16.msra.mxu0 0
        %4469 = vmatpush.bf16.msra.mxu0 0
        %4470 = vmatpush.bf16.msra.mxu0 0
        %4471 = vmatpush.bf16.msra.mxu0 0
        %4472 = vmatpush.bf16.msra.mxu0 %v3524
        %4473 = vmatpush.bf16.msra.mxu0 %v3504
        %4474 = vmatpush.bf16.msra.mxu0 %v3484
        %4475 = vmatpush.bf16.msra.mxu0 %v3464
        %4476 = vmatmul.bf16.gmra.mxu0 %v3934
        %v4477 = vpop.f32.mrf.mxu0
        %v4478 = vadd.f32 %v4464, %v4477
        %v4479 = vpop.f32.mrf.mxu0
        %v4480 = vadd.f32 %v4466, %v4479
        %4481 = vdwg.mxu0
        %4482 = vmatpush.bf16.msra.mxu0 %v3285
        %4483 = vmatpush.bf16.msra.mxu0 %v3265
        %4484 = vmatpush.bf16.msra.mxu0 %v3245
        %4485 = vmatpush.bf16.msra.mxu0 %v3225
        %4486 = vmatpush.bf16.msra.mxu0 %v3205
        %4487 = vmatpush.bf16.msra.mxu0 %v3185
        %4488 = vmatpush.bf16.msra.mxu0 %v3165
        %4489 = vmatpush.bf16.msra.mxu0 %v3145
        %4490 = vmatmul.bf16.gmra.mxu0 %v1927
        %v4491 = vpop.f32.mrf.mxu0
        %v4492 = vadd.f32 %v1890, %v4491
        %v4493 = vpop.f32.mrf.mxu0
        %v4494 = vadd.f32 %v1890, %v4493
        %4495 = vdwg.mxu0
        %4496 = vmatpush.bf16.msra.mxu0 %v3445
        %4497 = vmatpush.bf16.msra.mxu0 %v3425
        %4498 = vmatpush.bf16.msra.mxu0 %v3405
        %4499 = vmatpush.bf16.msra.mxu0 %v3385
        %4500 = vmatpush.bf16.msra.mxu0 %v3365
        %4501 = vmatpush.bf16.msra.mxu0 %v3345
        %4502 = vmatpush.bf16.msra.mxu0 %v3325
        %4503 = vmatpush.bf16.msra.mxu0 %v3305
        %4504 = vmatmul.bf16.gmra.mxu0 %v1928
        %v4505 = vpop.f32.mrf.mxu0
        %v4506 = vadd.f32 %v4492, %v4505
        %v4507 = vpop.f32.mrf.mxu0
        %v4508 = vadd.f32 %v4494, %v4507
        %4509 = vdwg.mxu0
        %4510 = vmatpush.bf16.msra.mxu0 0
        %4511 = vmatpush.bf16.msra.mxu0 0
        %4512 = vmatpush.bf16.msra.mxu0 0
        %4513 = vmatpush.bf16.msra.mxu0 0
        %4514 = vmatpush.bf16.msra.mxu0 %v3525
        %4515 = vmatpush.bf16.msra.mxu0 %v3505
        %4516 = vmatpush.bf16.msra.mxu0 %v3485
        %4517 = vmatpush.bf16.msra.mxu0 %v3465
        %4518 = vmatmul.bf16.gmra.mxu0 %v3934
        %v4519 = vpop.f32.mrf.mxu0
        %v4520 = vadd.f32 %v4506, %v4519
        %v4521 = vpop.f32.mrf.mxu0
        %v4522 = vadd.f32 %v4508, %v4521
        %4523 = vdwg.mxu0
        %4524 = vmatpush.bf16.msra.mxu0 %v3286
        %4525 = vmatpush.bf16.msra.mxu0 %v3266
        %4526 = vmatpush.bf16.msra.mxu0 %v3246
        %4527 = vmatpush.bf16.msra.mxu0 %v3226
        %4528 = vmatpush.bf16.msra.mxu0 %v3206
        %4529 = vmatpush.bf16.msra.mxu0 %v3186
        %4530 = vmatpush.bf16.msra.mxu0 %v3166
        %4531 = vmatpush.bf16.msra.mxu0 %v3146
        %4532 = vmatmul.bf16.gmra.mxu0 %v1927
        %v4533 = vpop.f32.mrf.mxu0
        %v4534 = vadd.f32 %v1891, %v4533
        %v4535 = vpop.f32.mrf.mxu0
        %v4536 = vadd.f32 %v1891, %v4535
        %4537 = vdwg.mxu0
        %4538 = vmatpush.bf16.msra.mxu0 %v3446
        %4539 = vmatpush.bf16.msra.mxu0 %v3426
        %4540 = vmatpush.bf16.msra.mxu0 %v3406
        %4541 = vmatpush.bf16.msra.mxu0 %v3386
        %4542 = vmatpush.bf16.msra.mxu0 %v3366
        %4543 = vmatpush.bf16.msra.mxu0 %v3346
        %4544 = vmatpush.bf16.msra.mxu0 %v3326
        %4545 = vmatpush.bf16.msra.mxu0 %v3306
        %4546 = vmatmul.bf16.gmra.mxu0 %v1928
        %v4547 = vpop.f32.mrf.mxu0
        %v4548 = vadd.f32 %v4534, %v4547
        %v4549 = vpop.f32.mrf.mxu0
        %v4550 = vadd.f32 %v4536, %v4549
        %4551 = vdwg.mxu0
        %4552 = vmatpush.bf16.msra.mxu0 0
        %4553 = vmatpush.bf16.msra.mxu0 0
        %4554 = vmatpush.bf16.msra.mxu0 0
        %4555 = vmatpush.bf16.msra.mxu0 0
        %4556 = vmatpush.bf16.msra.mxu0 %v3526
        %4557 = vmatpush.bf16.msra.mxu0 %v3506
        %4558 = vmatpush.bf16.msra.mxu0 %v3486
        %4559 = vmatpush.bf16.msra.mxu0 %v3466
        %4560 = vmatmul.bf16.gmra.mxu0 %v3934
        %v4561 = vpop.f32.mrf.mxu0
        %v4562 = vadd.f32 %v4548, %v4561
        %v4563 = vpop.f32.mrf.mxu0
        %v4564 = vadd.f32 %v4550, %v4563
        %4565 = vdwg.mxu0
        %4566 = vmatpush.bf16.msra.mxu0 %v3287
        %4567 = vmatpush.bf16.msra.mxu0 %v3267
        %4568 = vmatpush.bf16.msra.mxu0 %v3247
        %4569 = vmatpush.bf16.msra.mxu0 %v3227
        %4570 = vmatpush.bf16.msra.mxu0 %v3207
        %4571 = vmatpush.bf16.msra.mxu0 %v3187
        %4572 = vmatpush.bf16.msra.mxu0 %v3167
        %4573 = vmatpush.bf16.msra.mxu0 %v3147
        %4574 = vmatmul.bf16.gmra.mxu0 %v1927
        %v4575 = vpop.f32.mrf.mxu0
        %v4576 = vadd.f32 %v1892, %v4575
        %v4577 = vpop.f32.mrf.mxu0
        %v4578 = vadd.f32 %v1892, %v4577
        %4579 = vdwg.mxu0
        %4580 = vmatpush.bf16.msra.mxu0 %v3447
        %4581 = vmatpush.bf16.msra.mxu0 %v3427
        %4582 = vmatpush.bf16.msra.mxu0 %v3407
        %4583 = vmatpush.bf16.msra.mxu0 %v3387
        %4584 = vmatpush.bf16.msra.mxu0 %v3367
        %4585 = vmatpush.bf16.msra.mxu0 %v3347
        %4586 = vmatpush.bf16.msra.mxu0 %v3327
        %4587 = vmatpush.bf16.msra.mxu0 %v3307
        %4588 = vmatmul.bf16.gmra.mxu0 %v1928
        %v4589 = vpop.f32.mrf.mxu0
        %v4590 = vadd.f32 %v4576, %v4589
        %v4591 = vpop.f32.mrf.mxu0
        %v4592 = vadd.f32 %v4578, %v4591
        %4593 = vdwg.mxu0
        %4594 = vmatpush.bf16.msra.mxu0 0
        %4595 = vmatpush.bf16.msra.mxu0 0
        %4596 = vmatpush.bf16.msra.mxu0 0
        %4597 = vmatpush.bf16.msra.mxu0 0
        %4598 = vmatpush.bf16.msra.mxu0 %v3527
        %4599 = vmatpush.bf16.msra.mxu0 %v3507
        %4600 = vmatpush.bf16.msra.mxu0 %v3487
        %4601 = vmatpush.bf16.msra.mxu0 %v3467
        %4602 = vmatmul.bf16.gmra.mxu0 %v3934
        %v4603 = vpop.f32.mrf.mxu0
        %v4604 = vadd.f32 %v4590, %v4603
        %v4605 = vpop.f32.mrf.mxu0
        %v4606 = vadd.f32 %v4592, %v4605
        %4607 = vdwg.mxu0
        %4608 = vmatpush.bf16.msra.mxu0 %v3288
        %4609 = vmatpush.bf16.msra.mxu0 %v3268
        %4610 = vmatpush.bf16.msra.mxu0 %v3248
        %4611 = vmatpush.bf16.msra.mxu0 %v3228
        %4612 = vmatpush.bf16.msra.mxu0 %v3208
        %4613 = vmatpush.bf16.msra.mxu0 %v3188
        %4614 = vmatpush.bf16.msra.mxu0 %v3168
        %4615 = vmatpush.bf16.msra.mxu0 %v3148
        %4616 = vmatmul.bf16.gmra.mxu0 %v1927
        %v4617 = vpop.f32.mrf.mxu0
        %v4618 = vadd.f32 %v1893, %v4617
        %v4619 = vpop.f32.mrf.mxu0
        %v4620 = vadd.f32 %v1893, %v4619
        %4621 = vdwg.mxu0
        %4622 = vmatpush.bf16.msra.mxu0 %v3448
        %4623 = vmatpush.bf16.msra.mxu0 %v3428
        %4624 = vmatpush.bf16.msra.mxu0 %v3408
        %4625 = vmatpush.bf16.msra.mxu0 %v3388
        %4626 = vmatpush.bf16.msra.mxu0 %v3368
        %4627 = vmatpush.bf16.msra.mxu0 %v3348
        %4628 = vmatpush.bf16.msra.mxu0 %v3328
        %4629 = vmatpush.bf16.msra.mxu0 %v3308
        %4630 = vmatmul.bf16.gmra.mxu0 %v1928
        %v4631 = vpop.f32.mrf.mxu0
        %v4632 = vadd.f32 %v4618, %v4631
        %v4633 = vpop.f32.mrf.mxu0
        %v4634 = vadd.f32 %v4620, %v4633
        %4635 = vdwg.mxu0
        %4636 = vmatpush.bf16.msra.mxu0 0
        %4637 = vmatpush.bf16.msra.mxu0 0
        %4638 = vmatpush.bf16.msra.mxu0 0
        %4639 = vmatpush.bf16.msra.mxu0 0
        %4640 = vmatpush.bf16.msra.mxu0 %v3528
        %4641 = vmatpush.bf16.msra.mxu0 %v3508
        %4642 = vmatpush.bf16.msra.mxu0 %v3488
        %4643 = vmatpush.bf16.msra.mxu0 %v3468
        %4644 = vmatmul.bf16.gmra.mxu0 %v3934
        %v4645 = vpop.f32.mrf.mxu0
        %v4646 = vadd.f32 %v4632, %v4645
        %v4647 = vpop.f32.mrf.mxu0
        %v4648 = vadd.f32 %v4634, %v4647
        %4649 = vdwg.mxu0
        %4650 = vmatpush.bf16.msra.mxu0 %v3289
        %4651 = vmatpush.bf16.msra.mxu0 %v3269
        %4652 = vmatpush.bf16.msra.mxu0 %v3249
        %4653 = vmatpush.bf16.msra.mxu0 %v3229
        %4654 = vmatpush.bf16.msra.mxu0 %v3209
        %4655 = vmatpush.bf16.msra.mxu0 %v3189
        %4656 = vmatpush.bf16.msra.mxu0 %v3169
        %4657 = vmatpush.bf16.msra.mxu0 %v3149
        %4658 = vmatmul.bf16.gmra.mxu0 %v1927
        %v4659 = vpop.f32.mrf.mxu0
        %v4660 = vadd.f32 %v1894, %v4659
        %v4661 = vpop.f32.mrf.mxu0
        %v4662 = vadd.f32 %v1894, %v4661
        %4663 = vdwg.mxu0
        %4664 = vmatpush.bf16.msra.mxu0 %v3449
        %4665 = vmatpush.bf16.msra.mxu0 %v3429
        %4666 = vmatpush.bf16.msra.mxu0 %v3409
        %4667 = vmatpush.bf16.msra.mxu0 %v3389
        %4668 = vmatpush.bf16.msra.mxu0 %v3369
        %4669 = vmatpush.bf16.msra.mxu0 %v3349
        %4670 = vmatpush.bf16.msra.mxu0 %v3329
        %4671 = vmatpush.bf16.msra.mxu0 %v3309
        %4672 = vmatmul.bf16.gmra.mxu0 %v1928
        %v4673 = vpop.f32.mrf.mxu0
        %v4674 = vadd.f32 %v4660, %v4673
        %v4675 = vpop.f32.mrf.mxu0
        %v4676 = vadd.f32 %v4662, %v4675
        %4677 = vdwg.mxu0
        %4678 = vmatpush.bf16.msra.mxu0 0
        %4679 = vmatpush.bf16.msra.mxu0 0
        %4680 = vmatpush.bf16.msra.mxu0 0
        %4681 = vmatpush.bf16.msra.mxu0 0
        %4682 = vmatpush.bf16.msra.mxu0 %v3529
        %4683 = vmatpush.bf16.msra.mxu0 %v3509
        %4684 = vmatpush.bf16.msra.mxu0 %v3489
        %4685 = vmatpush.bf16.msra.mxu0 %v3469
        %4686 = vmatmul.bf16.gmra.mxu0 %v3934
        %v4687 = vpop.f32.mrf.mxu0
        %v4688 = vadd.f32 %v4674, %v4687
        %v4689 = vpop.f32.mrf.mxu0
        %v4690 = vadd.f32 %v4676, %v4689
        %4691 = vdwg.mxu0
        %4692 = vmatpush.bf16.msra.mxu0 %v3290
        %4693 = vmatpush.bf16.msra.mxu0 %v3270
        %4694 = vmatpush.bf16.msra.mxu0 %v3250
        %4695 = vmatpush.bf16.msra.mxu0 %v3230
        %4696 = vmatpush.bf16.msra.mxu0 %v3210
        %4697 = vmatpush.bf16.msra.mxu0 %v3190
        %4698 = vmatpush.bf16.msra.mxu0 %v3170
        %4699 = vmatpush.bf16.msra.mxu0 %v3150
        %4700 = vmatmul.bf16.gmra.mxu0 %v1927
        %v4701 = vpop.f32.mrf.mxu0
        %v4702 = vadd.f32 %v1895, %v4701
        %v4703 = vpop.f32.mrf.mxu0
        %v4704 = vadd.f32 %v1895, %v4703
        %4705 = vdwg.mxu0
        %4706 = vmatpush.bf16.msra.mxu0 %v3450
        %4707 = vmatpush.bf16.msra.mxu0 %v3430
        %4708 = vmatpush.bf16.msra.mxu0 %v3410
        %4709 = vmatpush.bf16.msra.mxu0 %v3390
        %4710 = vmatpush.bf16.msra.mxu0 %v3370
        %4711 = vmatpush.bf16.msra.mxu0 %v3350
        %4712 = vmatpush.bf16.msra.mxu0 %v3330
        %4713 = vmatpush.bf16.msra.mxu0 %v3310
        %4714 = vmatmul.bf16.gmra.mxu0 %v1928
        %v4715 = vpop.f32.mrf.mxu0
        %v4716 = vadd.f32 %v4702, %v4715
        %v4717 = vpop.f32.mrf.mxu0
        %v4718 = vadd.f32 %v4704, %v4717
        %4719 = vdwg.mxu0
        %4720 = vmatpush.bf16.msra.mxu0 0
        %4721 = vmatpush.bf16.msra.mxu0 0
        %4722 = vmatpush.bf16.msra.mxu0 0
        %4723 = vmatpush.bf16.msra.mxu0 0
        %4724 = vmatpush.bf16.msra.mxu0 %v3530
        %4725 = vmatpush.bf16.msra.mxu0 %v3510
        %4726 = vmatpush.bf16.msra.mxu0 %v3490
        %4727 = vmatpush.bf16.msra.mxu0 %v3470
        %4728 = vmatmul.bf16.gmra.mxu0 %v3934
        %v4729 = vpop.f32.mrf.mxu0
        %v4730 = vadd.f32 %v4716, %v4729
        %v4731 = vpop.f32.mrf.mxu0
        %v4732 = vadd.f32 %v4718, %v4731
        %4733 = vdwg.mxu0
        %4734 = vmatpush.bf16.msra.mxu0 %v3291
        %4735 = vmatpush.bf16.msra.mxu0 %v3271
        %4736 = vmatpush.bf16.msra.mxu0 %v3251
        %4737 = vmatpush.bf16.msra.mxu0 %v3231
        %4738 = vmatpush.bf16.msra.mxu0 %v3211
        %4739 = vmatpush.bf16.msra.mxu0 %v3191
        %4740 = vmatpush.bf16.msra.mxu0 %v3171
        %4741 = vmatpush.bf16.msra.mxu0 %v3151
        %4742 = vmatmul.bf16.gmra.mxu0 %v1927
        %v4743 = vpop.f32.mrf.mxu0
        %v4744 = vadd.f32 %v1896, %v4743
        %v4745 = vpop.f32.mrf.mxu0
        %v4746 = vadd.f32 %v1896, %v4745
        %4747 = vdwg.mxu0
        %4748 = vmatpush.bf16.msra.mxu0 %v3451
        %4749 = vmatpush.bf16.msra.mxu0 %v3431
        %4750 = vmatpush.bf16.msra.mxu0 %v3411
        %4751 = vmatpush.bf16.msra.mxu0 %v3391
        %4752 = vmatpush.bf16.msra.mxu0 %v3371
        %4753 = vmatpush.bf16.msra.mxu0 %v3351
        %4754 = vmatpush.bf16.msra.mxu0 %v3331
        %4755 = vmatpush.bf16.msra.mxu0 %v3311
        %4756 = vmatmul.bf16.gmra.mxu0 %v1928
        %v4757 = vpop.f32.mrf.mxu0
        %v4758 = vadd.f32 %v4744, %v4757
        %v4759 = vpop.f32.mrf.mxu0
        %v4760 = vadd.f32 %v4746, %v4759
        %4761 = vdwg.mxu0
        %4762 = vmatpush.bf16.msra.mxu0 0
        %4763 = vmatpush.bf16.msra.mxu0 0
        %4764 = vmatpush.bf16.msra.mxu0 0
        %4765 = vmatpush.bf16.msra.mxu0 0
        %4766 = vmatpush.bf16.msra.mxu0 %v3531
        %4767 = vmatpush.bf16.msra.mxu0 %v3511
        %4768 = vmatpush.bf16.msra.mxu0 %v3491
        %4769 = vmatpush.bf16.msra.mxu0 %v3471
        %4770 = vmatmul.bf16.gmra.mxu0 %v3934
        %v4771 = vpop.f32.mrf.mxu0
        %v4772 = vadd.f32 %v4758, %v4771
        %v4773 = vpop.f32.mrf.mxu0
        %v4774 = vadd.f32 %v4760, %v4773
        %4775 = vdwg.mxu0
        %v4776 = vmul.f32 %v3974, 0.5
        %v4777 = vmul.f32 %v4016, 0.5
        %v4778 = vmul.f32 %v4058, 0.5
        %v4779 = vmul.f32 %v4100, 0.5
        %v4780 = vmul.f32 %v4142, 0.5
        %v4781 = vmul.f32 %v4184, 0.5
        %v4782 = vmul.f32 %v4226, 0.5
        %v4783 = vmul.f32 %v4268, 0.5
        %v4784 = vmul.f32 %v4310, 0.5
        %v4785 = vmul.f32 %v4352, 0.5
        %v4786 = vmul.f32 %v4394, 0.5
        %v4787 = vmul.f32 %v4436, 0.5
        %v4788 = vmul.f32 %v4478, 0.5
        %v4789 = vmul.f32 %v4520, 0.5
        %v4790 = vmul.f32 %v4562, 0.5
        %v4791 = vmul.f32 %v4604, 0.5
        %v4792 = vmul.f32 %v4646, 0.5
        %v4793 = vmul.f32 %v4688, 0.5
        %v4794 = vmul.f32 %v4730, 0.5
        %v4795 = vmul.f32 %v4772, 0.5
        %v4796 = vmul.f32 %v3976, 0.5
        %v4797 = vmul.f32 %v4018, 0.5
        %v4798 = vmul.f32 %v4060, 0.5
        %v4799 = vmul.f32 %v4102, 0.5
        %v4800 = vmul.f32 %v4144, 0.5
        %v4801 = vmul.f32 %v4186, 0.5
        %v4802 = vmul.f32 %v4228, 0.5
        %v4803 = vmul.f32 %v4270, 0.5
        %v4804 = vmul.f32 %v4312, 0.5
        %v4805 = vmul.f32 %v4354, 0.5
        %v4806 = vmul.f32 %v4396, 0.5
        %v4807 = vmul.f32 %v4438, 0.5
        %v4808 = vmul.f32 %v4480, 0.5
        %v4809 = vmul.f32 %v4522, 0.5
        %v4810 = vmul.f32 %v4564, 0.5
        %v4811 = vmul.f32 %v4606, 0.5
        %v4812 = vmul.f32 %v4648, 0.5
        %v4813 = vmul.f32 %v4690, 0.5
        %v4814 = vmul.f32 %v4732, 0.5
        %v4815 = vmul.f32 %v4774, 0.5
        %v4816 = vmul.f32 %v3974, 0.044715
        %v4817 = vmul.f32 %v4016, 0.044715
        %v4818 = vmul.f32 %v4058, 0.044715
        %v4819 = vmul.f32 %v4100, 0.044715
        %v4820 = vmul.f32 %v4142, 0.044715
        %v4821 = vmul.f32 %v4184, 0.044715
        %v4822 = vmul.f32 %v4226, 0.044715
        %v4823 = vmul.f32 %v4268, 0.044715
        %v4824 = vmul.f32 %v4310, 0.044715
        %v4825 = vmul.f32 %v4352, 0.044715
        %v4826 = vmul.f32 %v4394, 0.044715
        %v4827 = vmul.f32 %v4436, 0.044715
        %v4828 = vmul.f32 %v4478, 0.044715
        %v4829 = vmul.f32 %v4520, 0.044715
        %v4830 = vmul.f32 %v4562, 0.044715
        %v4831 = vmul.f32 %v4604, 0.044715
        %v4832 = vmul.f32 %v4646, 0.044715
        %v4833 = vmul.f32 %v4688, 0.044715
        %v4834 = vmul.f32 %v4730, 0.044715
        %v4835 = vmul.f32 %v4772, 0.044715
        %v4836 = vmul.f32 %v3976, 0.044715
        %v4837 = vmul.f32 %v4018, 0.044715
        %v4838 = vmul.f32 %v4060, 0.044715
        %v4839 = vmul.f32 %v4102, 0.044715
        %v4840 = vmul.f32 %v4144, 0.044715
        %v4841 = vmul.f32 %v4186, 0.044715
        %v4842 = vmul.f32 %v4228, 0.044715
        %v4843 = vmul.f32 %v4270, 0.044715
        %v4844 = vmul.f32 %v4312, 0.044715
        %v4845 = vmul.f32 %v4354, 0.044715
        %v4846 = vmul.f32 %v4396, 0.044715
        %v4847 = vmul.f32 %v4438, 0.044715
        %v4848 = vmul.f32 %v4480, 0.044715
        %v4849 = vmul.f32 %v4522, 0.044715
        %v4850 = vmul.f32 %v4564, 0.044715
        %v4851 = vmul.f32 %v4606, 0.044715
        %v4852 = vmul.f32 %v4648, 0.044715
        %v4853 = vmul.f32 %v4690, 0.044715
        %v4854 = vmul.f32 %v4732, 0.044715
        %v4855 = vmul.f32 %v4774, 0.044715
        %v4856 = vmul.f32 %v4816, %v3974
        %v4857 = vmul.f32 %v4817, %v4016
        %v4858 = vmul.f32 %v4818, %v4058
        %v4859 = vmul.f32 %v4819, %v4100
        %v4860 = vmul.f32 %v4820, %v4142
        %v4861 = vmul.f32 %v4821, %v4184
        %v4862 = vmul.f32 %v4822, %v4226
        %v4863 = vmul.f32 %v4823, %v4268
        %v4864 = vmul.f32 %v4824, %v4310
        %v4865 = vmul.f32 %v4825, %v4352
        %v4866 = vmul.f32 %v4826, %v4394
        %v4867 = vmul.f32 %v4827, %v4436
        %v4868 = vmul.f32 %v4828, %v4478
        %v4869 = vmul.f32 %v4829, %v4520
        %v4870 = vmul.f32 %v4830, %v4562
        %v4871 = vmul.f32 %v4831, %v4604
        %v4872 = vmul.f32 %v4832, %v4646
        %v4873 = vmul.f32 %v4833, %v4688
        %v4874 = vmul.f32 %v4834, %v4730
        %v4875 = vmul.f32 %v4835, %v4772
        %v4876 = vmul.f32 %v4836, %v3976
        %v4877 = vmul.f32 %v4837, %v4018
        %v4878 = vmul.f32 %v4838, %v4060
        %v4879 = vmul.f32 %v4839, %v4102
        %v4880 = vmul.f32 %v4840, %v4144
        %v4881 = vmul.f32 %v4841, %v4186
        %v4882 = vmul.f32 %v4842, %v4228
        %v4883 = vmul.f32 %v4843, %v4270
        %v4884 = vmul.f32 %v4844, %v4312
        %v4885 = vmul.f32 %v4845, %v4354
        %v4886 = vmul.f32 %v4846, %v4396
        %v4887 = vmul.f32 %v4847, %v4438
        %v4888 = vmul.f32 %v4848, %v4480
        %v4889 = vmul.f32 %v4849, %v4522
        %v4890 = vmul.f32 %v4850, %v4564
        %v4891 = vmul.f32 %v4851, %v4606
        %v4892 = vmul.f32 %v4852, %v4648
        %v4893 = vmul.f32 %v4853, %v4690
        %v4894 = vmul.f32 %v4854, %v4732
        %v4895 = vmul.f32 %v4855, %v4774
        %v4896 = vmul.f32 %v4856, %v3974
        %v4897 = vmul.f32 %v4857, %v4016
        %v4898 = vmul.f32 %v4858, %v4058
        %v4899 = vmul.f32 %v4859, %v4100
        %v4900 = vmul.f32 %v4860, %v4142
        %v4901 = vmul.f32 %v4861, %v4184
        %v4902 = vmul.f32 %v4862, %v4226
        %v4903 = vmul.f32 %v4863, %v4268
        %v4904 = vmul.f32 %v4864, %v4310
        %v4905 = vmul.f32 %v4865, %v4352
        %v4906 = vmul.f32 %v4866, %v4394
        %v4907 = vmul.f32 %v4867, %v4436
        %v4908 = vmul.f32 %v4868, %v4478
        %v4909 = vmul.f32 %v4869, %v4520
        %v4910 = vmul.f32 %v4870, %v4562
        %v4911 = vmul.f32 %v4871, %v4604
        %v4912 = vmul.f32 %v4872, %v4646
        %v4913 = vmul.f32 %v4873, %v4688
        %v4914 = vmul.f32 %v4874, %v4730
        %v4915 = vmul.f32 %v4875, %v4772
        %v4916 = vmul.f32 %v4876, %v3976
        %v4917 = vmul.f32 %v4877, %v4018
        %v4918 = vmul.f32 %v4878, %v4060
        %v4919 = vmul.f32 %v4879, %v4102
        %v4920 = vmul.f32 %v4880, %v4144
        %v4921 = vmul.f32 %v4881, %v4186
        %v4922 = vmul.f32 %v4882, %v4228
        %v4923 = vmul.f32 %v4883, %v4270
        %v4924 = vmul.f32 %v4884, %v4312
        %v4925 = vmul.f32 %v4885, %v4354
        %v4926 = vmul.f32 %v4886, %v4396
        %v4927 = vmul.f32 %v4887, %v4438
        %v4928 = vmul.f32 %v4888, %v4480
        %v4929 = vmul.f32 %v4889, %v4522
        %v4930 = vmul.f32 %v4890, %v4564
        %v4931 = vmul.f32 %v4891, %v4606
        %v4932 = vmul.f32 %v4892, %v4648
        %v4933 = vmul.f32 %v4893, %v4690
        %v4934 = vmul.f32 %v4894, %v4732
        %v4935 = vmul.f32 %v4895, %v4774
        %v4936 = vadd.f32 %v3974, %v4896
        %v4937 = vadd.f32 %v4016, %v4897
        %v4938 = vadd.f32 %v4058, %v4898
        %v4939 = vadd.f32 %v4100, %v4899
        %v4940 = vadd.f32 %v4142, %v4900
        %v4941 = vadd.f32 %v4184, %v4901
        %v4942 = vadd.f32 %v4226, %v4902
        %v4943 = vadd.f32 %v4268, %v4903
        %v4944 = vadd.f32 %v4310, %v4904
        %v4945 = vadd.f32 %v4352, %v4905
        %v4946 = vadd.f32 %v4394, %v4906
        %v4947 = vadd.f32 %v4436, %v4907
        %v4948 = vadd.f32 %v4478, %v4908
        %v4949 = vadd.f32 %v4520, %v4909
        %v4950 = vadd.f32 %v4562, %v4910
        %v4951 = vadd.f32 %v4604, %v4911
        %v4952 = vadd.f32 %v4646, %v4912
        %v4953 = vadd.f32 %v4688, %v4913
        %v4954 = vadd.f32 %v4730, %v4914
        %v4955 = vadd.f32 %v4772, %v4915
        %v4956 = vadd.f32 %v3976, %v4916
        %v4957 = vadd.f32 %v4018, %v4917
        %v4958 = vadd.f32 %v4060, %v4918
        %v4959 = vadd.f32 %v4102, %v4919
        %v4960 = vadd.f32 %v4144, %v4920
        %v4961 = vadd.f32 %v4186, %v4921
        %v4962 = vadd.f32 %v4228, %v4922
        %v4963 = vadd.f32 %v4270, %v4923
        %v4964 = vadd.f32 %v4312, %v4924
        %v4965 = vadd.f32 %v4354, %v4925
        %v4966 = vadd.f32 %v4396, %v4926
        %v4967 = vadd.f32 %v4438, %v4927
        %v4968 = vadd.f32 %v4480, %v4928
        %v4969 = vadd.f32 %v4522, %v4929
        %v4970 = vadd.f32 %v4564, %v4930
        %v4971 = vadd.f32 %v4606, %v4931
        %v4972 = vadd.f32 %v4648, %v4932
        %v4973 = vadd.f32 %v4690, %v4933
        %v4974 = vadd.f32 %v4732, %v4934
        %v4975 = vadd.f32 %v4774, %v4935
        %v4976 = vmul.f32 %v4936, 0.7978846
        %v4977 = vmul.f32 %v4937, 0.7978846
        %v4978 = vmul.f32 %v4938, 0.7978846
        %v4979 = vmul.f32 %v4939, 0.7978846
        %v4980 = vmul.f32 %v4940, 0.7978846
        %v4981 = vmul.f32 %v4941, 0.7978846
        %v4982 = vmul.f32 %v4942, 0.7978846
        %v4983 = vmul.f32 %v4943, 0.7978846
        %v4984 = vmul.f32 %v4944, 0.7978846
        %v4985 = vmul.f32 %v4945, 0.7978846
        %v4986 = vmul.f32 %v4946, 0.7978846
        %v4987 = vmul.f32 %v4947, 0.7978846
        %v4988 = vmul.f32 %v4948, 0.7978846
        %v4989 = vmul.f32 %v4949, 0.7978846
        %v4990 = vmul.f32 %v4950, 0.7978846
        %v4991 = vmul.f32 %v4951, 0.7978846
        %v4992 = vmul.f32 %v4952, 0.7978846
        %v4993 = vmul.f32 %v4953, 0.7978846
        %v4994 = vmul.f32 %v4954, 0.7978846
        %v4995 = vmul.f32 %v4955, 0.7978846
        %v4996 = vmul.f32 %v4956, 0.7978846
        %v4997 = vmul.f32 %v4957, 0.7978846
        %v4998 = vmul.f32 %v4958, 0.7978846
        %v4999 = vmul.f32 %v4959, 0.7978846
        %v5000 = vmul.f32 %v4960, 0.7978846
        %v5001 = vmul.f32 %v4961, 0.7978846
        %v5002 = vmul.f32 %v4962, 0.7978846
        %v5003 = vmul.f32 %v4963, 0.7978846
        %v5004 = vmul.f32 %v4964, 0.7978846
        %v5005 = vmul.f32 %v4965, 0.7978846
        %v5006 = vmul.f32 %v4966, 0.7978846
        %v5007 = vmul.f32 %v4967, 0.7978846
        %v5008 = vmul.f32 %v4968, 0.7978846
        %v5009 = vmul.f32 %v4969, 0.7978846
        %v5010 = vmul.f32 %v4970, 0.7978846
        %v5011 = vmul.f32 %v4971, 0.7978846
        %v5012 = vmul.f32 %v4972, 0.7978846
        %v5013 = vmul.f32 %v4973, 0.7978846
        %v5014 = vmul.f32 %v4974, 0.7978846
        %v5015 = vmul.f32 %v4975, 0.7978846
        %v5016 = vtanh.pop %v4976
        %v5017 = vtanh.pop %v4977
        %v5018 = vtanh.pop %v4978
        %v5019 = vtanh.pop %v4979
        %v5020 = vtanh.pop %v4980
        %v5021 = vtanh.pop %v4981
        %v5022 = vtanh.pop %v4982
        %v5023 = vtanh.pop %v4983
        %v5024 = vtanh.pop %v4984
        %v5025 = vtanh.pop %v4985
        %v5026 = vtanh.pop %v4986
        %v5027 = vtanh.pop %v4987
        %v5028 = vtanh.pop %v4988
        %v5029 = vtanh.pop %v4989
        %v5030 = vtanh.pop %v4990
        %v5031 = vtanh.pop %v4991
        %v5032 = vtanh.pop %v4992
        %v5033 = vtanh.pop %v4993
        %v5034 = vtanh.pop %v4994
        %v5035 = vtanh.pop %v4995
        %v5036 = vtanh.pop %v4996
        %v5037 = vtanh.pop %v4997
        %v5038 = vtanh.pop %v4998
        %v5039 = vtanh.pop %v4999
        %v5040 = vtanh.pop %v5000
        %v5041 = vtanh.pop %v5001
        %v5042 = vtanh.pop %v5002
        %v5043 = vtanh.pop %v5003
        %v5044 = vtanh.pop %v5004
        %v5045 = vtanh.pop %v5005
        %v5046 = vtanh.pop %v5006
        %v5047 = vtanh.pop %v5007
        %v5048 = vtanh.pop %v5008
        %v5049 = vtanh.pop %v5009
        %v5050 = vtanh.pop %v5010
        %v5051 = vtanh.pop %v5011
        %v5052 = vtanh.pop %v5012
        %v5053 = vtanh.pop %v5013
        %v5054 = vtanh.pop %v5014
        %v5055 = vtanh.pop %v5015
        %v5056 = vadd.f32 %v5016, 1.0
        %v5057 = vadd.f32 %v5017, 1.0
        %v5058 = vadd.f32 %v5018, 1.0
        %v5059 = vadd.f32 %v5019, 1.0
        %v5060 = vadd.f32 %v5020, 1.0
        %v5061 = vadd.f32 %v5021, 1.0
        %v5062 = vadd.f32 %v5022, 1.0
        %v5063 = vadd.f32 %v5023, 1.0
        %v5064 = vadd.f32 %v5024, 1.0
        %v5065 = vadd.f32 %v5025, 1.0
        %v5066 = vadd.f32 %v5026, 1.0
        %v5067 = vadd.f32 %v5027, 1.0
        %v5068 = vadd.f32 %v5028, 1.0
        %v5069 = vadd.f32 %v5029, 1.0
        %v5070 = vadd.f32 %v5030, 1.0
        %v5071 = vadd.f32 %v5031, 1.0
        %v5072 = vadd.f32 %v5032, 1.0
        %v5073 = vadd.f32 %v5033, 1.0
        %v5074 = vadd.f32 %v5034, 1.0
        %v5075 = vadd.f32 %v5035, 1.0
        %v5076 = vadd.f32 %v5036, 1.0
        %v5077 = vadd.f32 %v5037, 1.0
        %v5078 = vadd.f32 %v5038, 1.0
        %v5079 = vadd.f32 %v5039, 1.0
        %v5080 = vadd.f32 %v5040, 1.0
        %v5081 = vadd.f32 %v5041, 1.0
        %v5082 = vadd.f32 %v5042, 1.0
        %v5083 = vadd.f32 %v5043, 1.0
        %v5084 = vadd.f32 %v5044, 1.0
        %v5085 = vadd.f32 %v5045, 1.0
        %v5086 = vadd.f32 %v5046, 1.0
        %v5087 = vadd.f32 %v5047, 1.0
        %v5088 = vadd.f32 %v5048, 1.0
        %v5089 = vadd.f32 %v5049, 1.0
        %v5090 = vadd.f32 %v5050, 1.0
        %v5091 = vadd.f32 %v5051, 1.0
        %v5092 = vadd.f32 %v5052, 1.0
        %v5093 = vadd.f32 %v5053, 1.0
        %v5094 = vadd.f32 %v5054, 1.0
        %v5095 = vadd.f32 %v5055, 1.0
        %v5096 = vmul.f32 %v4776, %v5056
        %v5097 = vmul.f32 %v4777, %v5057
        %v5098 = vmul.f32 %v4778, %v5058
        %v5099 = vmul.f32 %v4779, %v5059
        %v5100 = vmul.f32 %v4780, %v5060
        %v5101 = vmul.f32 %v4781, %v5061
        %v5102 = vmul.f32 %v4782, %v5062
        %v5103 = vmul.f32 %v4783, %v5063
        %v5104 = vmul.f32 %v4784, %v5064
        %v5105 = vmul.f32 %v4785, %v5065
        %v5106 = vmul.f32 %v4786, %v5066
        %v5107 = vmul.f32 %v4787, %v5067
        %v5108 = vmul.f32 %v4788, %v5068
        %v5109 = vmul.f32 %v4789, %v5069
        %v5110 = vmul.f32 %v4790, %v5070
        %v5111 = vmul.f32 %v4791, %v5071
        %v5112 = vmul.f32 %v4792, %v5072
        %v5113 = vmul.f32 %v4793, %v5073
        %v5114 = vmul.f32 %v4794, %v5074
        %v5115 = vmul.f32 %v4795, %v5075
        %v5116 = vmul.f32 %v4796, %v5076
        %v5117 = vmul.f32 %v4797, %v5077
        %v5118 = vmul.f32 %v4798, %v5078
        %v5119 = vmul.f32 %v4799, %v5079
        %v5120 = vmul.f32 %v4800, %v5080
        %v5121 = vmul.f32 %v4801, %v5081
        %v5122 = vmul.f32 %v4802, %v5082
        %v5123 = vmul.f32 %v4803, %v5083
        %v5124 = vmul.f32 %v4804, %v5084
        %v5125 = vmul.f32 %v4805, %v5085
        %v5126 = vmul.f32 %v4806, %v5086
        %v5127 = vmul.f32 %v4807, %v5087
        %v5128 = vmul.f32 %v4808, %v5088
        %v5129 = vmul.f32 %v4809, %v5089
        %v5130 = vmul.f32 %v4810, %v5090
        %v5131 = vmul.f32 %v4811, %v5091
        %v5132 = vmul.f32 %v4812, %v5092
        %v5133 = vmul.f32 %v4813, %v5093
        %v5134 = vmul.f32 %v4814, %v5094
        %v5135 = vmul.f32 %v4815, %v5095
        %v5136 = vmul.f32 %v5096, %v1025
        %v5137 = vmul.f32 %v5097, %v1048
        %v5138 = vmul.f32 %v5098, %v1071
        %v5139 = vmul.f32 %v5099, %v1094
        %v5140 = vmul.f32 %v5100, %v1117
        %v5141 = vmul.f32 %v5101, %v1140
        %v5142 = vmul.f32 %v5102, %v1163
        %v5143 = vmul.f32 %v5103, %v1186
        %v5144 = vmul.f32 %v5104, %v1209
        %v5145 = vmul.f32 %v5105, %v1232
        %v5146 = vmul.f32 %v5106, %v1255
        %v5147 = vmul.f32 %v5107, %v1278
        %v5148 = vmul.f32 %v5108, %v1301
        %v5149 = vmul.f32 %v5109, %v1324
        %v5150 = vmul.f32 %v5110, %v1347
        %v5151 = vmul.f32 %v5111, %v1370
        %v5152 = vmul.f32 %v5112, %v1393
        %v5153 = vmul.f32 %v5113, %v1416
        %v5154 = vmul.f32 %v5114, %v1439
        %v5155 = vmul.f32 %v5115, %v1462
        %v5156 = vmul.f32 %v5116, %v1028
        %v5157 = vmul.f32 %v5117, %v1051
        %v5158 = vmul.f32 %v5118, %v1074
        %v5159 = vmul.f32 %v5119, %v1097
        %v5160 = vmul.f32 %v5120, %v1120
        %v5161 = vmul.f32 %v5121, %v1143
        %v5162 = vmul.f32 %v5122, %v1166
        %v5163 = vmul.f32 %v5123, %v1189
        %v5164 = vmul.f32 %v5124, %v1212
        %v5165 = vmul.f32 %v5125, %v1235
        %v5166 = vmul.f32 %v5126, %v1258
        %v5167 = vmul.f32 %v5127, %v1281
        %v5168 = vmul.f32 %v5128, %v1304
        %v5169 = vmul.f32 %v5129, %v1327
        %v5170 = vmul.f32 %v5130, %v1350
        %v5171 = vmul.f32 %v5131, %v1373
        %v5172 = vmul.f32 %v5132, %v1396
        %v5173 = vmul.f32 %v5133, %v1419
        %v5174 = vmul.f32 %v5134, %v1442
        %v5175 = vmul.f32 %v5135, %v1465
        %v5176 = vpack.c.bf16 %v5156, %v5136
        %v5177 = vpack.c.bf16 %v5157, %v5137
        %v5178 = vpack.c.bf16 %v5158, %v5138
        %v5179 = vpack.c.bf16 %v5159, %v5139
        %v5180 = vpack.c.bf16 %v5160, %v5140
        %v5181 = vpack.c.bf16 %v5161, %v5141
        %v5182 = vpack.c.bf16 %v5162, %v5142
        %v5183 = vpack.c.bf16 %v5163, %v5143
        %v5184 = vpack.c.bf16 %v5164, %v5144
        %v5185 = vpack.c.bf16 %v5165, %v5145
        %v5186 = vpack.c.bf16 %v5166, %v5146
        %v5187 = vpack.c.bf16 %v5167, %v5147
        %v5188 = vpack.c.bf16 %v5168, %v5148
        %v5189 = vpack.c.bf16 %v5169, %v5149
        %v5190 = vpack.c.bf16 %v5170, %v5150
        %v5191 = vpack.c.bf16 %v5171, %v5151
        %v5192 = vpack.c.bf16 %v5172, %v5152
        %v5193 = vpack.c.bf16 %v5173, %v5153
        %v5194 = vpack.c.bf16 %v5174, %v5154
        %v5195 = vpack.c.bf16 %v5175, %v5155
        %v5196 = vld [vmem:[%s498] sm:$0xff]
        %v5197 = vld [vmem:[%s498 + $0x8] sm:$0xf]
        %v5198 = vld [vmem:[%s498 + $0xc] sm:$0xff]
        %v5199 = vld [vmem:[%s498 + $0x14] sm:$0xf]
        %v5200 = vld [vmem:[%s498 + $0x18] sm:$0xff]
        %v5201 = vld [vmem:[%s498 + $0x20] sm:$0xf]
        %v5202 = vld [vmem:[%s498 + $0x24] sm:$0xff]
        %v5203 = vld [vmem:[%s498 + $0x2c] sm:$0xf]
        %v5204 = vld [vmem:[%s498 + $0x30] sm:$0xff]
        %v5205 = vld [vmem:[%s498 + $0x38] sm:$0xf]
        %v5206 = vld [vmem:[%s498 + $0x3c] sm:$0xff]
        %v5207 = vld [vmem:[%s498 + $0x44] sm:$0xf]
        %v5208 = vld [vmem:[%s498 + $0x48] sm:$0xff]
        %v5209 = vld [vmem:[%s498 + $0x50] sm:$0xf]
        %v5210 = vld [vmem:[%s498 + $0x54] sm:$0xff]
        %v5211 = vld [vmem:[%s498 + $0x5c] sm:$0xf]
        %v5212 = vld [vmem:[%s498 + $0x60] sm:$0xff]
        %v5213 = vld [vmem:[%s498 + $0x68] sm:$0xf]
        %v5214 = vld [vmem:[%s498 + $0x6c] sm:$0xff]
        %v5215 = vld [vmem:[%s498 + $0x74] sm:$0xf]
        %v5216 = vld [vmem:[%s498 + $0x78] sm:$0xff]
        %v5217 = vld [vmem:[%s498 + $0x80] sm:$0xf]
        %v5218 = vld [vmem:[%s498 + $0x84] sm:$0xff]
        %v5219 = vld [vmem:[%s498 + $0x8c] sm:$0xf]
        %v5220 = vld [vmem:[%s498 + $0x90] sm:$0xff]
        %v5221 = vld [vmem:[%s498 + $0x98] sm:$0xf]
        %v5222 = vld [vmem:[%s498 + $0x9c] sm:$0xff]
        %v5223 = vld [vmem:[%s498 + $0xa4] sm:$0xf]
        %v5224 = vld [vmem:[%s498 + $0xa8] sm:$0xff]
        %v5225 = vld [vmem:[%s498 + $0xb0] sm:$0xf]
        %v5226 = vld [vmem:[%s498 + $0xb4] sm:$0xff]
        %v5227 = vld [vmem:[%s498 + $0xbc] sm:$0xf]
        %v5228 = vld [vmem:[%s498 + $0xc0] sm:$0xff]
        %v5229 = vld [vmem:[%s498 + $0xc8] sm:$0xf]
        %v5230 = vld [vmem:[%s498 + $0xcc] sm:$0xff]
        %v5231 = vld [vmem:[%s498 + $0xd4] sm:$0xf]
        %v5232 = vld [vmem:[%s498 + $0xd8] sm:$0xff]
        %v5233 = vld [vmem:[%s498 + $0xe0] sm:$0xf]
        %v5234 = vld [vmem:[%s498 + $0xe4] sm:$0xff]
        %v5235 = vld [vmem:[%s498 + $0xec] sm:$0xf]
        %v5236 = vld [vmem:[%s498 + $0xf0] sm:$0xff]
        %v5237 = vld [vmem:[%s498 + $0xf8] sm:$0xf]
        %v5238 = vld [vmem:[%s498 + $0xfc] sm:$0xff]
        %v5239 = vld [vmem:[%s498 + $0x104] sm:$0xf]
        %v5240 = vld [vmem:[%s498 + $0x108] sm:$0xff]
        %v5241 = vld [vmem:[%s498 + $0x110] sm:$0xf]
        %v5242 = vld [vmem:[%s498 + $0x114] sm:$0xff]
        %v5243 = vld [vmem:[%s498 + $0x11c] sm:$0xf]
        %v5244 = vld [vmem:[%s498 + $0x120] sm:$0xff]
        %v5245 = vld [vmem:[%s498 + $0x128] sm:$0xf]
        %v5246 = vld [vmem:[%s498 + $0x12c] sm:$0xff]
        %v5247 = vld [vmem:[%s498 + $0x134] sm:$0xf]
        %v5248 = vld [vmem:[%s498 + $0x138] sm:$0xff]
        %v5249 = vld [vmem:[%s498 + $0x140] sm:$0xf]
        %v5250 = vld [vmem:[%s498 + $0x144] sm:$0xff]
        %v5251 = vld [vmem:[%s498 + $0x14c] sm:$0xf]
        %v5252 = vld [vmem:[%s498 + $0x150] sm:$0xff]
        %v5253 = vld [vmem:[%s498 + $0x158] sm:$0xf]
        %v5254 = vld [vmem:[%s498 + $0x15c] sm:$0xff]
        %v5255 = vld [vmem:[%s498 + $0x164] sm:$0xf]
        %v5256 = vld [vmem:[%s498 + $0x168] sm:$0xff]
        %v5257 = vld [vmem:[%s498 + $0x170] sm:$0xf]
        %v5258 = vld [vmem:[%s498 + $0x174] sm:$0xff]
        %v5259 = vld [vmem:[%s498 + $0x17c] sm:$0xf]
        %v5260 = vld [vmem:[%s498 + $0x180] sm:$0xff]
        %v5261 = vld [vmem:[%s498 + $0x188] sm:$0xf]
        %v5262 = vld [vmem:[%s498 + $0x18c] sm:$0xff]
        %v5263 = vld [vmem:[%s498 + $0x194] sm:$0xf]
        %v5264 = vld [vmem:[%s498 + $0x198] sm:$0xff]
        %v5265 = vld [vmem:[%s498 + $0x1a0] sm:$0xf]
        %v5266 = vld [vmem:[%s498 + $0x1a4] sm:$0xff]
        %v5267 = vld [vmem:[%s498 + $0x1ac] sm:$0xf]
        %v5268 = vld [vmem:[%s498 + $0x1b0] sm:$0xff]
        %v5269 = vld [vmem:[%s498 + $0x1b8] sm:$0xf]
        %v5270 = vld [vmem:[%s498 + $0x1bc] sm:$0xff]
        %v5271 = vld [vmem:[%s498 + $0x1c4] sm:$0xf]
        %v5272 = vld [vmem:[%s498 + $0x1c8] sm:$0xff]
        %v5273 = vld [vmem:[%s498 + $0x1d0] sm:$0xf]
        %v5274 = vld [vmem:[%s498 + $0x1d4] sm:$0xff]
        %v5275 = vld [vmem:[%s498 + $0x1dc] sm:$0xf]
        %v5276 = vld [vmem:[%s498 + $0x1e0] sm:$0xff]
        %v5277 = vld [vmem:[%s498 + $0x1e8] sm:$0xf]
        %v5278 = vld [vmem:[%s498 + $0x1ec] sm:$0xff]
        %v5279 = vld [vmem:[%s498 + $0x1f4] sm:$0xf]
        %v5280 = vld [vmem:[%s498 + $0x1f8] sm:$0xff]
        %v5281 = vld [vmem:[%s498 + $0x200] sm:$0xf]
        %v5282 = vld [vmem:[%s498 + $0x204] sm:$0xff]
        %v5283 = vld [vmem:[%s498 + $0x20c] sm:$0xf]
        %v5284 = vld [vmem:[%s498 + $0x210] sm:$0xff]
        %v5285 = vld [vmem:[%s498 + $0x218] sm:$0xf]
        %v5286 = vld [vmem:[%s498 + $0x21c] sm:$0xff]
        %v5287 = vld [vmem:[%s498 + $0x224] sm:$0xf]
        %v5288 = vld [vmem:[%s498 + $0x228] sm:$0xff]
        %v5289 = vld [vmem:[%s498 + $0x230] sm:$0xf]
        %v5290 = vld [vmem:[%s498 + $0x234] sm:$0xff]
        %v5291 = vld [vmem:[%s498 + $0x23c] sm:$0xf]
        %v5292 = vld [vmem:[%s498 + $0x240] sm:$0xff]
        %v5293 = vld [vmem:[%s498 + $0x248] sm:$0xf]
        %v5294 = vld [vmem:[%s498 + $0x24c] sm:$0xff]
        %v5295 = vld [vmem:[%s498 + $0x254] sm:$0xf]
        %v5296 = vld [vmem:[%s498 + $0x258] sm:$0xff]
        %v5297 = vld [vmem:[%s498 + $0x260] sm:$0xf]
        %v5298 = vld [vmem:[%s498 + $0x264] sm:$0xff]
        %v5299 = vld [vmem:[%s498 + $0x26c] sm:$0xf]
        %v5300 = vld [vmem:[%s498 + $0x270] sm:$0xff]
        %v5301 = vld [vmem:[%s498 + $0x278] sm:$0xf]
        %v5302 = vld [vmem:[%s498 + $0x27c] sm:$0xff]
        %v5303 = vld [vmem:[%s498 + $0x284] sm:$0xf]
        %v5304 = vld [vmem:[%s498 + $0x288] sm:$0xff]
        %v5305 = vld [vmem:[%s498 + $0x290] sm:$0xf]
        %v5306 = vld [vmem:[%s498 + $0x294] sm:$0xff]
        %v5307 = vld [vmem:[%s498 + $0x29c] sm:$0xf]
        %v5308 = vld [vmem:[%s498 + $0x2a0] sm:$0xff]
        %v5309 = vld [vmem:[%s498 + $0x2a8] sm:$0xf]
        %v5310 = vld [vmem:[%s498 + $0x2ac] sm:$0xff]
        %v5311 = vld [vmem:[%s498 + $0x2b4] sm:$0xf]
        %v5312 = vld [vmem:[%s498 + $0x2b8] sm:$0xff]
        %v5313 = vld [vmem:[%s498 + $0x2c0] sm:$0xf]
        %v5314 = vld [vmem:[%s498 + $0x2c4] sm:$0xff]
        %v5315 = vld [vmem:[%s498 + $0x2cc] sm:$0xf]
        %v5316 = vld [vmem:[%s498 + $0x2d0] sm:$0xff]
        %v5317 = vld [vmem:[%s498 + $0x2d8] sm:$0xf]
        %v5318 = vld [vmem:[%s498 + $0x2dc] sm:$0xff]
        %v5319 = vld [vmem:[%s498 + $0x2e4] sm:$0xf]
        %v5320 = vld [vmem:[%s498 + $0x2e8] sm:$0xff]
        %v5321 = vld [vmem:[%s498 + $0x2f0] sm:$0xf]
        %v5322 = vld [vmem:[%s498 + $0x2f4] sm:$0xff]
        %v5323 = vld [vmem:[%s498 + $0x2fc] sm:$0xf]
        %v5324 = vld [vmem:[%s498 + $0x300] sm:$0xff]
        %v5325 = vld [vmem:[%s498 + $0x308] sm:$0xf]
        %v5326 = vld [vmem:[%s498 + $0x30c] sm:$0xff]
        %v5327 = vld [vmem:[%s498 + $0x314] sm:$0xf]
        %v5328 = vld [vmem:[%s498 + $0x318] sm:$0xff]
        %v5329 = vld [vmem:[%s498 + $0x320] sm:$0xf]
        %v5330 = vld [vmem:[%s498 + $0x324] sm:$0xff]
        %v5331 = vld [vmem:[%s498 + $0x32c] sm:$0xf]
        %v5332 = vld [vmem:[%s498 + $0x330] sm:$0xff]
        %v5333 = vld [vmem:[%s498 + $0x338] sm:$0xf]
        %v5334 = vld [vmem:[%s498 + $0x33c] sm:$0xff]
        %v5335 = vld [vmem:[%s498 + $0x344] sm:$0xf]
        %v5336 = vld [vmem:[%s498 + $0x348] sm:$0xff]
        %v5337 = vld [vmem:[%s498 + $0x350] sm:$0xf]
        %v5338 = vld [vmem:[%s498 + $0x354] sm:$0xff]
        %v5339 = vld [vmem:[%s498 + $0x35c] sm:$0xf]
        %v5340 = vld [vmem:[%s498 + $0x360] sm:$0xff]
        %v5341 = vld [vmem:[%s498 + $0x368] sm:$0xf]
        %v5342 = vld [vmem:[%s498 + $0x36c] sm:$0xff]
        %v5343 = vld [vmem:[%s498 + $0x374] sm:$0xf]
        %v5344 = vld [vmem:[%s498 + $0x378] sm:$0xff]
        %v5345 = vld [vmem:[%s498 + $0x380] sm:$0xf]
        %v5346 = vld [vmem:[%s498 + $0x384] sm:$0xff]
        %v5347 = vld [vmem:[%s498 + $0x38c] sm:$0xf]
        %v5348 = vld [vmem:[%s498 + $0x390] sm:$0xff]
        %v5349 = vld [vmem:[%s498 + $0x398] sm:$0xf]
        %v5350 = vld [vmem:[%s498 + $0x39c] sm:$0xff]
        %v5351 = vld [vmem:[%s498 + $0x3a4] sm:$0xf]
        %v5352 = vld [vmem:[%s498 + $0x3a8] sm:$0xff]
        %v5353 = vld [vmem:[%s498 + $0x3b0] sm:$0xf]
        %v5354 = vld [vmem:[%s498 + $0x3b4] sm:$0xff]
        %v5355 = vld [vmem:[%s498 + $0x3bc] sm:$0xf]
        %v5356 = vld [vmem:[%s498 + $0x3c0] sm:$0xff]
        %v5357 = vld [vmem:[%s498 + $0x3c8] sm:$0xf]
        %v5358 = vld [vmem:[%s498 + $0x3cc] sm:$0xff]
        %v5359 = vld [vmem:[%s498 + $0x3d4] sm:$0xf]
        %v5360 = vld [vmem:[%s498 + $0x3d8] sm:$0xff]
        %v5361 = vld [vmem:[%s498 + $0x3e0] sm:$0xf]
        %v5362 = vld [vmem:[%s498 + $0x3e4] sm:$0xff]
        %v5363 = vld [vmem:[%s498 + $0x3ec] sm:$0xf]
        %v5364 = vld [vmem:[%s498 + $0x3f0] sm:$0xff]
        %v5365 = vld [vmem:[%s498 + $0x3f8] sm:$0xf]
        %v5366 = vld [vmem:[%s498 + $0x3fc] sm:$0xff]
        %v5367 = vld [vmem:[%s498 + $0x404] sm:$0xf]
        %v5368 = vld [vmem:[%s498 + $0x408] sm:$0xff]
        %v5369 = vld [vmem:[%s498 + $0x410] sm:$0xf]
        %v5370 = vld [vmem:[%s498 + $0x414] sm:$0xff]
        %v5371 = vld [vmem:[%s498 + $0x41c] sm:$0xf]
        %v5372 = vld [vmem:[%s498 + $0x420] sm:$0xff]
        %v5373 = vld [vmem:[%s498 + $0x428] sm:$0xf]
        %v5374 = vld [vmem:[%s498 + $0x42c] sm:$0xff]
        %v5375 = vld [vmem:[%s498 + $0x434] sm:$0xf]
        %v5376 = vld [vmem:[%s498 + $0x438] sm:$0xff]
        %v5377 = vld [vmem:[%s498 + $0x440] sm:$0xf]
        %v5378 = vld [vmem:[%s498 + $0x444] sm:$0xff]
        %v5379 = vld [vmem:[%s498 + $0x44c] sm:$0xf]
        %v5380 = vld [vmem:[%s498 + $0x450] sm:$0xff]
        %v5381 = vld [vmem:[%s498 + $0x458] sm:$0xf]
        %v5382 = vld [vmem:[%s498 + $0x45c] sm:$0xff]
        %v5383 = vld [vmem:[%s498 + $0x464] sm:$0xf]
        %v5384 = vld [vmem:[%s498 + $0x468] sm:$0xff]
        %v5385 = vld [vmem:[%s498 + $0x470] sm:$0xf]
        %v5386 = vld [vmem:[%s498 + $0x474] sm:$0xff]
        %v5387 = vld [vmem:[%s498 + $0x47c] sm:$0xf]
        %v5388 = vld [vmem:[%s498 + $0x480] sm:$0xff]
        %v5389 = vld [vmem:[%s498 + $0x488] sm:$0xf]
        %v5390 = vld [vmem:[%s498 + $0x48c] sm:$0xff]
        %v5391 = vld [vmem:[%s498 + $0x494] sm:$0xf]
        %v5392 = vld [vmem:[%s498 + $0x498] sm:$0xff]
        %v5393 = vld [vmem:[%s498 + $0x4a0] sm:$0xf]
        %v5394 = vld [vmem:[%s498 + $0x4a4] sm:$0xff]
        %v5395 = vld [vmem:[%s498 + $0x4ac] sm:$0xf]
        %v5396 = vld [vmem:[%s498 + $0x4b0] sm:$0xff]
        %v5397 = vld [vmem:[%s498 + $0x4b8] sm:$0xf]
        %v5398 = vld [vmem:[%s498 + $0x4bc] sm:$0xff]
        %v5399 = vld [vmem:[%s498 + $0x4c4] sm:$0xf]
        %v5400 = vld [vmem:[%s498 + $0x4c8] sm:$0xff]
        %v5401 = vld [vmem:[%s498 + $0x4d0] sm:$0xf]
        %v5402 = vld [vmem:[%s498 + $0x4d4] sm:$0xff]
        %v5403 = vld [vmem:[%s498 + $0x4dc] sm:$0xf]
        %v5404 = vld [vmem:[%s498 + $0x4e0] sm:$0xff]
        %v5405 = vld [vmem:[%s498 + $0x4e8] sm:$0xf]
        %v5406 = vld [vmem:[%s498 + $0x4ec] sm:$0xff]
        %v5407 = vld [vmem:[%s498 + $0x4f4] sm:$0xf]
        %v5408 = vld [vmem:[%s498 + $0x4f8] sm:$0xff]
        %v5409 = vld [vmem:[%s498 + $0x500] sm:$0xf]
        %v5410 = vld [vmem:[%s498 + $0x504] sm:$0xff]
        %v5411 = vld [vmem:[%s498 + $0x50c] sm:$0xf]
        %v5412 = vld [vmem:[%s498 + $0x510] sm:$0xff]
        %v5413 = vld [vmem:[%s498 + $0x518] sm:$0xf]
        %v5414 = vld [vmem:[%s498 + $0x51c] sm:$0xff]
        %v5415 = vld [vmem:[%s498 + $0x524] sm:$0xf]
        %v5416 = vld [vmem:[%s498 + $0x528] sm:$0xff]
        %v5417 = vld [vmem:[%s498 + $0x530] sm:$0xf]
        %v5418 = vld [vmem:[%s498 + $0x534] sm:$0xff]
        %v5419 = vld [vmem:[%s498 + $0x53c] sm:$0xf]
        %v5420 = vld [vmem:[%s498 + $0x540] sm:$0xff]
        %v5421 = vld [vmem:[%s498 + $0x548] sm:$0xf]
        %v5422 = vld [vmem:[%s498 + $0x54c] sm:$0xff]
        %v5423 = vld [vmem:[%s498 + $0x554] sm:$0xf]
        %v5424 = vld [vmem:[%s498 + $0x558] sm:$0xff]
        %v5425 = vld [vmem:[%s498 + $0x560] sm:$0xf]
        %v5426 = vld [vmem:[%s498 + $0x564] sm:$0xff]
        %v5427 = vld [vmem:[%s498 + $0x56c] sm:$0xf]
        %v5428 = vld [vmem:[%s498 + $0x570] sm:$0xff]
        %v5429 = vld [vmem:[%s498 + $0x578] sm:$0xf]
        %v5430 = vld [vmem:[%s498 + $0x57c] sm:$0xff]
        %v5431 = vld [vmem:[%s498 + $0x584] sm:$0xf]
        %v5432 = vld [vmem:[%s498 + $0x588] sm:$0xff]
        %v5433 = vld [vmem:[%s498 + $0x590] sm:$0xf]
        %v5434 = vld [vmem:[%s498 + $0x594] sm:$0xff]
        %v5435 = vld [vmem:[%s498 + $0x59c] sm:$0xf]
        %v5436 = vld [vmem:[%s498 + $0x5a0] sm:$0xff]
        %v5437 = vld [vmem:[%s498 + $0x5a8] sm:$0xf]
        %v5438 = vld [vmem:[%s498 + $0x5ac] sm:$0xff]
        %v5439 = vld [vmem:[%s498 + $0x5b4] sm:$0xf]
        %v5440 = vld [vmem:[%s498 + $0x5b8] sm:$0xff]
        %v5441 = vld [vmem:[%s498 + $0x5c0] sm:$0xf]
        %v5442 = vld [vmem:[%s498 + $0x5c4] sm:$0xff]
        %v5443 = vld [vmem:[%s498 + $0x5cc] sm:$0xf]
        %v5444 = vld [vmem:[%s498 + $0x5d0] sm:$0xff]
        %v5445 = vld [vmem:[%s498 + $0x5d8] sm:$0xf]
        %v5446 = vld [vmem:[%s498 + $0x5dc] sm:$0xff]
        %v5447 = vld [vmem:[%s498 + $0x5e4] sm:$0xf]
        %v5448 = vld [vmem:[%s498 + $0x5e8] sm:$0xff]
        %v5449 = vld [vmem:[%s498 + $0x5f0] sm:$0xf]
        %v5450 = vld [vmem:[%s498 + $0x5f4] sm:$0xff]
        %v5451 = vld [vmem:[%s498 + $0x5fc] sm:$0xf]
        %v5452 = vld [vmem:[%s498 + $0x600] sm:$0xff]
        %v5453 = vld [vmem:[%s498 + $0x608] sm:$0xf]
        %v5454 = vld [vmem:[%s498 + $0x60c] sm:$0xff]
        %v5455 = vld [vmem:[%s498 + $0x614] sm:$0xf]
        %v5456 = vld [vmem:[%s498 + $0x618] sm:$0xff]
        %v5457 = vld [vmem:[%s498 + $0x620] sm:$0xf]
        %v5458 = vld [vmem:[%s498 + $0x624] sm:$0xff]
        %v5459 = vld [vmem:[%s498 + $0x62c] sm:$0xf]
        %v5460 = vld [vmem:[%s498 + $0x630] sm:$0xff]
        %v5461 = vld [vmem:[%s498 + $0x638] sm:$0xf]
        %v5462 = vld [vmem:[%s498 + $0x63c] sm:$0xff]
        %v5463 = vld [vmem:[%s498 + $0x644] sm:$0xf]
        %v5464 = vld [vmem:[%s498 + $0x648] sm:$0xff]
        %v5465 = vld [vmem:[%s498 + $0x650] sm:$0xf]
        %v5466 = vld [vmem:[%s498 + $0x654] sm:$0xff]
        %v5467 = vld [vmem:[%s498 + $0x65c] sm:$0xf]
        %v5468 = vld [vmem:[%s498 + $0x660] sm:$0xff]
        %v5469 = vld [vmem:[%s498 + $0x668] sm:$0xf]
        %v5470 = vld [vmem:[%s498 + $0x66c] sm:$0xff]
        %v5471 = vld [vmem:[%s498 + $0x674] sm:$0xf]
        %v5472 = vld [vmem:[%s498 + $0x678] sm:$0xff]
        %v5473 = vld [vmem:[%s498 + $0x680] sm:$0xf]
        %v5474 = vld [vmem:[%s498 + $0x684] sm:$0xff]
        %v5475 = vld [vmem:[%s498 + $0x68c] sm:$0xf]
        %v5476 = vld [vmem:[%s498 + $0x690] sm:$0xff]
        %v5477 = vld [vmem:[%s498 + $0x698] sm:$0xf]
        %v5478 = vld [vmem:[%s498 + $0x69c] sm:$0xff]
        %v5479 = vld [vmem:[%s498 + $0x6a4] sm:$0xf]
        %v5480 = vld [vmem:[%s498 + $0x6a8] sm:$0xff]
        %v5481 = vld [vmem:[%s498 + $0x6b0] sm:$0xf]
        %v5482 = vld [vmem:[%s498 + $0x6b4] sm:$0xff]
        %v5483 = vld [vmem:[%s498 + $0x6bc] sm:$0xf]
        %v5484 = vld [vmem:[%s498 + $0x6c0] sm:$0xff]
        %v5485 = vld [vmem:[%s498 + $0x6c8] sm:$0xf]
        %v5486 = vld [vmem:[%s498 + $0x6cc] sm:$0xff]
        %v5487 = vld [vmem:[%s498 + $0x6d4] sm:$0xf]
        %v5488 = vld [vmem:[%s498 + $0x6d8] sm:$0xff]
        %v5489 = vld [vmem:[%s498 + $0x6e0] sm:$0xf]
        %v5490 = vld [vmem:[%s498 + $0x6e4] sm:$0xff]
        %v5491 = vld [vmem:[%s498 + $0x6ec] sm:$0xf]
        %v5492 = vld [vmem:[%s498 + $0x6f0] sm:$0xff]
        %v5493 = vld [vmem:[%s498 + $0x6f8] sm:$0xf]
        %v5494 = vld [vmem:[%s498 + $0x6fc] sm:$0xff]
        %v5495 = vld [vmem:[%s498 + $0x704] sm:$0xf]
        %v5496 = vld [vmem:[%s498 + $0x708] sm:$0xff]
        %v5497 = vld [vmem:[%s498 + $0x710] sm:$0xf]
        %v5498 = vld [vmem:[%s498 + $0x714] sm:$0xff]
        %v5499 = vld [vmem:[%s498 + $0x71c] sm:$0xf]
        %v5500 = vld [vmem:[%s498 + $0x720] sm:$0xff]
        %v5501 = vld [vmem:[%s498 + $0x728] sm:$0xf]
        %v5502 = vld [vmem:[%s498 + $0x72c] sm:$0xff]
        %v5503 = vld [vmem:[%s498 + $0x734] sm:$0xf]
        %v5504 = vld [vmem:[%s498 + $0x738] sm:$0xff]
        %v5505 = vld [vmem:[%s498 + $0x740] sm:$0xf]
        %v5506 = vld [vmem:[%s498 + $0x744] sm:$0xff]
        %v5507 = vld [vmem:[%s498 + $0x74c] sm:$0xf]
        %v5508 = vld [vmem:[%s498 + $0x750] sm:$0xff]
        %v5509 = vld [vmem:[%s498 + $0x758] sm:$0xf]
        %v5510 = vld [vmem:[%s498 + $0x75c] sm:$0xff]
        %v5511 = vld [vmem:[%s498 + $0x764] sm:$0xf]
        %v5512 = vld [vmem:[%s498 + $0x768] sm:$0xff]
        %v5513 = vld [vmem:[%s498 + $0x770] sm:$0xf]
        %v5514 = vld [vmem:[%s498 + $0x774] sm:$0xff]
        %v5515 = vld [vmem:[%s498 + $0x77c] sm:$0xf]
        %v5516 = vld [vmem:[%s498 + $0x780] sm:$0xff]
        %v5517 = vld [vmem:[%s498 + $0x788] sm:$0xf]
        %v5518 = vld [vmem:[%s498 + $0x78c] sm:$0xff]
        %v5519 = vld [vmem:[%s498 + $0x794] sm:$0xf]
        %v5520 = vld [vmem:[%s498 + $0x798] sm:$0xff]
        %v5521 = vld [vmem:[%s498 + $0x7a0] sm:$0xf]
        %v5522 = vld [vmem:[%s498 + $0x7a4] sm:$0xff]
        %v5523 = vld [vmem:[%s498 + $0x7ac] sm:$0xf]
        %v5524 = vld [vmem:[%s498 + $0x7b0] sm:$0xff]
        %v5525 = vld [vmem:[%s498 + $0x7b8] sm:$0xf]
        %v5526 = vld [vmem:[%s498 + $0x7bc] sm:$0xff]
        %v5527 = vld [vmem:[%s498 + $0x7c4] sm:$0xf]
        %v5528 = vld [vmem:[%s498 + $0x7c8] sm:$0xff]
        %v5529 = vld [vmem:[%s498 + $0x7d0] sm:$0xf]
        %v5530 = vld [vmem:[%s498 + $0x7d4] sm:$0xff]
        %v5531 = vld [vmem:[%s498 + $0x7dc] sm:$0xf]
        %v5532 = vld [vmem:[%s498 + $0x7e0] sm:$0xff]
        %v5533 = vld [vmem:[%s498 + $0x7e8] sm:$0xf]
        %v5534 = vld [vmem:[%s498 + $0x7ec] sm:$0xff]
        %v5535 = vld [vmem:[%s498 + $0x7f4] sm:$0xf]
        %v5536 = vld [vmem:[%s498 + $0x7f8] sm:$0xff]
        %v5537 = vld [vmem:[%s498 + $0x800] sm:$0xf]
        %v5538 = vld [vmem:[%s498 + $0x804] sm:$0xff]
        %v5539 = vld [vmem:[%s498 + $0x80c] sm:$0xf]
        %v5540 = vld [vmem:[%s498 + $0x810] sm:$0xff]
        %v5541 = vld [vmem:[%s498 + $0x818] sm:$0xf]
        %v5542 = vld [vmem:[%s498 + $0x81c] sm:$0xff]
        %v5543 = vld [vmem:[%s498 + $0x824] sm:$0xf]
        %v5544 = vld [vmem:[%s498 + $0x828] sm:$0xff]
        %v5545 = vld [vmem:[%s498 + $0x830] sm:$0xf]
        %v5546 = vld [vmem:[%s498 + $0x834] sm:$0xff]
        %v5547 = vld [vmem:[%s498 + $0x83c] sm:$0xf]
        %v5548 = vld [vmem:[%s498 + $0x840] sm:$0xff]
        %v5549 = vld [vmem:[%s498 + $0x848] sm:$0xf]
        %v5550 = vld [vmem:[%s498 + $0x84c] sm:$0xff]
        %v5551 = vld [vmem:[%s498 + $0x854] sm:$0xf]
        %v5552 = vld [vmem:[%s498 + $0x858] sm:$0xff]
        %v5553 = vld [vmem:[%s498 + $0x860] sm:$0xf]
        %v5554 = vld [vmem:[%s498 + $0x864] sm:$0xff]
        %v5555 = vld [vmem:[%s498 + $0x86c] sm:$0xf]
        %v5556 = vld [vmem:[%s498 + $0x870] sm:$0xff]
        %v5557 = vld [vmem:[%s498 + $0x878] sm:$0xf]
        %v5558 = vld [vmem:[%s498 + $0x87c] sm:$0xff]
        %v5559 = vld [vmem:[%s498 + $0x884] sm:$0xf]
        %v5560 = vld [vmem:[%s498 + $0x888] sm:$0xff]
        %v5561 = vld [vmem:[%s498 + $0x890] sm:$0xf]
        %v5562 = vld [vmem:[%s498 + $0x894] sm:$0xff]
        %v5563 = vld [vmem:[%s498 + $0x89c] sm:$0xf]
        %v5564 = vld [vmem:[%s498 + $0x8a0] sm:$0xff]
        %v5565 = vld [vmem:[%s498 + $0x8a8] sm:$0xf]
        %v5566 = vld [vmem:[%s498 + $0x8ac] sm:$0xff]
        %v5567 = vld [vmem:[%s498 + $0x8b4] sm:$0xf]
        %v5568 = vld [vmem:[%s498 + $0x8b8] sm:$0xff]
        %v5569 = vld [vmem:[%s498 + $0x8c0] sm:$0xf]
        %v5570 = vld [vmem:[%s498 + $0x8c4] sm:$0xff]
        %v5571 = vld [vmem:[%s498 + $0x8cc] sm:$0xf]
        %v5572 = vld [vmem:[%s498 + $0x8d0] sm:$0xff]
        %v5573 = vld [vmem:[%s498 + $0x8d8] sm:$0xf]
        %v5574 = vld [vmem:[%s498 + $0x8dc] sm:$0xff]
        %v5575 = vld [vmem:[%s498 + $0x8e4] sm:$0xf]
        %v5576 = vld [vmem:[%s498 + $0x8e8] sm:$0xff]
        %v5577 = vld [vmem:[%s498 + $0x8f0] sm:$0xf]
        %v5578 = vld [vmem:[%s498 + $0x8f4] sm:$0xff]
        %v5579 = vld [vmem:[%s498 + $0x8fc] sm:$0xf]
        %v5580 = vld [vmem:[%s498 + $0x900] sm:$0xff]
        %v5581 = vld [vmem:[%s498 + $0x908] sm:$0xf]
        %v5582 = vld [vmem:[%s498 + $0x90c] sm:$0xff]
        %v5583 = vld [vmem:[%s498 + $0x914] sm:$0xf]
        %v5584 = vld [vmem:[%s498 + $0x918] sm:$0xff]
        %v5585 = vld [vmem:[%s498 + $0x920] sm:$0xf]
        %v5586 = vld [vmem:[%s498 + $0x924] sm:$0xff]
        %v5587 = vld [vmem:[%s498 + $0x92c] sm:$0xf]
        %v5588 = vld [vmem:[%s498 + $0x930] sm:$0xff]
        %v5589 = vld [vmem:[%s498 + $0x938] sm:$0xf]
        %v5590 = vld [vmem:[%s498 + $0x93c] sm:$0xff]
        %v5591 = vld [vmem:[%s498 + $0x944] sm:$0xf]
        %v5592 = vld [vmem:[%s498 + $0x948] sm:$0xff]
        %v5593 = vld [vmem:[%s498 + $0x950] sm:$0xf]
        %v5594 = vld [vmem:[%s498 + $0x954] sm:$0xff]
        %v5595 = vld [vmem:[%s498 + $0x95c] sm:$0xf]
        %v5596 = vld [vmem:[%s498 + $0x960] sm:$0xff]
        %v5597 = vld [vmem:[%s498 + $0x968] sm:$0xf]
        %v5598 = vld [vmem:[%s498 + $0x96c] sm:$0xff]
        %v5599 = vld [vmem:[%s498 + $0x974] sm:$0xf]
        %v5600 = vld [vmem:[%s498 + $0x978] sm:$0xff]
        %v5601 = vld [vmem:[%s498 + $0x980] sm:$0xf]
        %v5602 = vld [vmem:[%s498 + $0x984] sm:$0xff]
        %v5603 = vld [vmem:[%s498 + $0x98c] sm:$0xf]
        %v5604 = vld [vmem:[%s498 + $0x990] sm:$0xff]
        %v5605 = vld [vmem:[%s498 + $0x998] sm:$0xf]
        %v5606 = vld [vmem:[%s498 + $0x99c] sm:$0xff]
        %v5607 = vld [vmem:[%s498 + $0x9a4] sm:$0xf]
        %v5608 = vld [vmem:[%s498 + $0x9a8] sm:$0xff]
        %v5609 = vld [vmem:[%s498 + $0x9b0] sm:$0xf]
        %v5610 = vld [vmem:[%s498 + $0x9b4] sm:$0xff]
        %v5611 = vld [vmem:[%s498 + $0x9bc] sm:$0xf]
        %v5612 = vld [vmem:[%s498 + $0x9c0] sm:$0xff]
        %v5613 = vld [vmem:[%s498 + $0x9c8] sm:$0xf]
        %v5614 = vld [vmem:[%s498 + $0x9cc] sm:$0xff]
        %v5615 = vld [vmem:[%s498 + $0x9d4] sm:$0xf]
        %v5616 = vld [vmem:[%s498 + $0x9d8] sm:$0xff]
        %v5617 = vld [vmem:[%s498 + $0x9e0] sm:$0xf]
        %v5618 = vld [vmem:[%s498 + $0x9e4] sm:$0xff]
        %v5619 = vld [vmem:[%s498 + $0x9ec] sm:$0xf]
        %v5620 = vld [vmem:[%s498 + $0x9f0] sm:$0xff]
        %v5621 = vld [vmem:[%s498 + $0x9f8] sm:$0xf]
        %v5622 = vld [vmem:[%s498 + $0x9fc] sm:$0xff]
        %v5623 = vld [vmem:[%s498 + $0xa04] sm:$0xf]
        %v5624 = vld [vmem:[%s498 + $0xa08] sm:$0xff]
        %v5625 = vld [vmem:[%s498 + $0xa10] sm:$0xf]
        %v5626 = vld [vmem:[%s498 + $0xa14] sm:$0xff]
        %v5627 = vld [vmem:[%s498 + $0xa1c] sm:$0xf]
        %v5628 = vld [vmem:[%s498 + $0xa20] sm:$0xff]
        %v5629 = vld [vmem:[%s498 + $0xa28] sm:$0xf]
        %v5630 = vld [vmem:[%s498 + $0xa2c] sm:$0xff]
        %v5631 = vld [vmem:[%s498 + $0xa34] sm:$0xf]
        %v5632 = vld [vmem:[%s498 + $0xa38] sm:$0xff]
        %v5633 = vld [vmem:[%s498 + $0xa40] sm:$0xf]
        %v5634 = vld [vmem:[%s498 + $0xa44] sm:$0xff]
        %v5635 = vld [vmem:[%s498 + $0xa4c] sm:$0xf]
        %v5636 = vld [vmem:[%s498 + $0xa50] sm:$0xff]
        %v5637 = vld [vmem:[%s498 + $0xa58] sm:$0xf]
        %v5638 = vld [vmem:[%s498 + $0xa5c] sm:$0xff]
        %v5639 = vld [vmem:[%s498 + $0xa64] sm:$0xf]
        %v5640 = vld [vmem:[%s498 + $0xa68] sm:$0xff]
        %v5641 = vld [vmem:[%s498 + $0xa70] sm:$0xf]
        %v5642 = vld [vmem:[%s498 + $0xa74] sm:$0xff]
        %v5643 = vld [vmem:[%s498 + $0xa7c] sm:$0xf]
        %v5644 = vld [vmem:[%s498 + $0xa80] sm:$0xff]
        %v5645 = vld [vmem:[%s498 + $0xa88] sm:$0xf]
        %v5646 = vld [vmem:[%s498 + $0xa8c] sm:$0xff]
        %v5647 = vld [vmem:[%s498 + $0xa94] sm:$0xf]
        %v5648 = vld [vmem:[%s498 + $0xa98] sm:$0xff]
        %v5649 = vld [vmem:[%s498 + $0xaa0] sm:$0xf]
        %v5650 = vld [vmem:[%s498 + $0xaa4] sm:$0xff]
        %v5651 = vld [vmem:[%s498 + $0xaac] sm:$0xf]
        %v5652 = vld [vmem:[%s498 + $0xab0] sm:$0xff]
        %v5653 = vld [vmem:[%s498 + $0xab8] sm:$0xf]
        %v5654 = vld [vmem:[%s498 + $0xabc] sm:$0xff]
        %v5655 = vld [vmem:[%s498 + $0xac4] sm:$0xf]
        %v5656 = vld [vmem:[%s498 + $0xac8] sm:$0xff]
        %v5657 = vld [vmem:[%s498 + $0xad0] sm:$0xf]
        %v5658 = vld [vmem:[%s498 + $0xad4] sm:$0xff]
        %v5659 = vld [vmem:[%s498 + $0xadc] sm:$0xf]
        %v5660 = vld [vmem:[%s498 + $0xae0] sm:$0xff]
        %v5661 = vld [vmem:[%s498 + $0xae8] sm:$0xf]
        %v5662 = vld [vmem:[%s498 + $0xaec] sm:$0xff]
        %v5663 = vld [vmem:[%s498 + $0xaf4] sm:$0xf]
        %v5664 = vld [vmem:[%s498 + $0xaf8] sm:$0xff]
        %v5665 = vld [vmem:[%s498 + $0xb00] sm:$0xf]
        %v5666 = vld [vmem:[%s498 + $0xb04] sm:$0xff]
        %v5667 = vld [vmem:[%s498 + $0xb0c] sm:$0xf]
        %v5668 = vld [vmem:[%s498 + $0xb10] sm:$0xff]
        %v5669 = vld [vmem:[%s498 + $0xb18] sm:$0xf]
        %v5670 = vld [vmem:[%s498 + $0xb1c] sm:$0xff]
        %v5671 = vld [vmem:[%s498 + $0xb24] sm:$0xf]
        %v5672 = vld [vmem:[%s498 + $0xb28] sm:$0xff]
        %v5673 = vld [vmem:[%s498 + $0xb30] sm:$0xf]
        %v5674 = vld [vmem:[%s498 + $0xb34] sm:$0xff]
        %v5675 = vld [vmem:[%s498 + $0xb3c] sm:$0xf]
        %v5676 = vld [vmem:[%s498 + $0xb40] sm:$0xff]
        %v5677 = vld [vmem:[%s498 + $0xb48] sm:$0xf]
        %v5678 = vld [vmem:[%s498 + $0xb4c] sm:$0xff]
        %v5679 = vld [vmem:[%s498 + $0xb54] sm:$0xf]
        %v5680 = vld [vmem:[%s498 + $0xb58] sm:$0xff]
        %v5681 = vld [vmem:[%s498 + $0xb60] sm:$0xf]
        %v5682 = vld [vmem:[%s498 + $0xb64] sm:$0xff]
        %v5683 = vld [vmem:[%s498 + $0xb6c] sm:$0xf]
        %v5684 = vld [vmem:[%s498 + $0xb70] sm:$0xff]
        %v5685 = vld [vmem:[%s498 + $0xb78] sm:$0xf]
        %v5686 = vld [vmem:[%s498 + $0xb7c] sm:$0xff]
        %v5687 = vld [vmem:[%s498 + $0xb84] sm:$0xf]
        %v5688 = vld [vmem:[%s498 + $0xb88] sm:$0xff]
        %v5689 = vld [vmem:[%s498 + $0xb90] sm:$0xf]
        %v5690 = vld [vmem:[%s498 + $0xb94] sm:$0xff]
        %v5691 = vld [vmem:[%s498 + $0xb9c] sm:$0xf]
        %v5692 = vld [vmem:[%s498 + $0xba0] sm:$0xff]
        %v5693 = vld [vmem:[%s498 + $0xba8] sm:$0xf]
        %v5694 = vld [vmem:[%s498 + $0xbac] sm:$0xff]
        %v5695 = vld [vmem:[%s498 + $0xbb4] sm:$0xf]
        %v5696 = vld [vmem:[%s498 + $0xbb8] sm:$0xff]
        %v5697 = vld [vmem:[%s498 + $0xbc0] sm:$0xf]
        %v5698 = vld [vmem:[%s498 + $0xbc4] sm:$0xff]
        %v5699 = vld [vmem:[%s498 + $0xbcc] sm:$0xf]
        %v5700 = vld [vmem:[%s498 + $0xbd0] sm:$0xff]
        %v5701 = vld [vmem:[%s498 + $0xbd8] sm:$0xf]
        %v5702 = vld [vmem:[%s498 + $0xbdc] sm:$0xff]
        %v5703 = vld [vmem:[%s498 + $0xbe4] sm:$0xf]
        %v5704 = vld [vmem:[%s498 + $0xbe8] sm:$0xff]
        %v5705 = vld [vmem:[%s498 + $0xbf0] sm:$0xf]
        %v5706 = vld [vmem:[%s498 + $0xbf4] sm:$0xff]
        %v5707 = vld [vmem:[%s498 + $0xbfc] sm:$0xf]
        %v5708 = vld [vmem:[%s498 + $0xc00] sm:$0xff]
        %v5709 = vld [vmem:[%s498 + $0xc08] sm:$0xf]
        %v5710 = vld [vmem:[%s498 + $0xc0c] sm:$0xff]
        %v5711 = vld [vmem:[%s498 + $0xc14] sm:$0xf]
        %v5712 = vld [vmem:[%s498 + $0xc18] sm:$0xff]
        %v5713 = vld [vmem:[%s498 + $0xc20] sm:$0xf]
        %v5714 = vld [vmem:[%s498 + $0xc24] sm:$0xff]
        %v5715 = vld [vmem:[%s498 + $0xc2c] sm:$0xf]
        %v5716 = vld [vmem:[%s498 + $0xc30] sm:$0xff]
        %v5717 = vld [vmem:[%s498 + $0xc38] sm:$0xf]
        %v5718 = vld [vmem:[%s498 + $0xc3c] sm:$0xff]
        %v5719 = vld [vmem:[%s498 + $0xc44] sm:$0xf]
        %v5720 = vld [vmem:[%s498 + $0xc48] sm:$0xff]
        %v5721 = vld [vmem:[%s498 + $0xc50] sm:$0xf]
        %v5722 = vld [vmem:[%s498 + $0xc54] sm:$0xff]
        %v5723 = vld [vmem:[%s498 + $0xc5c] sm:$0xf]
        %v5724 = vld [vmem:[%s498 + $0xc60] sm:$0xff]
        %v5725 = vld [vmem:[%s498 + $0xc68] sm:$0xf]
        %v5726 = vld [vmem:[%s498 + $0xc6c] sm:$0xff]
        %v5727 = vld [vmem:[%s498 + $0xc74] sm:$0xf]
        %v5728 = vld [vmem:[%s498 + $0xc78] sm:$0xff]
        %v5729 = vld [vmem:[%s498 + $0xc80] sm:$0xf]
        %v5730 = vld [vmem:[%s498 + $0xc84] sm:$0xff]
        %v5731 = vld [vmem:[%s498 + $0xc8c] sm:$0xf]
        %v5732 = vld [vmem:[%s498 + $0xc90] sm:$0xff]
        %v5733 = vld [vmem:[%s498 + $0xc98] sm:$0xf]
        %v5734 = vld [vmem:[%s498 + $0xc9c] sm:$0xff]
        %v5735 = vld [vmem:[%s498 + $0xca4] sm:$0xf]
        %v5736 = vld [vmem:[%s498 + $0xca8] sm:$0xff]
        %v5737 = vld [vmem:[%s498 + $0xcb0] sm:$0xf]
        %v5738 = vld [vmem:[%s498 + $0xcb4] sm:$0xff]
        %v5739 = vld [vmem:[%s498 + $0xcbc] sm:$0xf]
        %v5740 = vld [vmem:[%s498 + $0xcc0] sm:$0xff]
        %v5741 = vld [vmem:[%s498 + $0xcc8] sm:$0xf]
        %v5742 = vld [vmem:[%s498 + $0xccc] sm:$0xff]
        %v5743 = vld [vmem:[%s498 + $0xcd4] sm:$0xf]
        %v5744 = vld [vmem:[%s498 + $0xcd8] sm:$0xff]
        %v5745 = vld [vmem:[%s498 + $0xce0] sm:$0xf]
        %v5746 = vld [vmem:[%s498 + $0xce4] sm:$0xff]
        %v5747 = vld [vmem:[%s498 + $0xcec] sm:$0xf]
        %v5748 = vld [vmem:[%s498 + $0xcf0] sm:$0xff]
        %v5749 = vld [vmem:[%s498 + $0xcf8] sm:$0xf]
        %v5750 = vld [vmem:[%s498 + $0xcfc] sm:$0xff]
        %v5751 = vld [vmem:[%s498 + $0xd04] sm:$0xf]
        %v5752 = vld [vmem:[%s498 + $0xd08] sm:$0xff]
        %v5753 = vld [vmem:[%s498 + $0xd10] sm:$0xf]
        %v5754 = vld [vmem:[%s498 + $0xd14] sm:$0xff]
        %v5755 = vld [vmem:[%s498 + $0xd1c] sm:$0xf]
        %v5756 = vld [vmem:[%s498 + $0xd20] sm:$0xff]
        %v5757 = vld [vmem:[%s498 + $0xd28] sm:$0xf]
        %v5758 = vld [vmem:[%s498 + $0xd2c] sm:$0xff]
        %v5759 = vld [vmem:[%s498 + $0xd34] sm:$0xf]
        %v5760 = vld [vmem:[%s498 + $0xd38] sm:$0xff]
        %v5761 = vld [vmem:[%s498 + $0xd40] sm:$0xf]
        %v5762 = vld [vmem:[%s498 + $0xd44] sm:$0xff]
        %v5763 = vld [vmem:[%s498 + $0xd4c] sm:$0xf]
        %v5764 = vld [vmem:[%s498 + $0xd50] sm:$0xff]
        %v5765 = vld [vmem:[%s498 + $0xd58] sm:$0xf]
        %v5766 = vld [vmem:[%s498 + $0xd5c] sm:$0xff]
        %v5767 = vld [vmem:[%s498 + $0xd64] sm:$0xf]
        %v5768 = vld [vmem:[%s498 + $0xd68] sm:$0xff]
        %v5769 = vld [vmem:[%s498 + $0xd70] sm:$0xf]
        %v5770 = vld [vmem:[%s498 + $0xd74] sm:$0xff]
        %v5771 = vld [vmem:[%s498 + $0xd7c] sm:$0xf]
        %v5772 = vld [vmem:[%s498 + $0xd80] sm:$0xff]
        %v5773 = vld [vmem:[%s498 + $0xd88] sm:$0xf]
        %v5774 = vld [vmem:[%s498 + $0xd8c] sm:$0xff]
        %v5775 = vld [vmem:[%s498 + $0xd94] sm:$0xf]
        %v5776 = vld [vmem:[%s498 + $0xd98] sm:$0xff]
        %v5777 = vld [vmem:[%s498 + $0xda0] sm:$0xf]
        %v5778 = vld [vmem:[%s498 + $0xda4] sm:$0xff]
        %v5779 = vld [vmem:[%s498 + $0xdac] sm:$0xf]
        %v5780 = vld [vmem:[%s498 + $0xdb0] sm:$0xff]
        %v5781 = vld [vmem:[%s498 + $0xdb8] sm:$0xf]
        %v5782 = vld [vmem:[%s498 + $0xdbc] sm:$0xff]
        %v5783 = vld [vmem:[%s498 + $0xdc4] sm:$0xf]
        %v5784 = vld [vmem:[%s498 + $0xdc8] sm:$0xff]
        %v5785 = vld [vmem:[%s498 + $0xdd0] sm:$0xf]
        %v5786 = vld [vmem:[%s498 + $0xdd4] sm:$0xff]
        %v5787 = vld [vmem:[%s498 + $0xddc] sm:$0xf]
        %v5788 = vld [vmem:[%s498 + $0xde0] sm:$0xff]
        %v5789 = vld [vmem:[%s498 + $0xde8] sm:$0xf]
        %v5790 = vld [vmem:[%s498 + $0xdec] sm:$0xff]
        %v5791 = vld [vmem:[%s498 + $0xdf4] sm:$0xf]
        %v5792 = vld [vmem:[%s498 + $0xdf8] sm:$0xff]
        %v5793 = vld [vmem:[%s498 + $0xe00] sm:$0xf]
        %v5794 = vld [vmem:[%s498 + $0xe04] sm:$0xff]
        %v5795 = vld [vmem:[%s498 + $0xe0c] sm:$0xf]
        %v5796 = vld [vmem:[%s498 + $0xe10] sm:$0xff]
        %v5797 = vld [vmem:[%s498 + $0xe18] sm:$0xf]
        %v5798 = vld [vmem:[%s498 + $0xe1c] sm:$0xff]
        %v5799 = vld [vmem:[%s498 + $0xe24] sm:$0xf]
        %v5800 = vld [vmem:[%s498 + $0xe28] sm:$0xff]
        %v5801 = vld [vmem:[%s498 + $0xe30] sm:$0xf]
        %v5802 = vld [vmem:[%s498 + $0xe34] sm:$0xff]
        %v5803 = vld [vmem:[%s498 + $0xe3c] sm:$0xf]
        %v5804 = vld [vmem:[%s498 + $0xe40] sm:$0xff]
        %v5805 = vld [vmem:[%s498 + $0xe48] sm:$0xf]
        %v5806 = vld [vmem:[%s498 + $0xe4c] sm:$0xff]
        %v5807 = vld [vmem:[%s498 + $0xe54] sm:$0xf]
        %v5808 = vld [vmem:[%s498 + $0xe58] sm:$0xff]
        %v5809 = vld [vmem:[%s498 + $0xe60] sm:$0xf]
        %v5810 = vld [vmem:[%s498 + $0xe64] sm:$0xff]
        %v5811 = vld [vmem:[%s498 + $0xe6c] sm:$0xf]
        %v5812 = vld [vmem:[%s498 + $0xe70] sm:$0xff]
        %v5813 = vld [vmem:[%s498 + $0xe78] sm:$0xf]
        %v5814 = vld [vmem:[%s498 + $0xe7c] sm:$0xff]
        %v5815 = vld [vmem:[%s498 + $0xe84] sm:$0xf]
        %v5816 = vld [vmem:[%s498 + $0xe88] sm:$0xff]
        %v5817 = vld [vmem:[%s498 + $0xe90] sm:$0xf]
        %v5818 = vld [vmem:[%s498 + $0xe94] sm:$0xff]
        %v5819 = vld [vmem:[%s498 + $0xe9c] sm:$0xf]
        %v5820 = vld [vmem:[%s498 + $0xea0] sm:$0xff]
        %v5821 = vld [vmem:[%s498 + $0xea8] sm:$0xf]
        %v5822 = vld [vmem:[%s498 + $0xeac] sm:$0xff]
        %v5823 = vld [vmem:[%s498 + $0xeb4] sm:$0xf]
        %v5824 = vld [vmem:[%s498 + $0xeb8] sm:$0xff]
        %v5825 = vld [vmem:[%s498 + $0xec0] sm:$0xf]
        %v5826 = vld [vmem:[%s498 + $0xec4] sm:$0xff]
        %v5827 = vld [vmem:[%s498 + $0xecc] sm:$0xf]
        %v5828 = vld [vmem:[%s498 + $0xed0] sm:$0xff]
        %v5829 = vld [vmem:[%s498 + $0xed8] sm:$0xf]
        %v5830 = vld [vmem:[%s498 + $0xedc] sm:$0xff]
        %v5831 = vld [vmem:[%s498 + $0xee4] sm:$0xf]
        %v5832 = vld [vmem:[%s498 + $0xee8] sm:$0xff]
        %v5833 = vld [vmem:[%s498 + $0xef0] sm:$0xf]
        %v5834 = vld [vmem:[%s498 + $0xef4] sm:$0xff]
        %v5835 = vld [vmem:[%s498 + $0xefc] sm:$0xf]
        %v6476 = vunpack.c.l.b16 %v5196
        %v6477 = vunpack.c.h.b16 %v5196
        %v6478 = vunpack.c.l.b16 %v5197
        %v6479 = vunpack.c.l.b16 %v5198
        %v6480 = vunpack.c.h.b16 %v5198
        %v6481 = vunpack.c.l.b16 %v5199
        %v6482 = vunpack.c.l.b16 %v5200
        %v6483 = vunpack.c.h.b16 %v5200
        %v6484 = vunpack.c.l.b16 %v5201
        %v6485 = vunpack.c.l.b16 %v5202
        %v6486 = vunpack.c.h.b16 %v5202
        %v6487 = vunpack.c.l.b16 %v5203
        %v6488 = vunpack.c.l.b16 %v5204
        %v6489 = vunpack.c.h.b16 %v5204
        %v6490 = vunpack.c.l.b16 %v5205
        %v6491 = vunpack.c.l.b16 %v5206
        %v6492 = vunpack.c.h.b16 %v5206
        %v6493 = vunpack.c.l.b16 %v5207
        %v6494 = vunpack.c.l.b16 %v5208
        %v6495 = vunpack.c.h.b16 %v5208
        %v6496 = vunpack.c.l.b16 %v5209
        %v6497 = vunpack.c.l.b16 %v5210
        %v6498 = vunpack.c.h.b16 %v5210
        %v6499 = vunpack.c.l.b16 %v5211
        %v6500 = vunpack.c.l.b16 %v5212
        %v6501 = vunpack.c.h.b16 %v5212
        %v6502 = vunpack.c.l.b16 %v5213
        %v6503 = vunpack.c.l.b16 %v5214
        %v6504 = vunpack.c.h.b16 %v5214
        %v6505 = vunpack.c.l.b16 %v5215
        %v6506 = vunpack.c.l.b16 %v5216
        %v6507 = vunpack.c.h.b16 %v5216
        %v6508 = vunpack.c.l.b16 %v5217
        %v6509 = vunpack.c.l.b16 %v5218
        %v6510 = vunpack.c.h.b16 %v5218
        %v6511 = vunpack.c.l.b16 %v5219
        %v6512 = vunpack.c.l.b16 %v5220
        %v6513 = vunpack.c.h.b16 %v5220
        %v6514 = vunpack.c.l.b16 %v5221
        %v6515 = vunpack.c.l.b16 %v5222
        %v6516 = vunpack.c.h.b16 %v5222
        %v6517 = vunpack.c.l.b16 %v5223
        %v6518 = vunpack.c.l.b16 %v5224
        %v6519 = vunpack.c.h.b16 %v5224
        %v6520 = vunpack.c.l.b16 %v5225
        %v6521 = vunpack.c.l.b16 %v5226
        %v6522 = vunpack.c.h.b16 %v5226
        %v6523 = vunpack.c.l.b16 %v5227
        %v6524 = vunpack.c.l.b16 %v5228
        %v6525 = vunpack.c.h.b16 %v5228
        %v6526 = vunpack.c.l.b16 %v5229
        %v6527 = vunpack.c.l.b16 %v5230
        %v6528 = vunpack.c.h.b16 %v5230
        %v6529 = vunpack.c.l.b16 %v5231
        %v6530 = vunpack.c.l.b16 %v5232
        %v6531 = vunpack.c.h.b16 %v5232
        %v6532 = vunpack.c.l.b16 %v5233
        %v6533 = vunpack.c.l.b16 %v5234
        %v6534 = vunpack.c.h.b16 %v5234
        %v6535 = vunpack.c.l.b16 %v5235
        %v6536 = vunpack.c.l.b16 %v5236
        %v6537 = vunpack.c.h.b16 %v5236
        %v6538 = vunpack.c.l.b16 %v5237
        %v6539 = vunpack.c.l.b16 %v5238
        %v6540 = vunpack.c.h.b16 %v5238
        %v6541 = vunpack.c.l.b16 %v5239
        %v6542 = vunpack.c.l.b16 %v5240
        %v6543 = vunpack.c.h.b16 %v5240
        %v6544 = vunpack.c.l.b16 %v5241
        %v6545 = vunpack.c.l.b16 %v5242
        %v6546 = vunpack.c.h.b16 %v5242
        %v6547 = vunpack.c.l.b16 %v5243
        %v6548 = vunpack.c.l.b16 %v5244
        %v6549 = vunpack.c.h.b16 %v5244
        %v6550 = vunpack.c.l.b16 %v5245
        %v6551 = vunpack.c.l.b16 %v5246
        %v6552 = vunpack.c.h.b16 %v5246
        %v6553 = vunpack.c.l.b16 %v5247
        %v6554 = vunpack.c.l.b16 %v5248
        %v6555 = vunpack.c.h.b16 %v5248
        %v6556 = vunpack.c.l.b16 %v5249
        %v6557 = vunpack.c.l.b16 %v5250
        %v6558 = vunpack.c.h.b16 %v5250
        %v6559 = vunpack.c.l.b16 %v5251
        %v6560 = vunpack.c.l.b16 %v5252
        %v6561 = vunpack.c.h.b16 %v5252
        %v6562 = vunpack.c.l.b16 %v5253
        %v6563 = vunpack.c.l.b16 %v5254
        %v6564 = vunpack.c.h.b16 %v5254
        %v6565 = vunpack.c.l.b16 %v5255
        %v6566 = vunpack.c.l.b16 %v5256
        %v6567 = vunpack.c.h.b16 %v5256
        %v6568 = vunpack.c.l.b16 %v5257
        %v6569 = vunpack.c.l.b16 %v5258
        %v6570 = vunpack.c.h.b16 %v5258
        %v6571 = vunpack.c.l.b16 %v5259
        %v6572 = vunpack.c.l.b16 %v5260
        %v6573 = vunpack.c.h.b16 %v5260
        %v6574 = vunpack.c.l.b16 %v5261
        %v6575 = vunpack.c.l.b16 %v5262
        %v6576 = vunpack.c.h.b16 %v5262
        %v6577 = vunpack.c.l.b16 %v5263
        %v6578 = vunpack.c.l.b16 %v5264
        %v6579 = vunpack.c.h.b16 %v5264
        %v6580 = vunpack.c.l.b16 %v5265
        %v6581 = vunpack.c.l.b16 %v5266
        %v6582 = vunpack.c.h.b16 %v5266
        %v6583 = vunpack.c.l.b16 %v5267
        %v6584 = vunpack.c.l.b16 %v5268
        %v6585 = vunpack.c.h.b16 %v5268
        %v6586 = vunpack.c.l.b16 %v5269
        %v6587 = vunpack.c.l.b16 %v5270
        %v6588 = vunpack.c.h.b16 %v5270
        %v6589 = vunpack.c.l.b16 %v5271
        %v6590 = vunpack.c.l.b16 %v5272
        %v6591 = vunpack.c.h.b16 %v5272
        %v6592 = vunpack.c.l.b16 %v5273
        %v6593 = vunpack.c.l.b16 %v5274
        %v6594 = vunpack.c.h.b16 %v5274
        %v6595 = vunpack.c.l.b16 %v5275
        %v6596 = vunpack.c.l.b16 %v5276
        %v6597 = vunpack.c.h.b16 %v5276
        %v6598 = vunpack.c.l.b16 %v5277
        %v6599 = vunpack.c.l.b16 %v5278
        %v6600 = vunpack.c.h.b16 %v5278
        %v6601 = vunpack.c.l.b16 %v5279
        %v6602 = vunpack.c.l.b16 %v5280
        %v6603 = vunpack.c.h.b16 %v5280
        %v6604 = vunpack.c.l.b16 %v5281
        %v6605 = vunpack.c.l.b16 %v5282
        %v6606 = vunpack.c.h.b16 %v5282
        %v6607 = vunpack.c.l.b16 %v5283
        %v6608 = vunpack.c.l.b16 %v5284
        %v6609 = vunpack.c.h.b16 %v5284
        %v6610 = vunpack.c.l.b16 %v5285
        %v6611 = vunpack.c.l.b16 %v5286
        %v6612 = vunpack.c.h.b16 %v5286
        %v6613 = vunpack.c.l.b16 %v5287
        %v6614 = vunpack.c.l.b16 %v5288
        %v6615 = vunpack.c.h.b16 %v5288
        %v6616 = vunpack.c.l.b16 %v5289
        %v6617 = vunpack.c.l.b16 %v5290
        %v6618 = vunpack.c.h.b16 %v5290
        %v6619 = vunpack.c.l.b16 %v5291
        %v6620 = vunpack.c.l.b16 %v5292
        %v6621 = vunpack.c.h.b16 %v5292
        %v6622 = vunpack.c.l.b16 %v5293
        %v6623 = vunpack.c.l.b16 %v5294
        %v6624 = vunpack.c.h.b16 %v5294
        %v6625 = vunpack.c.l.b16 %v5295
        %v6626 = vunpack.c.l.b16 %v5296
        %v6627 = vunpack.c.h.b16 %v5296
        %v6628 = vunpack.c.l.b16 %v5297
        %v6629 = vunpack.c.l.b16 %v5298
        %v6630 = vunpack.c.h.b16 %v5298
        %v6631 = vunpack.c.l.b16 %v5299
        %v6632 = vunpack.c.l.b16 %v5300
        %v6633 = vunpack.c.h.b16 %v5300
        %v6634 = vunpack.c.l.b16 %v5301
        %v6635 = vunpack.c.l.b16 %v5302
        %v6636 = vunpack.c.h.b16 %v5302
        %v6637 = vunpack.c.l.b16 %v5303
        %v6638 = vunpack.c.l.b16 %v5304
        %v6639 = vunpack.c.h.b16 %v5304
        %v6640 = vunpack.c.l.b16 %v5305
        %v6641 = vunpack.c.l.b16 %v5306
        %v6642 = vunpack.c.h.b16 %v5306
        %v6643 = vunpack.c.l.b16 %v5307
        %v6644 = vunpack.c.l.b16 %v5308
        %v6645 = vunpack.c.h.b16 %v5308
        %v6646 = vunpack.c.l.b16 %v5309
        %v6647 = vunpack.c.l.b16 %v5310
        %v6648 = vunpack.c.h.b16 %v5310
        %v6649 = vunpack.c.l.b16 %v5311
        %v6650 = vunpack.c.l.b16 %v5312
        %v6651 = vunpack.c.h.b16 %v5312
        %v6652 = vunpack.c.l.b16 %v5313
        %v6653 = vunpack.c.l.b16 %v5314
        %v6654 = vunpack.c.h.b16 %v5314
        %v6655 = vunpack.c.l.b16 %v5315
        %v6656 = vunpack.c.l.b16 %v5316
        %v6657 = vunpack.c.h.b16 %v5316
        %v6658 = vunpack.c.l.b16 %v5317
        %v6659 = vunpack.c.l.b16 %v5318
        %v6660 = vunpack.c.h.b16 %v5318
        %v6661 = vunpack.c.l.b16 %v5319
        %v6662 = vunpack.c.l.b16 %v5320
        %v6663 = vunpack.c.h.b16 %v5320
        %v6664 = vunpack.c.l.b16 %v5321
        %v6665 = vunpack.c.l.b16 %v5322
        %v6666 = vunpack.c.h.b16 %v5322
        %v6667 = vunpack.c.l.b16 %v5323
        %v6668 = vunpack.c.l.b16 %v5324
        %v6669 = vunpack.c.h.b16 %v5324
        %v6670 = vunpack.c.l.b16 %v5325
        %v6671 = vunpack.c.l.b16 %v5326
        %v6672 = vunpack.c.h.b16 %v5326
        %v6673 = vunpack.c.l.b16 %v5327
        %v6674 = vunpack.c.l.b16 %v5328
        %v6675 = vunpack.c.h.b16 %v5328
        %v6676 = vunpack.c.l.b16 %v5329
        %v6677 = vunpack.c.l.b16 %v5330
        %v6678 = vunpack.c.h.b16 %v5330
        %v6679 = vunpack.c.l.b16 %v5331
        %v6680 = vunpack.c.l.b16 %v5332
        %v6681 = vunpack.c.h.b16 %v5332
        %v6682 = vunpack.c.l.b16 %v5333
        %v6683 = vunpack.c.l.b16 %v5334
        %v6684 = vunpack.c.h.b16 %v5334
        %v6685 = vunpack.c.l.b16 %v5335
        %v6686 = vunpack.c.l.b16 %v5336
        %v6687 = vunpack.c.h.b16 %v5336
        %v6688 = vunpack.c.l.b16 %v5337
        %v6689 = vunpack.c.l.b16 %v5338
        %v6690 = vunpack.c.h.b16 %v5338
        %v6691 = vunpack.c.l.b16 %v5339
        %v6692 = vunpack.c.l.b16 %v5340
        %v6693 = vunpack.c.h.b16 %v5340
        %v6694 = vunpack.c.l.b16 %v5341
        %v6695 = vunpack.c.l.b16 %v5342
        %v6696 = vunpack.c.h.b16 %v5342
        %v6697 = vunpack.c.l.b16 %v5343
        %v6698 = vunpack.c.l.b16 %v5344
        %v6699 = vunpack.c.h.b16 %v5344
        %v6700 = vunpack.c.l.b16 %v5345
        %v6701 = vunpack.c.l.b16 %v5346
        %v6702 = vunpack.c.h.b16 %v5346
        %v6703 = vunpack.c.l.b16 %v5347
        %v6704 = vunpack.c.l.b16 %v5348
        %v6705 = vunpack.c.h.b16 %v5348
        %v6706 = vunpack.c.l.b16 %v5349
        %v6707 = vunpack.c.l.b16 %v5350
        %v6708 = vunpack.c.h.b16 %v5350
        %v6709 = vunpack.c.l.b16 %v5351
        %v6710 = vunpack.c.l.b16 %v5352
        %v6711 = vunpack.c.h.b16 %v5352
        %v6712 = vunpack.c.l.b16 %v5353
        %v6713 = vunpack.c.l.b16 %v5354
        %v6714 = vunpack.c.h.b16 %v5354
        %v6715 = vunpack.c.l.b16 %v5355
        %v6716 = vunpack.c.l.b16 %v5356
        %v6717 = vunpack.c.h.b16 %v5356
        %v6718 = vunpack.c.l.b16 %v5357
        %v6719 = vunpack.c.l.b16 %v5358
        %v6720 = vunpack.c.h.b16 %v5358
        %v6721 = vunpack.c.l.b16 %v5359
        %v6722 = vunpack.c.l.b16 %v5360
        %v6723 = vunpack.c.h.b16 %v5360
        %v6724 = vunpack.c.l.b16 %v5361
        %v6725 = vunpack.c.l.b16 %v5362
        %v6726 = vunpack.c.h.b16 %v5362
        %v6727 = vunpack.c.l.b16 %v5363
        %v6728 = vunpack.c.l.b16 %v5364
        %v6729 = vunpack.c.h.b16 %v5364
        %v6730 = vunpack.c.l.b16 %v5365
        %v6731 = vunpack.c.l.b16 %v5366
        %v6732 = vunpack.c.h.b16 %v5366
        %v6733 = vunpack.c.l.b16 %v5367
        %v6734 = vunpack.c.l.b16 %v5368
        %v6735 = vunpack.c.h.b16 %v5368
        %v6736 = vunpack.c.l.b16 %v5369
        %v6737 = vunpack.c.l.b16 %v5370
        %v6738 = vunpack.c.h.b16 %v5370
        %v6739 = vunpack.c.l.b16 %v5371
        %v6740 = vunpack.c.l.b16 %v5372
        %v6741 = vunpack.c.h.b16 %v5372
        %v6742 = vunpack.c.l.b16 %v5373
        %v6743 = vunpack.c.l.b16 %v5374
        %v6744 = vunpack.c.h.b16 %v5374
        %v6745 = vunpack.c.l.b16 %v5375
        %v6746 = vunpack.c.l.b16 %v5376
        %v6747 = vunpack.c.h.b16 %v5376
        %v6748 = vunpack.c.l.b16 %v5377
        %v6749 = vunpack.c.l.b16 %v5378
        %v6750 = vunpack.c.h.b16 %v5378
        %v6751 = vunpack.c.l.b16 %v5379
        %v6752 = vunpack.c.l.b16 %v5380
        %v6753 = vunpack.c.h.b16 %v5380
        %v6754 = vunpack.c.l.b16 %v5381
        %v6755 = vunpack.c.l.b16 %v5382
        %v6756 = vunpack.c.h.b16 %v5382
        %v6757 = vunpack.c.l.b16 %v5383
        %v6758 = vunpack.c.l.b16 %v5384
        %v6759 = vunpack.c.h.b16 %v5384
        %v6760 = vunpack.c.l.b16 %v5385
        %v6761 = vunpack.c.l.b16 %v5386
        %v6762 = vunpack.c.h.b16 %v5386
        %v6763 = vunpack.c.l.b16 %v5387
        %v6764 = vunpack.c.l.b16 %v5388
        %v6765 = vunpack.c.h.b16 %v5388
        %v6766 = vunpack.c.l.b16 %v5389
        %v6767 = vunpack.c.l.b16 %v5390
        %v6768 = vunpack.c.h.b16 %v5390
        %v6769 = vunpack.c.l.b16 %v5391
        %v6770 = vunpack.c.l.b16 %v5392
        %v6771 = vunpack.c.h.b16 %v5392
        %v6772 = vunpack.c.l.b16 %v5393
        %v6773 = vunpack.c.l.b16 %v5394
        %v6774 = vunpack.c.h.b16 %v5394
        %v6775 = vunpack.c.l.b16 %v5395
        %v6776 = vunpack.c.l.b16 %v5396
        %v6777 = vunpack.c.h.b16 %v5396
        %v6778 = vunpack.c.l.b16 %v5397
        %v6779 = vunpack.c.l.b16 %v5398
        %v6780 = vunpack.c.h.b16 %v5398
        %v6781 = vunpack.c.l.b16 %v5399
        %v6782 = vunpack.c.l.b16 %v5400
        %v6783 = vunpack.c.h.b16 %v5400
        %v6784 = vunpack.c.l.b16 %v5401
        %v6785 = vunpack.c.l.b16 %v5402
        %v6786 = vunpack.c.h.b16 %v5402
        %v6787 = vunpack.c.l.b16 %v5403
        %v6788 = vunpack.c.l.b16 %v5404
        %v6789 = vunpack.c.h.b16 %v5404
        %v6790 = vunpack.c.l.b16 %v5405
        %v6791 = vunpack.c.l.b16 %v5406
        %v6792 = vunpack.c.h.b16 %v5406
        %v6793 = vunpack.c.l.b16 %v5407
        %v6794 = vunpack.c.l.b16 %v5408
        %v6795 = vunpack.c.h.b16 %v5408
        %v6796 = vunpack.c.l.b16 %v5409
        %v6797 = vunpack.c.l.b16 %v5410
        %v6798 = vunpack.c.h.b16 %v5410
        %v6799 = vunpack.c.l.b16 %v5411
        %v6800 = vunpack.c.l.b16 %v5412
        %v6801 = vunpack.c.h.b16 %v5412
        %v6802 = vunpack.c.l.b16 %v5413
        %v6803 = vunpack.c.l.b16 %v5414
        %v6804 = vunpack.c.h.b16 %v5414
        %v6805 = vunpack.c.l.b16 %v5415
        %v6806 = vunpack.c.l.b16 %v5416
        %v6807 = vunpack.c.h.b16 %v5416
        %v6808 = vunpack.c.l.b16 %v5417
        %v6809 = vunpack.c.l.b16 %v5418
        %v6810 = vunpack.c.h.b16 %v5418
        %v6811 = vunpack.c.l.b16 %v5419
        %v6812 = vunpack.c.l.b16 %v5420
        %v6813 = vunpack.c.h.b16 %v5420
        %v6814 = vunpack.c.l.b16 %v5421
        %v6815 = vunpack.c.l.b16 %v5422
        %v6816 = vunpack.c.h.b16 %v5422
        %v6817 = vunpack.c.l.b16 %v5423
        %v6818 = vunpack.c.l.b16 %v5424
        %v6819 = vunpack.c.h.b16 %v5424
        %v6820 = vunpack.c.l.b16 %v5425
        %v6821 = vunpack.c.l.b16 %v5426
        %v6822 = vunpack.c.h.b16 %v5426
        %v6823 = vunpack.c.l.b16 %v5427
        %v6824 = vunpack.c.l.b16 %v5428
        %v6825 = vunpack.c.h.b16 %v5428
        %v6826 = vunpack.c.l.b16 %v5429
        %v6827 = vunpack.c.l.b16 %v5430
        %v6828 = vunpack.c.h.b16 %v5430
        %v6829 = vunpack.c.l.b16 %v5431
        %v6830 = vunpack.c.l.b16 %v5432
        %v6831 = vunpack.c.h.b16 %v5432
        %v6832 = vunpack.c.l.b16 %v5433
        %v6833 = vunpack.c.l.b16 %v5434
        %v6834 = vunpack.c.h.b16 %v5434
        %v6835 = vunpack.c.l.b16 %v5435
        %v6836 = vunpack.c.l.b16 %v5436
        %v6837 = vunpack.c.h.b16 %v5436
        %v6838 = vunpack.c.l.b16 %v5437
        %v6839 = vunpack.c.l.b16 %v5438
        %v6840 = vunpack.c.h.b16 %v5438
        %v6841 = vunpack.c.l.b16 %v5439
        %v6842 = vunpack.c.l.b16 %v5440
        %v6843 = vunpack.c.h.b16 %v5440
        %v6844 = vunpack.c.l.b16 %v5441
        %v6845 = vunpack.c.l.b16 %v5442
        %v6846 = vunpack.c.h.b16 %v5442
        %v6847 = vunpack.c.l.b16 %v5443
        %v6848 = vunpack.c.l.b16 %v5444
        %v6849 = vunpack.c.h.b16 %v5444
        %v6850 = vunpack.c.l.b16 %v5445
        %v6851 = vunpack.c.l.b16 %v5446
        %v6852 = vunpack.c.h.b16 %v5446
        %v6853 = vunpack.c.l.b16 %v5447
        %v6854 = vunpack.c.l.b16 %v5448
        %v6855 = vunpack.c.h.b16 %v5448
        %v6856 = vunpack.c.l.b16 %v5449
        %v6857 = vunpack.c.l.b16 %v5450
        %v6858 = vunpack.c.h.b16 %v5450
        %v6859 = vunpack.c.l.b16 %v5451
        %v6860 = vunpack.c.l.b16 %v5452
        %v6861 = vunpack.c.h.b16 %v5452
        %v6862 = vunpack.c.l.b16 %v5453
        %v6863 = vunpack.c.l.b16 %v5454
        %v6864 = vunpack.c.h.b16 %v5454
        %v6865 = vunpack.c.l.b16 %v5455
        %v6866 = vunpack.c.l.b16 %v5456
        %v6867 = vunpack.c.h.b16 %v5456
        %v6868 = vunpack.c.l.b16 %v5457
        %v6869 = vunpack.c.l.b16 %v5458
        %v6870 = vunpack.c.h.b16 %v5458
        %v6871 = vunpack.c.l.b16 %v5459
        %v6872 = vunpack.c.l.b16 %v5460
        %v6873 = vunpack.c.h.b16 %v5460
        %v6874 = vunpack.c.l.b16 %v5461
        %v6875 = vunpack.c.l.b16 %v5462
        %v6876 = vunpack.c.h.b16 %v5462
        %v6877 = vunpack.c.l.b16 %v5463
        %v6878 = vunpack.c.l.b16 %v5464
        %v6879 = vunpack.c.h.b16 %v5464
        %v6880 = vunpack.c.l.b16 %v5465
        %v6881 = vunpack.c.l.b16 %v5466
        %v6882 = vunpack.c.h.b16 %v5466
        %v6883 = vunpack.c.l.b16 %v5467
        %v6884 = vunpack.c.l.b16 %v5468
        %v6885 = vunpack.c.h.b16 %v5468
        %v6886 = vunpack.c.l.b16 %v5469
        %v6887 = vunpack.c.l.b16 %v5470
        %v6888 = vunpack.c.h.b16 %v5470
        %v6889 = vunpack.c.l.b16 %v5471
        %v6890 = vunpack.c.l.b16 %v5472
        %v6891 = vunpack.c.h.b16 %v5472
        %v6892 = vunpack.c.l.b16 %v5473
        %v6893 = vunpack.c.l.b16 %v5474
        %v6894 = vunpack.c.h.b16 %v5474
        %v6895 = vunpack.c.l.b16 %v5475
        %v6896 = vunpack.c.l.b16 %v5476
        %v6897 = vunpack.c.h.b16 %v5476
        %v6898 = vunpack.c.l.b16 %v5477
        %v6899 = vunpack.c.l.b16 %v5478
        %v6900 = vunpack.c.h.b16 %v5478
        %v6901 = vunpack.c.l.b16 %v5479
        %v6902 = vunpack.c.l.b16 %v5480
        %v6903 = vunpack.c.h.b16 %v5480
        %v6904 = vunpack.c.l.b16 %v5481
        %v6905 = vunpack.c.l.b16 %v5482
        %v6906 = vunpack.c.h.b16 %v5482
        %v6907 = vunpack.c.l.b16 %v5483
        %v6908 = vunpack.c.l.b16 %v5484
        %v6909 = vunpack.c.h.b16 %v5484
        %v6910 = vunpack.c.l.b16 %v5485
        %v6911 = vunpack.c.l.b16 %v5486
        %v6912 = vunpack.c.h.b16 %v5486
        %v6913 = vunpack.c.l.b16 %v5487
        %v6914 = vunpack.c.l.b16 %v5488
        %v6915 = vunpack.c.h.b16 %v5488
        %v6916 = vunpack.c.l.b16 %v5489
        %v6917 = vunpack.c.l.b16 %v5490
        %v6918 = vunpack.c.h.b16 %v5490
        %v6919 = vunpack.c.l.b16 %v5491
        %v6920 = vunpack.c.l.b16 %v5492
        %v6921 = vunpack.c.h.b16 %v5492
        %v6922 = vunpack.c.l.b16 %v5493
        %v6923 = vunpack.c.l.b16 %v5494
        %v6924 = vunpack.c.h.b16 %v5494
        %v6925 = vunpack.c.l.b16 %v5495
        %v6926 = vunpack.c.l.b16 %v5496
        %v6927 = vunpack.c.h.b16 %v5496
        %v6928 = vunpack.c.l.b16 %v5497
        %v6929 = vunpack.c.l.b16 %v5498
        %v6930 = vunpack.c.h.b16 %v5498
        %v6931 = vunpack.c.l.b16 %v5499
        %v6932 = vunpack.c.l.b16 %v5500
        %v6933 = vunpack.c.h.b16 %v5500
        %v6934 = vunpack.c.l.b16 %v5501
        %v6935 = vunpack.c.l.b16 %v5502
        %v6936 = vunpack.c.h.b16 %v5502
        %v6937 = vunpack.c.l.b16 %v5503
        %v6938 = vunpack.c.l.b16 %v5504
        %v6939 = vunpack.c.h.b16 %v5504
        %v6940 = vunpack.c.l.b16 %v5505
        %v6941 = vunpack.c.l.b16 %v5506
        %v6942 = vunpack.c.h.b16 %v5506
        %v6943 = vunpack.c.l.b16 %v5507
        %v6944 = vunpack.c.l.b16 %v5508
        %v6945 = vunpack.c.h.b16 %v5508
        %v6946 = vunpack.c.l.b16 %v5509
        %v6947 = vunpack.c.l.b16 %v5510
        %v6948 = vunpack.c.h.b16 %v5510
        %v6949 = vunpack.c.l.b16 %v5511
        %v6950 = vunpack.c.l.b16 %v5512
        %v6951 = vunpack.c.h.b16 %v5512
        %v6952 = vunpack.c.l.b16 %v5513
        %v6953 = vunpack.c.l.b16 %v5514
        %v6954 = vunpack.c.h.b16 %v5514
        %v6955 = vunpack.c.l.b16 %v5515
        %v6956 = vunpack.c.l.b16 %v5516
        %v6957 = vunpack.c.h.b16 %v5516
        %v6958 = vunpack.c.l.b16 %v5517
        %v6959 = vunpack.c.l.b16 %v5518
        %v6960 = vunpack.c.h.b16 %v5518
        %v6961 = vunpack.c.l.b16 %v5519
        %v6962 = vunpack.c.l.b16 %v5520
        %v6963 = vunpack.c.h.b16 %v5520
        %v6964 = vunpack.c.l.b16 %v5521
        %v6965 = vunpack.c.l.b16 %v5522
        %v6966 = vunpack.c.h.b16 %v5522
        %v6967 = vunpack.c.l.b16 %v5523
        %v6968 = vunpack.c.l.b16 %v5524
        %v6969 = vunpack.c.h.b16 %v5524
        %v6970 = vunpack.c.l.b16 %v5525
        %v6971 = vunpack.c.l.b16 %v5526
        %v6972 = vunpack.c.h.b16 %v5526
        %v6973 = vunpack.c.l.b16 %v5527
        %v6974 = vunpack.c.l.b16 %v5528
        %v6975 = vunpack.c.h.b16 %v5528
        %v6976 = vunpack.c.l.b16 %v5529
        %v6977 = vunpack.c.l.b16 %v5530
        %v6978 = vunpack.c.h.b16 %v5530
        %v6979 = vunpack.c.l.b16 %v5531
        %v6980 = vunpack.c.l.b16 %v5532
        %v6981 = vunpack.c.h.b16 %v5532
        %v6982 = vunpack.c.l.b16 %v5533
        %v6983 = vunpack.c.l.b16 %v5534
        %v6984 = vunpack.c.h.b16 %v5534
        %v6985 = vunpack.c.l.b16 %v5535
        %v6986 = vunpack.c.l.b16 %v5536
        %v6987 = vunpack.c.h.b16 %v5536
        %v6988 = vunpack.c.l.b16 %v5537
        %v6989 = vunpack.c.l.b16 %v5538
        %v6990 = vunpack.c.h.b16 %v5538
        %v6991 = vunpack.c.l.b16 %v5539
        %v6992 = vunpack.c.l.b16 %v5540
        %v6993 = vunpack.c.h.b16 %v5540
        %v6994 = vunpack.c.l.b16 %v5541
        %v6995 = vunpack.c.l.b16 %v5542
        %v6996 = vunpack.c.h.b16 %v5542
        %v6997 = vunpack.c.l.b16 %v5543
        %v6998 = vunpack.c.l.b16 %v5544
        %v6999 = vunpack.c.h.b16 %v5544
        %v7000 = vunpack.c.l.b16 %v5545
        %v7001 = vunpack.c.l.b16 %v5546
        %v7002 = vunpack.c.h.b16 %v5546
        %v7003 = vunpack.c.l.b16 %v5547
        %v7004 = vunpack.c.l.b16 %v5548
        %v7005 = vunpack.c.h.b16 %v5548
        %v7006 = vunpack.c.l.b16 %v5549
        %v7007 = vunpack.c.l.b16 %v5550
        %v7008 = vunpack.c.h.b16 %v5550
        %v7009 = vunpack.c.l.b16 %v5551
        %v7010 = vunpack.c.l.b16 %v5552
        %v7011 = vunpack.c.h.b16 %v5552
        %v7012 = vunpack.c.l.b16 %v5553
        %v7013 = vunpack.c.l.b16 %v5554
        %v7014 = vunpack.c.h.b16 %v5554
        %v7015 = vunpack.c.l.b16 %v5555
        %v7016 = vunpack.c.l.b16 %v5556
        %v7017 = vunpack.c.h.b16 %v5556
        %v7018 = vunpack.c.l.b16 %v5557
        %v7019 = vunpack.c.l.b16 %v5558
        %v7020 = vunpack.c.h.b16 %v5558
        %v7021 = vunpack.c.l.b16 %v5559
        %v7022 = vunpack.c.l.b16 %v5560
        %v7023 = vunpack.c.h.b16 %v5560
        %v7024 = vunpack.c.l.b16 %v5561
        %v7025 = vunpack.c.l.b16 %v5562
        %v7026 = vunpack.c.h.b16 %v5562
        %v7027 = vunpack.c.l.b16 %v5563
        %v7028 = vunpack.c.l.b16 %v5564
        %v7029 = vunpack.c.h.b16 %v5564
        %v7030 = vunpack.c.l.b16 %v5565
        %v7031 = vunpack.c.l.b16 %v5566
        %v7032 = vunpack.c.h.b16 %v5566
        %v7033 = vunpack.c.l.b16 %v5567
        %v7034 = vunpack.c.l.b16 %v5568
        %v7035 = vunpack.c.h.b16 %v5568
        %v7036 = vunpack.c.l.b16 %v5569
        %v7037 = vunpack.c.l.b16 %v5570
        %v7038 = vunpack.c.h.b16 %v5570
        %v7039 = vunpack.c.l.b16 %v5571
        %v7040 = vunpack.c.l.b16 %v5572
        %v7041 = vunpack.c.h.b16 %v5572
        %v7042 = vunpack.c.l.b16 %v5573
        %v7043 = vunpack.c.l.b16 %v5574
        %v7044 = vunpack.c.h.b16 %v5574
        %v7045 = vunpack.c.l.b16 %v5575
        %v7046 = vunpack.c.l.b16 %v5576
        %v7047 = vunpack.c.h.b16 %v5576
        %v7048 = vunpack.c.l.b16 %v5577
        %v7049 = vunpack.c.l.b16 %v5578
        %v7050 = vunpack.c.h.b16 %v5578
        %v7051 = vunpack.c.l.b16 %v5579
        %v7052 = vunpack.c.l.b16 %v5580
        %v7053 = vunpack.c.h.b16 %v5580
        %v7054 = vunpack.c.l.b16 %v5581
        %v7055 = vunpack.c.l.b16 %v5582
        %v7056 = vunpack.c.h.b16 %v5582
        %v7057 = vunpack.c.l.b16 %v5583
        %v7058 = vunpack.c.l.b16 %v5584
        %v7059 = vunpack.c.h.b16 %v5584
        %v7060 = vunpack.c.l.b16 %v5585
        %v7061 = vunpack.c.l.b16 %v5586
        %v7062 = vunpack.c.h.b16 %v5586
        %v7063 = vunpack.c.l.b16 %v5587
        %v7064 = vunpack.c.l.b16 %v5588
        %v7065 = vunpack.c.h.b16 %v5588
        %v7066 = vunpack.c.l.b16 %v5589
        %v7067 = vunpack.c.l.b16 %v5590
        %v7068 = vunpack.c.h.b16 %v5590
        %v7069 = vunpack.c.l.b16 %v5591
        %v7070 = vunpack.c.l.b16 %v5592
        %v7071 = vunpack.c.h.b16 %v5592
        %v7072 = vunpack.c.l.b16 %v5593
        %v7073 = vunpack.c.l.b16 %v5594
        %v7074 = vunpack.c.h.b16 %v5594
        %v7075 = vunpack.c.l.b16 %v5595
        %v7076 = vunpack.c.l.b16 %v5596
        %v7077 = vunpack.c.h.b16 %v5596
        %v7078 = vunpack.c.l.b16 %v5597
        %v7079 = vunpack.c.l.b16 %v5598
        %v7080 = vunpack.c.h.b16 %v5598
        %v7081 = vunpack.c.l.b16 %v5599
        %v7082 = vunpack.c.l.b16 %v5600
        %v7083 = vunpack.c.h.b16 %v5600
        %v7084 = vunpack.c.l.b16 %v5601
        %v7085 = vunpack.c.l.b16 %v5602
        %v7086 = vunpack.c.h.b16 %v5602
        %v7087 = vunpack.c.l.b16 %v5603
        %v7088 = vunpack.c.l.b16 %v5604
        %v7089 = vunpack.c.h.b16 %v5604
        %v7090 = vunpack.c.l.b16 %v5605
        %v7091 = vunpack.c.l.b16 %v5606
        %v7092 = vunpack.c.h.b16 %v5606
        %v7093 = vunpack.c.l.b16 %v5607
        %v7094 = vunpack.c.l.b16 %v5608
        %v7095 = vunpack.c.h.b16 %v5608
        %v7096 = vunpack.c.l.b16 %v5609
        %v7097 = vunpack.c.l.b16 %v5610
        %v7098 = vunpack.c.h.b16 %v5610
        %v7099 = vunpack.c.l.b16 %v5611
        %v7100 = vunpack.c.l.b16 %v5612
        %v7101 = vunpack.c.h.b16 %v5612
        %v7102 = vunpack.c.l.b16 %v5613
        %v7103 = vunpack.c.l.b16 %v5614
        %v7104 = vunpack.c.h.b16 %v5614
        %v7105 = vunpack.c.l.b16 %v5615
        %v7106 = vunpack.c.l.b16 %v5616
        %v7107 = vunpack.c.h.b16 %v5616
        %v7108 = vunpack.c.l.b16 %v5617
        %v7109 = vunpack.c.l.b16 %v5618
        %v7110 = vunpack.c.h.b16 %v5618
        %v7111 = vunpack.c.l.b16 %v5619
        %v7112 = vunpack.c.l.b16 %v5620
        %v7113 = vunpack.c.h.b16 %v5620
        %v7114 = vunpack.c.l.b16 %v5621
        %v7115 = vunpack.c.l.b16 %v5622
        %v7116 = vunpack.c.h.b16 %v5622
        %v7117 = vunpack.c.l.b16 %v5623
        %v7118 = vunpack.c.l.b16 %v5624
        %v7119 = vunpack.c.h.b16 %v5624
        %v7120 = vunpack.c.l.b16 %v5625
        %v7121 = vunpack.c.l.b16 %v5626
        %v7122 = vunpack.c.h.b16 %v5626
        %v7123 = vunpack.c.l.b16 %v5627
        %v7124 = vunpack.c.l.b16 %v5628
        %v7125 = vunpack.c.h.b16 %v5628
        %v7126 = vunpack.c.l.b16 %v5629
        %v7127 = vunpack.c.l.b16 %v5630
        %v7128 = vunpack.c.h.b16 %v5630
        %v7129 = vunpack.c.l.b16 %v5631
        %v7130 = vunpack.c.l.b16 %v5632
        %v7131 = vunpack.c.h.b16 %v5632
        %v7132 = vunpack.c.l.b16 %v5633
        %v7133 = vunpack.c.l.b16 %v5634
        %v7134 = vunpack.c.h.b16 %v5634
        %v7135 = vunpack.c.l.b16 %v5635
        %v7136 = vunpack.c.l.b16 %v5636
        %v7137 = vunpack.c.h.b16 %v5636
        %v7138 = vunpack.c.l.b16 %v5637
        %v7139 = vunpack.c.l.b16 %v5638
        %v7140 = vunpack.c.h.b16 %v5638
        %v7141 = vunpack.c.l.b16 %v5639
        %v7142 = vunpack.c.l.b16 %v5640
        %v7143 = vunpack.c.h.b16 %v5640
        %v7144 = vunpack.c.l.b16 %v5641
        %v7145 = vunpack.c.l.b16 %v5642
        %v7146 = vunpack.c.h.b16 %v5642
        %v7147 = vunpack.c.l.b16 %v5643
        %v7148 = vunpack.c.l.b16 %v5644
        %v7149 = vunpack.c.h.b16 %v5644
        %v7150 = vunpack.c.l.b16 %v5645
        %v7151 = vunpack.c.l.b16 %v5646
        %v7152 = vunpack.c.h.b16 %v5646
        %v7153 = vunpack.c.l.b16 %v5647
        %v7154 = vunpack.c.l.b16 %v5648
        %v7155 = vunpack.c.h.b16 %v5648
        %v7156 = vunpack.c.l.b16 %v5649
        %v7157 = vunpack.c.l.b16 %v5650
        %v7158 = vunpack.c.h.b16 %v5650
        %v7159 = vunpack.c.l.b16 %v5651
        %v7160 = vunpack.c.l.b16 %v5652
        %v7161 = vunpack.c.h.b16 %v5652
        %v7162 = vunpack.c.l.b16 %v5653
        %v7163 = vunpack.c.l.b16 %v5654
        %v7164 = vunpack.c.h.b16 %v5654
        %v7165 = vunpack.c.l.b16 %v5655
        %v7166 = vunpack.c.l.b16 %v5656
        %v7167 = vunpack.c.h.b16 %v5656
        %v7168 = vunpack.c.l.b16 %v5657
        %v7169 = vunpack.c.l.b16 %v5658
        %v7170 = vunpack.c.h.b16 %v5658
        %v7171 = vunpack.c.l.b16 %v5659
        %v7172 = vunpack.c.l.b16 %v5660
        %v7173 = vunpack.c.h.b16 %v5660
        %v7174 = vunpack.c.l.b16 %v5661
        %v7175 = vunpack.c.l.b16 %v5662
        %v7176 = vunpack.c.h.b16 %v5662
        %v7177 = vunpack.c.l.b16 %v5663
        %v7178 = vunpack.c.l.b16 %v5664
        %v7179 = vunpack.c.h.b16 %v5664
        %v7180 = vunpack.c.l.b16 %v5665
        %v7181 = vunpack.c.l.b16 %v5666
        %v7182 = vunpack.c.h.b16 %v5666
        %v7183 = vunpack.c.l.b16 %v5667
        %v7184 = vunpack.c.l.b16 %v5668
        %v7185 = vunpack.c.h.b16 %v5668
        %v7186 = vunpack.c.l.b16 %v5669
        %v7187 = vunpack.c.l.b16 %v5670
        %v7188 = vunpack.c.h.b16 %v5670
        %v7189 = vunpack.c.l.b16 %v5671
        %v7190 = vunpack.c.l.b16 %v5672
        %v7191 = vunpack.c.h.b16 %v5672
        %v7192 = vunpack.c.l.b16 %v5673
        %v7193 = vunpack.c.l.b16 %v5674
        %v7194 = vunpack.c.h.b16 %v5674
        %v7195 = vunpack.c.l.b16 %v5675
        %v7196 = vunpack.c.l.b16 %v5676
        %v7197 = vunpack.c.h.b16 %v5676
        %v7198 = vunpack.c.l.b16 %v5677
        %v7199 = vunpack.c.l.b16 %v5678
        %v7200 = vunpack.c.h.b16 %v5678
        %v7201 = vunpack.c.l.b16 %v5679
        %v7202 = vunpack.c.l.b16 %v5680
        %v7203 = vunpack.c.h.b16 %v5680
        %v7204 = vunpack.c.l.b16 %v5681
        %v7205 = vunpack.c.l.b16 %v5682
        %v7206 = vunpack.c.h.b16 %v5682
        %v7207 = vunpack.c.l.b16 %v5683
        %v7208 = vunpack.c.l.b16 %v5684
        %v7209 = vunpack.c.h.b16 %v5684
        %v7210 = vunpack.c.l.b16 %v5685
        %v7211 = vunpack.c.l.b16 %v5686
        %v7212 = vunpack.c.h.b16 %v5686
        %v7213 = vunpack.c.l.b16 %v5687
        %v7214 = vunpack.c.l.b16 %v5688
        %v7215 = vunpack.c.h.b16 %v5688
        %v7216 = vunpack.c.l.b16 %v5689
        %v7217 = vunpack.c.l.b16 %v5690
        %v7218 = vunpack.c.h.b16 %v5690
        %v7219 = vunpack.c.l.b16 %v5691
        %v7220 = vunpack.c.l.b16 %v5692
        %v7221 = vunpack.c.h.b16 %v5692
        %v7222 = vunpack.c.l.b16 %v5693
        %v7223 = vunpack.c.l.b16 %v5694
        %v7224 = vunpack.c.h.b16 %v5694
        %v7225 = vunpack.c.l.b16 %v5695
        %v7226 = vunpack.c.l.b16 %v5696
        %v7227 = vunpack.c.h.b16 %v5696
        %v7228 = vunpack.c.l.b16 %v5697
        %v7229 = vunpack.c.l.b16 %v5698
        %v7230 = vunpack.c.h.b16 %v5698
        %v7231 = vunpack.c.l.b16 %v5699
        %v7232 = vunpack.c.l.b16 %v5700
        %v7233 = vunpack.c.h.b16 %v5700
        %v7234 = vunpack.c.l.b16 %v5701
        %v7235 = vunpack.c.l.b16 %v5702
        %v7236 = vunpack.c.h.b16 %v5702
        %v7237 = vunpack.c.l.b16 %v5703
        %v7238 = vunpack.c.l.b16 %v5704
        %v7239 = vunpack.c.h.b16 %v5704
        %v7240 = vunpack.c.l.b16 %v5705
        %v7241 = vunpack.c.l.b16 %v5706
        %v7242 = vunpack.c.h.b16 %v5706
        %v7243 = vunpack.c.l.b16 %v5707
        %v7244 = vunpack.c.l.b16 %v5708
        %v7245 = vunpack.c.h.b16 %v5708
        %v7246 = vunpack.c.l.b16 %v5709
        %v7247 = vunpack.c.l.b16 %v5710
        %v7248 = vunpack.c.h.b16 %v5710
        %v7249 = vunpack.c.l.b16 %v5711
        %v7250 = vunpack.c.l.b16 %v5712
        %v7251 = vunpack.c.h.b16 %v5712
        %v7252 = vunpack.c.l.b16 %v5713
        %v7253 = vunpack.c.l.b16 %v5714
        %v7254 = vunpack.c.h.b16 %v5714
        %v7255 = vunpack.c.l.b16 %v5715
        %v7256 = vunpack.c.l.b16 %v5716
        %v7257 = vunpack.c.h.b16 %v5716
        %v7258 = vunpack.c.l.b16 %v5717
        %v7259 = vunpack.c.l.b16 %v5718
        %v7260 = vunpack.c.h.b16 %v5718
        %v7261 = vunpack.c.l.b16 %v5719
        %v7262 = vunpack.c.l.b16 %v5720
        %v7263 = vunpack.c.h.b16 %v5720
        %v7264 = vunpack.c.l.b16 %v5721
        %v7265 = vunpack.c.l.b16 %v5722
        %v7266 = vunpack.c.h.b16 %v5722
        %v7267 = vunpack.c.l.b16 %v5723
        %v7268 = vunpack.c.l.b16 %v5724
        %v7269 = vunpack.c.h.b16 %v5724
        %v7270 = vunpack.c.l.b16 %v5725
        %v7271 = vunpack.c.l.b16 %v5726
        %v7272 = vunpack.c.h.b16 %v5726
        %v7273 = vunpack.c.l.b16 %v5727
        %v7274 = vunpack.c.l.b16 %v5728
        %v7275 = vunpack.c.h.b16 %v5728
        %v7276 = vunpack.c.l.b16 %v5729
        %v7277 = vunpack.c.l.b16 %v5730
        %v7278 = vunpack.c.h.b16 %v5730
        %v7279 = vunpack.c.l.b16 %v5731
        %v7280 = vunpack.c.l.b16 %v5732
        %v7281 = vunpack.c.h.b16 %v5732
        %v7282 = vunpack.c.l.b16 %v5733
        %v7283 = vunpack.c.l.b16 %v5734
        %v7284 = vunpack.c.h.b16 %v5734
        %v7285 = vunpack.c.l.b16 %v5735
        %v7286 = vunpack.c.l.b16 %v5736
        %v7287 = vunpack.c.h.b16 %v5736
        %v7288 = vunpack.c.l.b16 %v5737
        %v7289 = vunpack.c.l.b16 %v5738
        %v7290 = vunpack.c.h.b16 %v5738
        %v7291 = vunpack.c.l.b16 %v5739
        %v7292 = vunpack.c.l.b16 %v5740
        %v7293 = vunpack.c.h.b16 %v5740
        %v7294 = vunpack.c.l.b16 %v5741
        %v7295 = vunpack.c.l.b16 %v5742
        %v7296 = vunpack.c.h.b16 %v5742
        %v7297 = vunpack.c.l.b16 %v5743
        %v7298 = vunpack.c.l.b16 %v5744
        %v7299 = vunpack.c.h.b16 %v5744
        %v7300 = vunpack.c.l.b16 %v5745
        %v7301 = vunpack.c.l.b16 %v5746
        %v7302 = vunpack.c.h.b16 %v5746
        %v7303 = vunpack.c.l.b16 %v5747
        %v7304 = vunpack.c.l.b16 %v5748
        %v7305 = vunpack.c.h.b16 %v5748
        %v7306 = vunpack.c.l.b16 %v5749
        %v7307 = vunpack.c.l.b16 %v5750
        %v7308 = vunpack.c.h.b16 %v5750
        %v7309 = vunpack.c.l.b16 %v5751
        %v7310 = vunpack.c.l.b16 %v5752
        %v7311 = vunpack.c.h.b16 %v5752
        %v7312 = vunpack.c.l.b16 %v5753
        %v7313 = vunpack.c.l.b16 %v5754
        %v7314 = vunpack.c.h.b16 %v5754
        %v7315 = vunpack.c.l.b16 %v5755
        %v7316 = vunpack.c.l.b16 %v5756
        %v7317 = vunpack.c.h.b16 %v5756
        %v7318 = vunpack.c.l.b16 %v5757
        %v7319 = vunpack.c.l.b16 %v5758
        %v7320 = vunpack.c.h.b16 %v5758
        %v7321 = vunpack.c.l.b16 %v5759
        %v7322 = vunpack.c.l.b16 %v5760
        %v7323 = vunpack.c.h.b16 %v5760
        %v7324 = vunpack.c.l.b16 %v5761
        %v7325 = vunpack.c.l.b16 %v5762
        %v7326 = vunpack.c.h.b16 %v5762
        %v7327 = vunpack.c.l.b16 %v5763
        %v7328 = vunpack.c.l.b16 %v5764
        %v7329 = vunpack.c.h.b16 %v5764
        %v7330 = vunpack.c.l.b16 %v5765
        %v7331 = vunpack.c.l.b16 %v5766
        %v7332 = vunpack.c.h.b16 %v5766
        %v7333 = vunpack.c.l.b16 %v5767
        %v7334 = vunpack.c.l.b16 %v5768
        %v7335 = vunpack.c.h.b16 %v5768
        %v7336 = vunpack.c.l.b16 %v5769
        %v7337 = vunpack.c.l.b16 %v5770
        %v7338 = vunpack.c.h.b16 %v5770
        %v7339 = vunpack.c.l.b16 %v5771
        %v7340 = vunpack.c.l.b16 %v5772
        %v7341 = vunpack.c.h.b16 %v5772
        %v7342 = vunpack.c.l.b16 %v5773
        %v7343 = vunpack.c.l.b16 %v5774
        %v7344 = vunpack.c.h.b16 %v5774
        %v7345 = vunpack.c.l.b16 %v5775
        %v7346 = vunpack.c.l.b16 %v5776
        %v7347 = vunpack.c.h.b16 %v5776
        %v7348 = vunpack.c.l.b16 %v5777
        %v7349 = vunpack.c.l.b16 %v5778
        %v7350 = vunpack.c.h.b16 %v5778
        %v7351 = vunpack.c.l.b16 %v5779
        %v7352 = vunpack.c.l.b16 %v5780
        %v7353 = vunpack.c.h.b16 %v5780
        %v7354 = vunpack.c.l.b16 %v5781
        %v7355 = vunpack.c.l.b16 %v5782
        %v7356 = vunpack.c.h.b16 %v5782
        %v7357 = vunpack.c.l.b16 %v5783
        %v7358 = vunpack.c.l.b16 %v5784
        %v7359 = vunpack.c.h.b16 %v5784
        %v7360 = vunpack.c.l.b16 %v5785
        %v7361 = vunpack.c.l.b16 %v5786
        %v7362 = vunpack.c.h.b16 %v5786
        %v7363 = vunpack.c.l.b16 %v5787
        %v7364 = vunpack.c.l.b16 %v5788
        %v7365 = vunpack.c.h.b16 %v5788
        %v7366 = vunpack.c.l.b16 %v5789
        %v7367 = vunpack.c.l.b16 %v5790
        %v7368 = vunpack.c.h.b16 %v5790
        %v7369 = vunpack.c.l.b16 %v5791
        %v7370 = vunpack.c.l.b16 %v5792
        %v7371 = vunpack.c.h.b16 %v5792
        %v7372 = vunpack.c.l.b16 %v5793
        %v7373 = vunpack.c.l.b16 %v5794
        %v7374 = vunpack.c.h.b16 %v5794
        %v7375 = vunpack.c.l.b16 %v5795
        %v7376 = vunpack.c.l.b16 %v5796
        %v7377 = vunpack.c.h.b16 %v5796
        %v7378 = vunpack.c.l.b16 %v5797
        %v7379 = vunpack.c.l.b16 %v5798
        %v7380 = vunpack.c.h.b16 %v5798
        %v7381 = vunpack.c.l.b16 %v5799
        %v7382 = vunpack.c.l.b16 %v5800
        %v7383 = vunpack.c.h.b16 %v5800
        %v7384 = vunpack.c.l.b16 %v5801
        %v7385 = vunpack.c.l.b16 %v5802
        %v7386 = vunpack.c.h.b16 %v5802
        %v7387 = vunpack.c.l.b16 %v5803
        %v7388 = vunpack.c.l.b16 %v5804
        %v7389 = vunpack.c.h.b16 %v5804
        %v7390 = vunpack.c.l.b16 %v5805
        %v7391 = vunpack.c.l.b16 %v5806
        %v7392 = vunpack.c.h.b16 %v5806
        %v7393 = vunpack.c.l.b16 %v5807
        %v7394 = vunpack.c.l.b16 %v5808
        %v7395 = vunpack.c.h.b16 %v5808
        %v7396 = vunpack.c.l.b16 %v5809
        %v7397 = vunpack.c.l.b16 %v5810
        %v7398 = vunpack.c.h.b16 %v5810
        %v7399 = vunpack.c.l.b16 %v5811
        %v7400 = vunpack.c.l.b16 %v5812
        %v7401 = vunpack.c.h.b16 %v5812
        %v7402 = vunpack.c.l.b16 %v5813
        %v7403 = vunpack.c.l.b16 %v5814
        %v7404 = vunpack.c.h.b16 %v5814
        %v7405 = vunpack.c.l.b16 %v5815
        %v7406 = vunpack.c.l.b16 %v5816
        %v7407 = vunpack.c.h.b16 %v5816
        %v7408 = vunpack.c.l.b16 %v5817
        %v7409 = vunpack.c.l.b16 %v5818
        %v7410 = vunpack.c.h.b16 %v5818
        %v7411 = vunpack.c.l.b16 %v5819
        %v7412 = vunpack.c.l.b16 %v5820
        %v7413 = vunpack.c.h.b16 %v5820
        %v7414 = vunpack.c.l.b16 %v5821
        %v7415 = vunpack.c.l.b16 %v5822
        %v7416 = vunpack.c.h.b16 %v5822
        %v7417 = vunpack.c.l.b16 %v5823
        %v7418 = vunpack.c.l.b16 %v5824
        %v7419 = vunpack.c.h.b16 %v5824
        %v7420 = vunpack.c.l.b16 %v5825
        %v7421 = vunpack.c.l.b16 %v5826
        %v7422 = vunpack.c.h.b16 %v5826
        %v7423 = vunpack.c.l.b16 %v5827
        %v7424 = vunpack.c.l.b16 %v5828
        %v7425 = vunpack.c.h.b16 %v5828
        %v7426 = vunpack.c.l.b16 %v5829
        %v7427 = vunpack.c.l.b16 %v5830
        %v7428 = vunpack.c.h.b16 %v5830
        %v7429 = vunpack.c.l.b16 %v5831
        %v7430 = vunpack.c.l.b16 %v5832
        %v7431 = vunpack.c.h.b16 %v5832
        %v7432 = vunpack.c.l.b16 %v5833
        %v7433 = vunpack.c.l.b16 %v5834
        %v7434 = vunpack.c.h.b16 %v5834
        %v7435 = vunpack.c.l.b16 %v5835
        %v7436 = vpack.c.b16 %v6479, %v6476
        %v7437 = vpack.c.b16 %v6480, %v6477
        %v7438 = vpack.c.b16 %v6481, %v6478
        %v7439 = vpack.c.b16 %v6485, %v6482
        %v7440 = vpack.c.b16 %v6486, %v6483
        %v7441 = vpack.c.b16 %v6487, %v6484
        %v7442 = vpack.c.b16 %v6491, %v6488
        %v7443 = vpack.c.b16 %v6492, %v6489
        %v7444 = vpack.c.b16 %v6493, %v6490
        %v7445 = vpack.c.b16 %v6497, %v6494
        %v7446 = vpack.c.b16 %v6498, %v6495
        %v7447 = vpack.c.b16 %v6499, %v6496
        %v7448 = vpack.c.b16 %v6503, %v6500
        %v7449 = vpack.c.b16 %v6504, %v6501
        %v7450 = vpack.c.b16 %v6505, %v6502
        %v7451 = vpack.c.b16 %v6509, %v6506
        %v7452 = vpack.c.b16 %v6510, %v6507
        %v7453 = vpack.c.b16 %v6511, %v6508
        %v7454 = vpack.c.b16 %v6515, %v6512
        %v7455 = vpack.c.b16 %v6516, %v6513
        %v7456 = vpack.c.b16 %v6517, %v6514
        %v7457 = vpack.c.b16 %v6521, %v6518
        %v7458 = vpack.c.b16 %v6522, %v6519
        %v7459 = vpack.c.b16 %v6523, %v6520
        %v7460 = vpack.c.b16 %v6527, %v6524
        %v7461 = vpack.c.b16 %v6528, %v6525
        %v7462 = vpack.c.b16 %v6529, %v6526
        %v7463 = vpack.c.b16 %v6533, %v6530
        %v7464 = vpack.c.b16 %v6534, %v6531
        %v7465 = vpack.c.b16 %v6535, %v6532
        %v7466 = vpack.c.b16 %v6539, %v6536
        %v7467 = vpack.c.b16 %v6540, %v6537
        %v7468 = vpack.c.b16 %v6541, %v6538
        %v7469 = vpack.c.b16 %v6545, %v6542
        %v7470 = vpack.c.b16 %v6546, %v6543
        %v7471 = vpack.c.b16 %v6547, %v6544
        %v7472 = vpack.c.b16 %v6551, %v6548
        %v7473 = vpack.c.b16 %v6552, %v6549
        %v7474 = vpack.c.b16 %v6553, %v6550
        %v7475 = vpack.c.b16 %v6557, %v6554
        %v7476 = vpack.c.b16 %v6558, %v6555
        %v7477 = vpack.c.b16 %v6559, %v6556
        %v7478 = vpack.c.b16 %v6563, %v6560
        %v7479 = vpack.c.b16 %v6564, %v6561
        %v7480 = vpack.c.b16 %v6565, %v6562
        %v7481 = vpack.c.b16 %v6569, %v6566
        %v7482 = vpack.c.b16 %v6570, %v6567
        %v7483 = vpack.c.b16 %v6571, %v6568
        %v7484 = vpack.c.b16 %v6575, %v6572
        %v7485 = vpack.c.b16 %v6576, %v6573
        %v7486 = vpack.c.b16 %v6577, %v6574
        %v7487 = vpack.c.b16 %v6581, %v6578
        %v7488 = vpack.c.b16 %v6582, %v6579
        %v7489 = vpack.c.b16 %v6583, %v6580
        %v7490 = vpack.c.b16 %v6587, %v6584
        %v7491 = vpack.c.b16 %v6588, %v6585
        %v7492 = vpack.c.b16 %v6589, %v6586
        %v7493 = vpack.c.b16 %v6593, %v6590
        %v7494 = vpack.c.b16 %v6594, %v6591
        %v7495 = vpack.c.b16 %v6595, %v6592
        %v7496 = vpack.c.b16 %v6599, %v6596
        %v7497 = vpack.c.b16 %v6600, %v6597
        %v7498 = vpack.c.b16 %v6601, %v6598
        %v7499 = vpack.c.b16 %v6605, %v6602
        %v7500 = vpack.c.b16 %v6606, %v6603
        %v7501 = vpack.c.b16 %v6607, %v6604
        %v7502 = vpack.c.b16 %v6611, %v6608
        %v7503 = vpack.c.b16 %v6612, %v6609
        %v7504 = vpack.c.b16 %v6613, %v6610
        %v7505 = vpack.c.b16 %v6617, %v6614
        %v7506 = vpack.c.b16 %v6618, %v6615
        %v7507 = vpack.c.b16 %v6619, %v6616
        %v7508 = vpack.c.b16 %v6623, %v6620
        %v7509 = vpack.c.b16 %v6624, %v6621
        %v7510 = vpack.c.b16 %v6625, %v6622
        %v7511 = vpack.c.b16 %v6629, %v6626
        %v7512 = vpack.c.b16 %v6630, %v6627
        %v7513 = vpack.c.b16 %v6631, %v6628
        %v7514 = vpack.c.b16 %v6635, %v6632
        %v7515 = vpack.c.b16 %v6636, %v6633
        %v7516 = vpack.c.b16 %v6637, %v6634
        %v7517 = vpack.c.b16 %v6641, %v6638
        %v7518 = vpack.c.b16 %v6642, %v6639
        %v7519 = vpack.c.b16 %v6643, %v6640
        %v7520 = vpack.c.b16 %v6647, %v6644
        %v7521 = vpack.c.b16 %v6648, %v6645
        %v7522 = vpack.c.b16 %v6649, %v6646
        %v7523 = vpack.c.b16 %v6653, %v6650
        %v7524 = vpack.c.b16 %v6654, %v6651
        %v7525 = vpack.c.b16 %v6655, %v6652
        %v7526 = vpack.c.b16 %v6659, %v6656
        %v7527 = vpack.c.b16 %v6660, %v6657
        %v7528 = vpack.c.b16 %v6661, %v6658
        %v7529 = vpack.c.b16 %v6665, %v6662
        %v7530 = vpack.c.b16 %v6666, %v6663
        %v7531 = vpack.c.b16 %v6667, %v6664
        %v7532 = vpack.c.b16 %v6671, %v6668
        %v7533 = vpack.c.b16 %v6672, %v6669
        %v7534 = vpack.c.b16 %v6673, %v6670
        %v7535 = vpack.c.b16 %v6677, %v6674
        %v7536 = vpack.c.b16 %v6678, %v6675
        %v7537 = vpack.c.b16 %v6679, %v6676
        %v7538 = vpack.c.b16 %v6683, %v6680
        %v7539 = vpack.c.b16 %v6684, %v6681
        %v7540 = vpack.c.b16 %v6685, %v6682
        %v7541 = vpack.c.b16 %v6689, %v6686
        %v7542 = vpack.c.b16 %v6690, %v6687
        %v7543 = vpack.c.b16 %v6691, %v6688
        %v7544 = vpack.c.b16 %v6695, %v6692
        %v7545 = vpack.c.b16 %v6696, %v6693
        %v7546 = vpack.c.b16 %v6697, %v6694
        %v7547 = vpack.c.b16 %v6701, %v6698
        %v7548 = vpack.c.b16 %v6702, %v6699
        %v7549 = vpack.c.b16 %v6703, %v6700
        %v7550 = vpack.c.b16 %v6707, %v6704
        %v7551 = vpack.c.b16 %v6708, %v6705
        %v7552 = vpack.c.b16 %v6709, %v6706
        %v7553 = vpack.c.b16 %v6713, %v6710
        %v7554 = vpack.c.b16 %v6714, %v6711
        %v7555 = vpack.c.b16 %v6715, %v6712
        %v7556 = vpack.c.b16 %v6719, %v6716
        %v7557 = vpack.c.b16 %v6720, %v6717
        %v7558 = vpack.c.b16 %v6721, %v6718
        %v7559 = vpack.c.b16 %v6725, %v6722
        %v7560 = vpack.c.b16 %v6726, %v6723
        %v7561 = vpack.c.b16 %v6727, %v6724
        %v7562 = vpack.c.b16 %v6731, %v6728
        %v7563 = vpack.c.b16 %v6732, %v6729
        %v7564 = vpack.c.b16 %v6733, %v6730
        %v7565 = vpack.c.b16 %v6737, %v6734
        %v7566 = vpack.c.b16 %v6738, %v6735
        %v7567 = vpack.c.b16 %v6739, %v6736
        %v7568 = vpack.c.b16 %v6743, %v6740
        %v7569 = vpack.c.b16 %v6744, %v6741
        %v7570 = vpack.c.b16 %v6745, %v6742
        %v7571 = vpack.c.b16 %v6749, %v6746
        %v7572 = vpack.c.b16 %v6750, %v6747
        %v7573 = vpack.c.b16 %v6751, %v6748
        %v7574 = vpack.c.b16 %v6755, %v6752
        %v7575 = vpack.c.b16 %v6756, %v6753
        %v7576 = vpack.c.b16 %v6757, %v6754
        %v7577 = vpack.c.b16 %v6761, %v6758
        %v7578 = vpack.c.b16 %v6762, %v6759
        %v7579 = vpack.c.b16 %v6763, %v6760
        %v7580 = vpack.c.b16 %v6767, %v6764
        %v7581 = vpack.c.b16 %v6768, %v6765
        %v7582 = vpack.c.b16 %v6769, %v6766
        %v7583 = vpack.c.b16 %v6773, %v6770
        %v7584 = vpack.c.b16 %v6774, %v6771
        %v7585 = vpack.c.b16 %v6775, %v6772
        %v7586 = vpack.c.b16 %v6779, %v6776
        %v7587 = vpack.c.b16 %v6780, %v6777
        %v7588 = vpack.c.b16 %v6781, %v6778
        %v7589 = vpack.c.b16 %v6785, %v6782
        %v7590 = vpack.c.b16 %v6786, %v6783
        %v7591 = vpack.c.b16 %v6787, %v6784
        %v7592 = vpack.c.b16 %v6791, %v6788
        %v7593 = vpack.c.b16 %v6792, %v6789
        %v7594 = vpack.c.b16 %v6793, %v6790
        %v7595 = vpack.c.b16 %v6797, %v6794
        %v7596 = vpack.c.b16 %v6798, %v6795
        %v7597 = vpack.c.b16 %v6799, %v6796
        %v7598 = vpack.c.b16 %v6803, %v6800
        %v7599 = vpack.c.b16 %v6804, %v6801
        %v7600 = vpack.c.b16 %v6805, %v6802
        %v7601 = vpack.c.b16 %v6809, %v6806
        %v7602 = vpack.c.b16 %v6810, %v6807
        %v7603 = vpack.c.b16 %v6811, %v6808
        %v7604 = vpack.c.b16 %v6815, %v6812
        %v7605 = vpack.c.b16 %v6816, %v6813
        %v7606 = vpack.c.b16 %v6817, %v6814
        %v7607 = vpack.c.b16 %v6821, %v6818
        %v7608 = vpack.c.b16 %v6822, %v6819
        %v7609 = vpack.c.b16 %v6823, %v6820
        %v7610 = vpack.c.b16 %v6827, %v6824
        %v7611 = vpack.c.b16 %v6828, %v6825
        %v7612 = vpack.c.b16 %v6829, %v6826
        %v7613 = vpack.c.b16 %v6833, %v6830
        %v7614 = vpack.c.b16 %v6834, %v6831
        %v7615 = vpack.c.b16 %v6835, %v6832
        %v7616 = vpack.c.b16 %v6839, %v6836
        %v7617 = vpack.c.b16 %v6840, %v6837
        %v7618 = vpack.c.b16 %v6841, %v6838
        %v7619 = vpack.c.b16 %v6845, %v6842
        %v7620 = vpack.c.b16 %v6846, %v6843
        %v7621 = vpack.c.b16 %v6847, %v6844
        %v7622 = vpack.c.b16 %v6851, %v6848
        %v7623 = vpack.c.b16 %v6852, %v6849
        %v7624 = vpack.c.b16 %v6853, %v6850
        %v7625 = vpack.c.b16 %v6857, %v6854
        %v7626 = vpack.c.b16 %v6858, %v6855
        %v7627 = vpack.c.b16 %v6859, %v6856
        %v7628 = vpack.c.b16 %v6863, %v6860
        %v7629 = vpack.c.b16 %v6864, %v6861
        %v7630 = vpack.c.b16 %v6865, %v6862
        %v7631 = vpack.c.b16 %v6869, %v6866
        %v7632 = vpack.c.b16 %v6870, %v6867
        %v7633 = vpack.c.b16 %v6871, %v6868
        %v7634 = vpack.c.b16 %v6875, %v6872
        %v7635 = vpack.c.b16 %v6876, %v6873
        %v7636 = vpack.c.b16 %v6877, %v6874
        %v7637 = vpack.c.b16 %v6881, %v6878
        %v7638 = vpack.c.b16 %v6882, %v6879
        %v7639 = vpack.c.b16 %v6883, %v6880
        %v7640 = vpack.c.b16 %v6887, %v6884
        %v7641 = vpack.c.b16 %v6888, %v6885
        %v7642 = vpack.c.b16 %v6889, %v6886
        %v7643 = vpack.c.b16 %v6893, %v6890
        %v7644 = vpack.c.b16 %v6894, %v6891
        %v7645 = vpack.c.b16 %v6895, %v6892
        %v7646 = vpack.c.b16 %v6899, %v6896
        %v7647 = vpack.c.b16 %v6900, %v6897
        %v7648 = vpack.c.b16 %v6901, %v6898
        %v7649 = vpack.c.b16 %v6905, %v6902
        %v7650 = vpack.c.b16 %v6906, %v6903
        %v7651 = vpack.c.b16 %v6907, %v6904
        %v7652 = vpack.c.b16 %v6911, %v6908
        %v7653 = vpack.c.b16 %v6912, %v6909
        %v7654 = vpack.c.b16 %v6913, %v6910
        %v7655 = vpack.c.b16 %v6917, %v6914
        %v7656 = vpack.c.b16 %v6918, %v6915
        %v7657 = vpack.c.b16 %v6919, %v6916
        %v7658 = vpack.c.b16 %v6923, %v6920
        %v7659 = vpack.c.b16 %v6924, %v6921
        %v7660 = vpack.c.b16 %v6925, %v6922
        %v7661 = vpack.c.b16 %v6929, %v6926
        %v7662 = vpack.c.b16 %v6930, %v6927
        %v7663 = vpack.c.b16 %v6931, %v6928
        %v7664 = vpack.c.b16 %v6935, %v6932
        %v7665 = vpack.c.b16 %v6936, %v6933
        %v7666 = vpack.c.b16 %v6937, %v6934
        %v7667 = vpack.c.b16 %v6941, %v6938
        %v7668 = vpack.c.b16 %v6942, %v6939
        %v7669 = vpack.c.b16 %v6943, %v6940
        %v7670 = vpack.c.b16 %v6947, %v6944
        %v7671 = vpack.c.b16 %v6948, %v6945
        %v7672 = vpack.c.b16 %v6949, %v6946
        %v7673 = vpack.c.b16 %v6953, %v6950
        %v7674 = vpack.c.b16 %v6954, %v6951
        %v7675 = vpack.c.b16 %v6955, %v6952
        %v7676 = vpack.c.b16 %v6959, %v6956
        %v7677 = vpack.c.b16 %v6960, %v6957
        %v7678 = vpack.c.b16 %v6961, %v6958
        %v7679 = vpack.c.b16 %v6965, %v6962
        %v7680 = vpack.c.b16 %v6966, %v6963
        %v7681 = vpack.c.b16 %v6967, %v6964
        %v7682 = vpack.c.b16 %v6971, %v6968
        %v7683 = vpack.c.b16 %v6972, %v6969
        %v7684 = vpack.c.b16 %v6973, %v6970
        %v7685 = vpack.c.b16 %v6977, %v6974
        %v7686 = vpack.c.b16 %v6978, %v6975
        %v7687 = vpack.c.b16 %v6979, %v6976
        %v7688 = vpack.c.b16 %v6983, %v6980
        %v7689 = vpack.c.b16 %v6984, %v6981
        %v7690 = vpack.c.b16 %v6985, %v6982
        %v7691 = vpack.c.b16 %v6989, %v6986
        %v7692 = vpack.c.b16 %v6990, %v6987
        %v7693 = vpack.c.b16 %v6991, %v6988
        %v7694 = vpack.c.b16 %v6995, %v6992
        %v7695 = vpack.c.b16 %v6996, %v6993
        %v7696 = vpack.c.b16 %v6997, %v6994
        %v7697 = vpack.c.b16 %v7001, %v6998
        %v7698 = vpack.c.b16 %v7002, %v6999
        %v7699 = vpack.c.b16 %v7003, %v7000
        %v7700 = vpack.c.b16 %v7007, %v7004
        %v7701 = vpack.c.b16 %v7008, %v7005
        %v7702 = vpack.c.b16 %v7009, %v7006
        %v7703 = vpack.c.b16 %v7013, %v7010
        %v7704 = vpack.c.b16 %v7014, %v7011
        %v7705 = vpack.c.b16 %v7015, %v7012
        %v7706 = vpack.c.b16 %v7019, %v7016
        %v7707 = vpack.c.b16 %v7020, %v7017
        %v7708 = vpack.c.b16 %v7021, %v7018
        %v7709 = vpack.c.b16 %v7025, %v7022
        %v7710 = vpack.c.b16 %v7026, %v7023
        %v7711 = vpack.c.b16 %v7027, %v7024
        %v7712 = vpack.c.b16 %v7031, %v7028
        %v7713 = vpack.c.b16 %v7032, %v7029
        %v7714 = vpack.c.b16 %v7033, %v7030
        %v7715 = vpack.c.b16 %v7037, %v7034
        %v7716 = vpack.c.b16 %v7038, %v7035
        %v7717 = vpack.c.b16 %v7039, %v7036
        %v7718 = vpack.c.b16 %v7043, %v7040
        %v7719 = vpack.c.b16 %v7044, %v7041
        %v7720 = vpack.c.b16 %v7045, %v7042
        %v7721 = vpack.c.b16 %v7049, %v7046
        %v7722 = vpack.c.b16 %v7050, %v7047
        %v7723 = vpack.c.b16 %v7051, %v7048
        %v7724 = vpack.c.b16 %v7055, %v7052
        %v7725 = vpack.c.b16 %v7056, %v7053
        %v7726 = vpack.c.b16 %v7057, %v7054
        %v7727 = vpack.c.b16 %v7061, %v7058
        %v7728 = vpack.c.b16 %v7062, %v7059
        %v7729 = vpack.c.b16 %v7063, %v7060
        %v7730 = vpack.c.b16 %v7067, %v7064
        %v7731 = vpack.c.b16 %v7068, %v7065
        %v7732 = vpack.c.b16 %v7069, %v7066
        %v7733 = vpack.c.b16 %v7073, %v7070
        %v7734 = vpack.c.b16 %v7074, %v7071
        %v7735 = vpack.c.b16 %v7075, %v7072
        %v7736 = vpack.c.b16 %v7079, %v7076
        %v7737 = vpack.c.b16 %v7080, %v7077
        %v7738 = vpack.c.b16 %v7081, %v7078
        %v7739 = vpack.c.b16 %v7085, %v7082
        %v7740 = vpack.c.b16 %v7086, %v7083
        %v7741 = vpack.c.b16 %v7087, %v7084
        %v7742 = vpack.c.b16 %v7091, %v7088
        %v7743 = vpack.c.b16 %v7092, %v7089
        %v7744 = vpack.c.b16 %v7093, %v7090
        %v7745 = vpack.c.b16 %v7097, %v7094
        %v7746 = vpack.c.b16 %v7098, %v7095
        %v7747 = vpack.c.b16 %v7099, %v7096
        %v7748 = vpack.c.b16 %v7103, %v7100
        %v7749 = vpack.c.b16 %v7104, %v7101
        %v7750 = vpack.c.b16 %v7105, %v7102
        %v7751 = vpack.c.b16 %v7109, %v7106
        %v7752 = vpack.c.b16 %v7110, %v7107
        %v7753 = vpack.c.b16 %v7111, %v7108
        %v7754 = vpack.c.b16 %v7115, %v7112
        %v7755 = vpack.c.b16 %v7116, %v7113
        %v7756 = vpack.c.b16 %v7117, %v7114
        %v7757 = vpack.c.b16 %v7121, %v7118
        %v7758 = vpack.c.b16 %v7122, %v7119
        %v7759 = vpack.c.b16 %v7123, %v7120
        %v7760 = vpack.c.b16 %v7127, %v7124
        %v7761 = vpack.c.b16 %v7128, %v7125
        %v7762 = vpack.c.b16 %v7129, %v7126
        %v7763 = vpack.c.b16 %v7133, %v7130
        %v7764 = vpack.c.b16 %v7134, %v7131
        %v7765 = vpack.c.b16 %v7135, %v7132
        %v7766 = vpack.c.b16 %v7139, %v7136
        %v7767 = vpack.c.b16 %v7140, %v7137
        %v7768 = vpack.c.b16 %v7141, %v7138
        %v7769 = vpack.c.b16 %v7145, %v7142
        %v7770 = vpack.c.b16 %v7146, %v7143
        %v7771 = vpack.c.b16 %v7147, %v7144
        %v7772 = vpack.c.b16 %v7151, %v7148
        %v7773 = vpack.c.b16 %v7152, %v7149
        %v7774 = vpack.c.b16 %v7153, %v7150
        %v7775 = vpack.c.b16 %v7157, %v7154
        %v7776 = vpack.c.b16 %v7158, %v7155
        %v7777 = vpack.c.b16 %v7159, %v7156
        %v7778 = vpack.c.b16 %v7163, %v7160
        %v7779 = vpack.c.b16 %v7164, %v7161
        %v7780 = vpack.c.b16 %v7165, %v7162
        %v7781 = vpack.c.b16 %v7169, %v7166
        %v7782 = vpack.c.b16 %v7170, %v7167
        %v7783 = vpack.c.b16 %v7171, %v7168
        %v7784 = vpack.c.b16 %v7175, %v7172
        %v7785 = vpack.c.b16 %v7176, %v7173
        %v7786 = vpack.c.b16 %v7177, %v7174
        %v7787 = vpack.c.b16 %v7181, %v7178
        %v7788 = vpack.c.b16 %v7182, %v7179
        %v7789 = vpack.c.b16 %v7183, %v7180
        %v7790 = vpack.c.b16 %v7187, %v7184
        %v7791 = vpack.c.b16 %v7188, %v7185
        %v7792 = vpack.c.b16 %v7189, %v7186
        %v7793 = vpack.c.b16 %v7193, %v7190
        %v7794 = vpack.c.b16 %v7194, %v7191
        %v7795 = vpack.c.b16 %v7195, %v7192
        %v7796 = vpack.c.b16 %v7199, %v7196
        %v7797 = vpack.c.b16 %v7200, %v7197
        %v7798 = vpack.c.b16 %v7201, %v7198
        %v7799 = vpack.c.b16 %v7205, %v7202
        %v7800 = vpack.c.b16 %v7206, %v7203
        %v7801 = vpack.c.b16 %v7207, %v7204
        %v7802 = vpack.c.b16 %v7211, %v7208
        %v7803 = vpack.c.b16 %v7212, %v7209
        %v7804 = vpack.c.b16 %v7213, %v7210
        %v7805 = vpack.c.b16 %v7217, %v7214
        %v7806 = vpack.c.b16 %v7218, %v7215
        %v7807 = vpack.c.b16 %v7219, %v7216
        %v7808 = vpack.c.b16 %v7223, %v7220
        %v7809 = vpack.c.b16 %v7224, %v7221
        %v7810 = vpack.c.b16 %v7225, %v7222
        %v7811 = vpack.c.b16 %v7229, %v7226
        %v7812 = vpack.c.b16 %v7230, %v7227
        %v7813 = vpack.c.b16 %v7231, %v7228
        %v7814 = vpack.c.b16 %v7235, %v7232
        %v7815 = vpack.c.b16 %v7236, %v7233
        %v7816 = vpack.c.b16 %v7237, %v7234
        %v7817 = vpack.c.b16 %v7241, %v7238
        %v7818 = vpack.c.b16 %v7242, %v7239
        %v7819 = vpack.c.b16 %v7243, %v7240
        %v7820 = vpack.c.b16 %v7247, %v7244
        %v7821 = vpack.c.b16 %v7248, %v7245
        %v7822 = vpack.c.b16 %v7249, %v7246
        %v7823 = vpack.c.b16 %v7253, %v7250
        %v7824 = vpack.c.b16 %v7254, %v7251
        %v7825 = vpack.c.b16 %v7255, %v7252
        %v7826 = vpack.c.b16 %v7259, %v7256
        %v7827 = vpack.c.b16 %v7260, %v7257
        %v7828 = vpack.c.b16 %v7261, %v7258
        %v7829 = vpack.c.b16 %v7265, %v7262
        %v7830 = vpack.c.b16 %v7266, %v7263
        %v7831 = vpack.c.b16 %v7267, %v7264
        %v7832 = vpack.c.b16 %v7271, %v7268
        %v7833 = vpack.c.b16 %v7272, %v7269
        %v7834 = vpack.c.b16 %v7273, %v7270
        %v7835 = vpack.c.b16 %v7277, %v7274
        %v7836 = vpack.c.b16 %v7278, %v7275
        %v7837 = vpack.c.b16 %v7279, %v7276
        %v7838 = vpack.c.b16 %v7283, %v7280
        %v7839 = vpack.c.b16 %v7284, %v7281
        %v7840 = vpack.c.b16 %v7285, %v7282
        %v7841 = vpack.c.b16 %v7289, %v7286
        %v7842 = vpack.c.b16 %v7290, %v7287
        %v7843 = vpack.c.b16 %v7291, %v7288
        %v7844 = vpack.c.b16 %v7295, %v7292
        %v7845 = vpack.c.b16 %v7296, %v7293
        %v7846 = vpack.c.b16 %v7297, %v7294
        %v7847 = vpack.c.b16 %v7301, %v7298
        %v7848 = vpack.c.b16 %v7302, %v7299
        %v7849 = vpack.c.b16 %v7303, %v7300
        %v7850 = vpack.c.b16 %v7307, %v7304
        %v7851 = vpack.c.b16 %v7308, %v7305
        %v7852 = vpack.c.b16 %v7309, %v7306
        %v7853 = vpack.c.b16 %v7313, %v7310
        %v7854 = vpack.c.b16 %v7314, %v7311
        %v7855 = vpack.c.b16 %v7315, %v7312
        %v7856 = vpack.c.b16 %v7319, %v7316
        %v7857 = vpack.c.b16 %v7320, %v7317
        %v7858 = vpack.c.b16 %v7321, %v7318
        %v7859 = vpack.c.b16 %v7325, %v7322
        %v7860 = vpack.c.b16 %v7326, %v7323
        %v7861 = vpack.c.b16 %v7327, %v7324
        %v7862 = vpack.c.b16 %v7331, %v7328
        %v7863 = vpack.c.b16 %v7332, %v7329
        %v7864 = vpack.c.b16 %v7333, %v7330
        %v7865 = vpack.c.b16 %v7337, %v7334
        %v7866 = vpack.c.b16 %v7338, %v7335
        %v7867 = vpack.c.b16 %v7339, %v7336
        %v7868 = vpack.c.b16 %v7343, %v7340
        %v7869 = vpack.c.b16 %v7344, %v7341
        %v7870 = vpack.c.b16 %v7345, %v7342
        %v7871 = vpack.c.b16 %v7349, %v7346
        %v7872 = vpack.c.b16 %v7350, %v7347
        %v7873 = vpack.c.b16 %v7351, %v7348
        %v7874 = vpack.c.b16 %v7355, %v7352
        %v7875 = vpack.c.b16 %v7356, %v7353
        %v7876 = vpack.c.b16 %v7357, %v7354
        %v7877 = vpack.c.b16 %v7361, %v7358
        %v7878 = vpack.c.b16 %v7362, %v7359
        %v7879 = vpack.c.b16 %v7363, %v7360
        %v7880 = vpack.c.b16 %v7367, %v7364
        %v7881 = vpack.c.b16 %v7368, %v7365
        %v7882 = vpack.c.b16 %v7369, %v7366
        %v7883 = vpack.c.b16 %v7373, %v7370
        %v7884 = vpack.c.b16 %v7374, %v7371
        %v7885 = vpack.c.b16 %v7375, %v7372
        %v7886 = vpack.c.b16 %v7379, %v7376
        %v7887 = vpack.c.b16 %v7380, %v7377
        %v7888 = vpack.c.b16 %v7381, %v7378
        %v7889 = vpack.c.b16 %v7385, %v7382
        %v7890 = vpack.c.b16 %v7386, %v7383
        %v7891 = vpack.c.b16 %v7387, %v7384
        %v7892 = vpack.c.b16 %v7391, %v7388
        %v7893 = vpack.c.b16 %v7392, %v7389
        %v7894 = vpack.c.b16 %v7393, %v7390
        %v7895 = vpack.c.b16 %v7397, %v7394
        %v7896 = vpack.c.b16 %v7398, %v7395
        %v7897 = vpack.c.b16 %v7399, %v7396
        %v7898 = vpack.c.b16 %v7403, %v7400
        %v7899 = vpack.c.b16 %v7404, %v7401
        %v7900 = vpack.c.b16 %v7405, %v7402
        %v7901 = vpack.c.b16 %v7409, %v7406
        %v7902 = vpack.c.b16 %v7410, %v7407
        %v7903 = vpack.c.b16 %v7411, %v7408
        %v7904 = vpack.c.b16 %v7415, %v7412
        %v7905 = vpack.c.b16 %v7416, %v7413
        %v7906 = vpack.c.b16 %v7417, %v7414
        %v7907 = vpack.c.b16 %v7421, %v7418
        %v7908 = vpack.c.b16 %v7422, %v7419
        %v7909 = vpack.c.b16 %v7423, %v7420
        %v7910 = vpack.c.b16 %v7427, %v7424
        %v7911 = vpack.c.b16 %v7428, %v7425
        %v7912 = vpack.c.b16 %v7429, %v7426
        %v7913 = vpack.c.b16 %v7433, %v7430
        %v7914 = vpack.c.b16 %v7434, %v7431
        %v7915 = vpack.c.b16 %v7435, %v7432
        %8396 = vmatpush.bf16.msra.mxu0 %v7457
        %8397 = vmatpush.bf16.msra.mxu0 %v7454
        %8398 = vmatpush.bf16.msra.mxu0 %v7451
        %8399 = vmatpush.bf16.msra.mxu0 %v7448
        %8400 = vmatpush.bf16.msra.mxu0 %v7445
        %8401 = vmatpush.bf16.msra.mxu0 %v7442
        %8402 = vmatpush.bf16.msra.mxu0 %v7439
        %8403 = vmatpush.bf16.msra.mxu0 %v7436
        %8404 = vmatmul.bf16.gmra.mxu0 %v5176
        %v8405 = vpop.f32.mrf.mxu0
        %v8406 = vadd.f32 0.0, %v8405
        %v8407 = vpop.f32.mrf.mxu0
        %v8408 = vadd.f32 0.0, %v8407
        %8409 = vdwg.mxu0
        %8410 = vmatpush.bf16.msra.mxu0 %v7481
        %8411 = vmatpush.bf16.msra.mxu0 %v7478
        %8412 = vmatpush.bf16.msra.mxu0 %v7475
        %8413 = vmatpush.bf16.msra.mxu0 %v7472
        %8414 = vmatpush.bf16.msra.mxu0 %v7469
        %8415 = vmatpush.bf16.msra.mxu0 %v7466
        %8416 = vmatpush.bf16.msra.mxu0 %v7463
        %8417 = vmatpush.bf16.msra.mxu0 %v7460
        %8418 = vmatmul.bf16.gmra.mxu0 %v5177
        %v8419 = vpop.f32.mrf.mxu0
        %v8420 = vadd.f32 %v8406, %v8419
        %v8421 = vpop.f32.mrf.mxu0
        %v8422 = vadd.f32 %v8408, %v8421
        %8423 = vdwg.mxu0
        %8424 = vmatpush.bf16.msra.mxu0 %v7505
        %8425 = vmatpush.bf16.msra.mxu0 %v7502
        %8426 = vmatpush.bf16.msra.mxu0 %v7499
        %8427 = vmatpush.bf16.msra.mxu0 %v7496
        %8428 = vmatpush.bf16.msra.mxu0 %v7493
        %8429 = vmatpush.bf16.msra.mxu0 %v7490
        %8430 = vmatpush.bf16.msra.mxu0 %v7487
        %8431 = vmatpush.bf16.msra.mxu0 %v7484
        %8432 = vmatmul.bf16.gmra.mxu0 %v5178
        %v8433 = vpop.f32.mrf.mxu0
        %v8434 = vadd.f32 %v8420, %v8433
        %v8435 = vpop.f32.mrf.mxu0
        %v8436 = vadd.f32 %v8422, %v8435
        %8437 = vdwg.mxu0
        %8438 = vmatpush.bf16.msra.mxu0 %v7529
        %8439 = vmatpush.bf16.msra.mxu0 %v7526
        %8440 = vmatpush.bf16.msra.mxu0 %v7523
        %8441 = vmatpush.bf16.msra.mxu0 %v7520
        %8442 = vmatpush.bf16.msra.mxu0 %v7517
        %8443 = vmatpush.bf16.msra.mxu0 %v7514
        %8444 = vmatpush.bf16.msra.mxu0 %v7511
        %8445 = vmatpush.bf16.msra.mxu0 %v7508
        %8446 = vmatmul.bf16.gmra.mxu0 %v5179
        %v8447 = vpop.f32.mrf.mxu0
        %v8448 = vadd.f32 %v8434, %v8447
        %v8449 = vpop.f32.mrf.mxu0
        %v8450 = vadd.f32 %v8436, %v8449
        %8451 = vdwg.mxu0
        %8452 = vmatpush.bf16.msra.mxu0 %v7553
        %8453 = vmatpush.bf16.msra.mxu0 %v7550
        %8454 = vmatpush.bf16.msra.mxu0 %v7547
        %8455 = vmatpush.bf16.msra.mxu0 %v7544
        %8456 = vmatpush.bf16.msra.mxu0 %v7541
        %8457 = vmatpush.bf16.msra.mxu0 %v7538
        %8458 = vmatpush.bf16.msra.mxu0 %v7535
        %8459 = vmatpush.bf16.msra.mxu0 %v7532
        %8460 = vmatmul.bf16.gmra.mxu0 %v5180
        %v8461 = vpop.f32.mrf.mxu0
        %v8462 = vadd.f32 %v8448, %v8461
        %v8463 = vpop.f32.mrf.mxu0
        %v8464 = vadd.f32 %v8450, %v8463
        %8465 = vdwg.mxu0
        %8466 = vmatpush.bf16.msra.mxu0 %v7577
        %8467 = vmatpush.bf16.msra.mxu0 %v7574
        %8468 = vmatpush.bf16.msra.mxu0 %v7571
        %8469 = vmatpush.bf16.msra.mxu0 %v7568
        %8470 = vmatpush.bf16.msra.mxu0 %v7565
        %8471 = vmatpush.bf16.msra.mxu0 %v7562
        %8472 = vmatpush.bf16.msra.mxu0 %v7559
        %8473 = vmatpush.bf16.msra.mxu0 %v7556
        %8474 = vmatmul.bf16.gmra.mxu0 %v5181
        %v8475 = vpop.f32.mrf.mxu0
        %v8476 = vadd.f32 %v8462, %v8475
        %v8477 = vpop.f32.mrf.mxu0
        %v8478 = vadd.f32 %v8464, %v8477
        %8479 = vdwg.mxu0
        %8480 = vmatpush.bf16.msra.mxu0 %v7601
        %8481 = vmatpush.bf16.msra.mxu0 %v7598
        %8482 = vmatpush.bf16.msra.mxu0 %v7595
        %8483 = vmatpush.bf16.msra.mxu0 %v7592
        %8484 = vmatpush.bf16.msra.mxu0 %v7589
        %8485 = vmatpush.bf16.msra.mxu0 %v7586
        %8486 = vmatpush.bf16.msra.mxu0 %v7583
        %8487 = vmatpush.bf16.msra.mxu0 %v7580
        %8488 = vmatmul.bf16.gmra.mxu0 %v5182
        %v8489 = vpop.f32.mrf.mxu0
        %v8490 = vadd.f32 %v8476, %v8489
        %v8491 = vpop.f32.mrf.mxu0
        %v8492 = vadd.f32 %v8478, %v8491
        %8493 = vdwg.mxu0
        %8494 = vmatpush.bf16.msra.mxu0 %v7625
        %8495 = vmatpush.bf16.msra.mxu0 %v7622
        %8496 = vmatpush.bf16.msra.mxu0 %v7619
        %8497 = vmatpush.bf16.msra.mxu0 %v7616
        %8498 = vmatpush.bf16.msra.mxu0 %v7613
        %8499 = vmatpush.bf16.msra.mxu0 %v7610
        %8500 = vmatpush.bf16.msra.mxu0 %v7607
        %8501 = vmatpush.bf16.msra.mxu0 %v7604
        %8502 = vmatmul.bf16.gmra.mxu0 %v5183
        %v8503 = vpop.f32.mrf.mxu0
        %v8504 = vadd.f32 %v8490, %v8503
        %v8505 = vpop.f32.mrf.mxu0
        %v8506 = vadd.f32 %v8492, %v8505
        %8507 = vdwg.mxu0
        %8508 = vmatpush.bf16.msra.mxu0 %v7649
        %8509 = vmatpush.bf16.msra.mxu0 %v7646
        %8510 = vmatpush.bf16.msra.mxu0 %v7643
        %8511 = vmatpush.bf16.msra.mxu0 %v7640
        %8512 = vmatpush.bf16.msra.mxu0 %v7637
        %8513 = vmatpush.bf16.msra.mxu0 %v7634
        %8514 = vmatpush.bf16.msra.mxu0 %v7631
        %8515 = vmatpush.bf16.msra.mxu0 %v7628
        %8516 = vmatmul.bf16.gmra.mxu0 %v5184
        %v8517 = vpop.f32.mrf.mxu0
        %v8518 = vadd.f32 %v8504, %v8517
        %v8519 = vpop.f32.mrf.mxu0
        %v8520 = vadd.f32 %v8506, %v8519
        %8521 = vdwg.mxu0
        %8522 = vmatpush.bf16.msra.mxu0 %v7673
        %8523 = vmatpush.bf16.msra.mxu0 %v7670
        %8524 = vmatpush.bf16.msra.mxu0 %v7667
        %8525 = vmatpush.bf16.msra.mxu0 %v7664
        %8526 = vmatpush.bf16.msra.mxu0 %v7661
        %8527 = vmatpush.bf16.msra.mxu0 %v7658
        %8528 = vmatpush.bf16.msra.mxu0 %v7655
        %8529 = vmatpush.bf16.msra.mxu0 %v7652
        %8530 = vmatmul.bf16.gmra.mxu0 %v5185
        %v8531 = vpop.f32.mrf.mxu0
        %v8532 = vadd.f32 %v8518, %v8531
        %v8533 = vpop.f32.mrf.mxu0
        %v8534 = vadd.f32 %v8520, %v8533
        %8535 = vdwg.mxu0
        %8536 = vmatpush.bf16.msra.mxu0 %v7697
        %8537 = vmatpush.bf16.msra.mxu0 %v7694
        %8538 = vmatpush.bf16.msra.mxu0 %v7691
        %8539 = vmatpush.bf16.msra.mxu0 %v7688
        %8540 = vmatpush.bf16.msra.mxu0 %v7685
        %8541 = vmatpush.bf16.msra.mxu0 %v7682
        %8542 = vmatpush.bf16.msra.mxu0 %v7679
        %8543 = vmatpush.bf16.msra.mxu0 %v7676
        %8544 = vmatmul.bf16.gmra.mxu0 %v5186
        %v8545 = vpop.f32.mrf.mxu0
        %v8546 = vadd.f32 %v8532, %v8545
        %v8547 = vpop.f32.mrf.mxu0
        %v8548 = vadd.f32 %v8534, %v8547
        %8549 = vdwg.mxu0
        %8550 = vmatpush.bf16.msra.mxu0 %v7721
        %8551 = vmatpush.bf16.msra.mxu0 %v7718
        %8552 = vmatpush.bf16.msra.mxu0 %v7715
        %8553 = vmatpush.bf16.msra.mxu0 %v7712
        %8554 = vmatpush.bf16.msra.mxu0 %v7709
        %8555 = vmatpush.bf16.msra.mxu0 %v7706
        %8556 = vmatpush.bf16.msra.mxu0 %v7703
        %8557 = vmatpush.bf16.msra.mxu0 %v7700
        %8558 = vmatmul.bf16.gmra.mxu0 %v5187
        %v8559 = vpop.f32.mrf.mxu0
        %v8560 = vadd.f32 %v8546, %v8559
        %v8561 = vpop.f32.mrf.mxu0
        %v8562 = vadd.f32 %v8548, %v8561
        %8563 = vdwg.mxu0
        %8564 = vmatpush.bf16.msra.mxu0 %v7745
        %8565 = vmatpush.bf16.msra.mxu0 %v7742
        %8566 = vmatpush.bf16.msra.mxu0 %v7739
        %8567 = vmatpush.bf16.msra.mxu0 %v7736
        %8568 = vmatpush.bf16.msra.mxu0 %v7733
        %8569 = vmatpush.bf16.msra.mxu0 %v7730
        %8570 = vmatpush.bf16.msra.mxu0 %v7727
        %8571 = vmatpush.bf16.msra.mxu0 %v7724
        %8572 = vmatmul.bf16.gmra.mxu0 %v5188
        %v8573 = vpop.f32.mrf.mxu0
        %v8574 = vadd.f32 %v8560, %v8573
        %v8575 = vpop.f32.mrf.mxu0
        %v8576 = vadd.f32 %v8562, %v8575
        %8577 = vdwg.mxu0
        %8578 = vmatpush.bf16.msra.mxu0 %v7769
        %8579 = vmatpush.bf16.msra.mxu0 %v7766
        %8580 = vmatpush.bf16.msra.mxu0 %v7763
        %8581 = vmatpush.bf16.msra.mxu0 %v7760
        %8582 = vmatpush.bf16.msra.mxu0 %v7757
        %8583 = vmatpush.bf16.msra.mxu0 %v7754
        %8584 = vmatpush.bf16.msra.mxu0 %v7751
        %8585 = vmatpush.bf16.msra.mxu0 %v7748
        %8586 = vmatmul.bf16.gmra.mxu0 %v5189
        %v8587 = vpop.f32.mrf.mxu0
        %v8588 = vadd.f32 %v8574, %v8587
        %v8589 = vpop.f32.mrf.mxu0
        %v8590 = vadd.f32 %v8576, %v8589
        %8591 = vdwg.mxu0
        %8592 = vmatpush.bf16.msra.mxu0 %v7793
        %8593 = vmatpush.bf16.msra.mxu0 %v7790
        %8594 = vmatpush.bf16.msra.mxu0 %v7787
        %8595 = vmatpush.bf16.msra.mxu0 %v7784
        %8596 = vmatpush.bf16.msra.mxu0 %v7781
        %8597 = vmatpush.bf16.msra.mxu0 %v7778
        %8598 = vmatpush.bf16.msra.mxu0 %v7775
        %8599 = vmatpush.bf16.msra.mxu0 %v7772
        %8600 = vmatmul.bf16.gmra.mxu0 %v5190
        %v8601 = vpop.f32.mrf.mxu0
        %v8602 = vadd.f32 %v8588, %v8601
        %v8603 = vpop.f32.mrf.mxu0
        %v8604 = vadd.f32 %v8590, %v8603
        %8605 = vdwg.mxu0
        %8606 = vmatpush.bf16.msra.mxu0 %v7817
        %8607 = vmatpush.bf16.msra.mxu0 %v7814
        %8608 = vmatpush.bf16.msra.mxu0 %v7811
        %8609 = vmatpush.bf16.msra.mxu0 %v7808
        %8610 = vmatpush.bf16.msra.mxu0 %v7805
        %8611 = vmatpush.bf16.msra.mxu0 %v7802
        %8612 = vmatpush.bf16.msra.mxu0 %v7799
        %8613 = vmatpush.bf16.msra.mxu0 %v7796
        %8614 = vmatmul.bf16.gmra.mxu0 %v5191
        %v8615 = vpop.f32.mrf.mxu0
        %v8616 = vadd.f32 %v8602, %v8615
        %v8617 = vpop.f32.mrf.mxu0
        %v8618 = vadd.f32 %v8604, %v8617
        %8619 = vdwg.mxu0
        %8620 = vmatpush.bf16.msra.mxu0 %v7841
        %8621 = vmatpush.bf16.msra.mxu0 %v7838
        %8622 = vmatpush.bf16.msra.mxu0 %v7835
        %8623 = vmatpush.bf16.msra.mxu0 %v7832
        %8624 = vmatpush.bf16.msra.mxu0 %v7829
        %8625 = vmatpush.bf16.msra.mxu0 %v7826
        %8626 = vmatpush.bf16.msra.mxu0 %v7823
        %8627 = vmatpush.bf16.msra.mxu0 %v7820
        %8628 = vmatmul.bf16.gmra.mxu0 %v5192
        %v8629 = vpop.f32.mrf.mxu0
        %v8630 = vadd.f32 %v8616, %v8629
        %v8631 = vpop.f32.mrf.mxu0
        %v8632 = vadd.f32 %v8618, %v8631
        %8633 = vdwg.mxu0
        %8634 = vmatpush.bf16.msra.mxu0 %v7865
        %8635 = vmatpush.bf16.msra.mxu0 %v7862
        %8636 = vmatpush.bf16.msra.mxu0 %v7859
        %8637 = vmatpush.bf16.msra.mxu0 %v7856
        %8638 = vmatpush.bf16.msra.mxu0 %v7853
        %8639 = vmatpush.bf16.msra.mxu0 %v7850
        %8640 = vmatpush.bf16.msra.mxu0 %v7847
        %8641 = vmatpush.bf16.msra.mxu0 %v7844
        %8642 = vmatmul.bf16.gmra.mxu0 %v5193
        %v8643 = vpop.f32.mrf.mxu0
        %v8644 = vadd.f32 %v8630, %v8643
        %v8645 = vpop.f32.mrf.mxu0
        %v8646 = vadd.f32 %v8632, %v8645
        %8647 = vdwg.mxu0
        %8648 = vmatpush.bf16.msra.mxu0 %v7889
        %8649 = vmatpush.bf16.msra.mxu0 %v7886
        %8650 = vmatpush.bf16.msra.mxu0 %v7883
        %8651 = vmatpush.bf16.msra.mxu0 %v7880
        %8652 = vmatpush.bf16.msra.mxu0 %v7877
        %8653 = vmatpush.bf16.msra.mxu0 %v7874
        %8654 = vmatpush.bf16.msra.mxu0 %v7871
        %8655 = vmatpush.bf16.msra.mxu0 %v7868
        %8656 = vmatmul.bf16.gmra.mxu0 %v5194
        %v8657 = vpop.f32.mrf.mxu0
        %v8658 = vadd.f32 %v8644, %v8657
        %v8659 = vpop.f32.mrf.mxu0
        %v8660 = vadd.f32 %v8646, %v8659
        %8661 = vdwg.mxu0
        %8662 = vmatpush.bf16.msra.mxu0 %v7913
        %8663 = vmatpush.bf16.msra.mxu0 %v7910
        %8664 = vmatpush.bf16.msra.mxu0 %v7907
        %8665 = vmatpush.bf16.msra.mxu0 %v7904
        %8666 = vmatpush.bf16.msra.mxu0 %v7901
        %8667 = vmatpush.bf16.msra.mxu0 %v7898
        %8668 = vmatpush.bf16.msra.mxu0 %v7895
        %8669 = vmatpush.bf16.msra.mxu0 %v7892
        %8670 = vmatmul.bf16.gmra.mxu0 %v5195
        %v8671 = vpop.f32.mrf.mxu0
        %v8672 = vadd.f32 %v8658, %v8671
        %v8673 = vpop.f32.mrf.mxu0
        %v8674 = vadd.f32 %v8660, %v8673
        %8675 = vdwg.mxu0
        %8676 = vmatpush.bf16.msra.mxu0 %v7458
        %8677 = vmatpush.bf16.msra.mxu0 %v7455
        %8678 = vmatpush.bf16.msra.mxu0 %v7452
        %8679 = vmatpush.bf16.msra.mxu0 %v7449
        %8680 = vmatpush.bf16.msra.mxu0 %v7446
        %8681 = vmatpush.bf16.msra.mxu0 %v7443
        %8682 = vmatpush.bf16.msra.mxu0 %v7440
        %8683 = vmatpush.bf16.msra.mxu0 %v7437
        %8684 = vmatmul.bf16.gmra.mxu0 %v5176
        %v8685 = vpop.f32.mrf.mxu0
        %v8686 = vadd.f32 0.0, %v8685
        %v8687 = vpop.f32.mrf.mxu0
        %v8688 = vadd.f32 0.0, %v8687
        %8689 = vdwg.mxu0
        %8690 = vmatpush.bf16.msra.mxu0 %v7482
        %8691 = vmatpush.bf16.msra.mxu0 %v7479
        %8692 = vmatpush.bf16.msra.mxu0 %v7476
        %8693 = vmatpush.bf16.msra.mxu0 %v7473
        %8694 = vmatpush.bf16.msra.mxu0 %v7470
        %8695 = vmatpush.bf16.msra.mxu0 %v7467
        %8696 = vmatpush.bf16.msra.mxu0 %v7464
        %8697 = vmatpush.bf16.msra.mxu0 %v7461
        %8698 = vmatmul.bf16.gmra.mxu0 %v5177
        %v8699 = vpop.f32.mrf.mxu0
        %v8700 = vadd.f32 %v8686, %v8699
        %v8701 = vpop.f32.mrf.mxu0
        %v8702 = vadd.f32 %v8688, %v8701
        %8703 = vdwg.mxu0
        %8704 = vmatpush.bf16.msra.mxu0 %v7506
        %8705 = vmatpush.bf16.msra.mxu0 %v7503
        %8706 = vmatpush.bf16.msra.mxu0 %v7500
        %8707 = vmatpush.bf16.msra.mxu0 %v7497
        %8708 = vmatpush.bf16.msra.mxu0 %v7494
        %8709 = vmatpush.bf16.msra.mxu0 %v7491
        %8710 = vmatpush.bf16.msra.mxu0 %v7488
        %8711 = vmatpush.bf16.msra.mxu0 %v7485
        %8712 = vmatmul.bf16.gmra.mxu0 %v5178
        %v8713 = vpop.f32.mrf.mxu0
        %v8714 = vadd.f32 %v8700, %v8713
        %v8715 = vpop.f32.mrf.mxu0
        %v8716 = vadd.f32 %v8702, %v8715
        %8717 = vdwg.mxu0
        %8718 = vmatpush.bf16.msra.mxu0 %v7530
        %8719 = vmatpush.bf16.msra.mxu0 %v7527
        %8720 = vmatpush.bf16.msra.mxu0 %v7524
        %8721 = vmatpush.bf16.msra.mxu0 %v7521
        %8722 = vmatpush.bf16.msra.mxu0 %v7518
        %8723 = vmatpush.bf16.msra.mxu0 %v7515
        %8724 = vmatpush.bf16.msra.mxu0 %v7512
        %8725 = vmatpush.bf16.msra.mxu0 %v7509
        %8726 = vmatmul.bf16.gmra.mxu0 %v5179
        %v8727 = vpop.f32.mrf.mxu0
        %v8728 = vadd.f32 %v8714, %v8727
        %v8729 = vpop.f32.mrf.mxu0
        %v8730 = vadd.f32 %v8716, %v8729
        %8731 = vdwg.mxu0
        %8732 = vmatpush.bf16.msra.mxu0 %v7554
        %8733 = vmatpush.bf16.msra.mxu0 %v7551
        %8734 = vmatpush.bf16.msra.mxu0 %v7548
        %8735 = vmatpush.bf16.msra.mxu0 %v7545
        %8736 = vmatpush.bf16.msra.mxu0 %v7542
        %8737 = vmatpush.bf16.msra.mxu0 %v7539
        %8738 = vmatpush.bf16.msra.mxu0 %v7536
        %8739 = vmatpush.bf16.msra.mxu0 %v7533
        %8740 = vmatmul.bf16.gmra.mxu0 %v5180
        %v8741 = vpop.f32.mrf.mxu0
        %v8742 = vadd.f32 %v8728, %v8741
        %v8743 = vpop.f32.mrf.mxu0
        %v8744 = vadd.f32 %v8730, %v8743
        %8745 = vdwg.mxu0
        %8746 = vmatpush.bf16.msra.mxu0 %v7578
        %8747 = vmatpush.bf16.msra.mxu0 %v7575
        %8748 = vmatpush.bf16.msra.mxu0 %v7572
        %8749 = vmatpush.bf16.msra.mxu0 %v7569
        %8750 = vmatpush.bf16.msra.mxu0 %v7566
        %8751 = vmatpush.bf16.msra.mxu0 %v7563
        %8752 = vmatpush.bf16.msra.mxu0 %v7560
        %8753 = vmatpush.bf16.msra.mxu0 %v7557
        %8754 = vmatmul.bf16.gmra.mxu0 %v5181
        %v8755 = vpop.f32.mrf.mxu0
        %v8756 = vadd.f32 %v8742, %v8755
        %v8757 = vpop.f32.mrf.mxu0
        %v8758 = vadd.f32 %v8744, %v8757
        %8759 = vdwg.mxu0
        %8760 = vmatpush.bf16.msra.mxu0 %v7602
        %8761 = vmatpush.bf16.msra.mxu0 %v7599
        %8762 = vmatpush.bf16.msra.mxu0 %v7596
        %8763 = vmatpush.bf16.msra.mxu0 %v7593
        %8764 = vmatpush.bf16.msra.mxu0 %v7590
        %8765 = vmatpush.bf16.msra.mxu0 %v7587
        %8766 = vmatpush.bf16.msra.mxu0 %v7584
        %8767 = vmatpush.bf16.msra.mxu0 %v7581
        %8768 = vmatmul.bf16.gmra.mxu0 %v5182
        %v8769 = vpop.f32.mrf.mxu0
        %v8770 = vadd.f32 %v8756, %v8769
        %v8771 = vpop.f32.mrf.mxu0
        %v8772 = vadd.f32 %v8758, %v8771
        %8773 = vdwg.mxu0
        %8774 = vmatpush.bf16.msra.mxu0 %v7626
        %8775 = vmatpush.bf16.msra.mxu0 %v7623
        %8776 = vmatpush.bf16.msra.mxu0 %v7620
        %8777 = vmatpush.bf16.msra.mxu0 %v7617
        %8778 = vmatpush.bf16.msra.mxu0 %v7614
        %8779 = vmatpush.bf16.msra.mxu0 %v7611
        %8780 = vmatpush.bf16.msra.mxu0 %v7608
        %8781 = vmatpush.bf16.msra.mxu0 %v7605
        %8782 = vmatmul.bf16.gmra.mxu0 %v5183
        %v8783 = vpop.f32.mrf.mxu0
        %v8784 = vadd.f32 %v8770, %v8783
        %v8785 = vpop.f32.mrf.mxu0
        %v8786 = vadd.f32 %v8772, %v8785
        %8787 = vdwg.mxu0
        %8788 = vmatpush.bf16.msra.mxu0 %v7650
        %8789 = vmatpush.bf16.msra.mxu0 %v7647
        %8790 = vmatpush.bf16.msra.mxu0 %v7644
        %8791 = vmatpush.bf16.msra.mxu0 %v7641
        %8792 = vmatpush.bf16.msra.mxu0 %v7638
        %8793 = vmatpush.bf16.msra.mxu0 %v7635
        %8794 = vmatpush.bf16.msra.mxu0 %v7632
        %8795 = vmatpush.bf16.msra.mxu0 %v7629
        %8796 = vmatmul.bf16.gmra.mxu0 %v5184
        %v8797 = vpop.f32.mrf.mxu0
        %v8798 = vadd.f32 %v8784, %v8797
        %v8799 = vpop.f32.mrf.mxu0
        %v8800 = vadd.f32 %v8786, %v8799
        %8801 = vdwg.mxu0
        %8802 = vmatpush.bf16.msra.mxu0 %v7674
        %8803 = vmatpush.bf16.msra.mxu0 %v7671
        %8804 = vmatpush.bf16.msra.mxu0 %v7668
        %8805 = vmatpush.bf16.msra.mxu0 %v7665
        %8806 = vmatpush.bf16.msra.mxu0 %v7662
        %8807 = vmatpush.bf16.msra.mxu0 %v7659
        %8808 = vmatpush.bf16.msra.mxu0 %v7656
        %8809 = vmatpush.bf16.msra.mxu0 %v7653
        %8810 = vmatmul.bf16.gmra.mxu0 %v5185
        %v8811 = vpop.f32.mrf.mxu0
        %v8812 = vadd.f32 %v8798, %v8811
        %v8813 = vpop.f32.mrf.mxu0
        %v8814 = vadd.f32 %v8800, %v8813
        %8815 = vdwg.mxu0
        %8816 = vmatpush.bf16.msra.mxu0 %v7698
        %8817 = vmatpush.bf16.msra.mxu0 %v7695
        %8818 = vmatpush.bf16.msra.mxu0 %v7692
        %8819 = vmatpush.bf16.msra.mxu0 %v7689
        %8820 = vmatpush.bf16.msra.mxu0 %v7686
        %8821 = vmatpush.bf16.msra.mxu0 %v7683
        %8822 = vmatpush.bf16.msra.mxu0 %v7680
        %8823 = vmatpush.bf16.msra.mxu0 %v7677
        %8824 = vmatmul.bf16.gmra.mxu0 %v5186
        %v8825 = vpop.f32.mrf.mxu0
        %v8826 = vadd.f32 %v8812, %v8825
        %v8827 = vpop.f32.mrf.mxu0
        %v8828 = vadd.f32 %v8814, %v8827
        %8829 = vdwg.mxu0
        %8830 = vmatpush.bf16.msra.mxu0 %v7722
        %8831 = vmatpush.bf16.msra.mxu0 %v7719
        %8832 = vmatpush.bf16.msra.mxu0 %v7716
        %8833 = vmatpush.bf16.msra.mxu0 %v7713
        %8834 = vmatpush.bf16.msra.mxu0 %v7710
        %8835 = vmatpush.bf16.msra.mxu0 %v7707
        %8836 = vmatpush.bf16.msra.mxu0 %v7704
        %8837 = vmatpush.bf16.msra.mxu0 %v7701
        %8838 = vmatmul.bf16.gmra.mxu0 %v5187
        %v8839 = vpop.f32.mrf.mxu0
        %v8840 = vadd.f32 %v8826, %v8839
        %v8841 = vpop.f32.mrf.mxu0
        %v8842 = vadd.f32 %v8828, %v8841
        %8843 = vdwg.mxu0
        %8844 = vmatpush.bf16.msra.mxu0 %v7746
        %8845 = vmatpush.bf16.msra.mxu0 %v7743
        %8846 = vmatpush.bf16.msra.mxu0 %v7740
        %8847 = vmatpush.bf16.msra.mxu0 %v7737
        %8848 = vmatpush.bf16.msra.mxu0 %v7734
        %8849 = vmatpush.bf16.msra.mxu0 %v7731
        %8850 = vmatpush.bf16.msra.mxu0 %v7728
        %8851 = vmatpush.bf16.msra.mxu0 %v7725
        %8852 = vmatmul.bf16.gmra.mxu0 %v5188
        %v8853 = vpop.f32.mrf.mxu0
        %v8854 = vadd.f32 %v8840, %v8853
        %v8855 = vpop.f32.mrf.mxu0
        %v8856 = vadd.f32 %v8842, %v8855
        %8857 = vdwg.mxu0
        %8858 = vmatpush.bf16.msra.mxu0 %v7770
        %8859 = vmatpush.bf16.msra.mxu0 %v7767
        %8860 = vmatpush.bf16.msra.mxu0 %v7764
        %8861 = vmatpush.bf16.msra.mxu0 %v7761
        %8862 = vmatpush.bf16.msra.mxu0 %v7758
        %8863 = vmatpush.bf16.msra.mxu0 %v7755
        %8864 = vmatpush.bf16.msra.mxu0 %v7752
        %8865 = vmatpush.bf16.msra.mxu0 %v7749
        %8866 = vmatmul.bf16.gmra.mxu0 %v5189
        %v8867 = vpop.f32.mrf.mxu0
        %v8868 = vadd.f32 %v8854, %v8867
        %v8869 = vpop.f32.mrf.mxu0
        %v8870 = vadd.f32 %v8856, %v8869
        %8871 = vdwg.mxu0
        %8872 = vmatpush.bf16.msra.mxu0 %v7794
        %8873 = vmatpush.bf16.msra.mxu0 %v7791
        %8874 = vmatpush.bf16.msra.mxu0 %v7788
        %8875 = vmatpush.bf16.msra.mxu0 %v7785
        %8876 = vmatpush.bf16.msra.mxu0 %v7782
        %8877 = vmatpush.bf16.msra.mxu0 %v7779
        %8878 = vmatpush.bf16.msra.mxu0 %v7776
        %8879 = vmatpush.bf16.msra.mxu0 %v7773
        %8880 = vmatmul.bf16.gmra.mxu0 %v5190
        %v8881 = vpop.f32.mrf.mxu0
        %v8882 = vadd.f32 %v8868, %v8881
        %v8883 = vpop.f32.mrf.mxu0
        %v8884 = vadd.f32 %v8870, %v8883
        %8885 = vdwg.mxu0
        %8886 = vmatpush.bf16.msra.mxu0 %v7818
        %8887 = vmatpush.bf16.msra.mxu0 %v7815
        %8888 = vmatpush.bf16.msra.mxu0 %v7812
        %8889 = vmatpush.bf16.msra.mxu0 %v7809
        %8890 = vmatpush.bf16.msra.mxu0 %v7806
        %8891 = vmatpush.bf16.msra.mxu0 %v7803
        %8892 = vmatpush.bf16.msra.mxu0 %v7800
        %8893 = vmatpush.bf16.msra.mxu0 %v7797
        %8894 = vmatmul.bf16.gmra.mxu0 %v5191
        %v8895 = vpop.f32.mrf.mxu0
        %v8896 = vadd.f32 %v8882, %v8895
        %v8897 = vpop.f32.mrf.mxu0
        %v8898 = vadd.f32 %v8884, %v8897
        %8899 = vdwg.mxu0
        %8900 = vmatpush.bf16.msra.mxu0 %v7842
        %8901 = vmatpush.bf16.msra.mxu0 %v7839
        %8902 = vmatpush.bf16.msra.mxu0 %v7836
        %8903 = vmatpush.bf16.msra.mxu0 %v7833
        %8904 = vmatpush.bf16.msra.mxu0 %v7830
        %8905 = vmatpush.bf16.msra.mxu0 %v7827
        %8906 = vmatpush.bf16.msra.mxu0 %v7824
        %8907 = vmatpush.bf16.msra.mxu0 %v7821
        %8908 = vmatmul.bf16.gmra.mxu0 %v5192
        %v8909 = vpop.f32.mrf.mxu0
        %v8910 = vadd.f32 %v8896, %v8909
        %v8911 = vpop.f32.mrf.mxu0
        %v8912 = vadd.f32 %v8898, %v8911
        %8913 = vdwg.mxu0
        %8914 = vmatpush.bf16.msra.mxu0 %v7866
        %8915 = vmatpush.bf16.msra.mxu0 %v7863
        %8916 = vmatpush.bf16.msra.mxu0 %v7860
        %8917 = vmatpush.bf16.msra.mxu0 %v7857
        %8918 = vmatpush.bf16.msra.mxu0 %v7854
        %8919 = vmatpush.bf16.msra.mxu0 %v7851
        %8920 = vmatpush.bf16.msra.mxu0 %v7848
        %8921 = vmatpush.bf16.msra.mxu0 %v7845
        %8922 = vmatmul.bf16.gmra.mxu0 %v5193
        %v8923 = vpop.f32.mrf.mxu0
        %v8924 = vadd.f32 %v8910, %v8923
        %v8925 = vpop.f32.mrf.mxu0
        %v8926 = vadd.f32 %v8912, %v8925
        %8927 = vdwg.mxu0
        %8928 = vmatpush.bf16.msra.mxu0 %v7890
        %8929 = vmatpush.bf16.msra.mxu0 %v7887
        %8930 = vmatpush.bf16.msra.mxu0 %v7884
        %8931 = vmatpush.bf16.msra.mxu0 %v7881
        %8932 = vmatpush.bf16.msra.mxu0 %v7878
        %8933 = vmatpush.bf16.msra.mxu0 %v7875
        %8934 = vmatpush.bf16.msra.mxu0 %v7872
        %8935 = vmatpush.bf16.msra.mxu0 %v7869
        %8936 = vmatmul.bf16.gmra.mxu0 %v5194
        %v8937 = vpop.f32.mrf.mxu0
        %v8938 = vadd.f32 %v8924, %v8937
        %v8939 = vpop.f32.mrf.mxu0
        %v8940 = vadd.f32 %v8926, %v8939
        %8941 = vdwg.mxu0
        %8942 = vmatpush.bf16.msra.mxu0 %v7914
        %8943 = vmatpush.bf16.msra.mxu0 %v7911
        %8944 = vmatpush.bf16.msra.mxu0 %v7908
        %8945 = vmatpush.bf16.msra.mxu0 %v7905
        %8946 = vmatpush.bf16.msra.mxu0 %v7902
        %8947 = vmatpush.bf16.msra.mxu0 %v7899
        %8948 = vmatpush.bf16.msra.mxu0 %v7896
        %8949 = vmatpush.bf16.msra.mxu0 %v7893
        %8950 = vmatmul.bf16.gmra.mxu0 %v5195
        %v8951 = vpop.f32.mrf.mxu0
        %v8952 = vadd.f32 %v8938, %v8951
        %v8953 = vpop.f32.mrf.mxu0
        %v8954 = vadd.f32 %v8940, %v8953
        %8955 = vdwg.mxu0
        %8956 = vmatpush.bf16.msra.mxu0 %v7459
        %8957 = vmatpush.bf16.msra.mxu0 %v7456
        %8958 = vmatpush.bf16.msra.mxu0 %v7453
        %8959 = vmatpush.bf16.msra.mxu0 %v7450
        %8960 = vmatpush.bf16.msra.mxu0 %v7447
        %8961 = vmatpush.bf16.msra.mxu0 %v7444
        %8962 = vmatpush.bf16.msra.mxu0 %v7441
        %8963 = vmatpush.bf16.msra.mxu0 %v7438
        %8964 = vmatmul.bf16.gmra.mxu0 %v5176
        %v8965 = vpop.f32.mrf.mxu0
        %v8966 = vadd.f32 0.0, %v8965
        %v8967 = vpop.f32.mrf.mxu0
        %v8968 = vadd.f32 0.0, %v8967
        %8969 = vdwg.mxu0
        %8970 = vmatpush.bf16.msra.mxu0 %v7483
        %8971 = vmatpush.bf16.msra.mxu0 %v7480
        %8972 = vmatpush.bf16.msra.mxu0 %v7477
        %8973 = vmatpush.bf16.msra.mxu0 %v7474
        %8974 = vmatpush.bf16.msra.mxu0 %v7471
        %8975 = vmatpush.bf16.msra.mxu0 %v7468
        %8976 = vmatpush.bf16.msra.mxu0 %v7465
        %8977 = vmatpush.bf16.msra.mxu0 %v7462
        %8978 = vmatmul.bf16.gmra.mxu0 %v5177
        %v8979 = vpop.f32.mrf.mxu0
        %v8980 = vadd.f32 %v8966, %v8979
        %v8981 = vpop.f32.mrf.mxu0
        %v8982 = vadd.f32 %v8968, %v8981
        %8983 = vdwg.mxu0
        %8984 = vmatpush.bf16.msra.mxu0 %v7507
        %8985 = vmatpush.bf16.msra.mxu0 %v7504
        %8986 = vmatpush.bf16.msra.mxu0 %v7501
        %8987 = vmatpush.bf16.msra.mxu0 %v7498
        %8988 = vmatpush.bf16.msra.mxu0 %v7495
        %8989 = vmatpush.bf16.msra.mxu0 %v7492
        %8990 = vmatpush.bf16.msra.mxu0 %v7489
        %8991 = vmatpush.bf16.msra.mxu0 %v7486
        %8992 = vmatmul.bf16.gmra.mxu0 %v5178
        %v8993 = vpop.f32.mrf.mxu0
        %v8994 = vadd.f32 %v8980, %v8993
        %v8995 = vpop.f32.mrf.mxu0
        %v8996 = vadd.f32 %v8982, %v8995
        %8997 = vdwg.mxu0
        %8998 = vmatpush.bf16.msra.mxu0 %v7531
        %8999 = vmatpush.bf16.msra.mxu0 %v7528
        %9000 = vmatpush.bf16.msra.mxu0 %v7525
        %9001 = vmatpush.bf16.msra.mxu0 %v7522
        %9002 = vmatpush.bf16.msra.mxu0 %v7519
        %9003 = vmatpush.bf16.msra.mxu0 %v7516
        %9004 = vmatpush.bf16.msra.mxu0 %v7513
        %9005 = vmatpush.bf16.msra.mxu0 %v7510
        %9006 = vmatmul.bf16.gmra.mxu0 %v5179
        %v9007 = vpop.f32.mrf.mxu0
        %v9008 = vadd.f32 %v8994, %v9007
        %v9009 = vpop.f32.mrf.mxu0
        %v9010 = vadd.f32 %v8996, %v9009
        %9011 = vdwg.mxu0
        %9012 = vmatpush.bf16.msra.mxu0 %v7555
        %9013 = vmatpush.bf16.msra.mxu0 %v7552
        %9014 = vmatpush.bf16.msra.mxu0 %v7549
        %9015 = vmatpush.bf16.msra.mxu0 %v7546
        %9016 = vmatpush.bf16.msra.mxu0 %v7543
        %9017 = vmatpush.bf16.msra.mxu0 %v7540
        %9018 = vmatpush.bf16.msra.mxu0 %v7537
        %9019 = vmatpush.bf16.msra.mxu0 %v7534
        %9020 = vmatmul.bf16.gmra.mxu0 %v5180
        %v9021 = vpop.f32.mrf.mxu0
        %v9022 = vadd.f32 %v9008, %v9021
        %v9023 = vpop.f32.mrf.mxu0
        %v9024 = vadd.f32 %v9010, %v9023
        %9025 = vdwg.mxu0
        %9026 = vmatpush.bf16.msra.mxu0 %v7579
        %9027 = vmatpush.bf16.msra.mxu0 %v7576
        %9028 = vmatpush.bf16.msra.mxu0 %v7573
        %9029 = vmatpush.bf16.msra.mxu0 %v7570
        %9030 = vmatpush.bf16.msra.mxu0 %v7567
        %9031 = vmatpush.bf16.msra.mxu0 %v7564
        %9032 = vmatpush.bf16.msra.mxu0 %v7561
        %9033 = vmatpush.bf16.msra.mxu0 %v7558
        %9034 = vmatmul.bf16.gmra.mxu0 %v5181
        %v9035 = vpop.f32.mrf.mxu0
        %v9036 = vadd.f32 %v9022, %v9035
        %v9037 = vpop.f32.mrf.mxu0
        %v9038 = vadd.f32 %v9024, %v9037
        %9039 = vdwg.mxu0
        %9040 = vmatpush.bf16.msra.mxu0 %v7603
        %9041 = vmatpush.bf16.msra.mxu0 %v7600
        %9042 = vmatpush.bf16.msra.mxu0 %v7597
        %9043 = vmatpush.bf16.msra.mxu0 %v7594
        %9044 = vmatpush.bf16.msra.mxu0 %v7591
        %9045 = vmatpush.bf16.msra.mxu0 %v7588
        %9046 = vmatpush.bf16.msra.mxu0 %v7585
        %9047 = vmatpush.bf16.msra.mxu0 %v7582
        %9048 = vmatmul.bf16.gmra.mxu0 %v5182
        %v9049 = vpop.f32.mrf.mxu0
        %v9050 = vadd.f32 %v9036, %v9049
        %v9051 = vpop.f32.mrf.mxu0
        %v9052 = vadd.f32 %v9038, %v9051
        %9053 = vdwg.mxu0
        %9054 = vmatpush.bf16.msra.mxu0 %v7627
        %9055 = vmatpush.bf16.msra.mxu0 %v7624
        %9056 = vmatpush.bf16.msra.mxu0 %v7621
        %9057 = vmatpush.bf16.msra.mxu0 %v7618
        %9058 = vmatpush.bf16.msra.mxu0 %v7615
        %9059 = vmatpush.bf16.msra.mxu0 %v7612
        %9060 = vmatpush.bf16.msra.mxu0 %v7609
        %9061 = vmatpush.bf16.msra.mxu0 %v7606
        %9062 = vmatmul.bf16.gmra.mxu0 %v5183
        %v9063 = vpop.f32.mrf.mxu0
        %v9064 = vadd.f32 %v9050, %v9063
        %v9065 = vpop.f32.mrf.mxu0
        %v9066 = vadd.f32 %v9052, %v9065
        %9067 = vdwg.mxu0
        %9068 = vmatpush.bf16.msra.mxu0 %v7651
        %9069 = vmatpush.bf16.msra.mxu0 %v7648
        %9070 = vmatpush.bf16.msra.mxu0 %v7645
        %9071 = vmatpush.bf16.msra.mxu0 %v7642
        %9072 = vmatpush.bf16.msra.mxu0 %v7639
        %9073 = vmatpush.bf16.msra.mxu0 %v7636
        %9074 = vmatpush.bf16.msra.mxu0 %v7633
        %9075 = vmatpush.bf16.msra.mxu0 %v7630
        %9076 = vmatmul.bf16.gmra.mxu0 %v5184
        %v9077 = vpop.f32.mrf.mxu0
        %v9078 = vadd.f32 %v9064, %v9077
        %v9079 = vpop.f32.mrf.mxu0
        %v9080 = vadd.f32 %v9066, %v9079
        %9081 = vdwg.mxu0
        %9082 = vmatpush.bf16.msra.mxu0 %v7675
        %9083 = vmatpush.bf16.msra.mxu0 %v7672
        %9084 = vmatpush.bf16.msra.mxu0 %v7669
        %9085 = vmatpush.bf16.msra.mxu0 %v7666
        %9086 = vmatpush.bf16.msra.mxu0 %v7663
        %9087 = vmatpush.bf16.msra.mxu0 %v7660
        %9088 = vmatpush.bf16.msra.mxu0 %v7657
        %9089 = vmatpush.bf16.msra.mxu0 %v7654
        %9090 = vmatmul.bf16.gmra.mxu0 %v5185
        %v9091 = vpop.f32.mrf.mxu0
        %v9092 = vadd.f32 %v9078, %v9091
        %v9093 = vpop.f32.mrf.mxu0
        %v9094 = vadd.f32 %v9080, %v9093
        %9095 = vdwg.mxu0
        %9096 = vmatpush.bf16.msra.mxu0 %v7699
        %9097 = vmatpush.bf16.msra.mxu0 %v7696
        %9098 = vmatpush.bf16.msra.mxu0 %v7693
        %9099 = vmatpush.bf16.msra.mxu0 %v7690
        %9100 = vmatpush.bf16.msra.mxu0 %v7687
        %9101 = vmatpush.bf16.msra.mxu0 %v7684
        %9102 = vmatpush.bf16.msra.mxu0 %v7681
        %9103 = vmatpush.bf16.msra.mxu0 %v7678
        %9104 = vmatmul.bf16.gmra.mxu0 %v5186
        %v9105 = vpop.f32.mrf.mxu0
        %v9106 = vadd.f32 %v9092, %v9105
        %v9107 = vpop.f32.mrf.mxu0
        %v9108 = vadd.f32 %v9094, %v9107
        %9109 = vdwg.mxu0
        %9110 = vmatpush.bf16.msra.mxu0 %v7723
        %9111 = vmatpush.bf16.msra.mxu0 %v7720
        %9112 = vmatpush.bf16.msra.mxu0 %v7717
        %9113 = vmatpush.bf16.msra.mxu0 %v7714
        %9114 = vmatpush.bf16.msra.mxu0 %v7711
        %9115 = vmatpush.bf16.msra.mxu0 %v7708
        %9116 = vmatpush.bf16.msra.mxu0 %v7705
        %9117 = vmatpush.bf16.msra.mxu0 %v7702
        %9118 = vmatmul.bf16.gmra.mxu0 %v5187
        %v9119 = vpop.f32.mrf.mxu0
        %v9120 = vadd.f32 %v9106, %v9119
        %v9121 = vpop.f32.mrf.mxu0
        %v9122 = vadd.f32 %v9108, %v9121
        %9123 = vdwg.mxu0
        %9124 = vmatpush.bf16.msra.mxu0 %v7747
        %9125 = vmatpush.bf16.msra.mxu0 %v7744
        %9126 = vmatpush.bf16.msra.mxu0 %v7741
        %9127 = vmatpush.bf16.msra.mxu0 %v7738
        %9128 = vmatpush.bf16.msra.mxu0 %v7735
        %9129 = vmatpush.bf16.msra.mxu0 %v7732
        %9130 = vmatpush.bf16.msra.mxu0 %v7729
        %9131 = vmatpush.bf16.msra.mxu0 %v7726
        %9132 = vmatmul.bf16.gmra.mxu0 %v5188
        %v9133 = vpop.f32.mrf.mxu0
        %v9134 = vadd.f32 %v9120, %v9133
        %v9135 = vpop.f32.mrf.mxu0
        %v9136 = vadd.f32 %v9122, %v9135
        %9137 = vdwg.mxu0
        %9138 = vmatpush.bf16.msra.mxu0 %v7771
        %9139 = vmatpush.bf16.msra.mxu0 %v7768
        %9140 = vmatpush.bf16.msra.mxu0 %v7765
        %9141 = vmatpush.bf16.msra.mxu0 %v7762
        %9142 = vmatpush.bf16.msra.mxu0 %v7759
        %9143 = vmatpush.bf16.msra.mxu0 %v7756
        %9144 = vmatpush.bf16.msra.mxu0 %v7753
        %9145 = vmatpush.bf16.msra.mxu0 %v7750
        %9146 = vmatmul.bf16.gmra.mxu0 %v5189
        %v9147 = vpop.f32.mrf.mxu0
        %v9148 = vadd.f32 %v9134, %v9147
        %v9149 = vpop.f32.mrf.mxu0
        %v9150 = vadd.f32 %v9136, %v9149
        %9151 = vdwg.mxu0
        %9152 = vmatpush.bf16.msra.mxu0 %v7795
        %9153 = vmatpush.bf16.msra.mxu0 %v7792
        %9154 = vmatpush.bf16.msra.mxu0 %v7789
        %9155 = vmatpush.bf16.msra.mxu0 %v7786
        %9156 = vmatpush.bf16.msra.mxu0 %v7783
        %9157 = vmatpush.bf16.msra.mxu0 %v7780
        %9158 = vmatpush.bf16.msra.mxu0 %v7777
        %9159 = vmatpush.bf16.msra.mxu0 %v7774
        %9160 = vmatmul.bf16.gmra.mxu0 %v5190
        %v9161 = vpop.f32.mrf.mxu0
        %v9162 = vadd.f32 %v9148, %v9161
        %v9163 = vpop.f32.mrf.mxu0
        %v9164 = vadd.f32 %v9150, %v9163
        %9165 = vdwg.mxu0
        %9166 = vmatpush.bf16.msra.mxu0 %v7819
        %9167 = vmatpush.bf16.msra.mxu0 %v7816
        %9168 = vmatpush.bf16.msra.mxu0 %v7813
        %9169 = vmatpush.bf16.msra.mxu0 %v7810
        %9170 = vmatpush.bf16.msra.mxu0 %v7807
        %9171 = vmatpush.bf16.msra.mxu0 %v7804
        %9172 = vmatpush.bf16.msra.mxu0 %v7801
        %9173 = vmatpush.bf16.msra.mxu0 %v7798
        %9174 = vmatmul.bf16.gmra.mxu0 %v5191
        %v9175 = vpop.f32.mrf.mxu0
        %v9176 = vadd.f32 %v9162, %v9175
        %v9177 = vpop.f32.mrf.mxu0
        %v9178 = vadd.f32 %v9164, %v9177
        %9179 = vdwg.mxu0
        %9180 = vmatpush.bf16.msra.mxu0 %v7843
        %9181 = vmatpush.bf16.msra.mxu0 %v7840
        %9182 = vmatpush.bf16.msra.mxu0 %v7837
        %9183 = vmatpush.bf16.msra.mxu0 %v7834
        %9184 = vmatpush.bf16.msra.mxu0 %v7831
        %9185 = vmatpush.bf16.msra.mxu0 %v7828
        %9186 = vmatpush.bf16.msra.mxu0 %v7825
        %9187 = vmatpush.bf16.msra.mxu0 %v7822
        %9188 = vmatmul.bf16.gmra.mxu0 %v5192
        %v9189 = vpop.f32.mrf.mxu0
        %v9190 = vadd.f32 %v9176, %v9189
        %v9191 = vpop.f32.mrf.mxu0
        %v9192 = vadd.f32 %v9178, %v9191
        %9193 = vdwg.mxu0
        %9194 = vmatpush.bf16.msra.mxu0 %v7867
        %9195 = vmatpush.bf16.msra.mxu0 %v7864
        %9196 = vmatpush.bf16.msra.mxu0 %v7861
        %9197 = vmatpush.bf16.msra.mxu0 %v7858
        %9198 = vmatpush.bf16.msra.mxu0 %v7855
        %9199 = vmatpush.bf16.msra.mxu0 %v7852
        %9200 = vmatpush.bf16.msra.mxu0 %v7849
        %9201 = vmatpush.bf16.msra.mxu0 %v7846
        %9202 = vmatmul.bf16.gmra.mxu0 %v5193
        %v9203 = vpop.f32.mrf.mxu0
        %v9204 = vadd.f32 %v9190, %v9203
        %v9205 = vpop.f32.mrf.mxu0
        %v9206 = vadd.f32 %v9192, %v9205
        %9207 = vdwg.mxu0
        %9208 = vmatpush.bf16.msra.mxu0 %v7891
        %9209 = vmatpush.bf16.msra.mxu0 %v7888
        %9210 = vmatpush.bf16.msra.mxu0 %v7885
        %9211 = vmatpush.bf16.msra.mxu0 %v7882
        %9212 = vmatpush.bf16.msra.mxu0 %v7879
        %9213 = vmatpush.bf16.msra.mxu0 %v7876
        %9214 = vmatpush.bf16.msra.mxu0 %v7873
        %9215 = vmatpush.bf16.msra.mxu0 %v7870
        %9216 = vmatmul.bf16.gmra.mxu0 %v5194
        %v9217 = vpop.f32.mrf.mxu0
        %v9218 = vadd.f32 %v9204, %v9217
        %v9219 = vpop.f32.mrf.mxu0
        %v9220 = vadd.f32 %v9206, %v9219
        %9221 = vdwg.mxu0
        %9222 = vmatpush.bf16.msra.mxu0 %v7915
        %9223 = vmatpush.bf16.msra.mxu0 %v7912
        %9224 = vmatpush.bf16.msra.mxu0 %v7909
        %9225 = vmatpush.bf16.msra.mxu0 %v7906
        %9226 = vmatpush.bf16.msra.mxu0 %v7903
        %9227 = vmatpush.bf16.msra.mxu0 %v7900
        %9228 = vmatpush.bf16.msra.mxu0 %v7897
        %9229 = vmatpush.bf16.msra.mxu0 %v7894
        %9230 = vmatmul.bf16.gmra.mxu0 %v5195
        %v9231 = vpop.f32.mrf.mxu0
        %v9232 = vadd.f32 %v9218, %v9231
        %v9233 = vpop.f32.mrf.mxu0
        %v9234 = vadd.f32 %v9220, %v9233
        %9235 = vdwg.mxu0
        %v9236 = vld [vmem:[#allocation3] sm:$0xff]
        %v9237 = vld [vmem:[#allocation3 + $0x8] sm:$0xff]
        %v9238 = vld [vmem:[#allocation3 + $0x10] sm:$0xff]
        %v9239 = vld [vmem:[#allocation3 + $0x18] sm:$0xff]
        %v9240 = vld [vmem:[#allocation3 + $0x20] sm:$0xff]
        %v9241 = vld [vmem:[#allocation3 + $0x28] sm:$0xff]
        %v9242 = vadd.f32 %v9236, %v8672
        %v9243 = vadd.f32 %v9237, %v8952
        %v9244 = vadd.f32 %v9238, %v9232
        %v9245 = vadd.f32 %v9239, %v8674
        %v9246 = vadd.f32 %v9240, %v8954
        %v9247 = vadd.f32 %v9241, %v9234
        %v9248 = vadd.f32 %v9242, %v916
        %v9249 = vadd.f32 %v9243, %v939
        %v9250 = vadd.f32 %v9244, %v962
        %v9251 = vadd.f32 %v9245, %v919
        %v9252 = vadd.f32 %v9246, %v942
        %v9253 = vadd.f32 %v9247, %v965
        %9254 = vst [vmem:[#allocation3] sm:$0xff] %v9248
        %9255 = vst [vmem:[#allocation3 + $0x8] sm:$0xff] %v9249
        %9256 = vst.msk [vmem:[#allocation3 + $0x10] sm:$0xff] %vm3932, %v9250
        %9257 = vst [vmem:[#allocation3 + $0x18] sm:$0xff] %v9251
        %9258 = vst [vmem:[#allocation3 + $0x20] sm:$0xff] %v9252
        %9259 = vst.msk [vmem:[#allocation3 + $0x28] sm:$0xff] %vm3932, %v9253
        // Predicated region
        $region65: #{moe_forward.1} parent=59 // pred_check
          %p9260 = pneg %p307
        $region66: #{moe_forward.1} parent=59 // pred_check_branch
          %9262 = sbr.rel (%p9260) target = $region68
        $region67: #{moe_forward.1} parent=59 // pred_region
          %9264 = vsyncadd [#allocation4], 0
          %s9265 = smul.addr %s26, 6
          %s9266 = smul.addr %s9265, 8
          %s9267 = scalar_lea.hbm %s10, %s9266
          %s9268 = sshll.u32 [#allocation3], 4
          %s9269 = int_to_ptr.vmem [resolvable:$true] %s9268
          %s9270 = sshll.u32 %s9267, 4
          %s9271 = int_to_ptr.hbm [resolvable:$true] %s9270
          %9276 = dma.vmem_to_hbm [thread:$0]  %s9269, 768, %s9271, [#allocation4], 384, 384, 24
        $region68: #{moe_forward.1} parent=59 // pred_fallthru
          _
        // Predicated region
        $region69: #{moe_forward.1} parent=59 // pred_check
          %p9277 = pneg %p307
        $region70: #{moe_forward.1} parent=59 // pred_check_branch
          %9279 = sbr.rel (%p9277) target = $region72
        $region71: #{moe_forward.1} parent=59 // pred_region
          %9281 = dma.done [#allocation4], 768
        $region72: #{moe_forward.1} parent=59 // pred_fallthru
          _
      $region60: #{moe_forward.1} parent=5 // pred_fallthru
        _
      %p9282 = scmp.le.s32.totalorder 2, %s17
      // Predicated region
      $region73: #{moe_forward.1} parent=5 // pred_check
        %p9283 = pneg %p9282
      $region74: #{moe_forward.1} parent=5 // pred_check_branch
        %9285 = sbr.rel (%p9283) target = $region76
      $region75: #{moe_forward.1} parent=5 // pred_region
        %s9286 = ssub.s32 %s17, 2
      $region76: #{moe_forward.1} parent=5 // pred_fallthru
        _
    $region6: #{moe_forward.1} parent=1 // loop_footer
      %s21 = sadd.s32 1, %s17
    $region7: #{moe_forward.1} parent=1 // loop_footer_branch
      %16 = sbr.rel target = $region3
    $region8: #{moe_forward.1} parent=1 // loop_exit
      _
    %9287 = vsyncpa [#allocation4], 1
    %s9288 = scalar_lea.sflag [#allocation4], 1
    %9289 = vsyncpa %s9288, 1

</llo_original>
